<compile_context>
chip_gen: v6e
topology: v6e:2x2x1
jax: 0.10.0
libtpu: 0.0.40
codegen_flags: <defaults>
</compile_context>

<pallas_src>
import functools

import jax
import jax.numpy as jnp
from jax.experimental import pallas as pl
from jax.experimental.pallas import tpu as pltpu


# ----------------------------------------------------------------------------
# helpers
# ----------------------------------------------------------------------------
_LANE = 128
_SUBLANE = 8


def _round_up(x, m):
    return ((x + m - 1) // m) * m


def _vmem_limit_bytes():
    """Scoped-VMEM budget derived from the actual chip (v7x only has 64 MiB
    physical VMEM); conservative 32 MiB fallback if the query fails."""
    try:
        cap = getattr(pltpu.get_tpu_info(), "vmem_capacity_bytes", None)
        if cap:
            return int(min(cap // 2, 64 * 1024 * 1024))
    except Exception:
        pass
    return 32 * 1024 * 1024


_VMEM_LIMIT = _vmem_limit_bytes()


# ----------------------------------------------------------------------------
# Pallas kernels
# ----------------------------------------------------------------------------
def _mm_kernel(a_ref, w_ref, b_ref, o_ref, acc_ref, *, relu):
    """(block_m, block_k) x (block_k, block_n) MXU tile with an f32 VMEM
    accumulator.  A is consumed in its stored dtype (f32 or bf16) and cast to
    bf16 on the fly (no XLA-side pad/cast pass over the activations); the
    bias + optional ReLU epilogue stays f32; the lane-dense (block_n % 128
    == 0) unmasked store narrows to o_ref.dtype (bf16 for intermediates)."""

    @pl.when(pl.program_id(2) == 0)
    def _():
        acc_ref[...] = jnp.zeros_like(acc_ref)

    acc_ref[...] += jnp.dot(a_ref[...].astype(jnp.bfloat16), w_ref[...],
                            preferred_element_type=jnp.float32)

    @pl.when(pl.program_id(2) == pl.num_programs(2) - 1)
    def _():
        out = acc_ref[...] + b_ref[...]
        if relu:
            out = jnp.maximum(out, 0.0)
        o_ref[...] = out.astype(o_ref.dtype)


def pallas_linear(a, w, b=None, relu=False, out_dtype=jnp.float32,
                  max_block_m=1024, max_block_n=512, max_block_k=2048):
    """act(a @ w + b): a (M, K) f32/bf16, w (K, N) f32 -> (M, N) out_dtype.

    * grid over (M, N, K): M/N "parallel" (v7x megacore), K "arbitrary" with
      an f32 VMEM accumulator (K stays a single whole block at DiMP-toy sizes
      so no extra padding/DMA happens, but the kernel scales to real channel
      counts without re-tuning);
    * A goes in as-is (cast to bf16 inside the kernel); only weights/bias are
      padded + cast in XLA (tiny, parameter-side);
    * N padded to a multiple of 128 -> unmasked lane-dense stores (v5e has a
      single vector-store slot); padding sliced off outside when present.
    """
    M, K = a.shape
    Kw, N = w.shape
    assert K == Kw, (K, Kw)

    # N tiling (lane dense)
    n128 = _round_up(N, _LANE)
    gn = -(-n128 // max_block_n)
    block_n = _round_up(-(-n128 // gn), _LANE)
    n_pad = block_n * gn

    # M tiling (sublane aligned; conv GEMMs are already exact multiples)
    m8 = _round_up(M, _SUBLANE)
    gm = -(-m8 // max_block_m)
    block_m = _round_up(-(-m8 // gm), _SUBLANE)
    m_pad = block_m * gm

    # K tiling (whole for DiMP-sized contractions)
    if K <= max_block_k:
        block_k, k_pad = K, K
    else:
        block_k = max_block_k
        k_pad = _round_up(K, block_k)
    gk = k_pad // block_k

    a_p = a
    if (m_pad, k_pad) != (M, K):
        a_p = jnp.pad(a, ((0, m_pad - M), (0, k_pad - K)))
    w_p = jnp.pad(w.astype(jnp.bfloat16), ((0, k_pad - K), (0, n_pad - N)))
    if b is None:
        b_p = jnp.zeros((1, n_pad), jnp.float32)
    else:
        b_p = jnp.pad(b.reshape(1, N).astype(jnp.float32),
                      ((0, 0), (0, n_pad - N)))

    out = pl.pallas_call(
        functools.partial(_mm_kernel, relu=relu),
        out_shape=jax.ShapeDtypeStruct((m_pad, n_pad), out_dtype),
        grid=(gm, gn, gk),
        in_specs=[
            pl.BlockSpec((block_m, block_k), lambda i, j, k: (i, k)),
            pl.BlockSpec((block_k, block_n), lambda i, j, k: (k, j)),
            pl.BlockSpec((1, block_n), lambda i, j, k: (0, j)),
        ],
        out_specs=pl.BlockSpec((block_m, block_n), lambda i, j, k: (i, j)),
        scratch_shapes=[pltpu.VMEM((block_m, block_n), jnp.float32)],
        compiler_params=pltpu.CompilerParams(
            dimension_semantics=("parallel", "parallel", "arbitrary"),
            vmem_limit_bytes=_VMEM_LIMIT,
        ),
    )(a_p, w_p, b_p)
    if (m_pad, n_pad) != (M, N):
        out = out[:M, :N]
    return out


def _gap_kernel(*refs):
    """Global average pool of several (B, HW, C) stacks in one launch:
    in-kernel f32 sum over the HW (sublane) axis * 1/HW (XLU reduce slot)."""
    n = len(refs) // 2
    for x_ref, o_ref in zip(refs[:n], refs[n:]):
        x = x_ref[...].astype(jnp.float32)
        o_ref[...] = jnp.sum(x, axis=1) * (1.0 / x.shape[1])


def pallas_gap(xs):
    """Fused global average pool: list of (B_i, H_i, W_i, C_i) NHWC feature
    maps -> list of (B_i, C_i) f32 pooled vectors in ONE pallas_call."""
    flats = [x.reshape(x.shape[0], x.shape[1] * x.shape[2], x.shape[3])
             for x in xs]
    out_shape = tuple(jax.ShapeDtypeStruct((f.shape[0], f.shape[2]),
                                           jnp.float32) for f in flats)
    outs = pl.pallas_call(
        _gap_kernel,
        out_shape=out_shape,
        grid=(1,),
        in_specs=[pl.BlockSpec(f.shape, lambda i: (0, 0, 0)) for f in flats],
        out_specs=tuple(pl.BlockSpec(s.shape, lambda i: (0, 0))
                        for s in out_shape),
        compiler_params=pltpu.CompilerParams(
            dimension_semantics=("arbitrary",),
            vmem_limit_bytes=_VMEM_LIMIT,
        ),
    )(*flats)
    return list(outs)


# ----------------------------------------------------------------------------
# JAX glue: channels-last im2col + conv wrapper (GEMM runs in Pallas)
# ----------------------------------------------------------------------------
def _im2col_nhwc(x, k, stride, pad):
    """Channels-last im2col: (B, H, W, C) -> (B*Ho*Wo, k*k*C)."""
    # TODO(synk): fold this patch gather into the GEMM kernel (DMA a rows+halo
    # slab per M-tile from an ANY-space HBM ref) to remove the ~k^2 read
    # amplification; kept XLA-side here because strided in-register patch
    # extraction has no robust Mosaic lowering at these layouts.  Its cost is
    # already halved by the bf16 intermediate activations.
    B, H, W, C = x.shape
    xp = jnp.pad(x, ((0, 0), (pad, pad), (pad, pad), (0, 0)))
    Ho = (H + 2 * pad - k) // stride + 1
    Wo = (W + 2 * pad - k) // stride + 1
    cols = []
    for i in range(k):
        for j in range(k):
            cols.append(xp[:, i:i + stride * (Ho - 1) + 1:stride,
                           j:j + stride * (Wo - 1) + 1:stride, :])
    patches = jnp.stack(cols, axis=3).reshape(B * Ho * Wo, k * k * C)
    return patches, Ho, Wo


def conv2d(x, w, b, stride, relu, out_dtype=jnp.bfloat16):
    """x: (B, H, W, C) channels-last; w: (Cout, Cin, k, k) (PyTorch layout).
    Output stays channels-last; intermediate activations are stored bf16."""
    Cout, Cin, k, _ = w.shape
    pad = k // 2
    patches, Ho, Wo = _im2col_nhwc(x, k, stride, pad)
    wm = w.transpose(2, 3, 1, 0).reshape(k * k * Cin, Cout)
    y = pallas_linear(patches, wm, b, relu=relu, out_dtype=out_dtype)
    return y.reshape(x.shape[0], Ho, Wo, Cout)


# ----------------------------------------------------------------------------
# Synthetic DiMPnet
# ----------------------------------------------------------------------------
C2, C3, CF, DMOD = 8, 16, 16, 32


def init_params(key):
    ks = jax.random.split(key, 7)

    def norm(k, shape, fan_in):
        return jax.random.normal(k, shape, jnp.float32) / jnp.sqrt(float(fan_in))

    return {
        # backbone
        "conv1_w": norm(ks[0], (C2, 3, 3, 3), 3 * 9),
        "conv1_b": jnp.zeros((C2,), jnp.float32),
        "conv2_w": norm(ks[1], (C3, C2, 3, 3), C2 * 9),
        "conv2_b": jnp.zeros((C3,), jnp.float32),
        # classifier
        "clf_w": norm(ks[2], (CF, C3, 3, 3), C3 * 9),
        "clf_b": jnp.zeros((CF,), jnp.float32),
        "filt_w": norm(ks[3], (CF + 4, CF), CF + 4),
        "filt_b": jnp.zeros((CF,), jnp.float32),
        # bb regressor
        "mod_w": norm(ks[4], (C2 + C3 + 4, DMOD), C2 + C3 + 4),
        "mod_b": jnp.zeros((DMOD,), jnp.float32),
        "te_w": norm(ks[5], (C2 + C3, DMOD), C2 + C3),
        "te_b": jnp.zeros((DMOD,), jnp.float32),
        "iou_w": norm(ks[6], (DMOD + 4, 1), DMOD + 4),
        "iou_b": jnp.zeros((1,), jnp.float32),
    }


def extract_backbone(params, imgs_nhwc):
    """imgs: (B, H, W, 3) channels-last -> dict of NHWC (bf16) feature maps."""
    layer2 = conv2d(imgs_nhwc, params["conv1_w"], params["conv1_b"],
                    stride=2, relu=True)
    layer3 = conv2d(layer2, params["conv2_w"], params["conv2_b"],
                    stride=2, relu=True)
    return {"layer2": layer2, "layer3": layer3}


def dimpnet_forward(params, train_imgs, test_imgs, train_bb, test_proposals):
    """Mirrors DiMPnet.forward semantics:
       train_imgs: (n_train, n_seq, 3, H, W), test_imgs: (n_test, n_seq, 3, H, W)
       train_bb:   (n_train, n_seq, 4), test_proposals: (n_test, n_seq, n_prop, 4)
       returns (target_scores, iou_pred)."""
    assert train_imgs.ndim == 5 and test_imgs.ndim == 5, "Expect 5 dimensional inputs"
    n_tr, n_seq = train_imgs.shape[:2]
    n_te = test_imgs.shape[0]
    n_btr = n_tr * n_seq
    n_prop = test_proposals.shape[2]

    # One backbone pass over the concatenated train+test batch, single
    # NCHW -> NHWC transpose at entry; activations stay channels-last bf16.
    tr_flat = train_imgs.reshape(-1, *train_imgs.shape[-3:])
    te_flat = test_imgs.reshape(-1, *test_imgs.shape[-3:])
    imgs = jnp.concatenate([tr_flat, te_flat], axis=0).transpose(0, 2, 3, 1)
    feat = extract_backbone(params, imgs)
    l2, l3 = feat["layer2"], feat["layer3"]

    # ----- classifier feature conv -----
    clf_all = conv2d(l3, params["clf_w"], params["clf_b"], stride=1, relu=True)
    Hf, Wf, Cf = clf_all.shape[1:]
    HWf = Hf * Wf

    # ----- fused global average pooling (one launch, in-kernel f32 reduce) --
    l2_pool, l3_pool, clf_tr_pool = pallas_gap([l2, l3, clf_all[:n_btr]])

    bb_mean = train_bb.mean(axis=0)                                    # (n_seq, 4)
    tr_clf_vec = clf_tr_pool.reshape(n_tr, n_seq, Cf).mean(axis=0)     # (n_seq, CF)
    pool_all = jnp.concatenate([l2_pool, l3_pool], axis=-1)            # (B, C2+C3)
    tr_vec = pool_all[:n_btr].reshape(n_tr, n_seq, -1).mean(axis=0)    # (n_seq, C2+C3)
    te_vec = pool_all[n_btr:]                                          # (n_te*n_seq, C2+C3)

    # ----- heads GEMM: filter predictor + bb modulation + test embedding ----
    # fused into ONE block-diagonal MXU GEMM (3 tiny launches -> 1)
    in_fm = jnp.concatenate([tr_clf_vec, bb_mean, tr_vec, bb_mean], axis=-1)
    a_heads = jax.scipy.linalg.block_diag(in_fm, te_vec)
    w_heads = jax.scipy.linalg.block_diag(params["filt_w"], params["mod_w"],
                                          params["te_w"])
    b_heads = jnp.concatenate([params["filt_b"], params["mod_b"], params["te_b"]])
    heads = pallas_linear(a_heads, w_heads, b_heads, relu=True)
    filt = heads[:n_seq, :CF]                                          # (n_seq, CF)
    mod = heads[:n_seq, CF:CF + DMOD]                                  # (n_seq, DMOD)
    te_emb = heads[n_seq:, CF + DMOD:].reshape(n_te, n_seq, DMOD)      # (n_te, n_seq, DMOD)

    # ----- correlation + IoU head fused into ONE block-diagonal GEMM --------
    te_clf = clf_all[n_btr:].reshape(n_te, n_seq, HWf, Cf)
    featstack = te_clf.transpose(1, 3, 0, 2).reshape(n_seq * Cf, n_te * HWf)

    corr_a = jnp.einsum("st,sc->stc", jnp.eye(n_seq, dtype=filt.dtype), filt)
    corr_a = corr_a.reshape(n_seq, n_seq * Cf)          # block-diag filters
    modte = (mod[None, :, :] * te_emb).reshape(n_te * n_seq, DMOD)
    prop_flat = test_proposals.reshape(-1, 4)
    w_d, w_p = params["iou_w"][:DMOD], params["iou_w"][DMOD:]

    a_tail = jax.scipy.linalg.block_diag(corr_a, modte, prop_flat)
    w_tail = jax.scipy.linalg.block_diag(featstack.astype(jnp.float32), w_d, w_p)
    tail = pallas_linear(a_tail, w_tail, b=None, relu=False)

    P = n_te * HWf
    scores = tail[:n_seq, :P]                                          # (n_seq, n_te*HWf)
    target_scores = scores.reshape(n_seq, n_te, Hf, Wf).transpose(1, 0, 2, 3)

    r0, r1 = n_seq, n_seq + n_te * n_seq
    iou_const = tail[r0:r1, P].reshape(n_te, n_seq, 1)                 # (mod*te_emb)@w_d
    iou_prop = tail[r1:, P + 1].reshape(n_te, n_seq, n_prop)           # proposals@w_p
    iou_pred = iou_const + iou_prop + params["iou_b"].reshape(1, 1, 1)

    return target_scores, iou_pred


# ----------------------------------------------------------------------------
if __name__ == "__main__":
    key = jax.random.PRNGKey(0)
    k_img1, k_img2, k_bb, k_prop, k_par = jax.random.split(key, 5)

    n_train, n_test, n_seq, H = 2, 2, 2, 32
    n_prop = 8

    train_imgs = jax.random.normal(k_img1, (n_train, n_seq, 3, H, H), jnp.float32)
    test_imgs = jax.random.normal(k_img2, (n_test, n_seq, 3, H, H), jnp.float32)
    train_bb = jax.random.uniform(k_bb, (n_train, n_seq, 4), jnp.float32, 0.0, float(H))
    test_proposals = jax.random.uniform(k_prop, (n_test, n_seq, n_prop, 4),
                                        jnp.float32, 0.0, float(H))

    params = init_params(k_par)

    fwd = jax.jit(functools.partial(dimpnet_forward, params))
    target_scores, iou_pred = fwd(train_imgs, test_imgs, train_bb, test_proposals)
    jax.block_until_ready((target_scores, iou_pred))

    assert target_scores.shape == (n_test, n_seq, 8, 8), target_scores.shape
    assert iou_pred.shape == (n_test, n_seq, n_prop), iou_pred.shape
    assert jnp.all(jnp.isfinite(target_scores)) and jnp.all(jnp.isfinite(iou_pred))

    print("KERNEL_OK")
</pallas_src>

<mosaic_0001>
module attributes {stable_mosaic.version = 11 : i64} {
  func.func @_mm_kernel(%arg0: i32, %arg1: i32, %arg2: i32, %arg3: memref<1024x27xf32, #tpu.memory_space<vmem>>, %arg4: memref<27x128xbf16, #tpu.memory_space<vmem>>, %arg5: memref<1x128xf32, #tpu.memory_space<vmem>>, %arg6: memref<1024x128xbf16, #tpu.memory_space<vmem>>, %arg7: memref<1024x128xf32, #tpu.memory_space<vmem>>) attributes {dimension_semantics = [#tpu.dimension_semantics<parallel>, #tpu.dimension_semantics<parallel>, #tpu.dimension_semantics<arbitrary>], iteration_bounds = array<i64: 2, 1, 1>, scalar_prefetch = 0 : i64, scratch_operands = 1 : i64, tpu.core_type = #tpu.core_type<tc>, window_params = [{transform_indices = @transform_0, window_bounds = array<i64: 1024, 27>}, {transform_indices = @transform_1, window_bounds = array<i64: 27, 128>}, {transform_indices = @transform_2, window_bounds = array<i64: 1, 128>}, {transform_indices = @transform_3, window_bounds = array<i64: 1024, 128>}]} {
    %c0_i32 = arith.constant 0 : i32
    %0 = arith.cmpi eq, %arg2, %c0_i32 : i32
    %1 = arith.extui %0 : i1 to i32
    %c0_i32_0 = arith.constant 0 : i32
    %2 = arith.cmpi ne, %1, %c0_i32_0 : i32
    scf.if %2 {
      %cst_10 = arith.constant 0.000000e+00 : f32
      %13 = vector.broadcast %cst_10 : f32 to vector<1024x128xf32>
      %c0_11 = arith.constant 0 : index
      %c0_12 = arith.constant 0 : index
      %14 = vector.load %arg7[%c0_11, %c0_12] : memref<1024x128xf32, #tpu.memory_space<vmem>>, vector<1024x128xf32>
      tpu.vector_store %arg7[%c0_11, %c0_12], %13 {strides = array<i32>} : memref<1024x128xf32, #tpu.memory_space<vmem>>, vector<1024x128xf32>,
    } else {
    }
    %c0 = arith.constant 0 : index
    %c0_1 = arith.constant 0 : index
    %3 = vector.load %arg7[%c0, %c0_1] : memref<1024x128xf32, #tpu.memory_space<vmem>>, vector<1024x128xf32>
    %c0_2 = arith.constant 0 : index
    %c0_3 = arith.constant 0 : index
    %4 = vector.load %arg3[%c0_2, %c0_3] : memref<1024x27xf32, #tpu.memory_space<vmem>>, vector<1024x27xf32>
    %5 = arith.truncf %4 : vector<1024x27xf32> to vector<1024x27xbf16>
    %c0_4 = arith.constant 0 : index
    %c0_5 = arith.constant 0 : index
    %6 = vector.load %arg4[%c0_4, %c0_5] : memref<27x128xbf16, #tpu.memory_space<vmem>>, vector<27x128xbf16>
    %cst = arith.constant dense<0.000000e+00> : vector<1024x128xf32>
    %7 = tpu.matmul %5, %6, %cst {dimension_numbers = #tpu.dot_dimension_numbers<[1], [0], [0], [1], [0, 0, 1, 1], [], []>} : vector<1024x27xbf16>, vector<27x128xbf16>, vector<1024x128xf32> -> vector<1024x128xf32>
    %8 = arith.addf %3, %7 : vector<1024x128xf32>
    %c0_6 = arith.constant 0 : index
    %c0_7 = arith.constant 0 : index
    %9 = vector.load %arg7[%c0_6, %c0_7] : memref<1024x128xf32, #tpu.memory_space<vmem>>, vector<1024x128xf32>
    tpu.vector_store %arg7[%c0_6, %c0_7], %8 {strides = array<i32>} : memref<1024x128xf32, #tpu.memory_space<vmem>>, vector<1024x128xf32>,
    %c0_i32_8 = arith.constant 0 : i32
    %10 = arith.cmpi eq, %arg2, %c0_i32_8 : i32
    %11 = arith.extui %10 : i1 to i32
    %c0_i32_9 = arith.constant 0 : i32
    %12 = arith.cmpi ne, %11, %c0_i32_9 : i32
    scf.if %12 {
      %c0_10 = arith.constant 0 : index
      %c0_11 = arith.constant 0 : index
      %13 = vector.load %arg7[%c0_10, %c0_11] : memref<1024x128xf32, #tpu.memory_space<vmem>>, vector<1024x128xf32>
      %c0_12 = arith.constant 0 : index
      %c0_13 = arith.constant 0 : index
      %14 = vector.load %arg5[%c0_12, %c0_13] : memref<1x128xf32, #tpu.memory_space<vmem>>, vector<1x128xf32>
      %15 = vector.broadcast %14 : vector<1x128xf32> to vector<1024x128xf32>
      %16 = arith.addf %13, %15 : vector<1024x128xf32>
      %cst_14 = arith.constant 0.000000e+00 : f32
      %17 = vector.broadcast %cst_14 : f32 to vector<1024x128xf32>
      %18 = arith.maximumf %16, %17 : vector<1024x128xf32>
      %19 = arith.truncf %18 : vector<1024x128xf32> to vector<1024x128xbf16>
      %c0_15 = arith.constant 0 : index
      %c0_16 = arith.constant 0 : index
      %20 = vector.load %arg6[%c0_15, %c0_16] : memref<1024x128xbf16, #tpu.memory_space<vmem>>, vector<1024x128xbf16>
      tpu.vector_store %arg6[%c0_15, %c0_16], %19 {strides = array<i32>} : memref<1024x128xbf16, #tpu.memory_space<vmem>>, vector<1024x128xbf16>,
    } else {
    }
    return
  }
  func.func @transform_0(%arg0: i32, %arg1: i32, %arg2: i32) -> (i32, i32) {
    %c0_i32 = arith.constant 0 : i32
    return %arg0, %arg2 : i32, i32
  }
  func.func @transform_1(%arg0: i32, %arg1: i32, %arg2: i32) -> (i32, i32) {
    %c0_i32 = arith.constant 0 : i32
    return %arg2, %arg1 : i32, i32
  }
  func.func @transform_2(%arg0: i32, %arg1: i32, %arg2: i32) -> (i32, i32) {
    %c0_i32 = arith.constant 0 : i32
    %c0_i32_0 = arith.constant 0 : i32
    return %c0_i32, %arg1 : i32, i32
  }
  func.func @transform_3(%arg0: i32, %arg1: i32, %arg2: i32) -> (i32, i32) {
    %c0_i32 = arith.constant 0 : i32
    return %arg0, %arg1 : i32, i32
  }
}

module attributes {stable_mosaic.version = 11 : i64} {
  func.func @_mm_kernel(%arg0: i32, %arg1: i32, %arg2: i32, %arg3: memref<512x72xbf16, #tpu.memory_space<vmem>>, %arg4: memref<72x128xbf16, #tpu.memory_space<vmem>>, %arg5: memref<1x128xf32, #tpu.memory_space<vmem>>, %arg6: memref<512x128xbf16, #tpu.memory_space<vmem>>, %arg7: memref<512x128xf32, #tpu.memory_space<vmem>>) attributes {dimension_semantics = [#tpu.dimension_semantics<parallel>, #tpu.dimension_semantics<parallel>, #tpu.dimension_semantics<arbitrary>], iteration_bounds = array<i64: 1, 1, 1>, scalar_prefetch = 0 : i64, scratch_operands = 1 : i64, tpu.core_type = #tpu.core_type<tc>, window_params = [{transform_indices = @transform_0, window_bounds = array<i64: 512, 72>}, {transform_indices = @transform_1, window_bounds = array<i64: 72, 128>}, {transform_indices = @transform_2, window_bounds = array<i64: 1, 128>}, {transform_indices = @transform_3, window_bounds = array<i64: 512, 128>}]} {
    %c0_i32 = arith.constant 0 : i32
    %0 = arith.cmpi eq, %arg2, %c0_i32 : i32
    %1 = arith.extui %0 : i1 to i32
    %c0_i32_0 = arith.constant 0 : i32
    %2 = arith.cmpi ne, %1, %c0_i32_0 : i32
    scf.if %2 {
      %cst_10 = arith.constant 0.000000e+00 : f32
      %12 = vector.broadcast %cst_10 : f32 to vector<512x128xf32>
      %c0_11 = arith.constant 0 : index
      %c0_12 = arith.constant 0 : index
      %13 = vector.load %arg7[%c0_11, %c0_12] : memref<512x128xf32, #tpu.memory_space<vmem>>, vector<512x128xf32>
      tpu.vector_store %arg7[%c0_11, %c0_12], %12 {strides = array<i32>} : memref<512x128xf32, #tpu.memory_space<vmem>>, vector<512x128xf32>,
    } else {
    }
    %c0 = arith.constant 0 : index
    %c0_1 = arith.constant 0 : index
    %3 = vector.load %arg7[%c0, %c0_1] : memref<512x128xf32, #tpu.memory_space<vmem>>, vector<512x128xf32>
    %c0_2 = arith.constant 0 : index
    %c0_3 = arith.constant 0 : index
    %4 = vector.load %arg3[%c0_2, %c0_3] : memref<512x72xbf16, #tpu.memory_space<vmem>>, vector<512x72xbf16>
    %c0_4 = arith.constant 0 : index
    %c0_5 = arith.constant 0 : index
    %5 = vector.load %arg4[%c0_4, %c0_5] : memref<72x128xbf16, #tpu.memory_space<vmem>>, vector<72x128xbf16>
    %cst = arith.constant dense<0.000000e+00> : vector<512x128xf32>
    %6 = tpu.matmul %4, %5, %cst {dimension_numbers = #tpu.dot_dimension_numbers<[1], [0], [0], [1], [0, 0, 1, 1], [], []>} : vector<512x72xbf16>, vector<72x128xbf16>, vector<512x128xf32> -> vector<512x128xf32>
    %7 = arith.addf %3, %6 : vector<512x128xf32>
    %c0_6 = arith.constant 0 : index
    %c0_7 = arith.constant 0 : index
    %8 = vector.load %arg7[%c0_6, %c0_7] : memref<512x128xf32, #tpu.memory_space<vmem>>, vector<512x128xf32>
    tpu.vector_store %arg7[%c0_6, %c0_7], %7 {strides = array<i32>} : memref<512x128xf32, #tpu.memory_space<vmem>>, vector<512x128xf32>,
    %c0_i32_8 = arith.constant 0 : i32
    %9 = arith.cmpi eq, %arg2, %c0_i32_8 : i32
    %10 = arith.extui %9 : i1 to i32
    %c0_i32_9 = arith.constant 0 : i32
    %11 = arith.cmpi ne, %10, %c0_i32_9 : i32
    scf.if %11 {
      %c0_10 = arith.constant 0 : index
      %c0_11 = arith.constant 0 : index
      %12 = vector.load %arg7[%c0_10, %c0_11] : memref<512x128xf32, #tpu.memory_space<vmem>>, vector<512x128xf32>
      %c0_12 = arith.constant 0 : index
      %c0_13 = arith.constant 0 : index
      %13 = vector.load %arg5[%c0_12, %c0_13] : memref<1x128xf32, #tpu.memory_space<vmem>>, vector<1x128xf32>
      %14 = vector.broadcast %13 : vector<1x128xf32> to vector<512x128xf32>
      %15 = arith.addf %12, %14 : vector<512x128xf32>
      %cst_14 = arith.constant 0.000000e+00 : f32
      %16 = vector.broadcast %cst_14 : f32 to vector<512x128xf32>
      %17 = arith.maximumf %15, %16 : vector<512x128xf32>
      %18 = arith.truncf %17 : vector<512x128xf32> to vector<512x128xbf16>
      %c0_15 = arith.constant 0 : index
      %c0_16 = arith.constant 0 : index
      %19 = vector.load %arg6[%c0_15, %c0_16] : memref<512x128xbf16, #tpu.memory_space<vmem>>, vector<512x128xbf16>
      tpu.vector_store %arg6[%c0_15, %c0_16], %18 {strides = array<i32>} : memref<512x128xbf16, #tpu.memory_space<vmem>>, vector<512x128xbf16>,
    } else {
    }
    return
  }
  func.func @transform_0(%arg0: i32, %arg1: i32, %arg2: i32) -> (i32, i32) {
    %c0_i32 = arith.constant 0 : i32
    return %arg0, %arg2 : i32, i32
  }
  func.func @transform_1(%arg0: i32, %arg1: i32, %arg2: i32) -> (i32, i32) {
    %c0_i32 = arith.constant 0 : i32
    return %arg2, %arg1 : i32, i32
  }
  func.func @transform_2(%arg0: i32, %arg1: i32, %arg2: i32) -> (i32, i32) {
    %c0_i32 = arith.constant 0 : i32
    %c0_i32_0 = arith.constant 0 : i32
    return %c0_i32, %arg1 : i32, i32
  }
  func.func @transform_3(%arg0: i32, %arg1: i32, %arg2: i32) -> (i32, i32) {
    %c0_i32 = arith.constant 0 : i32
    return %arg0, %arg1 : i32, i32
  }
}

module attributes {stable_mosaic.version = 11 : i64} {
  func.func @_mm_kernel(%arg0: i32, %arg1: i32, %arg2: i32, %arg3: memref<512x144xbf16, #tpu.memory_space<vmem>>, %arg4: memref<144x128xbf16, #tpu.memory_space<vmem>>, %arg5: memref<1x128xf32, #tpu.memory_space<vmem>>, %arg6: memref<512x128xbf16, #tpu.memory_space<vmem>>, %arg7: memref<512x128xf32, #tpu.memory_space<vmem>>) attributes {dimension_semantics = [#tpu.dimension_semantics<parallel>, #tpu.dimension_semantics<parallel>, #tpu.dimension_semantics<arbitrary>], iteration_bounds = array<i64: 1, 1, 1>, scalar_prefetch = 0 : i64, scratch_operands = 1 : i64, tpu.core_type = #tpu.core_type<tc>, window_params = [{transform_indices = @transform_0, window_bounds = array<i64: 512, 144>}, {transform_indices = @transform_1, window_bounds = array<i64: 144, 128>}, {transform_indices = @transform_2, window_bounds = array<i64: 1, 128>}, {transform_indices = @transform_3, window_bounds = array<i64: 512, 128>}]} {
    %c0_i32 = arith.constant 0 : i32
    %0 = arith.cmpi eq, %arg2, %c0_i32 : i32
    %1 = arith.extui %0 : i1 to i32
    %c0_i32_0 = arith.constant 0 : i32
    %2 = arith.cmpi ne, %1, %c0_i32_0 : i32
    scf.if %2 {
      %cst_10 = arith.constant 0.000000e+00 : f32
      %12 = vector.broadcast %cst_10 : f32 to vector<512x128xf32>
      %c0_11 = arith.constant 0 : index
      %c0_12 = arith.constant 0 : index
      %13 = vector.load %arg7[%c0_11, %c0_12] : memref<512x128xf32, #tpu.memory_space<vmem>>, vector<512x128xf32>
      tpu.vector_store %arg7[%c0_11, %c0_12], %12 {strides = array<i32>} : memref<512x128xf32, #tpu.memory_space<vmem>>, vector<512x128xf32>,
    } else {
    }
    %c0 = arith.constant 0 : index
    %c0_1 = arith.constant 0 : index
    %3 = vector.load %arg7[%c0, %c0_1] : memref<512x128xf32, #tpu.memory_space<vmem>>, vector<512x128xf32>
    %c0_2 = arith.constant 0 : index
    %c0_3 = arith.constant 0 : index
    %4 = vector.load %arg3[%c0_2, %c0_3] : memref<512x144xbf16, #tpu.memory_space<vmem>>, vector<512x144xbf16>
    %c0_4 = arith.constant 0 : index
    %c0_5 = arith.constant 0 : index
    %5 = vector.load %arg4[%c0_4, %c0_5] : memref<144x128xbf16, #tpu.memory_space<vmem>>, vector<144x128xbf16>
    %cst = arith.constant dense<0.000000e+00> : vector<512x128xf32>
    %6 = tpu.matmul %4, %5, %cst {dimension_numbers = #tpu.dot_dimension_numbers<[1], [0], [0], [1], [0, 0, 1, 1], [], []>} : vector<512x144xbf16>, vector<144x128xbf16>, vector<512x128xf32> -> vector<512x128xf32>
    %7 = arith.addf %3, %6 : vector<512x128xf32>
    %c0_6 = arith.constant 0 : index
    %c0_7 = arith.constant 0 : index
    %8 = vector.load %arg7[%c0_6, %c0_7] : memref<512x128xf32, #tpu.memory_space<vmem>>, vector<512x128xf32>
    tpu.vector_store %arg7[%c0_6, %c0_7], %7 {strides = array<i32>} : memref<512x128xf32, #tpu.memory_space<vmem>>, vector<512x128xf32>,
    %c0_i32_8 = arith.constant 0 : i32
    %9 = arith.cmpi eq, %arg2, %c0_i32_8 : i32
    %10 = arith.extui %9 : i1 to i32
    %c0_i32_9 = arith.constant 0 : i32
    %11 = arith.cmpi ne, %10, %c0_i32_9 : i32
    scf.if %11 {
      %c0_10 = arith.constant 0 : index
      %c0_11 = arith.constant 0 : index
      %12 = vector.load %arg7[%c0_10, %c0_11] : memref<512x128xf32, #tpu.memory_space<vmem>>, vector<512x128xf32>
      %c0_12 = arith.constant 0 : index
      %c0_13 = arith.constant 0 : index
      %13 = vector.load %arg5[%c0_12, %c0_13] : memref<1x128xf32, #tpu.memory_space<vmem>>, vector<1x128xf32>
      %14 = vector.broadcast %13 : vector<1x128xf32> to vector<512x128xf32>
      %15 = arith.addf %12, %14 : vector<512x128xf32>
      %cst_14 = arith.constant 0.000000e+00 : f32
      %16 = vector.broadcast %cst_14 : f32 to vector<512x128xf32>
      %17 = arith.maximumf %15, %16 : vector<512x128xf32>
      %18 = arith.truncf %17 : vector<512x128xf32> to vector<512x128xbf16>
      %c0_15 = arith.constant 0 : index
      %c0_16 = arith.constant 0 : index
      %19 = vector.load %arg6[%c0_15, %c0_16] : memref<512x128xbf16, #tpu.memory_space<vmem>>, vector<512x128xbf16>
      tpu.vector_store %arg6[%c0_15, %c0_16], %18 {strides = array<i32>} : memref<512x128xbf16, #tpu.memory_space<vmem>>, vector<512x128xbf16>,
    } else {
    }
    return
  }
  func.func @transform_0(%arg0: i32, %arg1: i32, %arg2: i32) -> (i32, i32) {
    %c0_i32 = arith.constant 0 : i32
    return %arg0, %arg2 : i32, i32
  }
  func.func @transform_1(%arg0: i32, %arg1: i32, %arg2: i32) -> (i32, i32) {
    %c0_i32 = arith.constant 0 : i32
    return %arg2, %arg1 : i32, i32
  }
  func.func @transform_2(%arg0: i32, %arg1: i32, %arg2: i32) -> (i32, i32) {
    %c0_i32 = arith.constant 0 : i32
    %c0_i32_0 = arith.constant 0 : i32
    return %c0_i32, %arg1 : i32, i32
  }
  func.func @transform_3(%arg0: i32, %arg1: i32, %arg2: i32) -> (i32, i32) {
    %c0_i32 = arith.constant 0 : i32
    return %arg0, %arg1 : i32, i32
  }
}

module attributes {stable_mosaic.version = 11 : i64} {
  func.func @_gap_kernel(%arg0: i32, %arg1: memref<8x256x8xbf16, #tpu.memory_space<vmem>>, %arg2: memref<8x64x16xbf16, #tpu.memory_space<vmem>>, %arg3: memref<4x64x16xbf16, #tpu.memory_space<vmem>>, %arg4: memref<8x8xf32, #tpu.memory_space<vmem>>, %arg5: memref<8x16xf32, #tpu.memory_space<vmem>>, %arg6: memref<4x16xf32, #tpu.memory_space<vmem>>) attributes {dimension_semantics = [#tpu.dimension_semantics<arbitrary>], iteration_bounds = array<i64: 1>, scalar_prefetch = 0 : i64, scratch_operands = 0 : i64, tpu.core_type = #tpu.core_type<tc>, window_params = [{pipeline_mode = #tpu.pipeline_mode<synchronous>, transform_indices = @transform_0, window_bounds = array<i64: 8, 256, 8>}, {pipeline_mode = #tpu.pipeline_mode<synchronous>, transform_indices = @transform_1, window_bounds = array<i64: 8, 64, 16>}, {pipeline_mode = #tpu.pipeline_mode<synchronous>, transform_indices = @transform_2, window_bounds = array<i64: 4, 64, 16>}, {pipeline_mode = #tpu.pipeline_mode<synchronous>, transform_indices = @transform_3, window_bounds = array<i64: 8, 8>}, {pipeline_mode = #tpu.pipeline_mode<synchronous>, transform_indices = @transform_4, window_bounds = array<i64: 8, 16>}, {pipeline_mode = #tpu.pipeline_mode<synchronous>, transform_indices = @transform_5, window_bounds = array<i64: 4, 16>}]} {
    %c0 = arith.constant 0 : index
    %c0_0 = arith.constant 0 : index
    %c0_1 = arith.constant 0 : index
    %0 = vector.load %arg1[%c0, %c0_0, %c0_1] : memref<8x256x8xbf16, #tpu.memory_space<vmem>>, vector<8x256x8xbf16>
    %1 = arith.extf %0 : vector<8x256x8xbf16> to vector<8x256x8xf32>
    %cst = arith.constant dense<0.000000e+00> : vector<8x8xf32>
    %2 = vector.multi_reduction <add>, %1, %cst [1] : vector<8x256x8xf32> to vector<8x8xf32>
    %cst_2 = arith.constant 3.906250e-03 : f32
    %3 = vector.broadcast %cst_2 : f32 to vector<8x8xf32>
    %4 = arith.mulf %2, %3 : vector<8x8xf32>
    %c0_3 = arith.constant 0 : index
    %c0_4 = arith.constant 0 : index
    %5 = vector.load %arg4[%c0_3, %c0_4] : memref<8x8xf32, #tpu.memory_space<vmem>>, vector<8x8xf32>
    tpu.vector_store %arg4[%c0_3, %c0_4], %4 {strides = array<i32>} : memref<8x8xf32, #tpu.memory_space<vmem>>, vector<8x8xf32>,
    %c0_5 = arith.constant 0 : index
    %c0_6 = arith.constant 0 : index
    %c0_7 = arith.constant 0 : index
    %6 = vector.load %arg2[%c0_5, %c0_6, %c0_7] : memref<8x64x16xbf16, #tpu.memory_space<vmem>>, vector<8x64x16xbf16>
    %7 = arith.extf %6 : vector<8x64x16xbf16> to vector<8x64x16xf32>
    %cst_8 = arith.constant dense<0.000000e+00> : vector<8x16xf32>
    %8 = vector.multi_reduction <add>, %7, %cst_8 [1] : vector<8x64x16xf32> to vector<8x16xf32>
    %cst_9 = arith.constant 1.562500e-02 : f32
    %9 = vector.broadcast %cst_9 : f32 to vector<8x16xf32>
    %10 = arith.mulf %8, %9 : vector<8x16xf32>
    %c0_10 = arith.constant 0 : index
    %c0_11 = arith.constant 0 : index
    %11 = vector.load %arg5[%c0_10, %c0_11] : memref<8x16xf32, #tpu.memory_space<vmem>>, vector<8x16xf32>
    tpu.vector_store %arg5[%c0_10, %c0_11], %10 {strides = array<i32>} : memref<8x16xf32, #tpu.memory_space<vmem>>, vector<8x16xf32>,
    %c0_12 = arith.constant 0 : index
    %c0_13 = arith.constant 0 : index
    %c0_14 = arith.constant 0 : index
    %12 = vector.load %arg3[%c0_12, %c0_13, %c0_14] : memref<4x64x16xbf16, #tpu.memory_space<vmem>>, vector<4x64x16xbf16>
    %13 = arith.extf %12 : vector<4x64x16xbf16> to vector<4x64x16xf32>
    %cst_15 = arith.constant dense<0.000000e+00> : vector<4x16xf32>
    %14 = vector.multi_reduction <add>, %13, %cst_15 [1] : vector<4x64x16xf32> to vector<4x16xf32>
    %cst_16 = arith.constant 1.562500e-02 : f32
    %15 = vector.broadcast %cst_16 : f32 to vector<4x16xf32>
    %16 = arith.mulf %14, %15 : vector<4x16xf32>
    %c0_17 = arith.constant 0 : index
    %c0_18 = arith.constant 0 : index
    %17 = vector.load %arg6[%c0_17, %c0_18] : memref<4x16xf32, #tpu.memory_space<vmem>>, vector<4x16xf32>
    tpu.vector_store %arg6[%c0_17, %c0_18], %16 {strides = array<i32>} : memref<4x16xf32, #tpu.memory_space<vmem>>, vector<4x16xf32>,
    return
  }
  func.func @transform_0(%arg0: i32) -> (i32, i32, i32) {
    %c0_i32 = arith.constant 0 : i32
    %c0_i32_0 = arith.constant 0 : i32
    %c0_i32_1 = arith.constant 0 : i32
    %c0_i32_2 = arith.constant 0 : i32
    return %c0_i32, %c0_i32_0, %c0_i32_1 : i32, i32, i32
  }
  func.func @transform_1(%arg0: i32) -> (i32, i32, i32) {
    %c0_i32 = arith.constant 0 : i32
    %c0_i32_0 = arith.constant 0 : i32
    %c0_i32_1 = arith.constant 0 : i32
    %c0_i32_2 = arith.constant 0 : i32
    return %c0_i32, %c0_i32_0, %c0_i32_1 : i32, i32, i32
  }
  func.func @transform_2(%arg0: i32) -> (i32, i32, i32) {
    %c0_i32 = arith.constant 0 : i32
    %c0_i32_0 = arith.constant 0 : i32
    %c0_i32_1 = arith.constant 0 : i32
    %c0_i32_2 = arith.constant 0 : i32
    return %c0_i32, %c0_i32_0, %c0_i32_1 : i32, i32, i32
  }
  func.func @transform_3(%arg0: i32) -> (i32, i32) {
    %c0_i32 = arith.constant 0 : i32
    %c0_i32_0 = arith.constant 0 : i32
    %c0_i32_1 = arith.constant 0 : i32
    return %c0_i32, %c0_i32_0 : i32, i32
  }
  func.func @transform_4(%arg0: i32) -> (i32, i32) {
    %c0_i32 = arith.constant 0 : i32
    %c0_i32_0 = arith.constant 0 : i32
    %c0_i32_1 = arith.constant 0 : i32
    return %c0_i32, %c0_i32_0 : i32, i32
  }
  func.func @transform_5(%arg0: i32) -> (i32, i32) {
    %c0_i32 = arith.constant 0 : i32
    %c0_i32_0 = arith.constant 0 : i32
    %c0_i32_1 = arith.constant 0 : i32
    return %c0_i32, %c0_i32_0 : i32, i32
  }
}

module attributes {stable_mosaic.version = 11 : i64} {
  func.func @_mm_kernel(%arg0: i32, %arg1: i32, %arg2: i32, %arg3: memref<8x72xf32, #tpu.memory_space<vmem>>, %arg4: memref<72x128xbf16, #tpu.memory_space<vmem>>, %arg5: memref<1x128xf32, #tpu.memory_space<vmem>>, %arg6: memref<8x128xf32, #tpu.memory_space<vmem>>, %arg7: memref<8x128xf32, #tpu.memory_space<vmem>>) attributes {dimension_semantics = [#tpu.dimension_semantics<parallel>, #tpu.dimension_semantics<parallel>, #tpu.dimension_semantics<arbitrary>], iteration_bounds = array<i64: 1, 1, 1>, scalar_prefetch = 0 : i64, scratch_operands = 1 : i64, tpu.core_type = #tpu.core_type<tc>, window_params = [{transform_indices = @transform_0, window_bounds = array<i64: 8, 72>}, {transform_indices = @transform_1, window_bounds = array<i64: 72, 128>}, {transform_indices = @transform_2, window_bounds = array<i64: 1, 128>}, {transform_indices = @transform_3, window_bounds = array<i64: 8, 128>}]} {
    %c0_i32 = arith.constant 0 : i32
    %0 = arith.cmpi eq, %arg2, %c0_i32 : i32
    %1 = arith.extui %0 : i1 to i32
    %c0_i32_0 = arith.constant 0 : i32
    %2 = arith.cmpi ne, %1, %c0_i32_0 : i32
    scf.if %2 {
      %cst_10 = arith.constant 0.000000e+00 : f32
      %13 = vector.broadcast %cst_10 : f32 to vector<8x128xf32>
      %c0_11 = arith.constant 0 : index
      %c0_12 = arith.constant 0 : index
      %14 = vector.load %arg7[%c0_11, %c0_12] : memref<8x128xf32, #tpu.memory_space<vmem>>, vector<8x128xf32>
      tpu.vector_store %arg7[%c0_11, %c0_12], %13 {strides = array<i32>} : memref<8x128xf32, #tpu.memory_space<vmem>>, vector<8x128xf32>,
    } else {
    }
    %c0 = arith.constant 0 : index
    %c0_1 = arith.constant 0 : index
    %3 = vector.load %arg7[%c0, %c0_1] : memref<8x128xf32, #tpu.memory_space<vmem>>, vector<8x128xf32>
    %c0_2 = arith.constant 0 : index
    %c0_3 = arith.constant 0 : index
    %4 = vector.load %arg3[%c0_2, %c0_3] : memref<8x72xf32, #tpu.memory_space<vmem>>, vector<8x72xf32>
    %5 = arith.truncf %4 : vector<8x72xf32> to vector<8x72xbf16>
    %c0_4 = arith.constant 0 : index
    %c0_5 = arith.constant 0 : index
    %6 = vector.load %arg4[%c0_4, %c0_5] : memref<72x128xbf16, #tpu.memory_space<vmem>>, vector<72x128xbf16>
    %cst = arith.constant dense<0.000000e+00> : vector<8x128xf32>
    %7 = tpu.matmul %5, %6, %cst {dimension_numbers = #tpu.dot_dimension_numbers<[1], [0], [0], [1], [0, 0, 1, 1], [], []>} : vector<8x72xbf16>, vector<72x128xbf16>, vector<8x128xf32> -> vector<8x128xf32>
    %8 = arith.addf %3, %7 : vector<8x128xf32>
    %c0_6 = arith.constant 0 : index
    %c0_7 = arith.constant 0 : index
    %9 = vector.load %arg7[%c0_6, %c0_7] : memref<8x128xf32, #tpu.memory_space<vmem>>, vector<8x128xf32>
    tpu.vector_store %arg7[%c0_6, %c0_7], %8 {strides = array<i32>} : memref<8x128xf32, #tpu.memory_space<vmem>>, vector<8x128xf32>,
    %c0_i32_8 = arith.constant 0 : i32
    %10 = arith.cmpi eq, %arg2, %c0_i32_8 : i32
    %11 = arith.extui %10 : i1 to i32
    %c0_i32_9 = arith.constant 0 : i32
    %12 = arith.cmpi ne, %11, %c0_i32_9 : i32
    scf.if %12 {
      %c0_10 = arith.constant 0 : index
      %c0_11 = arith.constant 0 : index
      %13 = vector.load %arg7[%c0_10, %c0_11] : memref<8x128xf32, #tpu.memory_space<vmem>>, vector<8x128xf32>
      %c0_12 = arith.constant 0 : index
      %c0_13 = arith.constant 0 : index
      %14 = vector.load %arg5[%c0_12, %c0_13] : memref<1x128xf32, #tpu.memory_space<vmem>>, vector<1x128xf32>
      %15 = vector.broadcast %14 : vector<1x128xf32> to vector<8x128xf32>
      %16 = arith.addf %13, %15 : vector<8x128xf32>
      %cst_14 = arith.constant 0.000000e+00 : f32
      %17 = vector.broadcast %cst_14 : f32 to vector<8x128xf32>
      %18 = arith.maximumf %16, %17 : vector<8x128xf32>
      %c0_15 = arith.constant 0 : index
      %c0_16 = arith.constant 0 : index
      %19 = vector.load %arg6[%c0_15, %c0_16] : memref<8x128xf32, #tpu.memory_space<vmem>>, vector<8x128xf32>
      tpu.vector_store %arg6[%c0_15, %c0_16], %18 {strides = array<i32>} : memref<8x128xf32, #tpu.memory_space<vmem>>, vector<8x128xf32>,
    } else {
    }
    return
  }
  func.func @transform_0(%arg0: i32, %arg1: i32, %arg2: i32) -> (i32, i32) {
    %c0_i32 = arith.constant 0 : i32
    return %arg0, %arg2 : i32, i32
  }
  func.func @transform_1(%arg0: i32, %arg1: i32, %arg2: i32) -> (i32, i32) {
    %c0_i32 = arith.constant 0 : i32
    return %arg2, %arg1 : i32, i32
  }
  func.func @transform_2(%arg0: i32, %arg1: i32, %arg2: i32) -> (i32, i32) {
    %c0_i32 = arith.constant 0 : i32
    %c0_i32_0 = arith.constant 0 : i32
    return %c0_i32, %arg1 : i32, i32
  }
  func.func @transform_3(%arg0: i32, %arg1: i32, %arg2: i32) -> (i32, i32) {
    %c0_i32 = arith.constant 0 : i32
    return %arg0, %arg1 : i32, i32
  }
}

module attributes {stable_mosaic.version = 11 : i64} {
  func.func @_mm_kernel(%arg0: i32, %arg1: i32, %arg2: i32, %arg3: memref<40x68xf32, #tpu.memory_space<vmem>>, %arg4: memref<68x256xbf16, #tpu.memory_space<vmem>>, %arg5: memref<1x256xf32, #tpu.memory_space<vmem>>, %arg6: memref<40x256xf32, #tpu.memory_space<vmem>>, %arg7: memref<40x256xf32, #tpu.memory_space<vmem>>) attributes {dimension_semantics = [#tpu.dimension_semantics<parallel>, #tpu.dimension_semantics<parallel>, #tpu.dimension_semantics<arbitrary>], iteration_bounds = array<i64: 1, 1, 1>, scalar_prefetch = 0 : i64, scratch_operands = 1 : i64, tpu.core_type = #tpu.core_type<tc>, window_params = [{transform_indices = @transform_0, window_bounds = array<i64: 40, 68>}, {transform_indices = @transform_1, window_bounds = array<i64: 68, 256>}, {transform_indices = @transform_2, window_bounds = array<i64: 1, 256>}, {transform_indices = @transform_3, window_bounds = array<i64: 40, 256>}]} {
    %c0_i32 = arith.constant 0 : i32
    %0 = arith.cmpi eq, %arg2, %c0_i32 : i32
    %1 = arith.extui %0 : i1 to i32
    %c0_i32_0 = arith.constant 0 : i32
    %2 = arith.cmpi ne, %1, %c0_i32_0 : i32
    scf.if %2 {
      %cst_10 = arith.constant 0.000000e+00 : f32
      %13 = vector.broadcast %cst_10 : f32 to vector<40x256xf32>
      %c0_11 = arith.constant 0 : index
      %c0_12 = arith.constant 0 : index
      %14 = vector.load %arg7[%c0_11, %c0_12] : memref<40x256xf32, #tpu.memory_space<vmem>>, vector<40x256xf32>
      tpu.vector_store %arg7[%c0_11, %c0_12], %13 {strides = array<i32>} : memref<40x256xf32, #tpu.memory_space<vmem>>, vector<40x256xf32>,
    } else {
    }
    %c0 = arith.constant 0 : index
    %c0_1 = arith.constant 0 : index
    %3 = vector.load %arg7[%c0, %c0_1] : memref<40x256xf32, #tpu.memory_space<vmem>>, vector<40x256xf32>
    %c0_2 = arith.constant 0 : index
    %c0_3 = arith.constant 0 : index
    %4 = vector.load %arg3[%c0_2, %c0_3] : memref<40x68xf32, #tpu.memory_space<vmem>>, vector<40x68xf32>
    %5 = arith.truncf %4 : vector<40x68xf32> to vector<40x68xbf16>
    %c0_4 = arith.constant 0 : index
    %c0_5 = arith.constant 0 : index
    %6 = vector.load %arg4[%c0_4, %c0_5] : memref<68x256xbf16, #tpu.memory_space<vmem>>, vector<68x256xbf16>
    %cst = arith.constant dense<0.000000e+00> : vector<40x256xf32>
    %7 = tpu.matmul %5, %6, %cst {dimension_numbers = #tpu.dot_dimension_numbers<[1], [0], [0], [1], [0, 0, 1, 1], [], []>} : vector<40x68xbf16>, vector<68x256xbf16>, vector<40x256xf32> -> vector<40x256xf32>
    %8 = arith.addf %3, %7 : vector<40x256xf32>
    %c0_6 = arith.constant 0 : index
    %c0_7 = arith.constant 0 : index
    %9 = vector.load %arg7[%c0_6, %c0_7] : memref<40x256xf32, #tpu.memory_space<vmem>>, vector<40x256xf32>
    tpu.vector_store %arg7[%c0_6, %c0_7], %8 {strides = array<i32>} : memref<40x256xf32, #tpu.memory_space<vmem>>, vector<40x256xf32>,
    %c0_i32_8 = arith.constant 0 : i32
    %10 = arith.cmpi eq, %arg2, %c0_i32_8 : i32
    %11 = arith.extui %10 : i1 to i32
    %c0_i32_9 = arith.constant 0 : i32
    %12 = arith.cmpi ne, %11, %c0_i32_9 : i32
    scf.if %12 {
      %c0_10 = arith.constant 0 : index
      %c0_11 = arith.constant 0 : index
      %13 = vector.load %arg7[%c0_10, %c0_11] : memref<40x256xf32, #tpu.memory_space<vmem>>, vector<40x256xf32>
      %c0_12 = arith.constant 0 : index
      %c0_13 = arith.constant 0 : index
      %14 = vector.load %arg5[%c0_12, %c0_13] : memref<1x256xf32, #tpu.memory_space<vmem>>, vector<1x256xf32>
      %15 = vector.broadcast %14 : vector<1x256xf32> to vector<40x256xf32>
      %16 = arith.addf %13, %15 : vector<40x256xf32>
      %c0_14 = arith.constant 0 : index
      %c0_15 = arith.constant 0 : index
      %17 = vector.load %arg6[%c0_14, %c0_15] : memref<40x256xf32, #tpu.memory_space<vmem>>, vector<40x256xf32>
      tpu.vector_store %arg6[%c0_14, %c0_15], %16 {strides = array<i32>} : memref<40x256xf32, #tpu.memory_space<vmem>>, vector<40x256xf32>,
    } else {
    }
    return
  }
  func.func @transform_0(%arg0: i32, %arg1: i32, %arg2: i32) -> (i32, i32) {
    %c0_i32 = arith.constant 0 : i32
    return %arg0, %arg2 : i32, i32
  }
  func.func @transform_1(%arg0: i32, %arg1: i32, %arg2: i32) -> (i32, i32) {
    %c0_i32 = arith.constant 0 : i32
    return %arg2, %arg1 : i32, i32
  }
  func.func @transform_2(%arg0: i32, %arg1: i32, %arg2: i32) -> (i32, i32) {
    %c0_i32 = arith.constant 0 : i32
    %c0_i32_0 = arith.constant 0 : i32
    return %c0_i32, %arg1 : i32, i32
  }
  func.func @transform_3(%arg0: i32, %arg1: i32, %arg2: i32) -> (i32, i32) {
    %c0_i32 = arith.constant 0 : i32
    return %arg0, %arg1 : i32, i32
  }
}

</mosaic_0001>

<llo_original>
// kernel: dimpnet_forward.6
$region0: #{dimpnet_forward.6}
  #allocation0 [shape = 'u32[]', space=smem, size = 0x4, offset = 0x4, fixed_abs, tag = 'smem constant byte address 0x4 - core index']
  #allocation1 [shape = 'u32[144,128]{1,0:T(1,128)}', space=vmem, size = 0x12000, scoped, tag = 'internal scratch']
  #allocation2 [shape = 'f32[1024,128]{1,0:T(8,128)}', space=vmem, size = 0x80000, scoped, tag = 'scratch operand']
  %s0 = inlined_call_operand.vmem [shape: f32[2048,27], index: 0, kind: input, shape index: {}]
  %s1 = inlined_call_operand.vmem [shape: bf16[27,128], index: 1, kind: input, shape index: {}]
  %s2 = inlined_call_operand.vmem [shape: f32[1,128], index: 2, kind: input, shape index: {}]
  %s3 = inlined_call_operand.vmem [shape: bf16[2048,128], index: 3, kind: output, shape index: {}]
  %s4 = sld [smem:[#allocation0]]
  $region53: #{dimpnet_forward.6} parent=0
    _
  %s6 = ssub.s32 1, %s4
  %s7 = scalar_select 0, %s6, %s4
  loop: start=0, step=1, limit=4
  $region2: #{dimpnet_forward.6} parent=0 // loop_pre_header
    _
  $region3: #{dimpnet_forward.6} parent=0 // loop_header
    %s9 = sphi 0, %s13
    %p10 = scmp.ge.s32.totalorder %s9, 4
    %s16 = sphi 0, %s35
    %s17 = sphi 0, %s31
    %s18 = sphi 0, %s27
    %s19 = sphi 0, %s16
    %s20 = sphi 0, %s17
    %s21 = sphi 0, %s18
    %s22 = sphi 0, %s19
    %s23 = sphi 0, %s20
    %s24 = sphi 0, %s21
    %s40 = sphi 0, %s42
    %s43 = sphi 0, %s40
    %s44 = sphi 0, %s43
    %s60 = sphi 0, %s44
    %s68 = sphi 0, %s70
    %s71 = sphi 0, %s68
    %s72 = sphi 0, %s71
    %s88 = sphi 0, %s72
    %s94 = sphi 0, %s96
    %s97 = sphi 0, %s94
    %s98 = sphi 0, %s97
    %s114 = sphi 0, %s98
    %s122 = sphi 0, %s124
    %s125 = sphi 0, %s122
    %s126 = sphi 0, %s125
    %s142 = sphi 0, %s126
  $region4: #{dimpnet_forward.6} parent=0 // loop_header_branch
    %12 = sbr.rel (%p10) target = $region8
  $region5: #{dimpnet_forward.6} parent=0 // loop_body
    %s14 = ssub.s32 %s9, 1
    %s15 = ssub.s32 %s9, 2
    %s25 = sadd.s32 1, %s18
    %p26 = scmp.ge.s32.totalorder %s25, 1
    %s27 = scalar_select %p26, 0, %s25
    %s28 = sadd.s32 1, %s17
    %s29 = scalar_select %p26, %s28, %s17
    %p30 = scmp.ge.s32.totalorder %s29, 1
    %s31 = scalar_select %p30, 0, %s29
    %s32 = sadd.s32 1, %s16
    %s33 = scalar_select %p30, %s32, %s16
    %p34 = scmp.ge.s32.totalorder %s33, 2
    %s35 = scalar_select %p34, 0, %s33
    %s36 = ssub.s32 %s16, %s35
    %s37 = ssub.s32 %s18, %s27
    %s38 = sor.u32 %s36, %s37
    %p39 = scmp.eq.s32.totalorder %s38, 0
    %s41 = sadd.s32 %s40, 1
    %s42 = scalar_select %p39, %s40, %s41
    %p45 = pneg %p39
    %p46 = scmp.eq.s32.totalorder %s9, 1
    %p47 = por %p45, %p46
    %p48 = scmp.ne.s32.totalorder %s40, %s43
    %p49 = scmp.eq.s32.totalorder %s9, 0
    %p50 = por %p48, %p49
    %p51 = scmp.ne.s32.totalorder %s40, %s43
    %p52 = scmp.eq.s32.totalorder %s14, 1
    %p53 = por %p51, %p52
    %p54 = scmp.ne.s32.totalorder %s43, %s44
    %p55 = scmp.eq.s32.totalorder %s14, 0
    %p56 = por %p54, %p55
    %p57 = scmp.ne.s32.totalorder %s43, %s44
    %p58 = scmp.eq.s32.totalorder %s15, 1
    %p59 = por %p57, %p58
    %p61 = scmp.ne.s32.totalorder %s44, %s60
    %p62 = scmp.eq.s32.totalorder %s15, 0
    %p63 = por %p61, %p62
    %s64 = ssub.s32 %s18, %s27
    %s65 = ssub.s32 %s17, %s31
    %s66 = sor.u32 %s64, %s65
    %p67 = scmp.eq.s32.totalorder %s66, 0
    %s69 = sadd.s32 %s68, 1
    %s70 = scalar_select %p67, %s68, %s69
    %p73 = pneg %p67
    %p74 = scmp.eq.s32.totalorder %s9, 1
    %p75 = por %p73, %p74
    %p76 = scmp.ne.s32.totalorder %s68, %s71
    %p77 = scmp.eq.s32.totalorder %s9, 0
    %p78 = por %p76, %p77
    %p79 = scmp.ne.s32.totalorder %s68, %s71
    %p80 = scmp.eq.s32.totalorder %s14, 1
    %p81 = por %p79, %p80
    %p82 = scmp.ne.s32.totalorder %s71, %s72
    %p83 = scmp.eq.s32.totalorder %s14, 0
    %p84 = por %p82, %p83
    %p85 = scmp.ne.s32.totalorder %s71, %s72
    %p86 = scmp.eq.s32.totalorder %s15, 1
    %p87 = por %p85, %p86
    %p89 = scmp.ne.s32.totalorder %s72, %s88
    %p90 = scmp.eq.s32.totalorder %s15, 0
    %p91 = por %p89, %p90
    %s92 = ssub.s32 %s17, %s31
    %p93 = scmp.eq.s32.totalorder %s92, 0
    %s95 = sadd.s32 %s94, 1
    %s96 = scalar_select %p93, %s94, %s95
    %p99 = pneg %p93
    %p100 = scmp.eq.s32.totalorder %s9, 1
    %p101 = por %p99, %p100
    %p102 = scmp.ne.s32.totalorder %s94, %s97
    %p103 = scmp.eq.s32.totalorder %s9, 0
    %p104 = por %p102, %p103
    %p105 = scmp.ne.s32.totalorder %s94, %s97
    %p106 = scmp.eq.s32.totalorder %s14, 1
    %p107 = por %p105, %p106
    %p108 = scmp.ne.s32.totalorder %s97, %s98
    %p109 = scmp.eq.s32.totalorder %s14, 0
    %p110 = por %p108, %p109
    %p111 = scmp.ne.s32.totalorder %s97, %s98
    %p112 = scmp.eq.s32.totalorder %s15, 1
    %p113 = por %p111, %p112
    %p115 = scmp.ne.s32.totalorder %s98, %s114
    %p116 = scmp.eq.s32.totalorder %s15, 0
    %p117 = por %p115, %p116
    %s118 = ssub.s32 %s16, %s35
    %s119 = ssub.s32 %s17, %s31
    %s120 = sor.u32 %s118, %s119
    %p121 = scmp.eq.s32.totalorder %s120, 0
    %s123 = sadd.s32 %s122, 1
    %s124 = scalar_select %p121, %s122, %s123
    %p127 = pneg %p121
    %p128 = scmp.eq.s32.totalorder %s9, 1
    %p129 = por %p127, %p128
    %p130 = scmp.ne.s32.totalorder %s122, %s125
    %p131 = scmp.eq.s32.totalorder %s9, 0
    %p132 = por %p130, %p131
    %p133 = scmp.ne.s32.totalorder %s122, %s125
    %p134 = scmp.eq.s32.totalorder %s14, 1
    %p135 = por %p133, %p134
    %p136 = scmp.ne.s32.totalorder %s125, %s126
    %p137 = scmp.eq.s32.totalorder %s14, 0
    %p138 = por %p136, %p137
    %p139 = scmp.ne.s32.totalorder %s125, %s126
    %p140 = scmp.eq.s32.totalorder %s15, 1
    %p141 = por %p139, %p140
    %p143 = scmp.ne.s32.totalorder %s126, %s142
    %p144 = scmp.eq.s32.totalorder %s15, 0
    %p145 = por %p143, %p144
    %p146 = scmp.le.s32.totalorder 1, %s9
    %p147 = scmp.lt.s32.totalorder %s9, 3
    %p148 = pnand %p146, %p147
    %p149 = pneg %p148
    // Predicated region
    $region9: #{dimpnet_forward.6} parent=5 // pred_check
      _
    $region10: #{dimpnet_forward.6} parent=5 // pred_check_branch
      %151 = sbr.rel (%p148) target = $region12
    $region11: #{dimpnet_forward.6} parent=5 // pred_region
      %s152 = ssub.s32 %s9, 1
      // Predicated region
      $region13: #{dimpnet_forward.6} parent=11 // pred_check
        %p153 = pneg %p84
      $region14: #{dimpnet_forward.6} parent=11 // pred_check_branch
        %155 = sbr.rel (%p153) target = $region16
      $region15: #{dimpnet_forward.6} parent=11 // pred_region
        %s156 = smul.u32 4, %s21
        %p157 = scmp.lt.s32.totalorder %s156, 3
        %s158 = scalar_select %p157, %s156, 3
        %p159 = scmp.lt.s32.totalorder %s20, 0
        %s160 = scalar_select %p159, %s20, 0
        %s161 = sadd.s32 %s160, %s158
        %s162 = smul.addr %s161, 4
        %s163 = scalar_lea.vmem %s1, %s162
        %s164 = smul.u32 4, %s21
      $region16: #{dimpnet_forward.6} parent=11 // pred_fallthru
        _
      // Predicated region
      $region17: #{dimpnet_forward.6} parent=11 // pred_check
        %p165 = pneg %p110
      $region18: #{dimpnet_forward.6} parent=11 // pred_check_branch
        %167 = sbr.rel (%p165) target = $region20
      $region19: #{dimpnet_forward.6} parent=11 // pred_region
        %p168 = scmp.lt.s32.totalorder %s20, 0
        %s169 = scalar_select %p168, %s20, 0
        %s170 = scalar_lea.vmem %s2, %s169
      $region20: #{dimpnet_forward.6} parent=11 // pred_fallthru
        _
    $region12: #{dimpnet_forward.6} parent=5 // pred_fallthru
      _
    %p171 = scmp.lt.s32.totalorder %s9, 2
    // Predicated region
    $region21: #{dimpnet_forward.6} parent=5 // pred_check
      %p172 = pneg %p171
    $region22: #{dimpnet_forward.6} parent=5 // pred_check_branch
      %174 = sbr.rel (%p172) target = $region24
    $region23: #{dimpnet_forward.6} parent=5 // pred_region
      // Predicated region
      $region25: #{dimpnet_forward.6} parent=23 // pred_check
        %p175 = pneg %p50
      $region26: #{dimpnet_forward.6} parent=23 // pred_check_branch
        %177 = sbr.rel (%p175) target = $region28
      $region27: #{dimpnet_forward.6} parent=23 // pred_region
        %s178 = smul.u32 128, %s16
        %p179 = scmp.lt.s32.totalorder %s178, 255
        %s180 = scalar_select %p179, %s178, 255
        %p181 = scmp.lt.s32.totalorder %s18, 0
        %s182 = scalar_select %p181, %s18, 0
        %s183 = sadd.s32 %s182, %s180
        %s184 = smul.addr %s183, 8
        %s185 = scalar_lea.vmem %s0, %s184
        %s186 = smul.u32 128, %s16
      $region28: #{dimpnet_forward.6} parent=23 // pred_fallthru
        _
    $region24: #{dimpnet_forward.6} parent=5 // pred_fallthru
      _
    %p187 = scmp.le.s32.totalorder 1, %s9
    %p188 = scmp.lt.s32.totalorder %s9, 3
    %p189 = pnand %p187, %p188
    %p190 = pneg %p189
    // Predicated region
    $region29: #{dimpnet_forward.6} parent=5 // pred_check
      _
    $region30: #{dimpnet_forward.6} parent=5 // pred_check_branch
      %192 = sbr.rel (%p189) target = $region32
    $region31: #{dimpnet_forward.6} parent=5 // pred_region
      %s193 = ssub.s32 %s9, 1
      %s194 = smul.u32 128, %s19
      %p195 = scmp.lt.s32.totalorder %s194, 255
      %s196 = scalar_select %p195, %s194, 255
      %p197 = scmp.lt.s32.totalorder %s21, 0
      %s198 = scalar_select %p197, %s21, 0
      %s199 = sadd.s32 %s198, %s196
      %s200 = smul.addr %s199, 8
      %s201 = scalar_lea.vmem %s0, %s200
      %p202 = pneg %p56
      %p203 = pneg %p53
      %s204 = smul.u32 4, %s21
      %p205 = scmp.lt.s32.totalorder %s204, 3
      %s206 = scalar_select %p205, %s204, 3
      %p207 = scmp.lt.s32.totalorder %s20, 0
      %s208 = scalar_select %p207, %s20, 0
      %s209 = sadd.s32 %s208, %s206
      %s210 = smul.addr %s209, 4
      %s211 = scalar_lea.vmem %s1, %s210
      %p212 = pneg %p84
      %p213 = pneg %p81
      %p214 = scmp.lt.s32.totalorder %s20, 0
      %s215 = scalar_select %p214, %s20, 0
      %s216 = scalar_lea.vmem %s2, %s215
      %p217 = pneg %p110
      %p218 = pneg %p107
      %p219 = pneg %p138
      %p220 = pneg %p135
      %s221 = smul.u32 128, %s19
      %p222 = scmp.lt.s32.totalorder %s221, 255
      %s223 = scalar_select %p222, %s221, 255
      %p224 = scmp.lt.s32.totalorder %s20, 0
      %s225 = scalar_select %p224, %s20, 0
      %s226 = sadd.s32 %s225, %s223
      %s227 = smul.addr %s226, 4
      %s228 = scalar_lea.vmem %s3, %s227
      %s229 = smul.u32 128, %s19
      %p230 = scmp.lt.s32.totalorder %s229, 255
      %s231 = scalar_select %p230, %s229, 255
      %p232 = scmp.lt.s32.totalorder %s21, 0
      %s233 = scalar_select %p232, %s21, 0
      %s234 = sadd.s32 %s233, %s231
      %s235 = smul.addr %s234, 8
      %s236 = scalar_lea.vmem %s0, %s235
      %s237 = smul.u32 128, %s19
      %s238 = smul.u32 4, %s21
      %p239 = scmp.lt.s32.totalorder %s238, 3
      %s240 = scalar_select %p239, %s238, 3
      %p241 = scmp.lt.s32.totalorder %s20, 0
      %s242 = scalar_select %p241, %s20, 0
      %s243 = sadd.s32 %s242, %s240
      %s244 = smul.addr %s243, 4
      %s245 = scalar_lea.vmem %s1, %s244
      %s246 = smul.u32 4, %s21
      %p247 = scmp.lt.s32.totalorder %s20, 0
      %s248 = scalar_select %p247, %s20, 0
      %s249 = scalar_lea.vmem %s2, %s248
      %s250 = smul.u32 128, %s19
      %p251 = scmp.lt.s32.totalorder %s250, 255
      %s252 = scalar_select %p251, %s250, 255
      %p253 = scmp.lt.s32.totalorder %s20, 0
      %s254 = scalar_select %p253, %s20, 0
      %s255 = sadd.s32 %s254, %s252
      %s256 = smul.addr %s255, 4
      %s257 = scalar_lea.vmem %s3, %s256
      %s258 = smul.u32 128, %s19
      %p260 = scmp.eq.s32.totalorder %s21, 0
      // Predicated region
      $region33: #{dimpnet_forward.6} parent=31 // pred_check
        %p261 = pneg %p260
      $region34: #{dimpnet_forward.6} parent=31 // pred_check_branch
        %263 = sbr.rel (%p261) target = $region36
      $region35: #{dimpnet_forward.6} parent=31 // pred_region
        %264 = vst [vmem:[#allocation2] sm:$0xff] 0.0
        %265 = vst [vmem:[#allocation2 + $0x8] sm:$0xff] 0.0
        %266 = vst [vmem:[#allocation2 + $0x10] sm:$0xff] 0.0
        %267 = vst [vmem:[#allocation2 + $0x18] sm:$0xff] 0.0
        %268 = vst [vmem:[#allocation2 + $0x20] sm:$0xff] 0.0
        %269 = vst [vmem:[#allocation2 + $0x28] sm:$0xff] 0.0
        %270 = vst [vmem:[#allocation2 + $0x30] sm:$0xff] 0.0
        %271 = vst [vmem:[#allocation2 + $0x38] sm:$0xff] 0.0
        %272 = vst [vmem:[#allocation2 + $0x40] sm:$0xff] 0.0
        %273 = vst [vmem:[#allocation2 + $0x48] sm:$0xff] 0.0
        %274 = vst [vmem:[#allocation2 + $0x50] sm:$0xff] 0.0
        %275 = vst [vmem:[#allocation2 + $0x58] sm:$0xff] 0.0
        %276 = vst [vmem:[#allocation2 + $0x60] sm:$0xff] 0.0
        %277 = vst [vmem:[#allocation2 + $0x68] sm:$0xff] 0.0
        %278 = vst [vmem:[#allocation2 + $0x70] sm:$0xff] 0.0
        %279 = vst [vmem:[#allocation2 + $0x78] sm:$0xff] 0.0
        %280 = vst [vmem:[#allocation2 + $0x80] sm:$0xff] 0.0
        %281 = vst [vmem:[#allocation2 + $0x88] sm:$0xff] 0.0
        %282 = vst [vmem:[#allocation2 + $0x90] sm:$0xff] 0.0
        %283 = vst [vmem:[#allocation2 + $0x98] sm:$0xff] 0.0
        %284 = vst [vmem:[#allocation2 + $0xa0] sm:$0xff] 0.0
        %285 = vst [vmem:[#allocation2 + $0xa8] sm:$0xff] 0.0
        %286 = vst [vmem:[#allocation2 + $0xb0] sm:$0xff] 0.0
        %287 = vst [vmem:[#allocation2 + $0xb8] sm:$0xff] 0.0
        %288 = vst [vmem:[#allocation2 + $0xc0] sm:$0xff] 0.0
        %289 = vst [vmem:[#allocation2 + $0xc8] sm:$0xff] 0.0
        %290 = vst [vmem:[#allocation2 + $0xd0] sm:$0xff] 0.0
        %291 = vst [vmem:[#allocation2 + $0xd8] sm:$0xff] 0.0
        %292 = vst [vmem:[#allocation2 + $0xe0] sm:$0xff] 0.0
        %293 = vst [vmem:[#allocation2 + $0xe8] sm:$0xff] 0.0
        %294 = vst [vmem:[#allocation2 + $0xf0] sm:$0xff] 0.0
        %295 = vst [vmem:[#allocation2 + $0xf8] sm:$0xff] 0.0
        %296 = vst [vmem:[#allocation2 + $0x100] sm:$0xff] 0.0
        %297 = vst [vmem:[#allocation2 + $0x108] sm:$0xff] 0.0
        %298 = vst [vmem:[#allocation2 + $0x110] sm:$0xff] 0.0
        %299 = vst [vmem:[#allocation2 + $0x118] sm:$0xff] 0.0
        %300 = vst [vmem:[#allocation2 + $0x120] sm:$0xff] 0.0
        %301 = vst [vmem:[#allocation2 + $0x128] sm:$0xff] 0.0
        %302 = vst [vmem:[#allocation2 + $0x130] sm:$0xff] 0.0
        %303 = vst [vmem:[#allocation2 + $0x138] sm:$0xff] 0.0
        %304 = vst [vmem:[#allocation2 + $0x140] sm:$0xff] 0.0
        %305 = vst [vmem:[#allocation2 + $0x148] sm:$0xff] 0.0
        %306 = vst [vmem:[#allocation2 + $0x150] sm:$0xff] 0.0
        %307 = vst [vmem:[#allocation2 + $0x158] sm:$0xff] 0.0
        %308 = vst [vmem:[#allocation2 + $0x160] sm:$0xff] 0.0
        %309 = vst [vmem:[#allocation2 + $0x168] sm:$0xff] 0.0
        %310 = vst [vmem:[#allocation2 + $0x170] sm:$0xff] 0.0
        %311 = vst [vmem:[#allocation2 + $0x178] sm:$0xff] 0.0
        %312 = vst [vmem:[#allocation2 + $0x180] sm:$0xff] 0.0
        %313 = vst [vmem:[#allocation2 + $0x188] sm:$0xff] 0.0
        %314 = vst [vmem:[#allocation2 + $0x190] sm:$0xff] 0.0
        %315 = vst [vmem:[#allocation2 + $0x198] sm:$0xff] 0.0
        %316 = vst [vmem:[#allocation2 + $0x1a0] sm:$0xff] 0.0
        %317 = vst [vmem:[#allocation2 + $0x1a8] sm:$0xff] 0.0
        %318 = vst [vmem:[#allocation2 + $0x1b0] sm:$0xff] 0.0
        %319 = vst [vmem:[#allocation2 + $0x1b8] sm:$0xff] 0.0
        %320 = vst [vmem:[#allocation2 + $0x1c0] sm:$0xff] 0.0
        %321 = vst [vmem:[#allocation2 + $0x1c8] sm:$0xff] 0.0
        %322 = vst [vmem:[#allocation2 + $0x1d0] sm:$0xff] 0.0
        %323 = vst [vmem:[#allocation2 + $0x1d8] sm:$0xff] 0.0
        %324 = vst [vmem:[#allocation2 + $0x1e0] sm:$0xff] 0.0
        %325 = vst [vmem:[#allocation2 + $0x1e8] sm:$0xff] 0.0
        %326 = vst [vmem:[#allocation2 + $0x1f0] sm:$0xff] 0.0
        %327 = vst [vmem:[#allocation2 + $0x1f8] sm:$0xff] 0.0
        %328 = vst [vmem:[#allocation2 + $0x200] sm:$0xff] 0.0
        %329 = vst [vmem:[#allocation2 + $0x208] sm:$0xff] 0.0
        %330 = vst [vmem:[#allocation2 + $0x210] sm:$0xff] 0.0
        %331 = vst [vmem:[#allocation2 + $0x218] sm:$0xff] 0.0
        %332 = vst [vmem:[#allocation2 + $0x220] sm:$0xff] 0.0
        %333 = vst [vmem:[#allocation2 + $0x228] sm:$0xff] 0.0
        %334 = vst [vmem:[#allocation2 + $0x230] sm:$0xff] 0.0
        %335 = vst [vmem:[#allocation2 + $0x238] sm:$0xff] 0.0
        %336 = vst [vmem:[#allocation2 + $0x240] sm:$0xff] 0.0
        %337 = vst [vmem:[#allocation2 + $0x248] sm:$0xff] 0.0
        %338 = vst [vmem:[#allocation2 + $0x250] sm:$0xff] 0.0
        %339 = vst [vmem:[#allocation2 + $0x258] sm:$0xff] 0.0
        %340 = vst [vmem:[#allocation2 + $0x260] sm:$0xff] 0.0
        %341 = vst [vmem:[#allocation2 + $0x268] sm:$0xff] 0.0
        %342 = vst [vmem:[#allocation2 + $0x270] sm:$0xff] 0.0
        %343 = vst [vmem:[#allocation2 + $0x278] sm:$0xff] 0.0
        %344 = vst [vmem:[#allocation2 + $0x280] sm:$0xff] 0.0
        %345 = vst [vmem:[#allocation2 + $0x288] sm:$0xff] 0.0
        %346 = vst [vmem:[#allocation2 + $0x290] sm:$0xff] 0.0
        %347 = vst [vmem:[#allocation2 + $0x298] sm:$0xff] 0.0
        %348 = vst [vmem:[#allocation2 + $0x2a0] sm:$0xff] 0.0
        %349 = vst [vmem:[#allocation2 + $0x2a8] sm:$0xff] 0.0
        %350 = vst [vmem:[#allocation2 + $0x2b0] sm:$0xff] 0.0
        %351 = vst [vmem:[#allocation2 + $0x2b8] sm:$0xff] 0.0
        %352 = vst [vmem:[#allocation2 + $0x2c0] sm:$0xff] 0.0
        %353 = vst [vmem:[#allocation2 + $0x2c8] sm:$0xff] 0.0
        %354 = vst [vmem:[#allocation2 + $0x2d0] sm:$0xff] 0.0
        %355 = vst [vmem:[#allocation2 + $0x2d8] sm:$0xff] 0.0
        %356 = vst [vmem:[#allocation2 + $0x2e0] sm:$0xff] 0.0
        %357 = vst [vmem:[#allocation2 + $0x2e8] sm:$0xff] 0.0
        %358 = vst [vmem:[#allocation2 + $0x2f0] sm:$0xff] 0.0
        %359 = vst [vmem:[#allocation2 + $0x2f8] sm:$0xff] 0.0
        %360 = vst [vmem:[#allocation2 + $0x300] sm:$0xff] 0.0
        %361 = vst [vmem:[#allocation2 + $0x308] sm:$0xff] 0.0
        %362 = vst [vmem:[#allocation2 + $0x310] sm:$0xff] 0.0
        %363 = vst [vmem:[#allocation2 + $0x318] sm:$0xff] 0.0
        %364 = vst [vmem:[#allocation2 + $0x320] sm:$0xff] 0.0
        %365 = vst [vmem:[#allocation2 + $0x328] sm:$0xff] 0.0
        %366 = vst [vmem:[#allocation2 + $0x330] sm:$0xff] 0.0
        %367 = vst [vmem:[#allocation2 + $0x338] sm:$0xff] 0.0
        %368 = vst [vmem:[#allocation2 + $0x340] sm:$0xff] 0.0
        %369 = vst [vmem:[#allocation2 + $0x348] sm:$0xff] 0.0
        %370 = vst [vmem:[#allocation2 + $0x350] sm:$0xff] 0.0
        %371 = vst [vmem:[#allocation2 + $0x358] sm:$0xff] 0.0
        %372 = vst [vmem:[#allocation2 + $0x360] sm:$0xff] 0.0
        %373 = vst [vmem:[#allocation2 + $0x368] sm:$0xff] 0.0
        %374 = vst [vmem:[#allocation2 + $0x370] sm:$0xff] 0.0
        %375 = vst [vmem:[#allocation2 + $0x378] sm:$0xff] 0.0
        %376 = vst [vmem:[#allocation2 + $0x380] sm:$0xff] 0.0
        %377 = vst [vmem:[#allocation2 + $0x388] sm:$0xff] 0.0
        %378 = vst [vmem:[#allocation2 + $0x390] sm:$0xff] 0.0
        %379 = vst [vmem:[#allocation2 + $0x398] sm:$0xff] 0.0
        %380 = vst [vmem:[#allocation2 + $0x3a0] sm:$0xff] 0.0
        %381 = vst [vmem:[#allocation2 + $0x3a8] sm:$0xff] 0.0
        %382 = vst [vmem:[#allocation2 + $0x3b0] sm:$0xff] 0.0
        %383 = vst [vmem:[#allocation2 + $0x3b8] sm:$0xff] 0.0
        %384 = vst [vmem:[#allocation2 + $0x3c0] sm:$0xff] 0.0
        %385 = vst [vmem:[#allocation2 + $0x3c8] sm:$0xff] 0.0
        %386 = vst [vmem:[#allocation2 + $0x3d0] sm:$0xff] 0.0
        %387 = vst [vmem:[#allocation2 + $0x3d8] sm:$0xff] 0.0
        %388 = vst [vmem:[#allocation2 + $0x3e0] sm:$0xff] 0.0
        %389 = vst [vmem:[#allocation2 + $0x3e8] sm:$0xff] 0.0
        %390 = vst [vmem:[#allocation2 + $0x3f0] sm:$0xff] 0.0
        %391 = vst [vmem:[#allocation2 + $0x3f8] sm:$0xff] 0.0
      $region36: #{dimpnet_forward.6} parent=31 // pred_fallthru
        _
      %v392 = vld [vmem:[#allocation2] sm:$0xff]
      %v393 = vld [vmem:[#allocation2 + $0x8] sm:$0xff]
      %v394 = vld [vmem:[#allocation2 + $0x10] sm:$0xff]
      %v395 = vld [vmem:[#allocation2 + $0x18] sm:$0xff]
      %v396 = vld [vmem:[#allocation2 + $0x20] sm:$0xff]
      %v397 = vld [vmem:[#allocation2 + $0x28] sm:$0xff]
      %v398 = vld [vmem:[#allocation2 + $0x30] sm:$0xff]
      %v399 = vld [vmem:[#allocation2 + $0x38] sm:$0xff]
      %v400 = vld [vmem:[#allocation2 + $0x40] sm:$0xff]
      %v401 = vld [vmem:[#allocation2 + $0x48] sm:$0xff]
      %v402 = vld [vmem:[#allocation2 + $0x50] sm:$0xff]
      %v403 = vld [vmem:[#allocation2 + $0x58] sm:$0xff]
      %v404 = vld [vmem:[#allocation2 + $0x60] sm:$0xff]
      %v405 = vld [vmem:[#allocation2 + $0x68] sm:$0xff]
      %v406 = vld [vmem:[#allocation2 + $0x70] sm:$0xff]
      %v407 = vld [vmem:[#allocation2 + $0x78] sm:$0xff]
      %v408 = vld [vmem:[#allocation2 + $0x80] sm:$0xff]
      %v409 = vld [vmem:[#allocation2 + $0x88] sm:$0xff]
      %v410 = vld [vmem:[#allocation2 + $0x90] sm:$0xff]
      %v411 = vld [vmem:[#allocation2 + $0x98] sm:$0xff]
      %v412 = vld [vmem:[#allocation2 + $0xa0] sm:$0xff]
      %v413 = vld [vmem:[#allocation2 + $0xa8] sm:$0xff]
      %v414 = vld [vmem:[#allocation2 + $0xb0] sm:$0xff]
      %v415 = vld [vmem:[#allocation2 + $0xb8] sm:$0xff]
      %v416 = vld [vmem:[#allocation2 + $0xc0] sm:$0xff]
      %v417 = vld [vmem:[#allocation2 + $0xc8] sm:$0xff]
      %v418 = vld [vmem:[#allocation2 + $0xd0] sm:$0xff]
      %v419 = vld [vmem:[#allocation2 + $0xd8] sm:$0xff]
      %v420 = vld [vmem:[#allocation2 + $0xe0] sm:$0xff]
      %v421 = vld [vmem:[#allocation2 + $0xe8] sm:$0xff]
      %v422 = vld [vmem:[#allocation2 + $0xf0] sm:$0xff]
      %v423 = vld [vmem:[#allocation2 + $0xf8] sm:$0xff]
      %v424 = vld [vmem:[#allocation2 + $0x100] sm:$0xff]
      %v425 = vld [vmem:[#allocation2 + $0x108] sm:$0xff]
      %v426 = vld [vmem:[#allocation2 + $0x110] sm:$0xff]
      %v427 = vld [vmem:[#allocation2 + $0x118] sm:$0xff]
      %v428 = vld [vmem:[#allocation2 + $0x120] sm:$0xff]
      %v429 = vld [vmem:[#allocation2 + $0x128] sm:$0xff]
      %v430 = vld [vmem:[#allocation2 + $0x130] sm:$0xff]
      %v431 = vld [vmem:[#allocation2 + $0x138] sm:$0xff]
      %v432 = vld [vmem:[#allocation2 + $0x140] sm:$0xff]
      %v433 = vld [vmem:[#allocation2 + $0x148] sm:$0xff]
      %v434 = vld [vmem:[#allocation2 + $0x150] sm:$0xff]
      %v435 = vld [vmem:[#allocation2 + $0x158] sm:$0xff]
      %v436 = vld [vmem:[#allocation2 + $0x160] sm:$0xff]
      %v437 = vld [vmem:[#allocation2 + $0x168] sm:$0xff]
      %v438 = vld [vmem:[#allocation2 + $0x170] sm:$0xff]
      %v439 = vld [vmem:[#allocation2 + $0x178] sm:$0xff]
      %v440 = vld [vmem:[#allocation2 + $0x180] sm:$0xff]
      %v441 = vld [vmem:[#allocation2 + $0x188] sm:$0xff]
      %v442 = vld [vmem:[#allocation2 + $0x190] sm:$0xff]
      %v443 = vld [vmem:[#allocation2 + $0x198] sm:$0xff]
      %v444 = vld [vmem:[#allocation2 + $0x1a0] sm:$0xff]
      %v445 = vld [vmem:[#allocation2 + $0x1a8] sm:$0xff]
      %v446 = vld [vmem:[#allocation2 + $0x1b0] sm:$0xff]
      %v447 = vld [vmem:[#allocation2 + $0x1b8] sm:$0xff]
      %v448 = vld [vmem:[#allocation2 + $0x1c0] sm:$0xff]
      %v449 = vld [vmem:[#allocation2 + $0x1c8] sm:$0xff]
      %v450 = vld [vmem:[#allocation2 + $0x1d0] sm:$0xff]
      %v451 = vld [vmem:[#allocation2 + $0x1d8] sm:$0xff]
      %v452 = vld [vmem:[#allocation2 + $0x1e0] sm:$0xff]
      %v453 = vld [vmem:[#allocation2 + $0x1e8] sm:$0xff]
      %v454 = vld [vmem:[#allocation2 + $0x1f0] sm:$0xff]
      %v455 = vld [vmem:[#allocation2 + $0x1f8] sm:$0xff]
      %v456 = vld [vmem:[#allocation2 + $0x200] sm:$0xff]
      %v457 = vld [vmem:[#allocation2 + $0x208] sm:$0xff]
      %v458 = vld [vmem:[#allocation2 + $0x210] sm:$0xff]
      %v459 = vld [vmem:[#allocation2 + $0x218] sm:$0xff]
      %v460 = vld [vmem:[#allocation2 + $0x220] sm:$0xff]
      %v461 = vld [vmem:[#allocation2 + $0x228] sm:$0xff]
      %v462 = vld [vmem:[#allocation2 + $0x230] sm:$0xff]
      %v463 = vld [vmem:[#allocation2 + $0x238] sm:$0xff]
      %v464 = vld [vmem:[#allocation2 + $0x240] sm:$0xff]
      %v465 = vld [vmem:[#allocation2 + $0x248] sm:$0xff]
      %v466 = vld [vmem:[#allocation2 + $0x250] sm:$0xff]
      %v467 = vld [vmem:[#allocation2 + $0x258] sm:$0xff]
      %v468 = vld [vmem:[#allocation2 + $0x260] sm:$0xff]
      %v469 = vld [vmem:[#allocation2 + $0x268] sm:$0xff]
      %v470 = vld [vmem:[#allocation2 + $0x270] sm:$0xff]
      %v471 = vld [vmem:[#allocation2 + $0x278] sm:$0xff]
      %v472 = vld [vmem:[#allocation2 + $0x280] sm:$0xff]
      %v473 = vld [vmem:[#allocation2 + $0x288] sm:$0xff]
      %v474 = vld [vmem:[#allocation2 + $0x290] sm:$0xff]
      %v475 = vld [vmem:[#allocation2 + $0x298] sm:$0xff]
      %v476 = vld [vmem:[#allocation2 + $0x2a0] sm:$0xff]
      %v477 = vld [vmem:[#allocation2 + $0x2a8] sm:$0xff]
      %v478 = vld [vmem:[#allocation2 + $0x2b0] sm:$0xff]
      %v479 = vld [vmem:[#allocation2 + $0x2b8] sm:$0xff]
      %v480 = vld [vmem:[#allocation2 + $0x2c0] sm:$0xff]
      %v481 = vld [vmem:[#allocation2 + $0x2c8] sm:$0xff]
      %v482 = vld [vmem:[#allocation2 + $0x2d0] sm:$0xff]
      %v483 = vld [vmem:[#allocation2 + $0x2d8] sm:$0xff]
      %v484 = vld [vmem:[#allocation2 + $0x2e0] sm:$0xff]
      %v485 = vld [vmem:[#allocation2 + $0x2e8] sm:$0xff]
      %v486 = vld [vmem:[#allocation2 + $0x2f0] sm:$0xff]
      %v487 = vld [vmem:[#allocation2 + $0x2f8] sm:$0xff]
      %v488 = vld [vmem:[#allocation2 + $0x300] sm:$0xff]
      %v489 = vld [vmem:[#allocation2 + $0x308] sm:$0xff]
      %v490 = vld [vmem:[#allocation2 + $0x310] sm:$0xff]
      %v491 = vld [vmem:[#allocation2 + $0x318] sm:$0xff]
      %v492 = vld [vmem:[#allocation2 + $0x320] sm:$0xff]
      %v493 = vld [vmem:[#allocation2 + $0x328] sm:$0xff]
      %v494 = vld [vmem:[#allocation2 + $0x330] sm:$0xff]
      %v495 = vld [vmem:[#allocation2 + $0x338] sm:$0xff]
      %v496 = vld [vmem:[#allocation2 + $0x340] sm:$0xff]
      %v497 = vld [vmem:[#allocation2 + $0x348] sm:$0xff]
      %v498 = vld [vmem:[#allocation2 + $0x350] sm:$0xff]
      %v499 = vld [vmem:[#allocation2 + $0x358] sm:$0xff]
      %v500 = vld [vmem:[#allocation2 + $0x360] sm:$0xff]
      %v501 = vld [vmem:[#allocation2 + $0x368] sm:$0xff]
      %v502 = vld [vmem:[#allocation2 + $0x370] sm:$0xff]
      %v503 = vld [vmem:[#allocation2 + $0x378] sm:$0xff]
      %v504 = vld [vmem:[#allocation2 + $0x380] sm:$0xff]
      %v505 = vld [vmem:[#allocation2 + $0x388] sm:$0xff]
      %v506 = vld [vmem:[#allocation2 + $0x390] sm:$0xff]
      %v507 = vld [vmem:[#allocation2 + $0x398] sm:$0xff]
      %v508 = vld [vmem:[#allocation2 + $0x3a0] sm:$0xff]
      %v509 = vld [vmem:[#allocation2 + $0x3a8] sm:$0xff]
      %v510 = vld [vmem:[#allocation2 + $0x3b0] sm:$0xff]
      %v511 = vld [vmem:[#allocation2 + $0x3b8] sm:$0xff]
      %v512 = vld [vmem:[#allocation2 + $0x3c0] sm:$0xff]
      %v513 = vld [vmem:[#allocation2 + $0x3c8] sm:$0xff]
      %v514 = vld [vmem:[#allocation2 + $0x3d0] sm:$0xff]
      %v515 = vld [vmem:[#allocation2 + $0x3d8] sm:$0xff]
      %v516 = vld [vmem:[#allocation2 + $0x3e0] sm:$0xff]
      %v517 = vld [vmem:[#allocation2 + $0x3e8] sm:$0xff]
      %v518 = vld [vmem:[#allocation2 + $0x3f0] sm:$0xff]
      %v519 = vld [vmem:[#allocation2 + $0x3f8] sm:$0xff]
      %v520 = vld [vmem:[%s236] sm:$0xff]
      %v521 = vld [vmem:[%s236 + $0x8] sm:$0xff]
      %v522 = vld [vmem:[%s236 + $0x10] sm:$0xff]
      %v523 = vld [vmem:[%s236 + $0x18] sm:$0xff]
      %v524 = vld [vmem:[%s236 + $0x20] sm:$0xff]
      %v525 = vld [vmem:[%s236 + $0x28] sm:$0xff]
      %v526 = vld [vmem:[%s236 + $0x30] sm:$0xff]
      %v527 = vld [vmem:[%s236 + $0x38] sm:$0xff]
      %v528 = vld [vmem:[%s236 + $0x40] sm:$0xff]
      %v529 = vld [vmem:[%s236 + $0x48] sm:$0xff]
      %v530 = vld [vmem:[%s236 + $0x50] sm:$0xff]
      %v531 = vld [vmem:[%s236 + $0x58] sm:$0xff]
      %v532 = vld [vmem:[%s236 + $0x60] sm:$0xff]
      %v533 = vld [vmem:[%s236 + $0x68] sm:$0xff]
      %v534 = vld [vmem:[%s236 + $0x70] sm:$0xff]
      %v535 = vld [vmem:[%s236 + $0x78] sm:$0xff]
      %v536 = vld [vmem:[%s236 + $0x80] sm:$0xff]
      %v537 = vld [vmem:[%s236 + $0x88] sm:$0xff]
      %v538 = vld [vmem:[%s236 + $0x90] sm:$0xff]
      %v539 = vld [vmem:[%s236 + $0x98] sm:$0xff]
      %v540 = vld [vmem:[%s236 + $0xa0] sm:$0xff]
      %v541 = vld [vmem:[%s236 + $0xa8] sm:$0xff]
      %v542 = vld [vmem:[%s236 + $0xb0] sm:$0xff]
      %v543 = vld [vmem:[%s236 + $0xb8] sm:$0xff]
      %v544 = vld [vmem:[%s236 + $0xc0] sm:$0xff]
      %v545 = vld [vmem:[%s236 + $0xc8] sm:$0xff]
      %v546 = vld [vmem:[%s236 + $0xd0] sm:$0xff]
      %v547 = vld [vmem:[%s236 + $0xd8] sm:$0xff]
      %v548 = vld [vmem:[%s236 + $0xe0] sm:$0xff]
      %v549 = vld [vmem:[%s236 + $0xe8] sm:$0xff]
      %v550 = vld [vmem:[%s236 + $0xf0] sm:$0xff]
      %v551 = vld [vmem:[%s236 + $0xf8] sm:$0xff]
      %v552 = vld [vmem:[%s236 + $0x100] sm:$0xff]
      %v553 = vld [vmem:[%s236 + $0x108] sm:$0xff]
      %v554 = vld [vmem:[%s236 + $0x110] sm:$0xff]
      %v555 = vld [vmem:[%s236 + $0x118] sm:$0xff]
      %v556 = vld [vmem:[%s236 + $0x120] sm:$0xff]
      %v557 = vld [vmem:[%s236 + $0x128] sm:$0xff]
      %v558 = vld [vmem:[%s236 + $0x130] sm:$0xff]
      %v559 = vld [vmem:[%s236 + $0x138] sm:$0xff]
      %v560 = vld [vmem:[%s236 + $0x140] sm:$0xff]
      %v561 = vld [vmem:[%s236 + $0x148] sm:$0xff]
      %v562 = vld [vmem:[%s236 + $0x150] sm:$0xff]
      %v563 = vld [vmem:[%s236 + $0x158] sm:$0xff]
      %v564 = vld [vmem:[%s236 + $0x160] sm:$0xff]
      %v565 = vld [vmem:[%s236 + $0x168] sm:$0xff]
      %v566 = vld [vmem:[%s236 + $0x170] sm:$0xff]
      %v567 = vld [vmem:[%s236 + $0x178] sm:$0xff]
      %v568 = vld [vmem:[%s236 + $0x180] sm:$0xff]
      %v569 = vld [vmem:[%s236 + $0x188] sm:$0xff]
      %v570 = vld [vmem:[%s236 + $0x190] sm:$0xff]
      %v571 = vld [vmem:[%s236 + $0x198] sm:$0xff]
      %v572 = vld [vmem:[%s236 + $0x1a0] sm:$0xff]
      %v573 = vld [vmem:[%s236 + $0x1a8] sm:$0xff]
      %v574 = vld [vmem:[%s236 + $0x1b0] sm:$0xff]
      %v575 = vld [vmem:[%s236 + $0x1b8] sm:$0xff]
      %v576 = vld [vmem:[%s236 + $0x1c0] sm:$0xff]
      %v577 = vld [vmem:[%s236 + $0x1c8] sm:$0xff]
      %v578 = vld [vmem:[%s236 + $0x1d0] sm:$0xff]
      %v579 = vld [vmem:[%s236 + $0x1d8] sm:$0xff]
      %v580 = vld [vmem:[%s236 + $0x1e0] sm:$0xff]
      %v581 = vld [vmem:[%s236 + $0x1e8] sm:$0xff]
      %v582 = vld [vmem:[%s236 + $0x1f0] sm:$0xff]
      %v583 = vld [vmem:[%s236 + $0x1f8] sm:$0xff]
      %v584 = vld [vmem:[%s236 + $0x200] sm:$0xff]
      %v585 = vld [vmem:[%s236 + $0x208] sm:$0xff]
      %v586 = vld [vmem:[%s236 + $0x210] sm:$0xff]
      %v587 = vld [vmem:[%s236 + $0x218] sm:$0xff]
      %v588 = vld [vmem:[%s236 + $0x220] sm:$0xff]
      %v589 = vld [vmem:[%s236 + $0x228] sm:$0xff]
      %v590 = vld [vmem:[%s236 + $0x230] sm:$0xff]
      %v591 = vld [vmem:[%s236 + $0x238] sm:$0xff]
      %v592 = vld [vmem:[%s236 + $0x240] sm:$0xff]
      %v593 = vld [vmem:[%s236 + $0x248] sm:$0xff]
      %v594 = vld [vmem:[%s236 + $0x250] sm:$0xff]
      %v595 = vld [vmem:[%s236 + $0x258] sm:$0xff]
      %v596 = vld [vmem:[%s236 + $0x260] sm:$0xff]
      %v597 = vld [vmem:[%s236 + $0x268] sm:$0xff]
      %v598 = vld [vmem:[%s236 + $0x270] sm:$0xff]
      %v599 = vld [vmem:[%s236 + $0x278] sm:$0xff]
      %v600 = vld [vmem:[%s236 + $0x280] sm:$0xff]
      %v601 = vld [vmem:[%s236 + $0x288] sm:$0xff]
      %v602 = vld [vmem:[%s236 + $0x290] sm:$0xff]
      %v603 = vld [vmem:[%s236 + $0x298] sm:$0xff]
      %v604 = vld [vmem:[%s236 + $0x2a0] sm:$0xff]
      %v605 = vld [vmem:[%s236 + $0x2a8] sm:$0xff]
      %v606 = vld [vmem:[%s236 + $0x2b0] sm:$0xff]
      %v607 = vld [vmem:[%s236 + $0x2b8] sm:$0xff]
      %v608 = vld [vmem:[%s236 + $0x2c0] sm:$0xff]
      %v609 = vld [vmem:[%s236 + $0x2c8] sm:$0xff]
      %v610 = vld [vmem:[%s236 + $0x2d0] sm:$0xff]
      %v611 = vld [vmem:[%s236 + $0x2d8] sm:$0xff]
      %v612 = vld [vmem:[%s236 + $0x2e0] sm:$0xff]
      %v613 = vld [vmem:[%s236 + $0x2e8] sm:$0xff]
      %v614 = vld [vmem:[%s236 + $0x2f0] sm:$0xff]
      %v615 = vld [vmem:[%s236 + $0x2f8] sm:$0xff]
      %v616 = vld [vmem:[%s236 + $0x300] sm:$0xff]
      %v617 = vld [vmem:[%s236 + $0x308] sm:$0xff]
      %v618 = vld [vmem:[%s236 + $0x310] sm:$0xff]
      %v619 = vld [vmem:[%s236 + $0x318] sm:$0xff]
      %v620 = vld [vmem:[%s236 + $0x320] sm:$0xff]
      %v621 = vld [vmem:[%s236 + $0x328] sm:$0xff]
      %v622 = vld [vmem:[%s236 + $0x330] sm:$0xff]
      %v623 = vld [vmem:[%s236 + $0x338] sm:$0xff]
      %v624 = vld [vmem:[%s236 + $0x340] sm:$0xff]
      %v625 = vld [vmem:[%s236 + $0x348] sm:$0xff]
      %v626 = vld [vmem:[%s236 + $0x350] sm:$0xff]
      %v627 = vld [vmem:[%s236 + $0x358] sm:$0xff]
      %v628 = vld [vmem:[%s236 + $0x360] sm:$0xff]
      %v629 = vld [vmem:[%s236 + $0x368] sm:$0xff]
      %v630 = vld [vmem:[%s236 + $0x370] sm:$0xff]
      %v631 = vld [vmem:[%s236 + $0x378] sm:$0xff]
      %v632 = vld [vmem:[%s236 + $0x380] sm:$0xff]
      %v633 = vld [vmem:[%s236 + $0x388] sm:$0xff]
      %v634 = vld [vmem:[%s236 + $0x390] sm:$0xff]
      %v635 = vld [vmem:[%s236 + $0x398] sm:$0xff]
      %v636 = vld [vmem:[%s236 + $0x3a0] sm:$0xff]
      %v637 = vld [vmem:[%s236 + $0x3a8] sm:$0xff]
      %v638 = vld [vmem:[%s236 + $0x3b0] sm:$0xff]
      %v639 = vld [vmem:[%s236 + $0x3b8] sm:$0xff]
      %v640 = vld [vmem:[%s236 + $0x3c0] sm:$0xff]
      %v641 = vld [vmem:[%s236 + $0x3c8] sm:$0xff]
      %v642 = vld [vmem:[%s236 + $0x3d0] sm:$0xff]
      %v643 = vld [vmem:[%s236 + $0x3d8] sm:$0xff]
      %v644 = vld [vmem:[%s236 + $0x3e0] sm:$0xff]
      %v645 = vld [vmem:[%s236 + $0x3e8] sm:$0xff]
      %v646 = vld [vmem:[%s236 + $0x3f0] sm:$0xff]
      %v647 = vld [vmem:[%s236 + $0x3f8] sm:$0xff]
      %v648 = vpack.c.bf16 %v521, %v520
      %v649 = vpack.c.bf16 %v523, %v522
      %v650 = vpack.c.bf16 %v525, %v524
      %v651 = vpack.c.bf16 %v527, %v526
      %v652 = vpack.c.bf16 %v529, %v528
      %v653 = vpack.c.bf16 %v531, %v530
      %v654 = vpack.c.bf16 %v533, %v532
      %v655 = vpack.c.bf16 %v535, %v534
      %v656 = vpack.c.bf16 %v537, %v536
      %v657 = vpack.c.bf16 %v539, %v538
      %v658 = vpack.c.bf16 %v541, %v540
      %v659 = vpack.c.bf16 %v543, %v542
      %v660 = vpack.c.bf16 %v545, %v544
      %v661 = vpack.c.bf16 %v547, %v546
      %v662 = vpack.c.bf16 %v549, %v548
      %v663 = vpack.c.bf16 %v551, %v550
      %v664 = vpack.c.bf16 %v553, %v552
      %v665 = vpack.c.bf16 %v555, %v554
      %v666 = vpack.c.bf16 %v557, %v556
      %v667 = vpack.c.bf16 %v559, %v558
      %v668 = vpack.c.bf16 %v561, %v560
      %v669 = vpack.c.bf16 %v563, %v562
      %v670 = vpack.c.bf16 %v565, %v564
      %v671 = vpack.c.bf16 %v567, %v566
      %v672 = vpack.c.bf16 %v569, %v568
      %v673 = vpack.c.bf16 %v571, %v570
      %v674 = vpack.c.bf16 %v573, %v572
      %v675 = vpack.c.bf16 %v575, %v574
      %v676 = vpack.c.bf16 %v577, %v576
      %v677 = vpack.c.bf16 %v579, %v578
      %v678 = vpack.c.bf16 %v581, %v580
      %v679 = vpack.c.bf16 %v583, %v582
      %v680 = vpack.c.bf16 %v585, %v584
      %v681 = vpack.c.bf16 %v587, %v586
      %v682 = vpack.c.bf16 %v589, %v588
      %v683 = vpack.c.bf16 %v591, %v590
      %v684 = vpack.c.bf16 %v593, %v592
      %v685 = vpack.c.bf16 %v595, %v594
      %v686 = vpack.c.bf16 %v597, %v596
      %v687 = vpack.c.bf16 %v599, %v598
      %v688 = vpack.c.bf16 %v601, %v600
      %v689 = vpack.c.bf16 %v603, %v602
      %v690 = vpack.c.bf16 %v605, %v604
      %v691 = vpack.c.bf16 %v607, %v606
      %v692 = vpack.c.bf16 %v609, %v608
      %v693 = vpack.c.bf16 %v611, %v610
      %v694 = vpack.c.bf16 %v613, %v612
      %v695 = vpack.c.bf16 %v615, %v614
      %v696 = vpack.c.bf16 %v617, %v616
      %v697 = vpack.c.bf16 %v619, %v618
      %v698 = vpack.c.bf16 %v621, %v620
      %v699 = vpack.c.bf16 %v623, %v622
      %v700 = vpack.c.bf16 %v625, %v624
      %v701 = vpack.c.bf16 %v627, %v626
      %v702 = vpack.c.bf16 %v629, %v628
      %v703 = vpack.c.bf16 %v631, %v630
      %v704 = vpack.c.bf16 %v633, %v632
      %v705 = vpack.c.bf16 %v635, %v634
      %v706 = vpack.c.bf16 %v637, %v636
      %v707 = vpack.c.bf16 %v639, %v638
      %v708 = vpack.c.bf16 %v641, %v640
      %v709 = vpack.c.bf16 %v643, %v642
      %v710 = vpack.c.bf16 %v645, %v644
      %v711 = vpack.c.bf16 %v647, %v646
      %v712 = vld [vmem:[%s245] sm:$0xf]
      %v713 = vld [vmem:[%s245 + $0x4] sm:$0xf]
      %v714 = vld [vmem:[%s245 + $0x8] sm:$0xf]
      %v715 = vld [vmem:[%s245 + $0xc] sm:$0x3]
      %v720 = vunpack.c.l.b16 %v712
      %v721 = vunpack.c.l.b16 %v713
      %v722 = vunpack.c.l.b16 %v714
      %v723 = vunpack.c.l.b16 %v715
      %v724 = vpack.c.b16 %v721, %v720
      %v725 = vpack.c.b16 %v723, %v722
      %vm727 = vcmask 220160
      %v729 = vsel %vm727, %v648, 0
      %v732 = vsel %vm727, %v649, 0
      %v735 = vsel %vm727, %v650, 0
      %v738 = vsel %vm727, %v651, 0
      %v741 = vsel %vm727, %v652, 0
      %v744 = vsel %vm727, %v653, 0
      %v747 = vsel %vm727, %v654, 0
      %v750 = vsel %vm727, %v655, 0
      %v753 = vsel %vm727, %v656, 0
      %v756 = vsel %vm727, %v657, 0
      %v759 = vsel %vm727, %v658, 0
      %v762 = vsel %vm727, %v659, 0
      %v765 = vsel %vm727, %v660, 0
      %v768 = vsel %vm727, %v661, 0
      %v771 = vsel %vm727, %v662, 0
      %v774 = vsel %vm727, %v663, 0
      %v777 = vsel %vm727, %v664, 0
      %v780 = vsel %vm727, %v665, 0
      %v783 = vsel %vm727, %v666, 0
      %v786 = vsel %vm727, %v667, 0
      %v789 = vsel %vm727, %v668, 0
      %v792 = vsel %vm727, %v669, 0
      %v795 = vsel %vm727, %v670, 0
      %v798 = vsel %vm727, %v671, 0
      %v801 = vsel %vm727, %v672, 0
      %v804 = vsel %vm727, %v673, 0
      %v807 = vsel %vm727, %v674, 0
      %v810 = vsel %vm727, %v675, 0
      %v813 = vsel %vm727, %v676, 0
      %v816 = vsel %vm727, %v677, 0
      %v819 = vsel %vm727, %v678, 0
      %v822 = vsel %vm727, %v679, 0
      %v825 = vsel %vm727, %v680, 0
      %v828 = vsel %vm727, %v681, 0
      %v831 = vsel %vm727, %v682, 0
      %v834 = vsel %vm727, %v683, 0
      %v837 = vsel %vm727, %v684, 0
      %v840 = vsel %vm727, %v685, 0
      %v843 = vsel %vm727, %v686, 0
      %v846 = vsel %vm727, %v687, 0
      %v849 = vsel %vm727, %v688, 0
      %v852 = vsel %vm727, %v689, 0
      %v855 = vsel %vm727, %v690, 0
      %v858 = vsel %vm727, %v691, 0
      %v861 = vsel %vm727, %v692, 0
      %v864 = vsel %vm727, %v693, 0
      %v867 = vsel %vm727, %v694, 0
      %v870 = vsel %vm727, %v695, 0
      %v873 = vsel %vm727, %v696, 0
      %v876 = vsel %vm727, %v697, 0
      %v879 = vsel %vm727, %v698, 0
      %v882 = vsel %vm727, %v699, 0
      %v885 = vsel %vm727, %v700, 0
      %v888 = vsel %vm727, %v701, 0
      %v891 = vsel %vm727, %v702, 0
      %v894 = vsel %vm727, %v703, 0
      %v897 = vsel %vm727, %v704, 0
      %v900 = vsel %vm727, %v705, 0
      %v903 = vsel %vm727, %v706, 0
      %v906 = vsel %vm727, %v707, 0
      %v909 = vsel %vm727, %v708, 0
      %v912 = vsel %vm727, %v709, 0
      %v915 = vsel %vm727, %v710, 0
      %v918 = vsel %vm727, %v711, 0
      %vm920 = vcmask 1044480
      %vm921 = vcmask 1045504
      %v922 = vsel %vm920, 4294967295, 65535
      %v923 = vsel %vm921, %v922, 0
      %v925 = vand.u32 %v725, %v923
      %927 = vmatprep.subr.bf16.mxu0 0
      %928 = vmatpush1.bf16.msra.mxu0 0
      %929 = vmatprep.subr.bf16.mxu0 0
      %930 = vmatpush1.bf16.msra.mxu0 0
      %931 = vmatprep.subr.bf16.mxu0 0
      %932 = vmatpush1.bf16.msra.mxu0 0
      %933 = vmatprep.subr.bf16.mxu0 0
      %934 = vmatpush1.bf16.msra.mxu0 0
      %935 = vmatprep.subr.bf16.mxu0 0
      %936 = vmatpush1.bf16.msra.mxu0 0
      %937 = vmatprep.subr.bf16.mxu0 0
      %938 = vmatpush1.bf16.msra.mxu0 0
      %939 = vmatprep.subr.bf16.mxu0 0
      %940 = vmatpush1.bf16.msra.mxu0 %v925
      %941 = vmatprep.subr.bf16.mxu0 0
      %942 = vmatpush1.bf16.msra.mxu0 %v724
      %943 = vmatprep.subr.bf16.mxu0 0
      %944 = vmatpush2.bf16.msra.mxu0 0
      %945 = vmatprep.subr.bf16.mxu0 0
      %946 = vmatpush2.bf16.msra.mxu0 0
      %947 = vmatprep.subr.bf16.mxu0 0
      %948 = vmatpush2.bf16.msra.mxu0 0
      %949 = vmatprep.subr.bf16.mxu0 0
      %950 = vmatpush2.bf16.msra.mxu0 0
      %951 = vmatprep.subr.bf16.mxu0 0
      %952 = vmatpush2.bf16.msra.mxu0 0
      %953 = vmatprep.subr.bf16.mxu0 0
      %954 = vmatpush2.bf16.msra.mxu0 0
      %955 = vmatprep.subr.bf16.mxu0 0
      %956 = vmatpush2.bf16.msra.mxu0 0
      %957 = vmatprep.subr.bf16.mxu0 0
      %958 = vmatpush2.bf16.msra.mxu0 0
      %959 = vmatprep.mubr.bf16.mxu0 0
      %960 = vmatmul.mubr.bf16.gmra.mxu0 %v729
      %v961 = vpop.f32.mrf.mxu0
      %v962 = vadd.f32 0.0, %v961
      %v963 = vpop.f32.mrf.mxu0
      %v964 = vpop.f32.mrf.mxu0
      %v965 = vadd.f32 0.0, %v964
      %v966 = vpop.f32.mrf.mxu0
      %967 = vmatprep.mubr.bf16.mxu0 0
      %968 = vmatmul.mubr.bf16.gmra.mxu0 %v732
      %v969 = vpop.f32.mrf.mxu0
      %v970 = vadd.f32 0.0, %v969
      %v971 = vpop.f32.mrf.mxu0
      %v972 = vpop.f32.mrf.mxu0
      %v973 = vadd.f32 0.0, %v972
      %v974 = vpop.f32.mrf.mxu0
      %975 = vmatprep.mubr.bf16.mxu0 0
      %976 = vmatmul.mubr.bf16.gmra.mxu0 %v735
      %v977 = vpop.f32.mrf.mxu0
      %v978 = vadd.f32 0.0, %v977
      %v979 = vpop.f32.mrf.mxu0
      %v980 = vpop.f32.mrf.mxu0
      %v981 = vadd.f32 0.0, %v980
      %v982 = vpop.f32.mrf.mxu0
      %983 = vmatprep.mubr.bf16.mxu0 0
      %984 = vmatmul.mubr.bf16.gmra.mxu0 %v738
      %v985 = vpop.f32.mrf.mxu0
      %v986 = vadd.f32 0.0, %v985
      %v987 = vpop.f32.mrf.mxu0
      %v988 = vpop.f32.mrf.mxu0
      %v989 = vadd.f32 0.0, %v988
      %v990 = vpop.f32.mrf.mxu0
      %991 = vmatprep.mubr.bf16.mxu0 0
      %992 = vmatmul.mubr.bf16.gmra.mxu0 %v741
      %v993 = vpop.f32.mrf.mxu0
      %v994 = vadd.f32 0.0, %v993
      %v995 = vpop.f32.mrf.mxu0
      %v996 = vpop.f32.mrf.mxu0
      %v997 = vadd.f32 0.0, %v996
      %v998 = vpop.f32.mrf.mxu0
      %999 = vmatprep.mubr.bf16.mxu0 0
      %1000 = vmatmul.mubr.bf16.gmra.mxu0 %v744
      %v1001 = vpop.f32.mrf.mxu0
      %v1002 = vadd.f32 0.0, %v1001
      %v1003 = vpop.f32.mrf.mxu0
      %v1004 = vpop.f32.mrf.mxu0
      %v1005 = vadd.f32 0.0, %v1004
      %v1006 = vpop.f32.mrf.mxu0
      %1007 = vmatprep.mubr.bf16.mxu0 0
      %1008 = vmatmul.mubr.bf16.gmra.mxu0 %v747
      %v1009 = vpop.f32.mrf.mxu0
      %v1010 = vadd.f32 0.0, %v1009
      %v1011 = vpop.f32.mrf.mxu0
      %v1012 = vpop.f32.mrf.mxu0
      %v1013 = vadd.f32 0.0, %v1012
      %v1014 = vpop.f32.mrf.mxu0
      %1015 = vmatprep.mubr.bf16.mxu0 0
      %1016 = vmatmul.mubr.bf16.gmra.mxu0 %v750
      %v1017 = vpop.f32.mrf.mxu0
      %v1018 = vadd.f32 0.0, %v1017
      %v1019 = vpop.f32.mrf.mxu0
      %v1020 = vpop.f32.mrf.mxu0
      %v1021 = vadd.f32 0.0, %v1020
      %v1022 = vpop.f32.mrf.mxu0
      %1023 = vmatprep.mubr.bf16.mxu0 0
      %1024 = vmatmul.mubr.bf16.gmra.mxu0 %v753
      %v1025 = vpop.f32.mrf.mxu0
      %v1026 = vadd.f32 0.0, %v1025
      %v1027 = vpop.f32.mrf.mxu0
      %v1028 = vpop.f32.mrf.mxu0
      %v1029 = vadd.f32 0.0, %v1028
      %v1030 = vpop.f32.mrf.mxu0
      %1031 = vmatprep.mubr.bf16.mxu0 0
      %1032 = vmatmul.mubr.bf16.gmra.mxu0 %v756
      %v1033 = vpop.f32.mrf.mxu0
      %v1034 = vadd.f32 0.0, %v1033
      %v1035 = vpop.f32.mrf.mxu0
      %v1036 = vpop.f32.mrf.mxu0
      %v1037 = vadd.f32 0.0, %v1036
      %v1038 = vpop.f32.mrf.mxu0
      %1039 = vmatprep.mubr.bf16.mxu0 0
      %1040 = vmatmul.mubr.bf16.gmra.mxu0 %v759
      %v1041 = vpop.f32.mrf.mxu0
      %v1042 = vadd.f32 0.0, %v1041
      %v1043 = vpop.f32.mrf.mxu0
      %v1044 = vpop.f32.mrf.mxu0
      %v1045 = vadd.f32 0.0, %v1044
      %v1046 = vpop.f32.mrf.mxu0
      %1047 = vmatprep.mubr.bf16.mxu0 0
      %1048 = vmatmul.mubr.bf16.gmra.mxu0 %v762
      %v1049 = vpop.f32.mrf.mxu0
      %v1050 = vadd.f32 0.0, %v1049
      %v1051 = vpop.f32.mrf.mxu0
      %v1052 = vpop.f32.mrf.mxu0
      %v1053 = vadd.f32 0.0, %v1052
      %v1054 = vpop.f32.mrf.mxu0
      %1055 = vmatprep.mubr.bf16.mxu0 0
      %1056 = vmatmul.mubr.bf16.gmra.mxu0 %v765
      %v1057 = vpop.f32.mrf.mxu0
      %v1058 = vadd.f32 0.0, %v1057
      %v1059 = vpop.f32.mrf.mxu0
      %v1060 = vpop.f32.mrf.mxu0
      %v1061 = vadd.f32 0.0, %v1060
      %v1062 = vpop.f32.mrf.mxu0
      %1063 = vmatprep.mubr.bf16.mxu0 0
      %1064 = vmatmul.mubr.bf16.gmra.mxu0 %v768
      %v1065 = vpop.f32.mrf.mxu0
      %v1066 = vadd.f32 0.0, %v1065
      %v1067 = vpop.f32.mrf.mxu0
      %v1068 = vpop.f32.mrf.mxu0
      %v1069 = vadd.f32 0.0, %v1068
      %v1070 = vpop.f32.mrf.mxu0
      %1071 = vmatprep.mubr.bf16.mxu0 0
      %1072 = vmatmul.mubr.bf16.gmra.mxu0 %v771
      %v1073 = vpop.f32.mrf.mxu0
      %v1074 = vadd.f32 0.0, %v1073
      %v1075 = vpop.f32.mrf.mxu0
      %v1076 = vpop.f32.mrf.mxu0
      %v1077 = vadd.f32 0.0, %v1076
      %v1078 = vpop.f32.mrf.mxu0
      %1079 = vmatprep.mubr.bf16.mxu0 0
      %1080 = vmatmul.mubr.bf16.gmra.mxu0 %v774
      %v1081 = vpop.f32.mrf.mxu0
      %v1082 = vadd.f32 0.0, %v1081
      %v1083 = vpop.f32.mrf.mxu0
      %v1084 = vpop.f32.mrf.mxu0
      %v1085 = vadd.f32 0.0, %v1084
      %v1086 = vpop.f32.mrf.mxu0
      %1087 = vmatprep.mubr.bf16.mxu0 0
      %1088 = vmatmul.mubr.bf16.gmra.mxu0 %v777
      %v1089 = vpop.f32.mrf.mxu0
      %v1090 = vadd.f32 0.0, %v1089
      %v1091 = vpop.f32.mrf.mxu0
      %v1092 = vpop.f32.mrf.mxu0
      %v1093 = vadd.f32 0.0, %v1092
      %v1094 = vpop.f32.mrf.mxu0
      %1095 = vmatprep.mubr.bf16.mxu0 0
      %1096 = vmatmul.mubr.bf16.gmra.mxu0 %v780
      %v1097 = vpop.f32.mrf.mxu0
      %v1098 = vadd.f32 0.0, %v1097
      %v1099 = vpop.f32.mrf.mxu0
      %v1100 = vpop.f32.mrf.mxu0
      %v1101 = vadd.f32 0.0, %v1100
      %v1102 = vpop.f32.mrf.mxu0
      %1103 = vmatprep.mubr.bf16.mxu0 0
      %1104 = vmatmul.mubr.bf16.gmra.mxu0 %v783
      %v1105 = vpop.f32.mrf.mxu0
      %v1106 = vadd.f32 0.0, %v1105
      %v1107 = vpop.f32.mrf.mxu0
      %v1108 = vpop.f32.mrf.mxu0
      %v1109 = vadd.f32 0.0, %v1108
      %v1110 = vpop.f32.mrf.mxu0
      %1111 = vmatprep.mubr.bf16.mxu0 0
      %1112 = vmatmul.mubr.bf16.gmra.mxu0 %v786
      %v1113 = vpop.f32.mrf.mxu0
      %v1114 = vadd.f32 0.0, %v1113
      %v1115 = vpop.f32.mrf.mxu0
      %v1116 = vpop.f32.mrf.mxu0
      %v1117 = vadd.f32 0.0, %v1116
      %v1118 = vpop.f32.mrf.mxu0
      %1119 = vmatprep.mubr.bf16.mxu0 0
      %1120 = vmatmul.mubr.bf16.gmra.mxu0 %v789
      %v1121 = vpop.f32.mrf.mxu0
      %v1122 = vadd.f32 0.0, %v1121
      %v1123 = vpop.f32.mrf.mxu0
      %v1124 = vpop.f32.mrf.mxu0
      %v1125 = vadd.f32 0.0, %v1124
      %v1126 = vpop.f32.mrf.mxu0
      %1127 = vmatprep.mubr.bf16.mxu0 0
      %1128 = vmatmul.mubr.bf16.gmra.mxu0 %v792
      %v1129 = vpop.f32.mrf.mxu0
      %v1130 = vadd.f32 0.0, %v1129
      %v1131 = vpop.f32.mrf.mxu0
      %v1132 = vpop.f32.mrf.mxu0
      %v1133 = vadd.f32 0.0, %v1132
      %v1134 = vpop.f32.mrf.mxu0
      %1135 = vmatprep.mubr.bf16.mxu0 0
      %1136 = vmatmul.mubr.bf16.gmra.mxu0 %v795
      %v1137 = vpop.f32.mrf.mxu0
      %v1138 = vadd.f32 0.0, %v1137
      %v1139 = vpop.f32.mrf.mxu0
      %v1140 = vpop.f32.mrf.mxu0
      %v1141 = vadd.f32 0.0, %v1140
      %v1142 = vpop.f32.mrf.mxu0
      %1143 = vmatprep.mubr.bf16.mxu0 0
      %1144 = vmatmul.mubr.bf16.gmra.mxu0 %v798
      %v1145 = vpop.f32.mrf.mxu0
      %v1146 = vadd.f32 0.0, %v1145
      %v1147 = vpop.f32.mrf.mxu0
      %v1148 = vpop.f32.mrf.mxu0
      %v1149 = vadd.f32 0.0, %v1148
      %v1150 = vpop.f32.mrf.mxu0
      %1151 = vmatprep.mubr.bf16.mxu0 0
      %1152 = vmatmul.mubr.bf16.gmra.mxu0 %v801
      %v1153 = vpop.f32.mrf.mxu0
      %v1154 = vadd.f32 0.0, %v1153
      %v1155 = vpop.f32.mrf.mxu0
      %v1156 = vpop.f32.mrf.mxu0
      %v1157 = vadd.f32 0.0, %v1156
      %v1158 = vpop.f32.mrf.mxu0
      %1159 = vmatprep.mubr.bf16.mxu0 0
      %1160 = vmatmul.mubr.bf16.gmra.mxu0 %v804
      %v1161 = vpop.f32.mrf.mxu0
      %v1162 = vadd.f32 0.0, %v1161
      %v1163 = vpop.f32.mrf.mxu0
      %v1164 = vpop.f32.mrf.mxu0
      %v1165 = vadd.f32 0.0, %v1164
      %v1166 = vpop.f32.mrf.mxu0
      %1167 = vmatprep.mubr.bf16.mxu0 0
      %1168 = vmatmul.mubr.bf16.gmra.mxu0 %v807
      %v1169 = vpop.f32.mrf.mxu0
      %v1170 = vadd.f32 0.0, %v1169
      %v1171 = vpop.f32.mrf.mxu0
      %v1172 = vpop.f32.mrf.mxu0
      %v1173 = vadd.f32 0.0, %v1172
      %v1174 = vpop.f32.mrf.mxu0
      %1175 = vmatprep.mubr.bf16.mxu0 0
      %1176 = vmatmul.mubr.bf16.gmra.mxu0 %v810
      %v1177 = vpop.f32.mrf.mxu0
      %v1178 = vadd.f32 0.0, %v1177
      %v1179 = vpop.f32.mrf.mxu0
      %v1180 = vpop.f32.mrf.mxu0
      %v1181 = vadd.f32 0.0, %v1180
      %v1182 = vpop.f32.mrf.mxu0
      %1183 = vmatprep.mubr.bf16.mxu0 0
      %1184 = vmatmul.mubr.bf16.gmra.mxu0 %v813
      %v1185 = vpop.f32.mrf.mxu0
      %v1186 = vadd.f32 0.0, %v1185
      %v1187 = vpop.f32.mrf.mxu0
      %v1188 = vpop.f32.mrf.mxu0
      %v1189 = vadd.f32 0.0, %v1188
      %v1190 = vpop.f32.mrf.mxu0
      %1191 = vmatprep.mubr.bf16.mxu0 0
      %1192 = vmatmul.mubr.bf16.gmra.mxu0 %v816
      %v1193 = vpop.f32.mrf.mxu0
      %v1194 = vadd.f32 0.0, %v1193
      %v1195 = vpop.f32.mrf.mxu0
      %v1196 = vpop.f32.mrf.mxu0
      %v1197 = vadd.f32 0.0, %v1196
      %v1198 = vpop.f32.mrf.mxu0
      %1199 = vmatprep.mubr.bf16.mxu0 0
      %1200 = vmatmul.mubr.bf16.gmra.mxu0 %v819
      %v1201 = vpop.f32.mrf.mxu0
      %v1202 = vadd.f32 0.0, %v1201
      %v1203 = vpop.f32.mrf.mxu0
      %v1204 = vpop.f32.mrf.mxu0
      %v1205 = vadd.f32 0.0, %v1204
      %v1206 = vpop.f32.mrf.mxu0
      %1207 = vmatprep.mubr.bf16.mxu0 0
      %1208 = vmatmul.mubr.bf16.gmra.mxu0 %v822
      %v1209 = vpop.f32.mrf.mxu0
      %v1210 = vadd.f32 0.0, %v1209
      %v1211 = vpop.f32.mrf.mxu0
      %v1212 = vpop.f32.mrf.mxu0
      %v1213 = vadd.f32 0.0, %v1212
      %v1214 = vpop.f32.mrf.mxu0
      %1215 = vmatprep.mubr.bf16.mxu0 0
      %1216 = vmatmul.mubr.bf16.gmra.mxu0 %v825
      %v1217 = vpop.f32.mrf.mxu0
      %v1218 = vadd.f32 0.0, %v1217
      %v1219 = vpop.f32.mrf.mxu0
      %v1220 = vpop.f32.mrf.mxu0
      %v1221 = vadd.f32 0.0, %v1220
      %v1222 = vpop.f32.mrf.mxu0
      %1223 = vmatprep.mubr.bf16.mxu0 0
      %1224 = vmatmul.mubr.bf16.gmra.mxu0 %v828
      %v1225 = vpop.f32.mrf.mxu0
      %v1226 = vadd.f32 0.0, %v1225
      %v1227 = vpop.f32.mrf.mxu0
      %v1228 = vpop.f32.mrf.mxu0
      %v1229 = vadd.f32 0.0, %v1228
      %v1230 = vpop.f32.mrf.mxu0
      %1231 = vmatprep.mubr.bf16.mxu0 0
      %1232 = vmatmul.mubr.bf16.gmra.mxu0 %v831
      %v1233 = vpop.f32.mrf.mxu0
      %v1234 = vadd.f32 0.0, %v1233
      %v1235 = vpop.f32.mrf.mxu0
      %v1236 = vpop.f32.mrf.mxu0
      %v1237 = vadd.f32 0.0, %v1236
      %v1238 = vpop.f32.mrf.mxu0
      %1239 = vmatprep.mubr.bf16.mxu0 0
      %1240 = vmatmul.mubr.bf16.gmra.mxu0 %v834
      %v1241 = vpop.f32.mrf.mxu0
      %v1242 = vadd.f32 0.0, %v1241
      %v1243 = vpop.f32.mrf.mxu0
      %v1244 = vpop.f32.mrf.mxu0
      %v1245 = vadd.f32 0.0, %v1244
      %v1246 = vpop.f32.mrf.mxu0
      %1247 = vmatprep.mubr.bf16.mxu0 0
      %1248 = vmatmul.mubr.bf16.gmra.mxu0 %v837
      %v1249 = vpop.f32.mrf.mxu0
      %v1250 = vadd.f32 0.0, %v1249
      %v1251 = vpop.f32.mrf.mxu0
      %v1252 = vpop.f32.mrf.mxu0
      %v1253 = vadd.f32 0.0, %v1252
      %v1254 = vpop.f32.mrf.mxu0
      %1255 = vmatprep.mubr.bf16.mxu0 0
      %1256 = vmatmul.mubr.bf16.gmra.mxu0 %v840
      %v1257 = vpop.f32.mrf.mxu0
      %v1258 = vadd.f32 0.0, %v1257
      %v1259 = vpop.f32.mrf.mxu0
      %v1260 = vpop.f32.mrf.mxu0
      %v1261 = vadd.f32 0.0, %v1260
      %v1262 = vpop.f32.mrf.mxu0
      %1263 = vmatprep.mubr.bf16.mxu0 0
      %1264 = vmatmul.mubr.bf16.gmra.mxu0 %v843
      %v1265 = vpop.f32.mrf.mxu0
      %v1266 = vadd.f32 0.0, %v1265
      %v1267 = vpop.f32.mrf.mxu0
      %v1268 = vpop.f32.mrf.mxu0
      %v1269 = vadd.f32 0.0, %v1268
      %v1270 = vpop.f32.mrf.mxu0
      %1271 = vmatprep.mubr.bf16.mxu0 0
      %1272 = vmatmul.mubr.bf16.gmra.mxu0 %v846
      %v1273 = vpop.f32.mrf.mxu0
      %v1274 = vadd.f32 0.0, %v1273
      %v1275 = vpop.f32.mrf.mxu0
      %v1276 = vpop.f32.mrf.mxu0
      %v1277 = vadd.f32 0.0, %v1276
      %v1278 = vpop.f32.mrf.mxu0
      %1279 = vmatprep.mubr.bf16.mxu0 0
      %1280 = vmatmul.mubr.bf16.gmra.mxu0 %v849
      %v1281 = vpop.f32.mrf.mxu0
      %v1282 = vadd.f32 0.0, %v1281
      %v1283 = vpop.f32.mrf.mxu0
      %v1284 = vpop.f32.mrf.mxu0
      %v1285 = vadd.f32 0.0, %v1284
      %v1286 = vpop.f32.mrf.mxu0
      %1287 = vmatprep.mubr.bf16.mxu0 0
      %1288 = vmatmul.mubr.bf16.gmra.mxu0 %v852
      %v1289 = vpop.f32.mrf.mxu0
      %v1290 = vadd.f32 0.0, %v1289
      %v1291 = vpop.f32.mrf.mxu0
      %v1292 = vpop.f32.mrf.mxu0
      %v1293 = vadd.f32 0.0, %v1292
      %v1294 = vpop.f32.mrf.mxu0
      %1295 = vmatprep.mubr.bf16.mxu0 0
      %1296 = vmatmul.mubr.bf16.gmra.mxu0 %v855
      %v1297 = vpop.f32.mrf.mxu0
      %v1298 = vadd.f32 0.0, %v1297
      %v1299 = vpop.f32.mrf.mxu0
      %v1300 = vpop.f32.mrf.mxu0
      %v1301 = vadd.f32 0.0, %v1300
      %v1302 = vpop.f32.mrf.mxu0
      %1303 = vmatprep.mubr.bf16.mxu0 0
      %1304 = vmatmul.mubr.bf16.gmra.mxu0 %v858
      %v1305 = vpop.f32.mrf.mxu0
      %v1306 = vadd.f32 0.0, %v1305
      %v1307 = vpop.f32.mrf.mxu0
      %v1308 = vpop.f32.mrf.mxu0
      %v1309 = vadd.f32 0.0, %v1308
      %v1310 = vpop.f32.mrf.mxu0
      %1311 = vmatprep.mubr.bf16.mxu0 0
      %1312 = vmatmul.mubr.bf16.gmra.mxu0 %v861
      %v1313 = vpop.f32.mrf.mxu0
      %v1314 = vadd.f32 0.0, %v1313
      %v1315 = vpop.f32.mrf.mxu0
      %v1316 = vpop.f32.mrf.mxu0
      %v1317 = vadd.f32 0.0, %v1316
      %v1318 = vpop.f32.mrf.mxu0
      %1319 = vmatprep.mubr.bf16.mxu0 0
      %1320 = vmatmul.mubr.bf16.gmra.mxu0 %v864
      %v1321 = vpop.f32.mrf.mxu0
      %v1322 = vadd.f32 0.0, %v1321
      %v1323 = vpop.f32.mrf.mxu0
      %v1324 = vpop.f32.mrf.mxu0
      %v1325 = vadd.f32 0.0, %v1324
      %v1326 = vpop.f32.mrf.mxu0
      %1327 = vmatprep.mubr.bf16.mxu0 0
      %1328 = vmatmul.mubr.bf16.gmra.mxu0 %v867
      %v1329 = vpop.f32.mrf.mxu0
      %v1330 = vadd.f32 0.0, %v1329
      %v1331 = vpop.f32.mrf.mxu0
      %v1332 = vpop.f32.mrf.mxu0
      %v1333 = vadd.f32 0.0, %v1332
      %v1334 = vpop.f32.mrf.mxu0
      %1335 = vmatprep.mubr.bf16.mxu0 0
      %1336 = vmatmul.mubr.bf16.gmra.mxu0 %v870
      %v1337 = vpop.f32.mrf.mxu0
      %v1338 = vadd.f32 0.0, %v1337
      %v1339 = vpop.f32.mrf.mxu0
      %v1340 = vpop.f32.mrf.mxu0
      %v1341 = vadd.f32 0.0, %v1340
      %v1342 = vpop.f32.mrf.mxu0
      %1343 = vmatprep.mubr.bf16.mxu0 0
      %1344 = vmatmul.mubr.bf16.gmra.mxu0 %v873
      %v1345 = vpop.f32.mrf.mxu0
      %v1346 = vadd.f32 0.0, %v1345
      %v1347 = vpop.f32.mrf.mxu0
      %v1348 = vpop.f32.mrf.mxu0
      %v1349 = vadd.f32 0.0, %v1348
      %v1350 = vpop.f32.mrf.mxu0
      %1351 = vmatprep.mubr.bf16.mxu0 0
      %1352 = vmatmul.mubr.bf16.gmra.mxu0 %v876
      %v1353 = vpop.f32.mrf.mxu0
      %v1354 = vadd.f32 0.0, %v1353
      %v1355 = vpop.f32.mrf.mxu0
      %v1356 = vpop.f32.mrf.mxu0
      %v1357 = vadd.f32 0.0, %v1356
      %v1358 = vpop.f32.mrf.mxu0
      %1359 = vmatprep.mubr.bf16.mxu0 0
      %1360 = vmatmul.mubr.bf16.gmra.mxu0 %v879
      %v1361 = vpop.f32.mrf.mxu0
      %v1362 = vadd.f32 0.0, %v1361
      %v1363 = vpop.f32.mrf.mxu0
      %v1364 = vpop.f32.mrf.mxu0
      %v1365 = vadd.f32 0.0, %v1364
      %v1366 = vpop.f32.mrf.mxu0
      %1367 = vmatprep.mubr.bf16.mxu0 0
      %1368 = vmatmul.mubr.bf16.gmra.mxu0 %v882
      %v1369 = vpop.f32.mrf.mxu0
      %v1370 = vadd.f32 0.0, %v1369
      %v1371 = vpop.f32.mrf.mxu0
      %v1372 = vpop.f32.mrf.mxu0
      %v1373 = vadd.f32 0.0, %v1372
      %v1374 = vpop.f32.mrf.mxu0
      %1375 = vmatprep.mubr.bf16.mxu0 0
      %1376 = vmatmul.mubr.bf16.gmra.mxu0 %v885
      %v1377 = vpop.f32.mrf.mxu0
      %v1378 = vadd.f32 0.0, %v1377
      %v1379 = vpop.f32.mrf.mxu0
      %v1380 = vpop.f32.mrf.mxu0
      %v1381 = vadd.f32 0.0, %v1380
      %v1382 = vpop.f32.mrf.mxu0
      %1383 = vmatprep.mubr.bf16.mxu0 0
      %1384 = vmatmul.mubr.bf16.gmra.mxu0 %v888
      %v1385 = vpop.f32.mrf.mxu0
      %v1386 = vadd.f32 0.0, %v1385
      %v1387 = vpop.f32.mrf.mxu0
      %v1388 = vpop.f32.mrf.mxu0
      %v1389 = vadd.f32 0.0, %v1388
      %v1390 = vpop.f32.mrf.mxu0
      %1391 = vmatprep.mubr.bf16.mxu0 0
      %1392 = vmatmul.mubr.bf16.gmra.mxu0 %v891
      %v1393 = vpop.f32.mrf.mxu0
      %v1394 = vadd.f32 0.0, %v1393
      %v1395 = vpop.f32.mrf.mxu0
      %v1396 = vpop.f32.mrf.mxu0
      %v1397 = vadd.f32 0.0, %v1396
      %v1398 = vpop.f32.mrf.mxu0
      %1399 = vmatprep.mubr.bf16.mxu0 0
      %1400 = vmatmul.mubr.bf16.gmra.mxu0 %v894
      %v1401 = vpop.f32.mrf.mxu0
      %v1402 = vadd.f32 0.0, %v1401
      %v1403 = vpop.f32.mrf.mxu0
      %v1404 = vpop.f32.mrf.mxu0
      %v1405 = vadd.f32 0.0, %v1404
      %v1406 = vpop.f32.mrf.mxu0
      %1407 = vmatprep.mubr.bf16.mxu0 0
      %1408 = vmatmul.mubr.bf16.gmra.mxu0 %v897
      %v1409 = vpop.f32.mrf.mxu0
      %v1410 = vadd.f32 0.0, %v1409
      %v1411 = vpop.f32.mrf.mxu0
      %v1412 = vpop.f32.mrf.mxu0
      %v1413 = vadd.f32 0.0, %v1412
      %v1414 = vpop.f32.mrf.mxu0
      %1415 = vmatprep.mubr.bf16.mxu0 0
      %1416 = vmatmul.mubr.bf16.gmra.mxu0 %v900
      %v1417 = vpop.f32.mrf.mxu0
      %v1418 = vadd.f32 0.0, %v1417
      %v1419 = vpop.f32.mrf.mxu0
      %v1420 = vpop.f32.mrf.mxu0
      %v1421 = vadd.f32 0.0, %v1420
      %v1422 = vpop.f32.mrf.mxu0
      %1423 = vmatprep.mubr.bf16.mxu0 0
      %1424 = vmatmul.mubr.bf16.gmra.mxu0 %v903
      %v1425 = vpop.f32.mrf.mxu0
      %v1426 = vadd.f32 0.0, %v1425
      %v1427 = vpop.f32.mrf.mxu0
      %v1428 = vpop.f32.mrf.mxu0
      %v1429 = vadd.f32 0.0, %v1428
      %v1430 = vpop.f32.mrf.mxu0
      %1431 = vmatprep.mubr.bf16.mxu0 0
      %1432 = vmatmul.mubr.bf16.gmra.mxu0 %v906
      %v1433 = vpop.f32.mrf.mxu0
      %v1434 = vadd.f32 0.0, %v1433
      %v1435 = vpop.f32.mrf.mxu0
      %v1436 = vpop.f32.mrf.mxu0
      %v1437 = vadd.f32 0.0, %v1436
      %v1438 = vpop.f32.mrf.mxu0
      %1439 = vmatprep.mubr.bf16.mxu0 0
      %1440 = vmatmul.mubr.bf16.gmra.mxu0 %v909
      %v1441 = vpop.f32.mrf.mxu0
      %v1442 = vadd.f32 0.0, %v1441
      %v1443 = vpop.f32.mrf.mxu0
      %v1444 = vpop.f32.mrf.mxu0
      %v1445 = vadd.f32 0.0, %v1444
      %v1446 = vpop.f32.mrf.mxu0
      %1447 = vmatprep.mubr.bf16.mxu0 0
      %1448 = vmatmul.mubr.bf16.gmra.mxu0 %v912
      %v1449 = vpop.f32.mrf.mxu0
      %v1450 = vadd.f32 0.0, %v1449
      %v1451 = vpop.f32.mrf.mxu0
      %v1452 = vpop.f32.mrf.mxu0
      %v1453 = vadd.f32 0.0, %v1452
      %v1454 = vpop.f32.mrf.mxu0
      %1455 = vmatprep.mubr.bf16.mxu0 0
      %1456 = vmatmul.mubr.bf16.gmra.mxu0 %v915
      %v1457 = vpop.f32.mrf.mxu0
      %v1458 = vadd.f32 0.0, %v1457
      %v1459 = vpop.f32.mrf.mxu0
      %v1460 = vpop.f32.mrf.mxu0
      %v1461 = vadd.f32 0.0, %v1460
      %v1462 = vpop.f32.mrf.mxu0
      %1463 = vmatprep.mubr.bf16.mxu0 0
      %1464 = vmatmul.mubr.bf16.gmra.mxu0 %v918
      %v1465 = vpop.f32.mrf.mxu0
      %v1466 = vadd.f32 0.0, %v1465
      %v1467 = vpop.f32.mrf.mxu0
      %v1468 = vpop.f32.mrf.mxu0
      %v1469 = vadd.f32 0.0, %v1468
      %v1470 = vpop.f32.mrf.mxu0
      %1471 = vdwg.mxu0
      %v1472 = vadd.f32 %v392, %v962
      %v1473 = vadd.f32 %v393, %v965
      %v1474 = vadd.f32 %v394, %v970
      %v1475 = vadd.f32 %v395, %v973
      %v1476 = vadd.f32 %v396, %v978
      %v1477 = vadd.f32 %v397, %v981
      %v1478 = vadd.f32 %v398, %v986
      %v1479 = vadd.f32 %v399, %v989
      %v1480 = vadd.f32 %v400, %v994
      %v1481 = vadd.f32 %v401, %v997
      %v1482 = vadd.f32 %v402, %v1002
      %v1483 = vadd.f32 %v403, %v1005
      %v1484 = vadd.f32 %v404, %v1010
      %v1485 = vadd.f32 %v405, %v1013
      %v1486 = vadd.f32 %v406, %v1018
      %v1487 = vadd.f32 %v407, %v1021
      %v1488 = vadd.f32 %v408, %v1026
      %v1489 = vadd.f32 %v409, %v1029
      %v1490 = vadd.f32 %v410, %v1034
      %v1491 = vadd.f32 %v411, %v1037
      %v1492 = vadd.f32 %v412, %v1042
      %v1493 = vadd.f32 %v413, %v1045
      %v1494 = vadd.f32 %v414, %v1050
      %v1495 = vadd.f32 %v415, %v1053
      %v1496 = vadd.f32 %v416, %v1058
      %v1497 = vadd.f32 %v417, %v1061
      %v1498 = vadd.f32 %v418, %v1066
      %v1499 = vadd.f32 %v419, %v1069
      %v1500 = vadd.f32 %v420, %v1074
      %v1501 = vadd.f32 %v421, %v1077
      %v1502 = vadd.f32 %v422, %v1082
      %v1503 = vadd.f32 %v423, %v1085
      %v1504 = vadd.f32 %v424, %v1090
      %v1505 = vadd.f32 %v425, %v1093
      %v1506 = vadd.f32 %v426, %v1098
      %v1507 = vadd.f32 %v427, %v1101
      %v1508 = vadd.f32 %v428, %v1106
      %v1509 = vadd.f32 %v429, %v1109
      %v1510 = vadd.f32 %v430, %v1114
      %v1511 = vadd.f32 %v431, %v1117
      %v1512 = vadd.f32 %v432, %v1122
      %v1513 = vadd.f32 %v433, %v1125
      %v1514 = vadd.f32 %v434, %v1130
      %v1515 = vadd.f32 %v435, %v1133
      %v1516 = vadd.f32 %v436, %v1138
      %v1517 = vadd.f32 %v437, %v1141
      %v1518 = vadd.f32 %v438, %v1146
      %v1519 = vadd.f32 %v439, %v1149
      %v1520 = vadd.f32 %v440, %v1154
      %v1521 = vadd.f32 %v441, %v1157
      %v1522 = vadd.f32 %v442, %v1162
      %v1523 = vadd.f32 %v443, %v1165
      %v1524 = vadd.f32 %v444, %v1170
      %v1525 = vadd.f32 %v445, %v1173
      %v1526 = vadd.f32 %v446, %v1178
      %v1527 = vadd.f32 %v447, %v1181
      %v1528 = vadd.f32 %v448, %v1186
      %v1529 = vadd.f32 %v449, %v1189
      %v1530 = vadd.f32 %v450, %v1194
      %v1531 = vadd.f32 %v451, %v1197
      %v1532 = vadd.f32 %v452, %v1202
      %v1533 = vadd.f32 %v453, %v1205
      %v1534 = vadd.f32 %v454, %v1210
      %v1535 = vadd.f32 %v455, %v1213
      %v1536 = vadd.f32 %v456, %v1218
      %v1537 = vadd.f32 %v457, %v1221
      %v1538 = vadd.f32 %v458, %v1226
      %v1539 = vadd.f32 %v459, %v1229
      %v1540 = vadd.f32 %v460, %v1234
      %v1541 = vadd.f32 %v461, %v1237
      %v1542 = vadd.f32 %v462, %v1242
      %v1543 = vadd.f32 %v463, %v1245
      %v1544 = vadd.f32 %v464, %v1250
      %v1545 = vadd.f32 %v465, %v1253
      %v1546 = vadd.f32 %v466, %v1258
      %v1547 = vadd.f32 %v467, %v1261
      %v1548 = vadd.f32 %v468, %v1266
      %v1549 = vadd.f32 %v469, %v1269
      %v1550 = vadd.f32 %v470, %v1274
      %v1551 = vadd.f32 %v471, %v1277
      %v1552 = vadd.f32 %v472, %v1282
      %v1553 = vadd.f32 %v473, %v1285
      %v1554 = vadd.f32 %v474, %v1290
      %v1555 = vadd.f32 %v475, %v1293
      %v1556 = vadd.f32 %v476, %v1298
      %v1557 = vadd.f32 %v477, %v1301
      %v1558 = vadd.f32 %v478, %v1306
      %v1559 = vadd.f32 %v479, %v1309
      %v1560 = vadd.f32 %v480, %v1314
      %v1561 = vadd.f32 %v481, %v1317
      %v1562 = vadd.f32 %v482, %v1322
      %v1563 = vadd.f32 %v483, %v1325
      %v1564 = vadd.f32 %v484, %v1330
      %v1565 = vadd.f32 %v485, %v1333
      %v1566 = vadd.f32 %v486, %v1338
      %v1567 = vadd.f32 %v487, %v1341
      %v1568 = vadd.f32 %v488, %v1346
      %v1569 = vadd.f32 %v489, %v1349
      %v1570 = vadd.f32 %v490, %v1354
      %v1571 = vadd.f32 %v491, %v1357
      %v1572 = vadd.f32 %v492, %v1362
      %v1573 = vadd.f32 %v493, %v1365
      %v1574 = vadd.f32 %v494, %v1370
      %v1575 = vadd.f32 %v495, %v1373
      %v1576 = vadd.f32 %v496, %v1378
      %v1577 = vadd.f32 %v497, %v1381
      %v1578 = vadd.f32 %v498, %v1386
      %v1579 = vadd.f32 %v499, %v1389
      %v1580 = vadd.f32 %v500, %v1394
      %v1581 = vadd.f32 %v501, %v1397
      %v1582 = vadd.f32 %v502, %v1402
      %v1583 = vadd.f32 %v503, %v1405
      %v1584 = vadd.f32 %v504, %v1410
      %v1585 = vadd.f32 %v505, %v1413
      %v1586 = vadd.f32 %v506, %v1418
      %v1587 = vadd.f32 %v507, %v1421
      %v1588 = vadd.f32 %v508, %v1426
      %v1589 = vadd.f32 %v509, %v1429
      %v1590 = vadd.f32 %v510, %v1434
      %v1591 = vadd.f32 %v511, %v1437
      %v1592 = vadd.f32 %v512, %v1442
      %v1593 = vadd.f32 %v513, %v1445
      %v1594 = vadd.f32 %v514, %v1450
      %v1595 = vadd.f32 %v515, %v1453
      %v1596 = vadd.f32 %v516, %v1458
      %v1597 = vadd.f32 %v517, %v1461
      %v1598 = vadd.f32 %v518, %v1466
      %v1599 = vadd.f32 %v519, %v1469
      %1600 = vst [vmem:[#allocation2] sm:$0xff] %v1472
      %1601 = vst [vmem:[#allocation2 + $0x8] sm:$0xff] %v1473
      %1602 = vst [vmem:[#allocation2 + $0x10] sm:$0xff] %v1474
      %1603 = vst [vmem:[#allocation2 + $0x18] sm:$0xff] %v1475
      %1604 = vst [vmem:[#allocation2 + $0x20] sm:$0xff] %v1476
      %1605 = vst [vmem:[#allocation2 + $0x28] sm:$0xff] %v1477
      %1606 = vst [vmem:[#allocation2 + $0x30] sm:$0xff] %v1478
      %1607 = vst [vmem:[#allocation2 + $0x38] sm:$0xff] %v1479
      %1608 = vst [vmem:[#allocation2 + $0x40] sm:$0xff] %v1480
      %1609 = vst [vmem:[#allocation2 + $0x48] sm:$0xff] %v1481
      %1610 = vst [vmem:[#allocation2 + $0x50] sm:$0xff] %v1482
      %1611 = vst [vmem:[#allocation2 + $0x58] sm:$0xff] %v1483
      %1612 = vst [vmem:[#allocation2 + $0x60] sm:$0xff] %v1484
      %1613 = vst [vmem:[#allocation2 + $0x68] sm:$0xff] %v1485
      %1614 = vst [vmem:[#allocation2 + $0x70] sm:$0xff] %v1486
      %1615 = vst [vmem:[#allocation2 + $0x78] sm:$0xff] %v1487
      %1616 = vst [vmem:[#allocation2 + $0x80] sm:$0xff] %v1488
      %1617 = vst [vmem:[#allocation2 + $0x88] sm:$0xff] %v1489
      %1618 = vst [vmem:[#allocation2 + $0x90] sm:$0xff] %v1490
      %1619 = vst [vmem:[#allocation2 + $0x98] sm:$0xff] %v1491
      %1620 = vst [vmem:[#allocation2 + $0xa0] sm:$0xff] %v1492
      %1621 = vst [vmem:[#allocation2 + $0xa8] sm:$0xff] %v1493
      %1622 = vst [vmem:[#allocation2 + $0xb0] sm:$0xff] %v1494
      %1623 = vst [vmem:[#allocation2 + $0xb8] sm:$0xff] %v1495
      %1624 = vst [vmem:[#allocation2 + $0xc0] sm:$0xff] %v1496
      %1625 = vst [vmem:[#allocation2 + $0xc8] sm:$0xff] %v1497
      %1626 = vst [vmem:[#allocation2 + $0xd0] sm:$0xff] %v1498
      %1627 = vst [vmem:[#allocation2 + $0xd8] sm:$0xff] %v1499
      %1628 = vst [vmem:[#allocation2 + $0xe0] sm:$0xff] %v1500
      %1629 = vst [vmem:[#allocation2 + $0xe8] sm:$0xff] %v1501
      %1630 = vst [vmem:[#allocation2 + $0xf0] sm:$0xff] %v1502
      %1631 = vst [vmem:[#allocation2 + $0xf8] sm:$0xff] %v1503
      %1632 = vst [vmem:[#allocation2 + $0x100] sm:$0xff] %v1504
      %1633 = vst [vmem:[#allocation2 + $0x108] sm:$0xff] %v1505
      %1634 = vst [vmem:[#allocation2 + $0x110] sm:$0xff] %v1506
      %1635 = vst [vmem:[#allocation2 + $0x118] sm:$0xff] %v1507
      %1636 = vst [vmem:[#allocation2 + $0x120] sm:$0xff] %v1508
      %1637 = vst [vmem:[#allocation2 + $0x128] sm:$0xff] %v1509
      %1638 = vst [vmem:[#allocation2 + $0x130] sm:$0xff] %v1510
      %1639 = vst [vmem:[#allocation2 + $0x138] sm:$0xff] %v1511
      %1640 = vst [vmem:[#allocation2 + $0x140] sm:$0xff] %v1512
      %1641 = vst [vmem:[#allocation2 + $0x148] sm:$0xff] %v1513
      %1642 = vst [vmem:[#allocation2 + $0x150] sm:$0xff] %v1514
      %1643 = vst [vmem:[#allocation2 + $0x158] sm:$0xff] %v1515
      %1644 = vst [vmem:[#allocation2 + $0x160] sm:$0xff] %v1516
      %1645 = vst [vmem:[#allocation2 + $0x168] sm:$0xff] %v1517
      %1646 = vst [vmem:[#allocation2 + $0x170] sm:$0xff] %v1518
      %1647 = vst [vmem:[#allocation2 + $0x178] sm:$0xff] %v1519
      %1648 = vst [vmem:[#allocation2 + $0x180] sm:$0xff] %v1520
      %1649 = vst [vmem:[#allocation2 + $0x188] sm:$0xff] %v1521
      %1650 = vst [vmem:[#allocation2 + $0x190] sm:$0xff] %v1522
      %1651 = vst [vmem:[#allocation2 + $0x198] sm:$0xff] %v1523
      %1652 = vst [vmem:[#allocation2 + $0x1a0] sm:$0xff] %v1524
      %1653 = vst [vmem:[#allocation2 + $0x1a8] sm:$0xff] %v1525
      %1654 = vst [vmem:[#allocation2 + $0x1b0] sm:$0xff] %v1526
      %1655 = vst [vmem:[#allocation2 + $0x1b8] sm:$0xff] %v1527
      %1656 = vst [vmem:[#allocation2 + $0x1c0] sm:$0xff] %v1528
      %1657 = vst [vmem:[#allocation2 + $0x1c8] sm:$0xff] %v1529
      %1658 = vst [vmem:[#allocation2 + $0x1d0] sm:$0xff] %v1530
      %1659 = vst [vmem:[#allocation2 + $0x1d8] sm:$0xff] %v1531
      %1660 = vst [vmem:[#allocation2 + $0x1e0] sm:$0xff] %v1532
      %1661 = vst [vmem:[#allocation2 + $0x1e8] sm:$0xff] %v1533
      %1662 = vst [vmem:[#allocation2 + $0x1f0] sm:$0xff] %v1534
      %1663 = vst [vmem:[#allocation2 + $0x1f8] sm:$0xff] %v1535
      %1664 = vst [vmem:[#allocation2 + $0x200] sm:$0xff] %v1536
      %1665 = vst [vmem:[#allocation2 + $0x208] sm:$0xff] %v1537
      %1666 = vst [vmem:[#allocation2 + $0x210] sm:$0xff] %v1538
      %1667 = vst [vmem:[#allocation2 + $0x218] sm:$0xff] %v1539
      %1668 = vst [vmem:[#allocation2 + $0x220] sm:$0xff] %v1540
      %1669 = vst [vmem:[#allocation2 + $0x228] sm:$0xff] %v1541
      %1670 = vst [vmem:[#allocation2 + $0x230] sm:$0xff] %v1542
      %1671 = vst [vmem:[#allocation2 + $0x238] sm:$0xff] %v1543
      %1672 = vst [vmem:[#allocation2 + $0x240] sm:$0xff] %v1544
      %1673 = vst [vmem:[#allocation2 + $0x248] sm:$0xff] %v1545
      %1674 = vst [vmem:[#allocation2 + $0x250] sm:$0xff] %v1546
      %1675 = vst [vmem:[#allocation2 + $0x258] sm:$0xff] %v1547
      %1676 = vst [vmem:[#allocation2 + $0x260] sm:$0xff] %v1548
      %1677 = vst [vmem:[#allocation2 + $0x268] sm:$0xff] %v1549
      %1678 = vst [vmem:[#allocation2 + $0x270] sm:$0xff] %v1550
      %1679 = vst [vmem:[#allocation2 + $0x278] sm:$0xff] %v1551
      %1680 = vst [vmem:[#allocation2 + $0x280] sm:$0xff] %v1552
      %1681 = vst [vmem:[#allocation2 + $0x288] sm:$0xff] %v1553
      %1682 = vst [vmem:[#allocation2 + $0x290] sm:$0xff] %v1554
      %1683 = vst [vmem:[#allocation2 + $0x298] sm:$0xff] %v1555
      %1684 = vst [vmem:[#allocation2 + $0x2a0] sm:$0xff] %v1556
      %1685 = vst [vmem:[#allocation2 + $0x2a8] sm:$0xff] %v1557
      %1686 = vst [vmem:[#allocation2 + $0x2b0] sm:$0xff] %v1558
      %1687 = vst [vmem:[#allocation2 + $0x2b8] sm:$0xff] %v1559
      %1688 = vst [vmem:[#allocation2 + $0x2c0] sm:$0xff] %v1560
      %1689 = vst [vmem:[#allocation2 + $0x2c8] sm:$0xff] %v1561
      %1690 = vst [vmem:[#allocation2 + $0x2d0] sm:$0xff] %v1562
      %1691 = vst [vmem:[#allocation2 + $0x2d8] sm:$0xff] %v1563
      %1692 = vst [vmem:[#allocation2 + $0x2e0] sm:$0xff] %v1564
      %1693 = vst [vmem:[#allocation2 + $0x2e8] sm:$0xff] %v1565
      %1694 = vst [vmem:[#allocation2 + $0x2f0] sm:$0xff] %v1566
      %1695 = vst [vmem:[#allocation2 + $0x2f8] sm:$0xff] %v1567
      %1696 = vst [vmem:[#allocation2 + $0x300] sm:$0xff] %v1568
      %1697 = vst [vmem:[#allocation2 + $0x308] sm:$0xff] %v1569
      %1698 = vst [vmem:[#allocation2 + $0x310] sm:$0xff] %v1570
      %1699 = vst [vmem:[#allocation2 + $0x318] sm:$0xff] %v1571
      %1700 = vst [vmem:[#allocation2 + $0x320] sm:$0xff] %v1572
      %1701 = vst [vmem:[#allocation2 + $0x328] sm:$0xff] %v1573
      %1702 = vst [vmem:[#allocation2 + $0x330] sm:$0xff] %v1574
      %1703 = vst [vmem:[#allocation2 + $0x338] sm:$0xff] %v1575
      %1704 = vst [vmem:[#allocation2 + $0x340] sm:$0xff] %v1576
      %1705 = vst [vmem:[#allocation2 + $0x348] sm:$0xff] %v1577
      %1706 = vst [vmem:[#allocation2 + $0x350] sm:$0xff] %v1578
      %1707 = vst [vmem:[#allocation2 + $0x358] sm:$0xff] %v1579
      %1708 = vst [vmem:[#allocation2 + $0x360] sm:$0xff] %v1580
      %1709 = vst [vmem:[#allocation2 + $0x368] sm:$0xff] %v1581
      %1710 = vst [vmem:[#allocation2 + $0x370] sm:$0xff] %v1582
      %1711 = vst [vmem:[#allocation2 + $0x378] sm:$0xff] %v1583
      %1712 = vst [vmem:[#allocation2 + $0x380] sm:$0xff] %v1584
      %1713 = vst [vmem:[#allocation2 + $0x388] sm:$0xff] %v1585
      %1714 = vst [vmem:[#allocation2 + $0x390] sm:$0xff] %v1586
      %1715 = vst [vmem:[#allocation2 + $0x398] sm:$0xff] %v1587
      %1716 = vst [vmem:[#allocation2 + $0x3a0] sm:$0xff] %v1588
      %1717 = vst [vmem:[#allocation2 + $0x3a8] sm:$0xff] %v1589
      %1718 = vst [vmem:[#allocation2 + $0x3b0] sm:$0xff] %v1590
      %1719 = vst [vmem:[#allocation2 + $0x3b8] sm:$0xff] %v1591
      %1720 = vst [vmem:[#allocation2 + $0x3c0] sm:$0xff] %v1592
      %1721 = vst [vmem:[#allocation2 + $0x3c8] sm:$0xff] %v1593
      %1722 = vst [vmem:[#allocation2 + $0x3d0] sm:$0xff] %v1594
      %1723 = vst [vmem:[#allocation2 + $0x3d8] sm:$0xff] %v1595
      %1724 = vst [vmem:[#allocation2 + $0x3e0] sm:$0xff] %v1596
      %1725 = vst [vmem:[#allocation2 + $0x3e8] sm:$0xff] %v1597
      %1726 = vst [vmem:[#allocation2 + $0x3f0] sm:$0xff] %v1598
      %1727 = vst [vmem:[#allocation2 + $0x3f8] sm:$0xff] %v1599
      // Predicated region
      $region37: #{dimpnet_forward.6} parent=31 // pred_check
        %p1728 = pneg %p260
      $region38: #{dimpnet_forward.6} parent=31 // pred_check_branch
        %1730 = sbr.rel (%p1728) target = $region40
      $region39: #{dimpnet_forward.6} parent=31 // pred_region
        %v1731 = vld [vmem:[#allocation2] sm:$0xff]
        %v1732 = vld [vmem:[#allocation2 + $0x8] sm:$0xff]
        %v1733 = vld [vmem:[#allocation2 + $0x10] sm:$0xff]
        %v1734 = vld [vmem:[#allocation2 + $0x18] sm:$0xff]
        %v1735 = vld [vmem:[#allocation2 + $0x20] sm:$0xff]
        %v1736 = vld [vmem:[#allocation2 + $0x28] sm:$0xff]
        %v1737 = vld [vmem:[#allocation2 + $0x30] sm:$0xff]
        %v1738 = vld [vmem:[#allocation2 + $0x38] sm:$0xff]
        %v1739 = vld [vmem:[#allocation2 + $0x40] sm:$0xff]
        %v1740 = vld [vmem:[#allocation2 + $0x48] sm:$0xff]
        %v1741 = vld [vmem:[#allocation2 + $0x50] sm:$0xff]
        %v1742 = vld [vmem:[#allocation2 + $0x58] sm:$0xff]
        %v1743 = vld [vmem:[#allocation2 + $0x60] sm:$0xff]
        %v1744 = vld [vmem:[#allocation2 + $0x68] sm:$0xff]
        %v1745 = vld [vmem:[#allocation2 + $0x70] sm:$0xff]
        %v1746 = vld [vmem:[#allocation2 + $0x78] sm:$0xff]
        %v1747 = vld [vmem:[#allocation2 + $0x80] sm:$0xff]
        %v1748 = vld [vmem:[#allocation2 + $0x88] sm:$0xff]
        %v1749 = vld [vmem:[#allocation2 + $0x90] sm:$0xff]
        %v1750 = vld [vmem:[#allocation2 + $0x98] sm:$0xff]
        %v1751 = vld [vmem:[#allocation2 + $0xa0] sm:$0xff]
        %v1752 = vld [vmem:[#allocation2 + $0xa8] sm:$0xff]
        %v1753 = vld [vmem:[#allocation2 + $0xb0] sm:$0xff]
        %v1754 = vld [vmem:[#allocation2 + $0xb8] sm:$0xff]
        %v1755 = vld [vmem:[#allocation2 + $0xc0] sm:$0xff]
        %v1756 = vld [vmem:[#allocation2 + $0xc8] sm:$0xff]
        %v1757 = vld [vmem:[#allocation2 + $0xd0] sm:$0xff]
        %v1758 = vld [vmem:[#allocation2 + $0xd8] sm:$0xff]
        %v1759 = vld [vmem:[#allocation2 + $0xe0] sm:$0xff]
        %v1760 = vld [vmem:[#allocation2 + $0xe8] sm:$0xff]
        %v1761 = vld [vmem:[#allocation2 + $0xf0] sm:$0xff]
        %v1762 = vld [vmem:[#allocation2 + $0xf8] sm:$0xff]
        %v1763 = vld [vmem:[#allocation2 + $0x100] sm:$0xff]
        %v1764 = vld [vmem:[#allocation2 + $0x108] sm:$0xff]
        %v1765 = vld [vmem:[#allocation2 + $0x110] sm:$0xff]
        %v1766 = vld [vmem:[#allocation2 + $0x118] sm:$0xff]
        %v1767 = vld [vmem:[#allocation2 + $0x120] sm:$0xff]
        %v1768 = vld [vmem:[#allocation2 + $0x128] sm:$0xff]
        %v1769 = vld [vmem:[#allocation2 + $0x130] sm:$0xff]
        %v1770 = vld [vmem:[#allocation2 + $0x138] sm:$0xff]
        %v1771 = vld [vmem:[#allocation2 + $0x140] sm:$0xff]
        %v1772 = vld [vmem:[#allocation2 + $0x148] sm:$0xff]
        %v1773 = vld [vmem:[#allocation2 + $0x150] sm:$0xff]
        %v1774 = vld [vmem:[#allocation2 + $0x158] sm:$0xff]
        %v1775 = vld [vmem:[#allocation2 + $0x160] sm:$0xff]
        %v1776 = vld [vmem:[#allocation2 + $0x168] sm:$0xff]
        %v1777 = vld [vmem:[#allocation2 + $0x170] sm:$0xff]
        %v1778 = vld [vmem:[#allocation2 + $0x178] sm:$0xff]
        %v1779 = vld [vmem:[#allocation2 + $0x180] sm:$0xff]
        %v1780 = vld [vmem:[#allocation2 + $0x188] sm:$0xff]
        %v1781 = vld [vmem:[#allocation2 + $0x190] sm:$0xff]
        %v1782 = vld [vmem:[#allocation2 + $0x198] sm:$0xff]
        %v1783 = vld [vmem:[#allocation2 + $0x1a0] sm:$0xff]
        %v1784 = vld [vmem:[#allocation2 + $0x1a8] sm:$0xff]
        %v1785 = vld [vmem:[#allocation2 + $0x1b0] sm:$0xff]
        %v1786 = vld [vmem:[#allocation2 + $0x1b8] sm:$0xff]
        %v1787 = vld [vmem:[#allocation2 + $0x1c0] sm:$0xff]
        %v1788 = vld [vmem:[#allocation2 + $0x1c8] sm:$0xff]
        %v1789 = vld [vmem:[#allocation2 + $0x1d0] sm:$0xff]
        %v1790 = vld [vmem:[#allocation2 + $0x1d8] sm:$0xff]
        %v1791 = vld [vmem:[#allocation2 + $0x1e0] sm:$0xff]
        %v1792 = vld [vmem:[#allocation2 + $0x1e8] sm:$0xff]
        %v1793 = vld [vmem:[#allocation2 + $0x1f0] sm:$0xff]
        %v1794 = vld [vmem:[#allocation2 + $0x1f8] sm:$0xff]
        %v1795 = vld [vmem:[#allocation2 + $0x200] sm:$0xff]
        %v1796 = vld [vmem:[#allocation2 + $0x208] sm:$0xff]
        %v1797 = vld [vmem:[#allocation2 + $0x210] sm:$0xff]
        %v1798 = vld [vmem:[#allocation2 + $0x218] sm:$0xff]
        %v1799 = vld [vmem:[#allocation2 + $0x220] sm:$0xff]
        %v1800 = vld [vmem:[#allocation2 + $0x228] sm:$0xff]
        %v1801 = vld [vmem:[#allocation2 + $0x230] sm:$0xff]
        %v1802 = vld [vmem:[#allocation2 + $0x238] sm:$0xff]
        %v1803 = vld [vmem:[#allocation2 + $0x240] sm:$0xff]
        %v1804 = vld [vmem:[#allocation2 + $0x248] sm:$0xff]
        %v1805 = vld [vmem:[#allocation2 + $0x250] sm:$0xff]
        %v1806 = vld [vmem:[#allocation2 + $0x258] sm:$0xff]
        %v1807 = vld [vmem:[#allocation2 + $0x260] sm:$0xff]
        %v1808 = vld [vmem:[#allocation2 + $0x268] sm:$0xff]
        %v1809 = vld [vmem:[#allocation2 + $0x270] sm:$0xff]
        %v1810 = vld [vmem:[#allocation2 + $0x278] sm:$0xff]
        %v1811 = vld [vmem:[#allocation2 + $0x280] sm:$0xff]
        %v1812 = vld [vmem:[#allocation2 + $0x288] sm:$0xff]
        %v1813 = vld [vmem:[#allocation2 + $0x290] sm:$0xff]
        %v1814 = vld [vmem:[#allocation2 + $0x298] sm:$0xff]
        %v1815 = vld [vmem:[#allocation2 + $0x2a0] sm:$0xff]
        %v1816 = vld [vmem:[#allocation2 + $0x2a8] sm:$0xff]
        %v1817 = vld [vmem:[#allocation2 + $0x2b0] sm:$0xff]
        %v1818 = vld [vmem:[#allocation2 + $0x2b8] sm:$0xff]
        %v1819 = vld [vmem:[#allocation2 + $0x2c0] sm:$0xff]
        %v1820 = vld [vmem:[#allocation2 + $0x2c8] sm:$0xff]
        %v1821 = vld [vmem:[#allocation2 + $0x2d0] sm:$0xff]
        %v1822 = vld [vmem:[#allocation2 + $0x2d8] sm:$0xff]
        %v1823 = vld [vmem:[#allocation2 + $0x2e0] sm:$0xff]
        %v1824 = vld [vmem:[#allocation2 + $0x2e8] sm:$0xff]
        %v1825 = vld [vmem:[#allocation2 + $0x2f0] sm:$0xff]
        %v1826 = vld [vmem:[#allocation2 + $0x2f8] sm:$0xff]
        %v1827 = vld [vmem:[#allocation2 + $0x300] sm:$0xff]
        %v1828 = vld [vmem:[#allocation2 + $0x308] sm:$0xff]
        %v1829 = vld [vmem:[#allocation2 + $0x310] sm:$0xff]
        %v1830 = vld [vmem:[#allocation2 + $0x318] sm:$0xff]
        %v1831 = vld [vmem:[#allocation2 + $0x320] sm:$0xff]
        %v1832 = vld [vmem:[#allocation2 + $0x328] sm:$0xff]
        %v1833 = vld [vmem:[#allocation2 + $0x330] sm:$0xff]
        %v1834 = vld [vmem:[#allocation2 + $0x338] sm:$0xff]
        %v1835 = vld [vmem:[#allocation2 + $0x340] sm:$0xff]
        %v1836 = vld [vmem:[#allocation2 + $0x348] sm:$0xff]
        %v1837 = vld [vmem:[#allocation2 + $0x350] sm:$0xff]
        %v1838 = vld [vmem:[#allocation2 + $0x358] sm:$0xff]
        %v1839 = vld [vmem:[#allocation2 + $0x360] sm:$0xff]
        %v1840 = vld [vmem:[#allocation2 + $0x368] sm:$0xff]
        %v1841 = vld [vmem:[#allocation2 + $0x370] sm:$0xff]
        %v1842 = vld [vmem:[#allocation2 + $0x378] sm:$0xff]
        %v1843 = vld [vmem:[#allocation2 + $0x380] sm:$0xff]
        %v1844 = vld [vmem:[#allocation2 + $0x388] sm:$0xff]
        %v1845 = vld [vmem:[#allocation2 + $0x390] sm:$0xff]
        %v1846 = vld [vmem:[#allocation2 + $0x398] sm:$0xff]
        %v1847 = vld [vmem:[#allocation2 + $0x3a0] sm:$0xff]
        %v1848 = vld [vmem:[#allocation2 + $0x3a8] sm:$0xff]
        %v1849 = vld [vmem:[#allocation2 + $0x3b0] sm:$0xff]
        %v1850 = vld [vmem:[#allocation2 + $0x3b8] sm:$0xff]
        %v1851 = vld [vmem:[#allocation2 + $0x3c0] sm:$0xff]
        %v1852 = vld [vmem:[#allocation2 + $0x3c8] sm:$0xff]
        %v1853 = vld [vmem:[#allocation2 + $0x3d0] sm:$0xff]
        %v1854 = vld [vmem:[#allocation2 + $0x3d8] sm:$0xff]
        %v1855 = vld [vmem:[#allocation2 + $0x3e0] sm:$0xff]
        %v1856 = vld [vmem:[#allocation2 + $0x3e8] sm:$0xff]
        %v1857 = vld [vmem:[#allocation2 + $0x3f0] sm:$0xff]
        %v1858 = vld [vmem:[#allocation2 + $0x3f8] sm:$0xff]
        %v1859 = vld [vmem:[%s249] sm:$0x1]
        %v1861 = vlaneseq
        %v1862 = vshrl.u32 %v1861, 7
        %v1863 = vsub.s32 0, %v1862
        %v1864 = vrot.slane %v1859, %v1863
        %v1866 = vadd.f32 %v1731, %v1864
        %v1867 = vadd.f32 %v1732, %v1864
        %v1868 = vadd.f32 %v1733, %v1864
        %v1869 = vadd.f32 %v1734, %v1864
        %v1870 = vadd.f32 %v1735, %v1864
        %v1871 = vadd.f32 %v1736, %v1864
        %v1872 = vadd.f32 %v1737, %v1864
        %v1873 = vadd.f32 %v1738, %v1864
        %v1874 = vadd.f32 %v1739, %v1864
        %v1875 = vadd.f32 %v1740, %v1864
        %v1876 = vadd.f32 %v1741, %v1864
        %v1877 = vadd.f32 %v1742, %v1864
        %v1878 = vadd.f32 %v1743, %v1864
        %v1879 = vadd.f32 %v1744, %v1864
        %v1880 = vadd.f32 %v1745, %v1864
        %v1881 = vadd.f32 %v1746, %v1864
        %v1882 = vadd.f32 %v1747, %v1864
        %v1883 = vadd.f32 %v1748, %v1864
        %v1884 = vadd.f32 %v1749, %v1864
        %v1885 = vadd.f32 %v1750, %v1864
        %v1886 = vadd.f32 %v1751, %v1864
        %v1887 = vadd.f32 %v1752, %v1864
        %v1888 = vadd.f32 %v1753, %v1864
        %v1889 = vadd.f32 %v1754, %v1864
        %v1890 = vadd.f32 %v1755, %v1864
        %v1891 = vadd.f32 %v1756, %v1864
        %v1892 = vadd.f32 %v1757, %v1864
        %v1893 = vadd.f32 %v1758, %v1864
        %v1894 = vadd.f32 %v1759, %v1864
        %v1895 = vadd.f32 %v1760, %v1864
        %v1896 = vadd.f32 %v1761, %v1864
        %v1897 = vadd.f32 %v1762, %v1864
        %v1898 = vadd.f32 %v1763, %v1864
        %v1899 = vadd.f32 %v1764, %v1864
        %v1900 = vadd.f32 %v1765, %v1864
        %v1901 = vadd.f32 %v1766, %v1864
        %v1902 = vadd.f32 %v1767, %v1864
        %v1903 = vadd.f32 %v1768, %v1864
        %v1904 = vadd.f32 %v1769, %v1864
        %v1905 = vadd.f32 %v1770, %v1864
        %v1906 = vadd.f32 %v1771, %v1864
        %v1907 = vadd.f32 %v1772, %v1864
        %v1908 = vadd.f32 %v1773, %v1864
        %v1909 = vadd.f32 %v1774, %v1864
        %v1910 = vadd.f32 %v1775, %v1864
        %v1911 = vadd.f32 %v1776, %v1864
        %v1912 = vadd.f32 %v1777, %v1864
        %v1913 = vadd.f32 %v1778, %v1864
        %v1914 = vadd.f32 %v1779, %v1864
        %v1915 = vadd.f32 %v1780, %v1864
        %v1916 = vadd.f32 %v1781, %v1864
        %v1917 = vadd.f32 %v1782, %v1864
        %v1918 = vadd.f32 %v1783, %v1864
        %v1919 = vadd.f32 %v1784, %v1864
        %v1920 = vadd.f32 %v1785, %v1864
        %v1921 = vadd.f32 %v1786, %v1864
        %v1922 = vadd.f32 %v1787, %v1864
        %v1923 = vadd.f32 %v1788, %v1864
        %v1924 = vadd.f32 %v1789, %v1864
        %v1925 = vadd.f32 %v1790, %v1864
        %v1926 = vadd.f32 %v1791, %v1864
        %v1927 = vadd.f32 %v1792, %v1864
        %v1928 = vadd.f32 %v1793, %v1864
        %v1929 = vadd.f32 %v1794, %v1864
        %v1930 = vadd.f32 %v1795, %v1864
        %v1931 = vadd.f32 %v1796, %v1864
        %v1932 = vadd.f32 %v1797, %v1864
        %v1933 = vadd.f32 %v1798, %v1864
        %v1934 = vadd.f32 %v1799, %v1864
        %v1935 = vadd.f32 %v1800, %v1864
        %v1936 = vadd.f32 %v1801, %v1864
        %v1937 = vadd.f32 %v1802, %v1864
        %v1938 = vadd.f32 %v1803, %v1864
        %v1939 = vadd.f32 %v1804, %v1864
        %v1940 = vadd.f32 %v1805, %v1864
        %v1941 = vadd.f32 %v1806, %v1864
        %v1942 = vadd.f32 %v1807, %v1864
        %v1943 = vadd.f32 %v1808, %v1864
        %v1944 = vadd.f32 %v1809, %v1864
        %v1945 = vadd.f32 %v1810, %v1864
        %v1946 = vadd.f32 %v1811, %v1864
        %v1947 = vadd.f32 %v1812, %v1864
        %v1948 = vadd.f32 %v1813, %v1864
        %v1949 = vadd.f32 %v1814, %v1864
        %v1950 = vadd.f32 %v1815, %v1864
        %v1951 = vadd.f32 %v1816, %v1864
        %v1952 = vadd.f32 %v1817, %v1864
        %v1953 = vadd.f32 %v1818, %v1864
        %v1954 = vadd.f32 %v1819, %v1864
        %v1955 = vadd.f32 %v1820, %v1864
        %v1956 = vadd.f32 %v1821, %v1864
        %v1957 = vadd.f32 %v1822, %v1864
        %v1958 = vadd.f32 %v1823, %v1864
        %v1959 = vadd.f32 %v1824, %v1864
        %v1960 = vadd.f32 %v1825, %v1864
        %v1961 = vadd.f32 %v1826, %v1864
        %v1962 = vadd.f32 %v1827, %v1864
        %v1963 = vadd.f32 %v1828, %v1864
        %v1964 = vadd.f32 %v1829, %v1864
        %v1965 = vadd.f32 %v1830, %v1864
        %v1966 = vadd.f32 %v1831, %v1864
        %v1967 = vadd.f32 %v1832, %v1864
        %v1968 = vadd.f32 %v1833, %v1864
        %v1969 = vadd.f32 %v1834, %v1864
        %v1970 = vadd.f32 %v1835, %v1864
        %v1971 = vadd.f32 %v1836, %v1864
        %v1972 = vadd.f32 %v1837, %v1864
        %v1973 = vadd.f32 %v1838, %v1864
        %v1974 = vadd.f32 %v1839, %v1864
        %v1975 = vadd.f32 %v1840, %v1864
        %v1976 = vadd.f32 %v1841, %v1864
        %v1977 = vadd.f32 %v1842, %v1864
        %v1978 = vadd.f32 %v1843, %v1864
        %v1979 = vadd.f32 %v1844, %v1864
        %v1980 = vadd.f32 %v1845, %v1864
        %v1981 = vadd.f32 %v1846, %v1864
        %v1982 = vadd.f32 %v1847, %v1864
        %v1983 = vadd.f32 %v1848, %v1864
        %v1984 = vadd.f32 %v1849, %v1864
        %v1985 = vadd.f32 %v1850, %v1864
        %v1986 = vadd.f32 %v1851, %v1864
        %v1987 = vadd.f32 %v1852, %v1864
        %v1988 = vadd.f32 %v1853, %v1864
        %v1989 = vadd.f32 %v1854, %v1864
        %v1990 = vadd.f32 %v1855, %v1864
        %v1991 = vadd.f32 %v1856, %v1864
        %v1992 = vadd.f32 %v1857, %v1864
        %v1993 = vadd.f32 %v1858, %v1864
        %v1994 = vmax.f32 %v1866, 0.0
        %v1995 = vmax.f32 %v1867, 0.0
        %v1996 = vmax.f32 %v1868, 0.0
        %v1997 = vmax.f32 %v1869, 0.0
        %v1998 = vmax.f32 %v1870, 0.0
        %v1999 = vmax.f32 %v1871, 0.0
        %v2000 = vmax.f32 %v1872, 0.0
        %v2001 = vmax.f32 %v1873, 0.0
        %v2002 = vmax.f32 %v1874, 0.0
        %v2003 = vmax.f32 %v1875, 0.0
        %v2004 = vmax.f32 %v1876, 0.0
        %v2005 = vmax.f32 %v1877, 0.0
        %v2006 = vmax.f32 %v1878, 0.0
        %v2007 = vmax.f32 %v1879, 0.0
        %v2008 = vmax.f32 %v1880, 0.0
        %v2009 = vmax.f32 %v1881, 0.0
        %v2010 = vmax.f32 %v1882, 0.0
        %v2011 = vmax.f32 %v1883, 0.0
        %v2012 = vmax.f32 %v1884, 0.0
        %v2013 = vmax.f32 %v1885, 0.0
        %v2014 = vmax.f32 %v1886, 0.0
        %v2015 = vmax.f32 %v1887, 0.0
        %v2016 = vmax.f32 %v1888, 0.0
        %v2017 = vmax.f32 %v1889, 0.0
        %v2018 = vmax.f32 %v1890, 0.0
        %v2019 = vmax.f32 %v1891, 0.0
        %v2020 = vmax.f32 %v1892, 0.0
        %v2021 = vmax.f32 %v1893, 0.0
        %v2022 = vmax.f32 %v1894, 0.0
        %v2023 = vmax.f32 %v1895, 0.0
        %v2024 = vmax.f32 %v1896, 0.0
        %v2025 = vmax.f32 %v1897, 0.0
        %v2026 = vmax.f32 %v1898, 0.0
        %v2027 = vmax.f32 %v1899, 0.0
        %v2028 = vmax.f32 %v1900, 0.0
        %v2029 = vmax.f32 %v1901, 0.0
        %v2030 = vmax.f32 %v1902, 0.0
        %v2031 = vmax.f32 %v1903, 0.0
        %v2032 = vmax.f32 %v1904, 0.0
        %v2033 = vmax.f32 %v1905, 0.0
        %v2034 = vmax.f32 %v1906, 0.0
        %v2035 = vmax.f32 %v1907, 0.0
        %v2036 = vmax.f32 %v1908, 0.0
        %v2037 = vmax.f32 %v1909, 0.0
        %v2038 = vmax.f32 %v1910, 0.0
        %v2039 = vmax.f32 %v1911, 0.0
        %v2040 = vmax.f32 %v1912, 0.0
        %v2041 = vmax.f32 %v1913, 0.0
        %v2042 = vmax.f32 %v1914, 0.0
        %v2043 = vmax.f32 %v1915, 0.0
        %v2044 = vmax.f32 %v1916, 0.0
        %v2045 = vmax.f32 %v1917, 0.0
        %v2046 = vmax.f32 %v1918, 0.0
        %v2047 = vmax.f32 %v1919, 0.0
        %v2048 = vmax.f32 %v1920, 0.0
        %v2049 = vmax.f32 %v1921, 0.0
        %v2050 = vmax.f32 %v1922, 0.0
        %v2051 = vmax.f32 %v1923, 0.0
        %v2052 = vmax.f32 %v1924, 0.0
        %v2053 = vmax.f32 %v1925, 0.0
        %v2054 = vmax.f32 %v1926, 0.0
        %v2055 = vmax.f32 %v1927, 0.0
        %v2056 = vmax.f32 %v1928, 0.0
        %v2057 = vmax.f32 %v1929, 0.0
        %v2058 = vmax.f32 %v1930, 0.0
        %v2059 = vmax.f32 %v1931, 0.0
        %v2060 = vmax.f32 %v1932, 0.0
        %v2061 = vmax.f32 %v1933, 0.0
        %v2062 = vmax.f32 %v1934, 0.0
        %v2063 = vmax.f32 %v1935, 0.0
        %v2064 = vmax.f32 %v1936, 0.0
        %v2065 = vmax.f32 %v1937, 0.0
        %v2066 = vmax.f32 %v1938, 0.0
        %v2067 = vmax.f32 %v1939, 0.0
        %v2068 = vmax.f32 %v1940, 0.0
        %v2069 = vmax.f32 %v1941, 0.0
        %v2070 = vmax.f32 %v1942, 0.0
        %v2071 = vmax.f32 %v1943, 0.0
        %v2072 = vmax.f32 %v1944, 0.0
        %v2073 = vmax.f32 %v1945, 0.0
        %v2074 = vmax.f32 %v1946, 0.0
        %v2075 = vmax.f32 %v1947, 0.0
        %v2076 = vmax.f32 %v1948, 0.0
        %v2077 = vmax.f32 %v1949, 0.0
        %v2078 = vmax.f32 %v1950, 0.0
        %v2079 = vmax.f32 %v1951, 0.0
        %v2080 = vmax.f32 %v1952, 0.0
        %v2081 = vmax.f32 %v1953, 0.0
        %v2082 = vmax.f32 %v1954, 0.0
        %v2083 = vmax.f32 %v1955, 0.0
        %v2084 = vmax.f32 %v1956, 0.0
        %v2085 = vmax.f32 %v1957, 0.0
        %v2086 = vmax.f32 %v1958, 0.0
        %v2087 = vmax.f32 %v1959, 0.0
        %v2088 = vmax.f32 %v1960, 0.0
        %v2089 = vmax.f32 %v1961, 0.0
        %v2090 = vmax.f32 %v1962, 0.0
        %v2091 = vmax.f32 %v1963, 0.0
        %v2092 = vmax.f32 %v1964, 0.0
        %v2093 = vmax.f32 %v1965, 0.0
        %v2094 = vmax.f32 %v1966, 0.0
        %v2095 = vmax.f32 %v1967, 0.0
        %v2096 = vmax.f32 %v1968, 0.0
        %v2097 = vmax.f32 %v1969, 0.0
        %v2098 = vmax.f32 %v1970, 0.0
        %v2099 = vmax.f32 %v1971, 0.0
        %v2100 = vmax.f32 %v1972, 0.0
        %v2101 = vmax.f32 %v1973, 0.0
        %v2102 = vmax.f32 %v1974, 0.0
        %v2103 = vmax.f32 %v1975, 0.0
        %v2104 = vmax.f32 %v1976, 0.0
        %v2105 = vmax.f32 %v1977, 0.0
        %v2106 = vmax.f32 %v1978, 0.0
        %v2107 = vmax.f32 %v1979, 0.0
        %v2108 = vmax.f32 %v1980, 0.0
        %v2109 = vmax.f32 %v1981, 0.0
        %v2110 = vmax.f32 %v1982, 0.0
        %v2111 = vmax.f32 %v1983, 0.0
        %v2112 = vmax.f32 %v1984, 0.0
        %v2113 = vmax.f32 %v1985, 0.0
        %v2114 = vmax.f32 %v1986, 0.0
        %v2115 = vmax.f32 %v1987, 0.0
        %v2116 = vmax.f32 %v1988, 0.0
        %v2117 = vmax.f32 %v1989, 0.0
        %v2118 = vmax.f32 %v1990, 0.0
        %v2119 = vmax.f32 %v1991, 0.0
        %v2120 = vmax.f32 %v1992, 0.0
        %v2121 = vmax.f32 %v1993, 0.0
        %v2122 = vpack.c.bf16 %v1995, %v1994
        %v2123 = vpack.c.bf16 %v1997, %v1996
        %v2124 = vpack.c.bf16 %v1999, %v1998
        %v2125 = vpack.c.bf16 %v2001, %v2000
        %v2126 = vpack.c.bf16 %v2003, %v2002
        %v2127 = vpack.c.bf16 %v2005, %v2004
        %v2128 = vpack.c.bf16 %v2007, %v2006
        %v2129 = vpack.c.bf16 %v2009, %v2008
        %v2130 = vpack.c.bf16 %v2011, %v2010
        %v2131 = vpack.c.bf16 %v2013, %v2012
        %v2132 = vpack.c.bf16 %v2015, %v2014
        %v2133 = vpack.c.bf16 %v2017, %v2016
        %v2134 = vpack.c.bf16 %v2019, %v2018
        %v2135 = vpack.c.bf16 %v2021, %v2020
        %v2136 = vpack.c.bf16 %v2023, %v2022
        %v2137 = vpack.c.bf16 %v2025, %v2024
        %v2138 = vpack.c.bf16 %v2027, %v2026
        %v2139 = vpack.c.bf16 %v2029, %v2028
        %v2140 = vpack.c.bf16 %v2031, %v2030
        %v2141 = vpack.c.bf16 %v2033, %v2032
        %v2142 = vpack.c.bf16 %v2035, %v2034
        %v2143 = vpack.c.bf16 %v2037, %v2036
        %v2144 = vpack.c.bf16 %v2039, %v2038
        %v2145 = vpack.c.bf16 %v2041, %v2040
        %v2146 = vpack.c.bf16 %v2043, %v2042
        %v2147 = vpack.c.bf16 %v2045, %v2044
        %v2148 = vpack.c.bf16 %v2047, %v2046
        %v2149 = vpack.c.bf16 %v2049, %v2048
        %v2150 = vpack.c.bf16 %v2051, %v2050
        %v2151 = vpack.c.bf16 %v2053, %v2052
        %v2152 = vpack.c.bf16 %v2055, %v2054
        %v2153 = vpack.c.bf16 %v2057, %v2056
        %v2154 = vpack.c.bf16 %v2059, %v2058
        %v2155 = vpack.c.bf16 %v2061, %v2060
        %v2156 = vpack.c.bf16 %v2063, %v2062
        %v2157 = vpack.c.bf16 %v2065, %v2064
        %v2158 = vpack.c.bf16 %v2067, %v2066
        %v2159 = vpack.c.bf16 %v2069, %v2068
        %v2160 = vpack.c.bf16 %v2071, %v2070
        %v2161 = vpack.c.bf16 %v2073, %v2072
        %v2162 = vpack.c.bf16 %v2075, %v2074
        %v2163 = vpack.c.bf16 %v2077, %v2076
        %v2164 = vpack.c.bf16 %v2079, %v2078
        %v2165 = vpack.c.bf16 %v2081, %v2080
        %v2166 = vpack.c.bf16 %v2083, %v2082
        %v2167 = vpack.c.bf16 %v2085, %v2084
        %v2168 = vpack.c.bf16 %v2087, %v2086
        %v2169 = vpack.c.bf16 %v2089, %v2088
        %v2170 = vpack.c.bf16 %v2091, %v2090
        %v2171 = vpack.c.bf16 %v2093, %v2092
        %v2172 = vpack.c.bf16 %v2095, %v2094
        %v2173 = vpack.c.bf16 %v2097, %v2096
        %v2174 = vpack.c.bf16 %v2099, %v2098
        %v2175 = vpack.c.bf16 %v2101, %v2100
        %v2176 = vpack.c.bf16 %v2103, %v2102
        %v2177 = vpack.c.bf16 %v2105, %v2104
        %v2178 = vpack.c.bf16 %v2107, %v2106
        %v2179 = vpack.c.bf16 %v2109, %v2108
        %v2180 = vpack.c.bf16 %v2111, %v2110
        %v2181 = vpack.c.bf16 %v2113, %v2112
        %v2182 = vpack.c.bf16 %v2115, %v2114
        %v2183 = vpack.c.bf16 %v2117, %v2116
        %v2184 = vpack.c.bf16 %v2119, %v2118
        %v2185 = vpack.c.bf16 %v2121, %v2120
        %v2250 = vunpack.c.l.b16 %v2122
        %v2251 = vunpack.c.h.b16 %v2122
        %v2252 = vunpack.c.l.b16 %v2123
        %v2253 = vunpack.c.h.b16 %v2123
        %v2254 = vunpack.c.l.b16 %v2124
        %v2255 = vunpack.c.h.b16 %v2124
        %v2256 = vunpack.c.l.b16 %v2125
        %v2257 = vunpack.c.h.b16 %v2125
        %v2258 = vunpack.c.l.b16 %v2126
        %v2259 = vunpack.c.h.b16 %v2126
        %v2260 = vunpack.c.l.b16 %v2127
        %v2261 = vunpack.c.h.b16 %v2127
        %v2262 = vunpack.c.l.b16 %v2128
        %v2263 = vunpack.c.h.b16 %v2128
        %v2264 = vunpack.c.l.b16 %v2129
        %v2265 = vunpack.c.h.b16 %v2129
        %v2266 = vunpack.c.l.b16 %v2130
        %v2267 = vunpack.c.h.b16 %v2130
        %v2268 = vunpack.c.l.b16 %v2131
        %v2269 = vunpack.c.h.b16 %v2131
        %v2270 = vunpack.c.l.b16 %v2132
        %v2271 = vunpack.c.h.b16 %v2132
        %v2272 = vunpack.c.l.b16 %v2133
        %v2273 = vunpack.c.h.b16 %v2133
        %v2274 = vunpack.c.l.b16 %v2134
        %v2275 = vunpack.c.h.b16 %v2134
        %v2276 = vunpack.c.l.b16 %v2135
        %v2277 = vunpack.c.h.b16 %v2135
        %v2278 = vunpack.c.l.b16 %v2136
        %v2279 = vunpack.c.h.b16 %v2136
        %v2280 = vunpack.c.l.b16 %v2137
        %v2281 = vunpack.c.h.b16 %v2137
        %v2282 = vunpack.c.l.b16 %v2138
        %v2283 = vunpack.c.h.b16 %v2138
        %v2284 = vunpack.c.l.b16 %v2139
        %v2285 = vunpack.c.h.b16 %v2139
        %v2286 = vunpack.c.l.b16 %v2140
        %v2287 = vunpack.c.h.b16 %v2140
        %v2288 = vunpack.c.l.b16 %v2141
        %v2289 = vunpack.c.h.b16 %v2141
        %v2290 = vunpack.c.l.b16 %v2142
        %v2291 = vunpack.c.h.b16 %v2142
        %v2292 = vunpack.c.l.b16 %v2143
        %v2293 = vunpack.c.h.b16 %v2143
        %v2294 = vunpack.c.l.b16 %v2144
        %v2295 = vunpack.c.h.b16 %v2144
        %v2296 = vunpack.c.l.b16 %v2145
        %v2297 = vunpack.c.h.b16 %v2145
        %v2298 = vunpack.c.l.b16 %v2146
        %v2299 = vunpack.c.h.b16 %v2146
        %v2300 = vunpack.c.l.b16 %v2147
        %v2301 = vunpack.c.h.b16 %v2147
        %v2302 = vunpack.c.l.b16 %v2148
        %v2303 = vunpack.c.h.b16 %v2148
        %v2304 = vunpack.c.l.b16 %v2149
        %v2305 = vunpack.c.h.b16 %v2149
        %v2306 = vunpack.c.l.b16 %v2150
        %v2307 = vunpack.c.h.b16 %v2150
        %v2308 = vunpack.c.l.b16 %v2151
        %v2309 = vunpack.c.h.b16 %v2151
        %v2310 = vunpack.c.l.b16 %v2152
        %v2311 = vunpack.c.h.b16 %v2152
        %v2312 = vunpack.c.l.b16 %v2153
        %v2313 = vunpack.c.h.b16 %v2153
        %v2314 = vunpack.c.l.b16 %v2154
        %v2315 = vunpack.c.h.b16 %v2154
        %v2316 = vunpack.c.l.b16 %v2155
        %v2317 = vunpack.c.h.b16 %v2155
        %v2318 = vunpack.c.l.b16 %v2156
        %v2319 = vunpack.c.h.b16 %v2156
        %v2320 = vunpack.c.l.b16 %v2157
        %v2321 = vunpack.c.h.b16 %v2157
        %v2322 = vunpack.c.l.b16 %v2158
        %v2323 = vunpack.c.h.b16 %v2158
        %v2324 = vunpack.c.l.b16 %v2159
        %v2325 = vunpack.c.h.b16 %v2159
        %v2326 = vunpack.c.l.b16 %v2160
        %v2327 = vunpack.c.h.b16 %v2160
        %v2328 = vunpack.c.l.b16 %v2161
        %v2329 = vunpack.c.h.b16 %v2161
        %v2330 = vunpack.c.l.b16 %v2162
        %v2331 = vunpack.c.h.b16 %v2162
        %v2332 = vunpack.c.l.b16 %v2163
        %v2333 = vunpack.c.h.b16 %v2163
        %v2334 = vunpack.c.l.b16 %v2164
        %v2335 = vunpack.c.h.b16 %v2164
        %v2336 = vunpack.c.l.b16 %v2165
        %v2337 = vunpack.c.h.b16 %v2165
        %v2338 = vunpack.c.l.b16 %v2166
        %v2339 = vunpack.c.h.b16 %v2166
        %v2340 = vunpack.c.l.b16 %v2167
        %v2341 = vunpack.c.h.b16 %v2167
        %v2342 = vunpack.c.l.b16 %v2168
        %v2343 = vunpack.c.h.b16 %v2168
        %v2344 = vunpack.c.l.b16 %v2169
        %v2345 = vunpack.c.h.b16 %v2169
        %v2346 = vunpack.c.l.b16 %v2170
        %v2347 = vunpack.c.h.b16 %v2170
        %v2348 = vunpack.c.l.b16 %v2171
        %v2349 = vunpack.c.h.b16 %v2171
        %v2350 = vunpack.c.l.b16 %v2172
        %v2351 = vunpack.c.h.b16 %v2172
        %v2352 = vunpack.c.l.b16 %v2173
        %v2353 = vunpack.c.h.b16 %v2173
        %v2354 = vunpack.c.l.b16 %v2174
        %v2355 = vunpack.c.h.b16 %v2174
        %v2356 = vunpack.c.l.b16 %v2175
        %v2357 = vunpack.c.h.b16 %v2175
        %v2358 = vunpack.c.l.b16 %v2176
        %v2359 = vunpack.c.h.b16 %v2176
        %v2360 = vunpack.c.l.b16 %v2177
        %v2361 = vunpack.c.h.b16 %v2177
        %v2362 = vunpack.c.l.b16 %v2178
        %v2363 = vunpack.c.h.b16 %v2178
        %v2364 = vunpack.c.l.b16 %v2179
        %v2365 = vunpack.c.h.b16 %v2179
        %v2366 = vunpack.c.l.b16 %v2180
        %v2367 = vunpack.c.h.b16 %v2180
        %v2368 = vunpack.c.l.b16 %v2181
        %v2369 = vunpack.c.h.b16 %v2181
        %v2370 = vunpack.c.l.b16 %v2182
        %v2371 = vunpack.c.h.b16 %v2182
        %v2372 = vunpack.c.l.b16 %v2183
        %v2373 = vunpack.c.h.b16 %v2183
        %v2374 = vunpack.c.l.b16 %v2184
        %v2375 = vunpack.c.h.b16 %v2184
        %v2376 = vunpack.c.l.b16 %v2185
        %v2377 = vunpack.c.h.b16 %v2185
        %v2378 = vpack.c.b16 %v2250, %v2250
        %v2379 = vpack.c.b16 %v2251, %v2251
        %v2380 = vpack.c.b16 %v2252, %v2252
        %v2381 = vpack.c.b16 %v2253, %v2253
        %v2382 = vpack.c.b16 %v2254, %v2254
        %v2383 = vpack.c.b16 %v2255, %v2255
        %v2384 = vpack.c.b16 %v2256, %v2256
        %v2385 = vpack.c.b16 %v2257, %v2257
        %v2386 = vpack.c.b16 %v2258, %v2258
        %v2387 = vpack.c.b16 %v2259, %v2259
        %v2388 = vpack.c.b16 %v2260, %v2260
        %v2389 = vpack.c.b16 %v2261, %v2261
        %v2390 = vpack.c.b16 %v2262, %v2262
        %v2391 = vpack.c.b16 %v2263, %v2263
        %v2392 = vpack.c.b16 %v2264, %v2264
        %v2393 = vpack.c.b16 %v2265, %v2265
        %v2394 = vpack.c.b16 %v2266, %v2266
        %v2395 = vpack.c.b16 %v2267, %v2267
        %v2396 = vpack.c.b16 %v2268, %v2268
        %v2397 = vpack.c.b16 %v2269, %v2269
        %v2398 = vpack.c.b16 %v2270, %v2270
        %v2399 = vpack.c.b16 %v2271, %v2271
        %v2400 = vpack.c.b16 %v2272, %v2272
        %v2401 = vpack.c.b16 %v2273, %v2273
        %v2402 = vpack.c.b16 %v2274, %v2274
        %v2403 = vpack.c.b16 %v2275, %v2275
        %v2404 = vpack.c.b16 %v2276, %v2276
        %v2405 = vpack.c.b16 %v2277, %v2277
        %v2406 = vpack.c.b16 %v2278, %v2278
        %v2407 = vpack.c.b16 %v2279, %v2279
        %v2408 = vpack.c.b16 %v2280, %v2280
        %v2409 = vpack.c.b16 %v2281, %v2281
        %v2410 = vpack.c.b16 %v2282, %v2282
        %v2411 = vpack.c.b16 %v2283, %v2283
        %v2412 = vpack.c.b16 %v2284, %v2284
        %v2413 = vpack.c.b16 %v2285, %v2285
        %v2414 = vpack.c.b16 %v2286, %v2286
        %v2415 = vpack.c.b16 %v2287, %v2287
        %v2416 = vpack.c.b16 %v2288, %v2288
        %v2417 = vpack.c.b16 %v2289, %v2289
        %v2418 = vpack.c.b16 %v2290, %v2290
        %v2419 = vpack.c.b16 %v2291, %v2291
        %v2420 = vpack.c.b16 %v2292, %v2292
        %v2421 = vpack.c.b16 %v2293, %v2293
        %v2422 = vpack.c.b16 %v2294, %v2294
        %v2423 = vpack.c.b16 %v2295, %v2295
        %v2424 = vpack.c.b16 %v2296, %v2296
        %v2425 = vpack.c.b16 %v2297, %v2297
        %v2426 = vpack.c.b16 %v2298, %v2298
        %v2427 = vpack.c.b16 %v2299, %v2299
        %v2428 = vpack.c.b16 %v2300, %v2300
        %v2429 = vpack.c.b16 %v2301, %v2301
        %v2430 = vpack.c.b16 %v2302, %v2302
        %v2431 = vpack.c.b16 %v2303, %v2303
        %v2432 = vpack.c.b16 %v2304, %v2304
        %v2433 = vpack.c.b16 %v2305, %v2305
        %v2434 = vpack.c.b16 %v2306, %v2306
        %v2435 = vpack.c.b16 %v2307, %v2307
        %v2436 = vpack.c.b16 %v2308, %v2308
        %v2437 = vpack.c.b16 %v2309, %v2309
        %v2438 = vpack.c.b16 %v2310, %v2310
        %v2439 = vpack.c.b16 %v2311, %v2311
        %v2440 = vpack.c.b16 %v2312, %v2312
        %v2441 = vpack.c.b16 %v2313, %v2313
        %v2442 = vpack.c.b16 %v2314, %v2314
        %v2443 = vpack.c.b16 %v2315, %v2315
        %v2444 = vpack.c.b16 %v2316, %v2316
        %v2445 = vpack.c.b16 %v2317, %v2317
        %v2446 = vpack.c.b16 %v2318, %v2318
        %v2447 = vpack.c.b16 %v2319, %v2319
        %v2448 = vpack.c.b16 %v2320, %v2320
        %v2449 = vpack.c.b16 %v2321, %v2321
        %v2450 = vpack.c.b16 %v2322, %v2322
        %v2451 = vpack.c.b16 %v2323, %v2323
        %v2452 = vpack.c.b16 %v2324, %v2324
        %v2453 = vpack.c.b16 %v2325, %v2325
        %v2454 = vpack.c.b16 %v2326, %v2326
        %v2455 = vpack.c.b16 %v2327, %v2327
        %v2456 = vpack.c.b16 %v2328, %v2328
        %v2457 = vpack.c.b16 %v2329, %v2329
        %v2458 = vpack.c.b16 %v2330, %v2330
        %v2459 = vpack.c.b16 %v2331, %v2331
        %v2460 = vpack.c.b16 %v2332, %v2332
        %v2461 = vpack.c.b16 %v2333, %v2333
        %v2462 = vpack.c.b16 %v2334, %v2334
        %v2463 = vpack.c.b16 %v2335, %v2335
        %v2464 = vpack.c.b16 %v2336, %v2336
        %v2465 = vpack.c.b16 %v2337, %v2337
        %v2466 = vpack.c.b16 %v2338, %v2338
        %v2467 = vpack.c.b16 %v2339, %v2339
        %v2468 = vpack.c.b16 %v2340, %v2340
        %v2469 = vpack.c.b16 %v2341, %v2341
        %v2470 = vpack.c.b16 %v2342, %v2342
        %v2471 = vpack.c.b16 %v2343, %v2343
        %v2472 = vpack.c.b16 %v2344, %v2344
        %v2473 = vpack.c.b16 %v2345, %v2345
        %v2474 = vpack.c.b16 %v2346, %v2346
        %v2475 = vpack.c.b16 %v2347, %v2347
        %v2476 = vpack.c.b16 %v2348, %v2348
        %v2477 = vpack.c.b16 %v2349, %v2349
        %v2478 = vpack.c.b16 %v2350, %v2350
        %v2479 = vpack.c.b16 %v2351, %v2351
        %v2480 = vpack.c.b16 %v2352, %v2352
        %v2481 = vpack.c.b16 %v2353, %v2353
        %v2482 = vpack.c.b16 %v2354, %v2354
        %v2483 = vpack.c.b16 %v2355, %v2355
        %v2484 = vpack.c.b16 %v2356, %v2356
        %v2485 = vpack.c.b16 %v2357, %v2357
        %v2486 = vpack.c.b16 %v2358, %v2358
        %v2487 = vpack.c.b16 %v2359, %v2359
        %v2488 = vpack.c.b16 %v2360, %v2360
        %v2489 = vpack.c.b16 %v2361, %v2361
        %v2490 = vpack.c.b16 %v2362, %v2362
        %v2491 = vpack.c.b16 %v2363, %v2363
        %v2492 = vpack.c.b16 %v2364, %v2364
        %v2493 = vpack.c.b16 %v2365, %v2365
        %v2494 = vpack.c.b16 %v2366, %v2366
        %v2495 = vpack.c.b16 %v2367, %v2367
        %v2496 = vpack.c.b16 %v2368, %v2368
        %v2497 = vpack.c.b16 %v2369, %v2369
        %v2498 = vpack.c.b16 %v2370, %v2370
        %v2499 = vpack.c.b16 %v2371, %v2371
        %v2500 = vpack.c.b16 %v2372, %v2372
        %v2501 = vpack.c.b16 %v2373, %v2373
        %v2502 = vpack.c.b16 %v2374, %v2374
        %v2503 = vpack.c.b16 %v2375, %v2375
        %v2504 = vpack.c.b16 %v2376, %v2376
        %v2505 = vpack.c.b16 %v2377, %v2377
        %2634 = vst [vmem:[%s257] sm:$0xf] %v2378
        %2635 = vst [vmem:[%s257 + $0x4] sm:$0xf] %v2379
        %2636 = vst [vmem:[%s257 + $0x8] sm:$0xf] %v2380
        %2637 = vst [vmem:[%s257 + $0xc] sm:$0xf] %v2381
        %2638 = vst [vmem:[%s257 + $0x10] sm:$0xf] %v2382
        %2639 = vst [vmem:[%s257 + $0x14] sm:$0xf] %v2383
        %2640 = vst [vmem:[%s257 + $0x18] sm:$0xf] %v2384
        %2641 = vst [vmem:[%s257 + $0x1c] sm:$0xf] %v2385
        %2642 = vst [vmem:[%s257 + $0x20] sm:$0xf] %v2386
        %2643 = vst [vmem:[%s257 + $0x24] sm:$0xf] %v2387
        %2644 = vst [vmem:[%s257 + $0x28] sm:$0xf] %v2388
        %2645 = vst [vmem:[%s257 + $0x2c] sm:$0xf] %v2389
        %2646 = vst [vmem:[%s257 + $0x30] sm:$0xf] %v2390
        %2647 = vst [vmem:[%s257 + $0x34] sm:$0xf] %v2391
        %2648 = vst [vmem:[%s257 + $0x38] sm:$0xf] %v2392
        %2649 = vst [vmem:[%s257 + $0x3c] sm:$0xf] %v2393
        %2650 = vst [vmem:[%s257 + $0x40] sm:$0xf] %v2394
        %2651 = vst [vmem:[%s257 + $0x44] sm:$0xf] %v2395
        %2652 = vst [vmem:[%s257 + $0x48] sm:$0xf] %v2396
        %2653 = vst [vmem:[%s257 + $0x4c] sm:$0xf] %v2397
        %2654 = vst [vmem:[%s257 + $0x50] sm:$0xf] %v2398
        %2655 = vst [vmem:[%s257 + $0x54] sm:$0xf] %v2399
        %2656 = vst [vmem:[%s257 + $0x58] sm:$0xf] %v2400
        %2657 = vst [vmem:[%s257 + $0x5c] sm:$0xf] %v2401
        %2658 = vst [vmem:[%s257 + $0x60] sm:$0xf] %v2402
        %2659 = vst [vmem:[%s257 + $0x64] sm:$0xf] %v2403
        %2660 = vst [vmem:[%s257 + $0x68] sm:$0xf] %v2404
        %2661 = vst [vmem:[%s257 + $0x6c] sm:$0xf] %v2405
        %2662 = vst [vmem:[%s257 + $0x70] sm:$0xf] %v2406
        %2663 = vst [vmem:[%s257 + $0x74] sm:$0xf] %v2407
        %2664 = vst [vmem:[%s257 + $0x78] sm:$0xf] %v2408
        %2665 = vst [vmem:[%s257 + $0x7c] sm:$0xf] %v2409
        %2666 = vst [vmem:[%s257 + $0x80] sm:$0xf] %v2410
        %2667 = vst [vmem:[%s257 + $0x84] sm:$0xf] %v2411
        %2668 = vst [vmem:[%s257 + $0x88] sm:$0xf] %v2412
        %2669 = vst [vmem:[%s257 + $0x8c] sm:$0xf] %v2413
        %2670 = vst [vmem:[%s257 + $0x90] sm:$0xf] %v2414
        %2671 = vst [vmem:[%s257 + $0x94] sm:$0xf] %v2415
        %2672 = vst [vmem:[%s257 + $0x98] sm:$0xf] %v2416
        %2673 = vst [vmem:[%s257 + $0x9c] sm:$0xf] %v2417
        %2674 = vst [vmem:[%s257 + $0xa0] sm:$0xf] %v2418
        %2675 = vst [vmem:[%s257 + $0xa4] sm:$0xf] %v2419
        %2676 = vst [vmem:[%s257 + $0xa8] sm:$0xf] %v2420
        %2677 = vst [vmem:[%s257 + $0xac] sm:$0xf] %v2421
        %2678 = vst [vmem:[%s257 + $0xb0] sm:$0xf] %v2422
        %2679 = vst [vmem:[%s257 + $0xb4] sm:$0xf] %v2423
        %2680 = vst [vmem:[%s257 + $0xb8] sm:$0xf] %v2424
        %2681 = vst [vmem:[%s257 + $0xbc] sm:$0xf] %v2425
        %2682 = vst [vmem:[%s257 + $0xc0] sm:$0xf] %v2426
        %2683 = vst [vmem:[%s257 + $0xc4] sm:$0xf] %v2427
        %2684 = vst [vmem:[%s257 + $0xc8] sm:$0xf] %v2428
        %2685 = vst [vmem:[%s257 + $0xcc] sm:$0xf] %v2429
        %2686 = vst [vmem:[%s257 + $0xd0] sm:$0xf] %v2430
        %2687 = vst [vmem:[%s257 + $0xd4] sm:$0xf] %v2431
        %2688 = vst [vmem:[%s257 + $0xd8] sm:$0xf] %v2432
        %2689 = vst [vmem:[%s257 + $0xdc] sm:$0xf] %v2433
        %2690 = vst [vmem:[%s257 + $0xe0] sm:$0xf] %v2434
        %2691 = vst [vmem:[%s257 + $0xe4] sm:$0xf] %v2435
        %2692 = vst [vmem:[%s257 + $0xe8] sm:$0xf] %v2436
        %2693 = vst [vmem:[%s257 + $0xec] sm:$0xf] %v2437
        %2694 = vst [vmem:[%s257 + $0xf0] sm:$0xf] %v2438
        %2695 = vst [vmem:[%s257 + $0xf4] sm:$0xf] %v2439
        %2696 = vst [vmem:[%s257 + $0xf8] sm:$0xf] %v2440
        %2697 = vst [vmem:[%s257 + $0xfc] sm:$0xf] %v2441
        %2698 = vst [vmem:[%s257 + $0x100] sm:$0xf] %v2442
        %2699 = vst [vmem:[%s257 + $0x104] sm:$0xf] %v2443
        %2700 = vst [vmem:[%s257 + $0x108] sm:$0xf] %v2444
        %2701 = vst [vmem:[%s257 + $0x10c] sm:$0xf] %v2445
        %2702 = vst [vmem:[%s257 + $0x110] sm:$0xf] %v2446
        %2703 = vst [vmem:[%s257 + $0x114] sm:$0xf] %v2447
        %2704 = vst [vmem:[%s257 + $0x118] sm:$0xf] %v2448
        %2705 = vst [vmem:[%s257 + $0x11c] sm:$0xf] %v2449
        %2706 = vst [vmem:[%s257 + $0x120] sm:$0xf] %v2450
        %2707 = vst [vmem:[%s257 + $0x124] sm:$0xf] %v2451
        %2708 = vst [vmem:[%s257 + $0x128] sm:$0xf] %v2452
        %2709 = vst [vmem:[%s257 + $0x12c] sm:$0xf] %v2453
        %2710 = vst [vmem:[%s257 + $0x130] sm:$0xf] %v2454
        %2711 = vst [vmem:[%s257 + $0x134] sm:$0xf] %v2455
        %2712 = vst [vmem:[%s257 + $0x138] sm:$0xf] %v2456
        %2713 = vst [vmem:[%s257 + $0x13c] sm:$0xf] %v2457
        %2714 = vst [vmem:[%s257 + $0x140] sm:$0xf] %v2458
        %2715 = vst [vmem:[%s257 + $0x144] sm:$0xf] %v2459
        %2716 = vst [vmem:[%s257 + $0x148] sm:$0xf] %v2460
        %2717 = vst [vmem:[%s257 + $0x14c] sm:$0xf] %v2461
        %2718 = vst [vmem:[%s257 + $0x150] sm:$0xf] %v2462
        %2719 = vst [vmem:[%s257 + $0x154] sm:$0xf] %v2463
        %2720 = vst [vmem:[%s257 + $0x158] sm:$0xf] %v2464
        %2721 = vst [vmem:[%s257 + $0x15c] sm:$0xf] %v2465
        %2722 = vst [vmem:[%s257 + $0x160] sm:$0xf] %v2466
        %2723 = vst [vmem:[%s257 + $0x164] sm:$0xf] %v2467
        %2724 = vst [vmem:[%s257 + $0x168] sm:$0xf] %v2468
        %2725 = vst [vmem:[%s257 + $0x16c] sm:$0xf] %v2469
        %2726 = vst [vmem:[%s257 + $0x170] sm:$0xf] %v2470
        %2727 = vst [vmem:[%s257 + $0x174] sm:$0xf] %v2471
        %2728 = vst [vmem:[%s257 + $0x178] sm:$0xf] %v2472
        %2729 = vst [vmem:[%s257 + $0x17c] sm:$0xf] %v2473
        %2730 = vst [vmem:[%s257 + $0x180] sm:$0xf] %v2474
        %2731 = vst [vmem:[%s257 + $0x184] sm:$0xf] %v2475
        %2732 = vst [vmem:[%s257 + $0x188] sm:$0xf] %v2476
        %2733 = vst [vmem:[%s257 + $0x18c] sm:$0xf] %v2477
        %2734 = vst [vmem:[%s257 + $0x190] sm:$0xf] %v2478
        %2735 = vst [vmem:[%s257 + $0x194] sm:$0xf] %v2479
        %2736 = vst [vmem:[%s257 + $0x198] sm:$0xf] %v2480
        %2737 = vst [vmem:[%s257 + $0x19c] sm:$0xf] %v2481
        %2738 = vst [vmem:[%s257 + $0x1a0] sm:$0xf] %v2482
        %2739 = vst [vmem:[%s257 + $0x1a4] sm:$0xf] %v2483
        %2740 = vst [vmem:[%s257 + $0x1a8] sm:$0xf] %v2484
        %2741 = vst [vmem:[%s257 + $0x1ac] sm:$0xf] %v2485
        %2742 = vst [vmem:[%s257 + $0x1b0] sm:$0xf] %v2486
        %2743 = vst [vmem:[%s257 + $0x1b4] sm:$0xf] %v2487
        %2744 = vst [vmem:[%s257 + $0x1b8] sm:$0xf] %v2488
        %2745 = vst [vmem:[%s257 + $0x1bc] sm:$0xf] %v2489
        %2746 = vst [vmem:[%s257 + $0x1c0] sm:$0xf] %v2490
        %2747 = vst [vmem:[%s257 + $0x1c4] sm:$0xf] %v2491
        %2748 = vst [vmem:[%s257 + $0x1c8] sm:$0xf] %v2492
        %2749 = vst [vmem:[%s257 + $0x1cc] sm:$0xf] %v2493
        %2750 = vst [vmem:[%s257 + $0x1d0] sm:$0xf] %v2494
        %2751 = vst [vmem:[%s257 + $0x1d4] sm:$0xf] %v2495
        %2752 = vst [vmem:[%s257 + $0x1d8] sm:$0xf] %v2496
        %2753 = vst [vmem:[%s257 + $0x1dc] sm:$0xf] %v2497
        %2754 = vst [vmem:[%s257 + $0x1e0] sm:$0xf] %v2498
        %2755 = vst [vmem:[%s257 + $0x1e4] sm:$0xf] %v2499
        %2756 = vst [vmem:[%s257 + $0x1e8] sm:$0xf] %v2500
        %2757 = vst [vmem:[%s257 + $0x1ec] sm:$0xf] %v2501
        %2758 = vst [vmem:[%s257 + $0x1f0] sm:$0xf] %v2502
        %2759 = vst [vmem:[%s257 + $0x1f4] sm:$0xf] %v2503
        %2760 = vst [vmem:[%s257 + $0x1f8] sm:$0xf] %v2504
        %2761 = vst [vmem:[%s257 + $0x1fc] sm:$0xf] %v2505
      $region40: #{dimpnet_forward.6} parent=31 // pred_fallthru
        _
      %s2762 = smul.u32 128, %s19
      %p2763 = scmp.lt.s32.totalorder %s2762, 255
      %s2764 = scalar_select %p2763, %s2762, 255
      %p2765 = scmp.lt.s32.totalorder %s20, 0
      %s2766 = scalar_select %p2765, %s20, 0
      %s2767 = sadd.s32 %s2766, %s2764
      %s2768 = smul.addr %s2767, 4
      %s2769 = scalar_lea.vmem %s3, %s2768
      // Predicated region
      $region41: #{dimpnet_forward.6} parent=31 // pred_check
        %p2770 = pneg %p135
      $region42: #{dimpnet_forward.6} parent=31 // pred_check_branch
        %2772 = sbr.rel (%p2770) target = $region44
      $region43: #{dimpnet_forward.6} parent=31 // pred_region
        %s2773 = smul.u32 128, %s19
      $region44: #{dimpnet_forward.6} parent=31 // pred_fallthru
        _
    $region32: #{dimpnet_forward.6} parent=5 // pred_fallthru
      _
    %p2774 = scmp.le.s32.totalorder 2, %s9
    // Predicated region
    $region45: #{dimpnet_forward.6} parent=5 // pred_check
      %p2775 = pneg %p2774
    $region46: #{dimpnet_forward.6} parent=5 // pred_check_branch
      %2777 = sbr.rel (%p2775) target = $region48
    $region47: #{dimpnet_forward.6} parent=5 // pred_region
      %s2778 = ssub.s32 %s9, 2
      // Predicated region
      $region49: #{dimpnet_forward.6} parent=47 // pred_check
        %p2779 = pneg %p141
      $region50: #{dimpnet_forward.6} parent=47 // pred_check_branch
        %2781 = sbr.rel (%p2779) target = $region52
      $region51: #{dimpnet_forward.6} parent=47 // pred_region
        %s2782 = smul.u32 128, %s22
        %p2783 = scmp.lt.s32.totalorder %s2782, 255
        %s2784 = scalar_select %p2783, %s2782, 255
        %p2785 = scmp.lt.s32.totalorder %s23, 0
        %s2786 = scalar_select %p2785, %s23, 0
        %s2787 = sadd.s32 %s2786, %s2784
        %s2788 = smul.addr %s2787, 4
        %s2789 = scalar_lea.vmem %s3, %s2788
      $region52: #{dimpnet_forward.6} parent=47 // pred_fallthru
        _
    $region48: #{dimpnet_forward.6} parent=5 // pred_fallthru
      _
  $region6: #{dimpnet_forward.6} parent=0 // loop_footer
    %s13 = sadd.s32 1, %s9
  $region7: #{dimpnet_forward.6} parent=0 // loop_footer_branch
    %8 = sbr.rel target = $region3
  $region8: #{dimpnet_forward.6} parent=0 // loop_exit
    _

// kernel: dimpnet_forward.7
$region0: #{dimpnet_forward.7}
  #allocation0 [shape = 'u32[]', space=smem, size = 0x4, offset = 0x4, fixed_abs, tag = 'smem constant byte address 0x4 - core index']
  #allocation1 [shape = 'u32[144,128]{1,0:T(1,128)}', space=vmem, size = 0x12000, scoped, tag = 'internal scratch']
  #allocation2 [shape = 'f32[512,128]{1,0:T(8,128)}', space=vmem, size = 0x40000, scoped, tag = 'scratch operand']
  %s0 = inlined_call_operand.vmem [shape: bf16[512,72], index: 0, kind: input, shape index: {}]
  %s1 = inlined_call_operand.vmem [shape: bf16[72,128], index: 1, kind: input, shape index: {}]
  %s2 = inlined_call_operand.vmem [shape: f32[1,128], index: 2, kind: input, shape index: {}]
  %s3 = inlined_call_operand.vmem [shape: bf16[512,128], index: 3, kind: output, shape index: {}]
  %s4 = sld [smem:[#allocation0]]
  $region30: #{dimpnet_forward.7} parent=0
    _
  %s6 = ssub.s32 1, %s4
  %s7 = scalar_select 0, %s6, %s4
  // Predicated region
  $region2: #{dimpnet_forward.7} parent=0 // pred_check
    _
  $region3: #{dimpnet_forward.7} parent=0 // pred_check_branch
    %9 = sbr.rel (0) target = $region5
  $region4: #{dimpnet_forward.7} parent=0 // pred_region
    _
  $region5: #{dimpnet_forward.7} parent=0 // pred_fallthru
    _
  // Predicated region
  $region6: #{dimpnet_forward.7} parent=0 // pred_check
    _
  $region7: #{dimpnet_forward.7} parent=0 // pred_check_branch
    %11 = sbr.rel (0) target = $region9
  $region8: #{dimpnet_forward.7} parent=0 // pred_region
    _
  $region9: #{dimpnet_forward.7} parent=0 // pred_fallthru
    _
  // Predicated region
  $region10: #{dimpnet_forward.7} parent=0 // pred_check
    _
  $region11: #{dimpnet_forward.7} parent=0 // pred_check_branch
    %13 = sbr.rel (0) target = $region13
  $region12: #{dimpnet_forward.7} parent=0 // pred_region
    _
  $region13: #{dimpnet_forward.7} parent=0 // pred_fallthru
    _
  %p15 = scmp.eq.s32.totalorder 0, 0
  // Predicated region
  $region14: #{dimpnet_forward.7} parent=0 // pred_check
    %p16 = pneg %p15
  $region15: #{dimpnet_forward.7} parent=0 // pred_check_branch
    %18 = sbr.rel (%p16) target = $region17
  $region16: #{dimpnet_forward.7} parent=0 // pred_region
    %19 = vst [vmem:[#allocation2] sm:$0xff] 0.0
    %20 = vst [vmem:[#allocation2 + $0x8] sm:$0xff] 0.0
    %21 = vst [vmem:[#allocation2 + $0x10] sm:$0xff] 0.0
    %22 = vst [vmem:[#allocation2 + $0x18] sm:$0xff] 0.0
    %23 = vst [vmem:[#allocation2 + $0x20] sm:$0xff] 0.0
    %24 = vst [vmem:[#allocation2 + $0x28] sm:$0xff] 0.0
    %25 = vst [vmem:[#allocation2 + $0x30] sm:$0xff] 0.0
    %26 = vst [vmem:[#allocation2 + $0x38] sm:$0xff] 0.0
    %27 = vst [vmem:[#allocation2 + $0x40] sm:$0xff] 0.0
    %28 = vst [vmem:[#allocation2 + $0x48] sm:$0xff] 0.0
    %29 = vst [vmem:[#allocation2 + $0x50] sm:$0xff] 0.0
    %30 = vst [vmem:[#allocation2 + $0x58] sm:$0xff] 0.0
    %31 = vst [vmem:[#allocation2 + $0x60] sm:$0xff] 0.0
    %32 = vst [vmem:[#allocation2 + $0x68] sm:$0xff] 0.0
    %33 = vst [vmem:[#allocation2 + $0x70] sm:$0xff] 0.0
    %34 = vst [vmem:[#allocation2 + $0x78] sm:$0xff] 0.0
    %35 = vst [vmem:[#allocation2 + $0x80] sm:$0xff] 0.0
    %36 = vst [vmem:[#allocation2 + $0x88] sm:$0xff] 0.0
    %37 = vst [vmem:[#allocation2 + $0x90] sm:$0xff] 0.0
    %38 = vst [vmem:[#allocation2 + $0x98] sm:$0xff] 0.0
    %39 = vst [vmem:[#allocation2 + $0xa0] sm:$0xff] 0.0
    %40 = vst [vmem:[#allocation2 + $0xa8] sm:$0xff] 0.0
    %41 = vst [vmem:[#allocation2 + $0xb0] sm:$0xff] 0.0
    %42 = vst [vmem:[#allocation2 + $0xb8] sm:$0xff] 0.0
    %43 = vst [vmem:[#allocation2 + $0xc0] sm:$0xff] 0.0
    %44 = vst [vmem:[#allocation2 + $0xc8] sm:$0xff] 0.0
    %45 = vst [vmem:[#allocation2 + $0xd0] sm:$0xff] 0.0
    %46 = vst [vmem:[#allocation2 + $0xd8] sm:$0xff] 0.0
    %47 = vst [vmem:[#allocation2 + $0xe0] sm:$0xff] 0.0
    %48 = vst [vmem:[#allocation2 + $0xe8] sm:$0xff] 0.0
    %49 = vst [vmem:[#allocation2 + $0xf0] sm:$0xff] 0.0
    %50 = vst [vmem:[#allocation2 + $0xf8] sm:$0xff] 0.0
    %51 = vst [vmem:[#allocation2 + $0x100] sm:$0xff] 0.0
    %52 = vst [vmem:[#allocation2 + $0x108] sm:$0xff] 0.0
    %53 = vst [vmem:[#allocation2 + $0x110] sm:$0xff] 0.0
    %54 = vst [vmem:[#allocation2 + $0x118] sm:$0xff] 0.0
    %55 = vst [vmem:[#allocation2 + $0x120] sm:$0xff] 0.0
    %56 = vst [vmem:[#allocation2 + $0x128] sm:$0xff] 0.0
    %57 = vst [vmem:[#allocation2 + $0x130] sm:$0xff] 0.0
    %58 = vst [vmem:[#allocation2 + $0x138] sm:$0xff] 0.0
    %59 = vst [vmem:[#allocation2 + $0x140] sm:$0xff] 0.0
    %60 = vst [vmem:[#allocation2 + $0x148] sm:$0xff] 0.0
    %61 = vst [vmem:[#allocation2 + $0x150] sm:$0xff] 0.0
    %62 = vst [vmem:[#allocation2 + $0x158] sm:$0xff] 0.0
    %63 = vst [vmem:[#allocation2 + $0x160] sm:$0xff] 0.0
    %64 = vst [vmem:[#allocation2 + $0x168] sm:$0xff] 0.0
    %65 = vst [vmem:[#allocation2 + $0x170] sm:$0xff] 0.0
    %66 = vst [vmem:[#allocation2 + $0x178] sm:$0xff] 0.0
    %67 = vst [vmem:[#allocation2 + $0x180] sm:$0xff] 0.0
    %68 = vst [vmem:[#allocation2 + $0x188] sm:$0xff] 0.0
    %69 = vst [vmem:[#allocation2 + $0x190] sm:$0xff] 0.0
    %70 = vst [vmem:[#allocation2 + $0x198] sm:$0xff] 0.0
    %71 = vst [vmem:[#allocation2 + $0x1a0] sm:$0xff] 0.0
    %72 = vst [vmem:[#allocation2 + $0x1a8] sm:$0xff] 0.0
    %73 = vst [vmem:[#allocation2 + $0x1b0] sm:$0xff] 0.0
    %74 = vst [vmem:[#allocation2 + $0x1b8] sm:$0xff] 0.0
    %75 = vst [vmem:[#allocation2 + $0x1c0] sm:$0xff] 0.0
    %76 = vst [vmem:[#allocation2 + $0x1c8] sm:$0xff] 0.0
    %77 = vst [vmem:[#allocation2 + $0x1d0] sm:$0xff] 0.0
    %78 = vst [vmem:[#allocation2 + $0x1d8] sm:$0xff] 0.0
    %79 = vst [vmem:[#allocation2 + $0x1e0] sm:$0xff] 0.0
    %80 = vst [vmem:[#allocation2 + $0x1e8] sm:$0xff] 0.0
    %81 = vst [vmem:[#allocation2 + $0x1f0] sm:$0xff] 0.0
    %82 = vst [vmem:[#allocation2 + $0x1f8] sm:$0xff] 0.0
  $region17: #{dimpnet_forward.7} parent=0 // pred_fallthru
    _
  %v83 = vld [vmem:[#allocation2] sm:$0xff]
  %v84 = vld [vmem:[#allocation2 + $0x8] sm:$0xff]
  %v85 = vld [vmem:[#allocation2 + $0x10] sm:$0xff]
  %v86 = vld [vmem:[#allocation2 + $0x18] sm:$0xff]
  %v87 = vld [vmem:[#allocation2 + $0x20] sm:$0xff]
  %v88 = vld [vmem:[#allocation2 + $0x28] sm:$0xff]
  %v89 = vld [vmem:[#allocation2 + $0x30] sm:$0xff]
  %v90 = vld [vmem:[#allocation2 + $0x38] sm:$0xff]
  %v91 = vld [vmem:[#allocation2 + $0x40] sm:$0xff]
  %v92 = vld [vmem:[#allocation2 + $0x48] sm:$0xff]
  %v93 = vld [vmem:[#allocation2 + $0x50] sm:$0xff]
  %v94 = vld [vmem:[#allocation2 + $0x58] sm:$0xff]
  %v95 = vld [vmem:[#allocation2 + $0x60] sm:$0xff]
  %v96 = vld [vmem:[#allocation2 + $0x68] sm:$0xff]
  %v97 = vld [vmem:[#allocation2 + $0x70] sm:$0xff]
  %v98 = vld [vmem:[#allocation2 + $0x78] sm:$0xff]
  %v99 = vld [vmem:[#allocation2 + $0x80] sm:$0xff]
  %v100 = vld [vmem:[#allocation2 + $0x88] sm:$0xff]
  %v101 = vld [vmem:[#allocation2 + $0x90] sm:$0xff]
  %v102 = vld [vmem:[#allocation2 + $0x98] sm:$0xff]
  %v103 = vld [vmem:[#allocation2 + $0xa0] sm:$0xff]
  %v104 = vld [vmem:[#allocation2 + $0xa8] sm:$0xff]
  %v105 = vld [vmem:[#allocation2 + $0xb0] sm:$0xff]
  %v106 = vld [vmem:[#allocation2 + $0xb8] sm:$0xff]
  %v107 = vld [vmem:[#allocation2 + $0xc0] sm:$0xff]
  %v108 = vld [vmem:[#allocation2 + $0xc8] sm:$0xff]
  %v109 = vld [vmem:[#allocation2 + $0xd0] sm:$0xff]
  %v110 = vld [vmem:[#allocation2 + $0xd8] sm:$0xff]
  %v111 = vld [vmem:[#allocation2 + $0xe0] sm:$0xff]
  %v112 = vld [vmem:[#allocation2 + $0xe8] sm:$0xff]
  %v113 = vld [vmem:[#allocation2 + $0xf0] sm:$0xff]
  %v114 = vld [vmem:[#allocation2 + $0xf8] sm:$0xff]
  %v115 = vld [vmem:[#allocation2 + $0x100] sm:$0xff]
  %v116 = vld [vmem:[#allocation2 + $0x108] sm:$0xff]
  %v117 = vld [vmem:[#allocation2 + $0x110] sm:$0xff]
  %v118 = vld [vmem:[#allocation2 + $0x118] sm:$0xff]
  %v119 = vld [vmem:[#allocation2 + $0x120] sm:$0xff]
  %v120 = vld [vmem:[#allocation2 + $0x128] sm:$0xff]
  %v121 = vld [vmem:[#allocation2 + $0x130] sm:$0xff]
  %v122 = vld [vmem:[#allocation2 + $0x138] sm:$0xff]
  %v123 = vld [vmem:[#allocation2 + $0x140] sm:$0xff]
  %v124 = vld [vmem:[#allocation2 + $0x148] sm:$0xff]
  %v125 = vld [vmem:[#allocation2 + $0x150] sm:$0xff]
  %v126 = vld [vmem:[#allocation2 + $0x158] sm:$0xff]
  %v127 = vld [vmem:[#allocation2 + $0x160] sm:$0xff]
  %v128 = vld [vmem:[#allocation2 + $0x168] sm:$0xff]
  %v129 = vld [vmem:[#allocation2 + $0x170] sm:$0xff]
  %v130 = vld [vmem:[#allocation2 + $0x178] sm:$0xff]
  %v131 = vld [vmem:[#allocation2 + $0x180] sm:$0xff]
  %v132 = vld [vmem:[#allocation2 + $0x188] sm:$0xff]
  %v133 = vld [vmem:[#allocation2 + $0x190] sm:$0xff]
  %v134 = vld [vmem:[#allocation2 + $0x198] sm:$0xff]
  %v135 = vld [vmem:[#allocation2 + $0x1a0] sm:$0xff]
  %v136 = vld [vmem:[#allocation2 + $0x1a8] sm:$0xff]
  %v137 = vld [vmem:[#allocation2 + $0x1b0] sm:$0xff]
  %v138 = vld [vmem:[#allocation2 + $0x1b8] sm:$0xff]
  %v139 = vld [vmem:[#allocation2 + $0x1c0] sm:$0xff]
  %v140 = vld [vmem:[#allocation2 + $0x1c8] sm:$0xff]
  %v141 = vld [vmem:[#allocation2 + $0x1d0] sm:$0xff]
  %v142 = vld [vmem:[#allocation2 + $0x1d8] sm:$0xff]
  %v143 = vld [vmem:[#allocation2 + $0x1e0] sm:$0xff]
  %v144 = vld [vmem:[#allocation2 + $0x1e8] sm:$0xff]
  %v145 = vld [vmem:[#allocation2 + $0x1f0] sm:$0xff]
  %v146 = vld [vmem:[#allocation2 + $0x1f8] sm:$0xff]
  %v147 = vld [vmem:[%s0] sm:$0xf]
  %v148 = vld [vmem:[%s0 + $0x4] sm:$0xf]
  %v149 = vld [vmem:[%s0 + $0x8] sm:$0xf]
  %v150 = vld [vmem:[%s0 + $0xc] sm:$0xf]
  %v151 = vld [vmem:[%s0 + $0x10] sm:$0xf]
  %v152 = vld [vmem:[%s0 + $0x14] sm:$0xf]
  %v153 = vld [vmem:[%s0 + $0x18] sm:$0xf]
  %v154 = vld [vmem:[%s0 + $0x1c] sm:$0xf]
  %v155 = vld [vmem:[%s0 + $0x20] sm:$0xf]
  %v156 = vld [vmem:[%s0 + $0x24] sm:$0xf]
  %v157 = vld [vmem:[%s0 + $0x28] sm:$0xf]
  %v158 = vld [vmem:[%s0 + $0x2c] sm:$0xf]
  %v159 = vld [vmem:[%s0 + $0x30] sm:$0xf]
  %v160 = vld [vmem:[%s0 + $0x34] sm:$0xf]
  %v161 = vld [vmem:[%s0 + $0x38] sm:$0xf]
  %v162 = vld [vmem:[%s0 + $0x3c] sm:$0xf]
  %v163 = vld [vmem:[%s0 + $0x40] sm:$0xf]
  %v164 = vld [vmem:[%s0 + $0x44] sm:$0xf]
  %v165 = vld [vmem:[%s0 + $0x48] sm:$0xf]
  %v166 = vld [vmem:[%s0 + $0x4c] sm:$0xf]
  %v167 = vld [vmem:[%s0 + $0x50] sm:$0xf]
  %v168 = vld [vmem:[%s0 + $0x54] sm:$0xf]
  %v169 = vld [vmem:[%s0 + $0x58] sm:$0xf]
  %v170 = vld [vmem:[%s0 + $0x5c] sm:$0xf]
  %v171 = vld [vmem:[%s0 + $0x60] sm:$0xf]
  %v172 = vld [vmem:[%s0 + $0x64] sm:$0xf]
  %v173 = vld [vmem:[%s0 + $0x68] sm:$0xf]
  %v174 = vld [vmem:[%s0 + $0x6c] sm:$0xf]
  %v175 = vld [vmem:[%s0 + $0x70] sm:$0xf]
  %v176 = vld [vmem:[%s0 + $0x74] sm:$0xf]
  %v177 = vld [vmem:[%s0 + $0x78] sm:$0xf]
  %v178 = vld [vmem:[%s0 + $0x7c] sm:$0xf]
  %v179 = vld [vmem:[%s0 + $0x80] sm:$0xf]
  %v180 = vld [vmem:[%s0 + $0x84] sm:$0xf]
  %v181 = vld [vmem:[%s0 + $0x88] sm:$0xf]
  %v182 = vld [vmem:[%s0 + $0x8c] sm:$0xf]
  %v183 = vld [vmem:[%s0 + $0x90] sm:$0xf]
  %v184 = vld [vmem:[%s0 + $0x94] sm:$0xf]
  %v185 = vld [vmem:[%s0 + $0x98] sm:$0xf]
  %v186 = vld [vmem:[%s0 + $0x9c] sm:$0xf]
  %v187 = vld [vmem:[%s0 + $0xa0] sm:$0xf]
  %v188 = vld [vmem:[%s0 + $0xa4] sm:$0xf]
  %v189 = vld [vmem:[%s0 + $0xa8] sm:$0xf]
  %v190 = vld [vmem:[%s0 + $0xac] sm:$0xf]
  %v191 = vld [vmem:[%s0 + $0xb0] sm:$0xf]
  %v192 = vld [vmem:[%s0 + $0xb4] sm:$0xf]
  %v193 = vld [vmem:[%s0 + $0xb8] sm:$0xf]
  %v194 = vld [vmem:[%s0 + $0xbc] sm:$0xf]
  %v195 = vld [vmem:[%s0 + $0xc0] sm:$0xf]
  %v196 = vld [vmem:[%s0 + $0xc4] sm:$0xf]
  %v197 = vld [vmem:[%s0 + $0xc8] sm:$0xf]
  %v198 = vld [vmem:[%s0 + $0xcc] sm:$0xf]
  %v199 = vld [vmem:[%s0 + $0xd0] sm:$0xf]
  %v200 = vld [vmem:[%s0 + $0xd4] sm:$0xf]
  %v201 = vld [vmem:[%s0 + $0xd8] sm:$0xf]
  %v202 = vld [vmem:[%s0 + $0xdc] sm:$0xf]
  %v203 = vld [vmem:[%s0 + $0xe0] sm:$0xf]
  %v204 = vld [vmem:[%s0 + $0xe4] sm:$0xf]
  %v205 = vld [vmem:[%s0 + $0xe8] sm:$0xf]
  %v206 = vld [vmem:[%s0 + $0xec] sm:$0xf]
  %v207 = vld [vmem:[%s0 + $0xf0] sm:$0xf]
  %v208 = vld [vmem:[%s0 + $0xf4] sm:$0xf]
  %v209 = vld [vmem:[%s0 + $0xf8] sm:$0xf]
  %v210 = vld [vmem:[%s0 + $0xfc] sm:$0xf]
  %v211 = vld [vmem:[%s1] sm:$0xf]
  %v212 = vld [vmem:[%s1 + $0x4] sm:$0xf]
  %v213 = vld [vmem:[%s1 + $0x8] sm:$0xf]
  %v214 = vld [vmem:[%s1 + $0xc] sm:$0xf]
  %v215 = vld [vmem:[%s1 + $0x10] sm:$0xf]
  %v216 = vld [vmem:[%s1 + $0x14] sm:$0xf]
  %v217 = vld [vmem:[%s1 + $0x18] sm:$0xf]
  %v218 = vld [vmem:[%s1 + $0x1c] sm:$0xf]
  %v219 = vld [vmem:[%s1 + $0x20] sm:$0xf]
  %v284 = vunpack.c.l.b16 %v147
  %v285 = vunpack.c.l.b16 %v148
  %v286 = vunpack.c.l.b16 %v149
  %v287 = vunpack.c.l.b16 %v150
  %v288 = vunpack.c.l.b16 %v151
  %v289 = vunpack.c.l.b16 %v152
  %v290 = vunpack.c.l.b16 %v153
  %v291 = vunpack.c.l.b16 %v154
  %v292 = vunpack.c.l.b16 %v155
  %v293 = vunpack.c.l.b16 %v156
  %v294 = vunpack.c.l.b16 %v157
  %v295 = vunpack.c.l.b16 %v158
  %v296 = vunpack.c.l.b16 %v159
  %v297 = vunpack.c.l.b16 %v160
  %v298 = vunpack.c.l.b16 %v161
  %v299 = vunpack.c.l.b16 %v162
  %v300 = vunpack.c.l.b16 %v163
  %v301 = vunpack.c.l.b16 %v164
  %v302 = vunpack.c.l.b16 %v165
  %v303 = vunpack.c.l.b16 %v166
  %v304 = vunpack.c.l.b16 %v167
  %v305 = vunpack.c.l.b16 %v168
  %v306 = vunpack.c.l.b16 %v169
  %v307 = vunpack.c.l.b16 %v170
  %v308 = vunpack.c.l.b16 %v171
  %v309 = vunpack.c.l.b16 %v172
  %v310 = vunpack.c.l.b16 %v173
  %v311 = vunpack.c.l.b16 %v174
  %v312 = vunpack.c.l.b16 %v175
  %v313 = vunpack.c.l.b16 %v176
  %v314 = vunpack.c.l.b16 %v177
  %v315 = vunpack.c.l.b16 %v178
  %v316 = vunpack.c.l.b16 %v179
  %v317 = vunpack.c.l.b16 %v180
  %v318 = vunpack.c.l.b16 %v181
  %v319 = vunpack.c.l.b16 %v182
  %v320 = vunpack.c.l.b16 %v183
  %v321 = vunpack.c.l.b16 %v184
  %v322 = vunpack.c.l.b16 %v185
  %v323 = vunpack.c.l.b16 %v186
  %v324 = vunpack.c.l.b16 %v187
  %v325 = vunpack.c.l.b16 %v188
  %v326 = vunpack.c.l.b16 %v189
  %v327 = vunpack.c.l.b16 %v190
  %v328 = vunpack.c.l.b16 %v191
  %v329 = vunpack.c.l.b16 %v192
  %v330 = vunpack.c.l.b16 %v193
  %v331 = vunpack.c.l.b16 %v194
  %v332 = vunpack.c.l.b16 %v195
  %v333 = vunpack.c.l.b16 %v196
  %v334 = vunpack.c.l.b16 %v197
  %v335 = vunpack.c.l.b16 %v198
  %v336 = vunpack.c.l.b16 %v199
  %v337 = vunpack.c.l.b16 %v200
  %v338 = vunpack.c.l.b16 %v201
  %v339 = vunpack.c.l.b16 %v202
  %v340 = vunpack.c.l.b16 %v203
  %v341 = vunpack.c.l.b16 %v204
  %v342 = vunpack.c.l.b16 %v205
  %v343 = vunpack.c.l.b16 %v206
  %v344 = vunpack.c.l.b16 %v207
  %v345 = vunpack.c.l.b16 %v208
  %v346 = vunpack.c.l.b16 %v209
  %v347 = vunpack.c.l.b16 %v210
  %v348 = vpack.c.b16 %v285, %v284
  %v349 = vpack.c.b16 %v287, %v286
  %v350 = vpack.c.b16 %v289, %v288
  %v351 = vpack.c.b16 %v291, %v290
  %v352 = vpack.c.b16 %v293, %v292
  %v353 = vpack.c.b16 %v295, %v294
  %v354 = vpack.c.b16 %v297, %v296
  %v355 = vpack.c.b16 %v299, %v298
  %v356 = vpack.c.b16 %v301, %v300
  %v357 = vpack.c.b16 %v303, %v302
  %v358 = vpack.c.b16 %v305, %v304
  %v359 = vpack.c.b16 %v307, %v306
  %v360 = vpack.c.b16 %v309, %v308
  %v361 = vpack.c.b16 %v311, %v310
  %v362 = vpack.c.b16 %v313, %v312
  %v363 = vpack.c.b16 %v315, %v314
  %v364 = vpack.c.b16 %v317, %v316
  %v365 = vpack.c.b16 %v319, %v318
  %v366 = vpack.c.b16 %v321, %v320
  %v367 = vpack.c.b16 %v323, %v322
  %v368 = vpack.c.b16 %v325, %v324
  %v369 = vpack.c.b16 %v327, %v326
  %v370 = vpack.c.b16 %v329, %v328
  %v371 = vpack.c.b16 %v331, %v330
  %v372 = vpack.c.b16 %v333, %v332
  %v373 = vpack.c.b16 %v335, %v334
  %v374 = vpack.c.b16 %v337, %v336
  %v375 = vpack.c.b16 %v339, %v338
  %v376 = vpack.c.b16 %v341, %v340
  %v377 = vpack.c.b16 %v343, %v342
  %v378 = vpack.c.b16 %v345, %v344
  %v379 = vpack.c.b16 %v347, %v346
  %v389 = vunpack.c.l.b16 %v211
  %v390 = vunpack.c.l.b16 %v212
  %v391 = vunpack.c.l.b16 %v213
  %v392 = vunpack.c.l.b16 %v214
  %v393 = vunpack.c.l.b16 %v215
  %v394 = vunpack.c.l.b16 %v216
  %v395 = vunpack.c.l.b16 %v217
  %v396 = vunpack.c.l.b16 %v218
  %v397 = vunpack.c.l.b16 %v219
  %v398 = vpack.c.b16 %v390, %v389
  %v399 = vpack.c.b16 %v392, %v391
  %v400 = vpack.c.b16 %v394, %v393
  %v401 = vpack.c.b16 %v396, %v395
  %v402 = vpack.c.b16 %v397, %v397
  %vm407 = vcmask 588800
  %v409 = vsel %vm407, %v348, 0
  %v412 = vsel %vm407, %v349, 0
  %v415 = vsel %vm407, %v350, 0
  %v418 = vsel %vm407, %v351, 0
  %v421 = vsel %vm407, %v352, 0
  %v424 = vsel %vm407, %v353, 0
  %v427 = vsel %vm407, %v354, 0
  %v430 = vsel %vm407, %v355, 0
  %v433 = vsel %vm407, %v356, 0
  %v436 = vsel %vm407, %v357, 0
  %v439 = vsel %vm407, %v358, 0
  %v442 = vsel %vm407, %v359, 0
  %v445 = vsel %vm407, %v360, 0
  %v448 = vsel %vm407, %v361, 0
  %v451 = vsel %vm407, %v362, 0
  %v454 = vsel %vm407, %v363, 0
  %v457 = vsel %vm407, %v364, 0
  %v460 = vsel %vm407, %v365, 0
  %v463 = vsel %vm407, %v366, 0
  %v466 = vsel %vm407, %v367, 0
  %v469 = vsel %vm407, %v368, 0
  %v472 = vsel %vm407, %v369, 0
  %v475 = vsel %vm407, %v370, 0
  %v478 = vsel %vm407, %v371, 0
  %v481 = vsel %vm407, %v372, 0
  %v484 = vsel %vm407, %v373, 0
  %v487 = vsel %vm407, %v374, 0
  %v490 = vsel %vm407, %v375, 0
  %v493 = vsel %vm407, %v376, 0
  %v496 = vsel %vm407, %v377, 0
  %v499 = vsel %vm407, %v378, 0
  %v502 = vsel %vm407, %v379, 0
  %vm504 = vcmask 1043456
  %v506 = vsel %vm504, %v402, 0
  %508 = vmatprep.subr.bf16.mxu0 0
  %509 = vmatpush1.bf16.msra.mxu0 0
  %510 = vmatprep.subr.bf16.mxu0 0
  %511 = vmatpush1.bf16.msra.mxu0 0
  %512 = vmatprep.subr.bf16.mxu0 0
  %513 = vmatpush1.bf16.msra.mxu0 0
  %514 = vmatprep.subr.bf16.mxu0 0
  %515 = vmatpush1.bf16.msra.mxu0 %v506
  %516 = vmatprep.subr.bf16.mxu0 0
  %517 = vmatpush1.bf16.msra.mxu0 %v401
  %518 = vmatprep.subr.bf16.mxu0 0
  %519 = vmatpush1.bf16.msra.mxu0 %v400
  %520 = vmatprep.subr.bf16.mxu0 0
  %521 = vmatpush1.bf16.msra.mxu0 %v399
  %522 = vmatprep.subr.bf16.mxu0 0
  %523 = vmatpush1.bf16.msra.mxu0 %v398
  %524 = vmatprep.subr.bf16.mxu0 0
  %525 = vmatpush2.bf16.msra.mxu0 0
  %526 = vmatprep.subr.bf16.mxu0 0
  %527 = vmatpush2.bf16.msra.mxu0 0
  %528 = vmatprep.subr.bf16.mxu0 0
  %529 = vmatpush2.bf16.msra.mxu0 0
  %530 = vmatprep.subr.bf16.mxu0 0
  %531 = vmatpush2.bf16.msra.mxu0 0
  %532 = vmatprep.subr.bf16.mxu0 0
  %533 = vmatpush2.bf16.msra.mxu0 0
  %534 = vmatprep.subr.bf16.mxu0 0
  %535 = vmatpush2.bf16.msra.mxu0 0
  %536 = vmatprep.subr.bf16.mxu0 0
  %537 = vmatpush2.bf16.msra.mxu0 0
  %538 = vmatprep.subr.bf16.mxu0 0
  %539 = vmatpush2.bf16.msra.mxu0 0
  %540 = vmatprep.mubr.bf16.mxu0 0
  %541 = vmatmul.mubr.bf16.gmra.mxu0 %v409
  %v542 = vpop.f32.mrf.mxu0
  %v543 = vadd.f32 0.0, %v542
  %v544 = vpop.f32.mrf.mxu0
  %v545 = vpop.f32.mrf.mxu0
  %v546 = vadd.f32 0.0, %v545
  %v547 = vpop.f32.mrf.mxu0
  %548 = vmatprep.mubr.bf16.mxu0 0
  %549 = vmatmul.mubr.bf16.gmra.mxu0 %v412
  %v550 = vpop.f32.mrf.mxu0
  %v551 = vadd.f32 0.0, %v550
  %v552 = vpop.f32.mrf.mxu0
  %v553 = vpop.f32.mrf.mxu0
  %v554 = vadd.f32 0.0, %v553
  %v555 = vpop.f32.mrf.mxu0
  %556 = vmatprep.mubr.bf16.mxu0 0
  %557 = vmatmul.mubr.bf16.gmra.mxu0 %v415
  %v558 = vpop.f32.mrf.mxu0
  %v559 = vadd.f32 0.0, %v558
  %v560 = vpop.f32.mrf.mxu0
  %v561 = vpop.f32.mrf.mxu0
  %v562 = vadd.f32 0.0, %v561
  %v563 = vpop.f32.mrf.mxu0
  %564 = vmatprep.mubr.bf16.mxu0 0
  %565 = vmatmul.mubr.bf16.gmra.mxu0 %v418
  %v566 = vpop.f32.mrf.mxu0
  %v567 = vadd.f32 0.0, %v566
  %v568 = vpop.f32.mrf.mxu0
  %v569 = vpop.f32.mrf.mxu0
  %v570 = vadd.f32 0.0, %v569
  %v571 = vpop.f32.mrf.mxu0
  %572 = vmatprep.mubr.bf16.mxu0 0
  %573 = vmatmul.mubr.bf16.gmra.mxu0 %v421
  %v574 = vpop.f32.mrf.mxu0
  %v575 = vadd.f32 0.0, %v574
  %v576 = vpop.f32.mrf.mxu0
  %v577 = vpop.f32.mrf.mxu0
  %v578 = vadd.f32 0.0, %v577
  %v579 = vpop.f32.mrf.mxu0
  %580 = vmatprep.mubr.bf16.mxu0 0
  %581 = vmatmul.mubr.bf16.gmra.mxu0 %v424
  %v582 = vpop.f32.mrf.mxu0
  %v583 = vadd.f32 0.0, %v582
  %v584 = vpop.f32.mrf.mxu0
  %v585 = vpop.f32.mrf.mxu0
  %v586 = vadd.f32 0.0, %v585
  %v587 = vpop.f32.mrf.mxu0
  %588 = vmatprep.mubr.bf16.mxu0 0
  %589 = vmatmul.mubr.bf16.gmra.mxu0 %v427
  %v590 = vpop.f32.mrf.mxu0
  %v591 = vadd.f32 0.0, %v590
  %v592 = vpop.f32.mrf.mxu0
  %v593 = vpop.f32.mrf.mxu0
  %v594 = vadd.f32 0.0, %v593
  %v595 = vpop.f32.mrf.mxu0
  %596 = vmatprep.mubr.bf16.mxu0 0
  %597 = vmatmul.mubr.bf16.gmra.mxu0 %v430
  %v598 = vpop.f32.mrf.mxu0
  %v599 = vadd.f32 0.0, %v598
  %v600 = vpop.f32.mrf.mxu0
  %v601 = vpop.f32.mrf.mxu0
  %v602 = vadd.f32 0.0, %v601
  %v603 = vpop.f32.mrf.mxu0
  %604 = vmatprep.mubr.bf16.mxu0 0
  %605 = vmatmul.mubr.bf16.gmra.mxu0 %v433
  %v606 = vpop.f32.mrf.mxu0
  %v607 = vadd.f32 0.0, %v606
  %v608 = vpop.f32.mrf.mxu0
  %v609 = vpop.f32.mrf.mxu0
  %v610 = vadd.f32 0.0, %v609
  %v611 = vpop.f32.mrf.mxu0
  %612 = vmatprep.mubr.bf16.mxu0 0
  %613 = vmatmul.mubr.bf16.gmra.mxu0 %v436
  %v614 = vpop.f32.mrf.mxu0
  %v615 = vadd.f32 0.0, %v614
  %v616 = vpop.f32.mrf.mxu0
  %v617 = vpop.f32.mrf.mxu0
  %v618 = vadd.f32 0.0, %v617
  %v619 = vpop.f32.mrf.mxu0
  %620 = vmatprep.mubr.bf16.mxu0 0
  %621 = vmatmul.mubr.bf16.gmra.mxu0 %v439
  %v622 = vpop.f32.mrf.mxu0
  %v623 = vadd.f32 0.0, %v622
  %v624 = vpop.f32.mrf.mxu0
  %v625 = vpop.f32.mrf.mxu0
  %v626 = vadd.f32 0.0, %v625
  %v627 = vpop.f32.mrf.mxu0
  %628 = vmatprep.mubr.bf16.mxu0 0
  %629 = vmatmul.mubr.bf16.gmra.mxu0 %v442
  %v630 = vpop.f32.mrf.mxu0
  %v631 = vadd.f32 0.0, %v630
  %v632 = vpop.f32.mrf.mxu0
  %v633 = vpop.f32.mrf.mxu0
  %v634 = vadd.f32 0.0, %v633
  %v635 = vpop.f32.mrf.mxu0
  %636 = vmatprep.mubr.bf16.mxu0 0
  %637 = vmatmul.mubr.bf16.gmra.mxu0 %v445
  %v638 = vpop.f32.mrf.mxu0
  %v639 = vadd.f32 0.0, %v638
  %v640 = vpop.f32.mrf.mxu0
  %v641 = vpop.f32.mrf.mxu0
  %v642 = vadd.f32 0.0, %v641
  %v643 = vpop.f32.mrf.mxu0
  %644 = vmatprep.mubr.bf16.mxu0 0
  %645 = vmatmul.mubr.bf16.gmra.mxu0 %v448
  %v646 = vpop.f32.mrf.mxu0
  %v647 = vadd.f32 0.0, %v646
  %v648 = vpop.f32.mrf.mxu0
  %v649 = vpop.f32.mrf.mxu0
  %v650 = vadd.f32 0.0, %v649
  %v651 = vpop.f32.mrf.mxu0
  %652 = vmatprep.mubr.bf16.mxu0 0
  %653 = vmatmul.mubr.bf16.gmra.mxu0 %v451
  %v654 = vpop.f32.mrf.mxu0
  %v655 = vadd.f32 0.0, %v654
  %v656 = vpop.f32.mrf.mxu0
  %v657 = vpop.f32.mrf.mxu0
  %v658 = vadd.f32 0.0, %v657
  %v659 = vpop.f32.mrf.mxu0
  %660 = vmatprep.mubr.bf16.mxu0 0
  %661 = vmatmul.mubr.bf16.gmra.mxu0 %v454
  %v662 = vpop.f32.mrf.mxu0
  %v663 = vadd.f32 0.0, %v662
  %v664 = vpop.f32.mrf.mxu0
  %v665 = vpop.f32.mrf.mxu0
  %v666 = vadd.f32 0.0, %v665
  %v667 = vpop.f32.mrf.mxu0
  %668 = vmatprep.mubr.bf16.mxu0 0
  %669 = vmatmul.mubr.bf16.gmra.mxu0 %v457
  %v670 = vpop.f32.mrf.mxu0
  %v671 = vadd.f32 0.0, %v670
  %v672 = vpop.f32.mrf.mxu0
  %v673 = vpop.f32.mrf.mxu0
  %v674 = vadd.f32 0.0, %v673
  %v675 = vpop.f32.mrf.mxu0
  %676 = vmatprep.mubr.bf16.mxu0 0
  %677 = vmatmul.mubr.bf16.gmra.mxu0 %v460
  %v678 = vpop.f32.mrf.mxu0
  %v679 = vadd.f32 0.0, %v678
  %v680 = vpop.f32.mrf.mxu0
  %v681 = vpop.f32.mrf.mxu0
  %v682 = vadd.f32 0.0, %v681
  %v683 = vpop.f32.mrf.mxu0
  %684 = vmatprep.mubr.bf16.mxu0 0
  %685 = vmatmul.mubr.bf16.gmra.mxu0 %v463
  %v686 = vpop.f32.mrf.mxu0
  %v687 = vadd.f32 0.0, %v686
  %v688 = vpop.f32.mrf.mxu0
  %v689 = vpop.f32.mrf.mxu0
  %v690 = vadd.f32 0.0, %v689
  %v691 = vpop.f32.mrf.mxu0
  %692 = vmatprep.mubr.bf16.mxu0 0
  %693 = vmatmul.mubr.bf16.gmra.mxu0 %v466
  %v694 = vpop.f32.mrf.mxu0
  %v695 = vadd.f32 0.0, %v694
  %v696 = vpop.f32.mrf.mxu0
  %v697 = vpop.f32.mrf.mxu0
  %v698 = vadd.f32 0.0, %v697
  %v699 = vpop.f32.mrf.mxu0
  %700 = vmatprep.mubr.bf16.mxu0 0
  %701 = vmatmul.mubr.bf16.gmra.mxu0 %v469
  %v702 = vpop.f32.mrf.mxu0
  %v703 = vadd.f32 0.0, %v702
  %v704 = vpop.f32.mrf.mxu0
  %v705 = vpop.f32.mrf.mxu0
  %v706 = vadd.f32 0.0, %v705
  %v707 = vpop.f32.mrf.mxu0
  %708 = vmatprep.mubr.bf16.mxu0 0
  %709 = vmatmul.mubr.bf16.gmra.mxu0 %v472
  %v710 = vpop.f32.mrf.mxu0
  %v711 = vadd.f32 0.0, %v710
  %v712 = vpop.f32.mrf.mxu0
  %v713 = vpop.f32.mrf.mxu0
  %v714 = vadd.f32 0.0, %v713
  %v715 = vpop.f32.mrf.mxu0
  %716 = vmatprep.mubr.bf16.mxu0 0
  %717 = vmatmul.mubr.bf16.gmra.mxu0 %v475
  %v718 = vpop.f32.mrf.mxu0
  %v719 = vadd.f32 0.0, %v718
  %v720 = vpop.f32.mrf.mxu0
  %v721 = vpop.f32.mrf.mxu0
  %v722 = vadd.f32 0.0, %v721
  %v723 = vpop.f32.mrf.mxu0
  %724 = vmatprep.mubr.bf16.mxu0 0
  %725 = vmatmul.mubr.bf16.gmra.mxu0 %v478
  %v726 = vpop.f32.mrf.mxu0
  %v727 = vadd.f32 0.0, %v726
  %v728 = vpop.f32.mrf.mxu0
  %v729 = vpop.f32.mrf.mxu0
  %v730 = vadd.f32 0.0, %v729
  %v731 = vpop.f32.mrf.mxu0
  %732 = vmatprep.mubr.bf16.mxu0 0
  %733 = vmatmul.mubr.bf16.gmra.mxu0 %v481
  %v734 = vpop.f32.mrf.mxu0
  %v735 = vadd.f32 0.0, %v734
  %v736 = vpop.f32.mrf.mxu0
  %v737 = vpop.f32.mrf.mxu0
  %v738 = vadd.f32 0.0, %v737
  %v739 = vpop.f32.mrf.mxu0
  %740 = vmatprep.mubr.bf16.mxu0 0
  %741 = vmatmul.mubr.bf16.gmra.mxu0 %v484
  %v742 = vpop.f32.mrf.mxu0
  %v743 = vadd.f32 0.0, %v742
  %v744 = vpop.f32.mrf.mxu0
  %v745 = vpop.f32.mrf.mxu0
  %v746 = vadd.f32 0.0, %v745
  %v747 = vpop.f32.mrf.mxu0
  %748 = vmatprep.mubr.bf16.mxu0 0
  %749 = vmatmul.mubr.bf16.gmra.mxu0 %v487
  %v750 = vpop.f32.mrf.mxu0
  %v751 = vadd.f32 0.0, %v750
  %v752 = vpop.f32.mrf.mxu0
  %v753 = vpop.f32.mrf.mxu0
  %v754 = vadd.f32 0.0, %v753
  %v755 = vpop.f32.mrf.mxu0
  %756 = vmatprep.mubr.bf16.mxu0 0
  %757 = vmatmul.mubr.bf16.gmra.mxu0 %v490
  %v758 = vpop.f32.mrf.mxu0
  %v759 = vadd.f32 0.0, %v758
  %v760 = vpop.f32.mrf.mxu0
  %v761 = vpop.f32.mrf.mxu0
  %v762 = vadd.f32 0.0, %v761
  %v763 = vpop.f32.mrf.mxu0
  %764 = vmatprep.mubr.bf16.mxu0 0
  %765 = vmatmul.mubr.bf16.gmra.mxu0 %v493
  %v766 = vpop.f32.mrf.mxu0
  %v767 = vadd.f32 0.0, %v766
  %v768 = vpop.f32.mrf.mxu0
  %v769 = vpop.f32.mrf.mxu0
  %v770 = vadd.f32 0.0, %v769
  %v771 = vpop.f32.mrf.mxu0
  %772 = vmatprep.mubr.bf16.mxu0 0
  %773 = vmatmul.mubr.bf16.gmra.mxu0 %v496
  %v774 = vpop.f32.mrf.mxu0
  %v775 = vadd.f32 0.0, %v774
  %v776 = vpop.f32.mrf.mxu0
  %v777 = vpop.f32.mrf.mxu0
  %v778 = vadd.f32 0.0, %v777
  %v779 = vpop.f32.mrf.mxu0
  %780 = vmatprep.mubr.bf16.mxu0 0
  %781 = vmatmul.mubr.bf16.gmra.mxu0 %v499
  %v782 = vpop.f32.mrf.mxu0
  %v783 = vadd.f32 0.0, %v782
  %v784 = vpop.f32.mrf.mxu0
  %v785 = vpop.f32.mrf.mxu0
  %v786 = vadd.f32 0.0, %v785
  %v787 = vpop.f32.mrf.mxu0
  %788 = vmatprep.mubr.bf16.mxu0 0
  %789 = vmatmul.mubr.bf16.gmra.mxu0 %v502
  %v790 = vpop.f32.mrf.mxu0
  %v791 = vadd.f32 0.0, %v790
  %v792 = vpop.f32.mrf.mxu0
  %v793 = vpop.f32.mrf.mxu0
  %v794 = vadd.f32 0.0, %v793
  %v795 = vpop.f32.mrf.mxu0
  %796 = vdwg.mxu0
  %v797 = vadd.f32 %v83, %v543
  %v798 = vadd.f32 %v84, %v546
  %v799 = vadd.f32 %v85, %v551
  %v800 = vadd.f32 %v86, %v554
  %v801 = vadd.f32 %v87, %v559
  %v802 = vadd.f32 %v88, %v562
  %v803 = vadd.f32 %v89, %v567
  %v804 = vadd.f32 %v90, %v570
  %v805 = vadd.f32 %v91, %v575
  %v806 = vadd.f32 %v92, %v578
  %v807 = vadd.f32 %v93, %v583
  %v808 = vadd.f32 %v94, %v586
  %v809 = vadd.f32 %v95, %v591
  %v810 = vadd.f32 %v96, %v594
  %v811 = vadd.f32 %v97, %v599
  %v812 = vadd.f32 %v98, %v602
  %v813 = vadd.f32 %v99, %v607
  %v814 = vadd.f32 %v100, %v610
  %v815 = vadd.f32 %v101, %v615
  %v816 = vadd.f32 %v102, %v618
  %v817 = vadd.f32 %v103, %v623
  %v818 = vadd.f32 %v104, %v626
  %v819 = vadd.f32 %v105, %v631
  %v820 = vadd.f32 %v106, %v634
  %v821 = vadd.f32 %v107, %v639
  %v822 = vadd.f32 %v108, %v642
  %v823 = vadd.f32 %v109, %v647
  %v824 = vadd.f32 %v110, %v650
  %v825 = vadd.f32 %v111, %v655
  %v826 = vadd.f32 %v112, %v658
  %v827 = vadd.f32 %v113, %v663
  %v828 = vadd.f32 %v114, %v666
  %v829 = vadd.f32 %v115, %v671
  %v830 = vadd.f32 %v116, %v674
  %v831 = vadd.f32 %v117, %v679
  %v832 = vadd.f32 %v118, %v682
  %v833 = vadd.f32 %v119, %v687
  %v834 = vadd.f32 %v120, %v690
  %v835 = vadd.f32 %v121, %v695
  %v836 = vadd.f32 %v122, %v698
  %v837 = vadd.f32 %v123, %v703
  %v838 = vadd.f32 %v124, %v706
  %v839 = vadd.f32 %v125, %v711
  %v840 = vadd.f32 %v126, %v714
  %v841 = vadd.f32 %v127, %v719
  %v842 = vadd.f32 %v128, %v722
  %v843 = vadd.f32 %v129, %v727
  %v844 = vadd.f32 %v130, %v730
  %v845 = vadd.f32 %v131, %v735
  %v846 = vadd.f32 %v132, %v738
  %v847 = vadd.f32 %v133, %v743
  %v848 = vadd.f32 %v134, %v746
  %v849 = vadd.f32 %v135, %v751
  %v850 = vadd.f32 %v136, %v754
  %v851 = vadd.f32 %v137, %v759
  %v852 = vadd.f32 %v138, %v762
  %v853 = vadd.f32 %v139, %v767
  %v854 = vadd.f32 %v140, %v770
  %v855 = vadd.f32 %v141, %v775
  %v856 = vadd.f32 %v142, %v778
  %v857 = vadd.f32 %v143, %v783
  %v858 = vadd.f32 %v144, %v786
  %v859 = vadd.f32 %v145, %v791
  %v860 = vadd.f32 %v146, %v794
  %861 = vst [vmem:[#allocation2] sm:$0xff] %v797
  %862 = vst [vmem:[#allocation2 + $0x8] sm:$0xff] %v798
  %863 = vst [vmem:[#allocation2 + $0x10] sm:$0xff] %v799
  %864 = vst [vmem:[#allocation2 + $0x18] sm:$0xff] %v800
  %865 = vst [vmem:[#allocation2 + $0x20] sm:$0xff] %v801
  %866 = vst [vmem:[#allocation2 + $0x28] sm:$0xff] %v802
  %867 = vst [vmem:[#allocation2 + $0x30] sm:$0xff] %v803
  %868 = vst [vmem:[#allocation2 + $0x38] sm:$0xff] %v804
  %869 = vst [vmem:[#allocation2 + $0x40] sm:$0xff] %v805
  %870 = vst [vmem:[#allocation2 + $0x48] sm:$0xff] %v806
  %871 = vst [vmem:[#allocation2 + $0x50] sm:$0xff] %v807
  %872 = vst [vmem:[#allocation2 + $0x58] sm:$0xff] %v808
  %873 = vst [vmem:[#allocation2 + $0x60] sm:$0xff] %v809
  %874 = vst [vmem:[#allocation2 + $0x68] sm:$0xff] %v810
  %875 = vst [vmem:[#allocation2 + $0x70] sm:$0xff] %v811
  %876 = vst [vmem:[#allocation2 + $0x78] sm:$0xff] %v812
  %877 = vst [vmem:[#allocation2 + $0x80] sm:$0xff] %v813
  %878 = vst [vmem:[#allocation2 + $0x88] sm:$0xff] %v814
  %879 = vst [vmem:[#allocation2 + $0x90] sm:$0xff] %v815
  %880 = vst [vmem:[#allocation2 + $0x98] sm:$0xff] %v816
  %881 = vst [vmem:[#allocation2 + $0xa0] sm:$0xff] %v817
  %882 = vst [vmem:[#allocation2 + $0xa8] sm:$0xff] %v818
  %883 = vst [vmem:[#allocation2 + $0xb0] sm:$0xff] %v819
  %884 = vst [vmem:[#allocation2 + $0xb8] sm:$0xff] %v820
  %885 = vst [vmem:[#allocation2 + $0xc0] sm:$0xff] %v821
  %886 = vst [vmem:[#allocation2 + $0xc8] sm:$0xff] %v822
  %887 = vst [vmem:[#allocation2 + $0xd0] sm:$0xff] %v823
  %888 = vst [vmem:[#allocation2 + $0xd8] sm:$0xff] %v824
  %889 = vst [vmem:[#allocation2 + $0xe0] sm:$0xff] %v825
  %890 = vst [vmem:[#allocation2 + $0xe8] sm:$0xff] %v826
  %891 = vst [vmem:[#allocation2 + $0xf0] sm:$0xff] %v827
  %892 = vst [vmem:[#allocation2 + $0xf8] sm:$0xff] %v828
  %893 = vst [vmem:[#allocation2 + $0x100] sm:$0xff] %v829
  %894 = vst [vmem:[#allocation2 + $0x108] sm:$0xff] %v830
  %895 = vst [vmem:[#allocation2 + $0x110] sm:$0xff] %v831
  %896 = vst [vmem:[#allocation2 + $0x118] sm:$0xff] %v832
  %897 = vst [vmem:[#allocation2 + $0x120] sm:$0xff] %v833
  %898 = vst [vmem:[#allocation2 + $0x128] sm:$0xff] %v834
  %899 = vst [vmem:[#allocation2 + $0x130] sm:$0xff] %v835
  %900 = vst [vmem:[#allocation2 + $0x138] sm:$0xff] %v836
  %901 = vst [vmem:[#allocation2 + $0x140] sm:$0xff] %v837
  %902 = vst [vmem:[#allocation2 + $0x148] sm:$0xff] %v838
  %903 = vst [vmem:[#allocation2 + $0x150] sm:$0xff] %v839
  %904 = vst [vmem:[#allocation2 + $0x158] sm:$0xff] %v840
  %905 = vst [vmem:[#allocation2 + $0x160] sm:$0xff] %v841
  %906 = vst [vmem:[#allocation2 + $0x168] sm:$0xff] %v842
  %907 = vst [vmem:[#allocation2 + $0x170] sm:$0xff] %v843
  %908 = vst [vmem:[#allocation2 + $0x178] sm:$0xff] %v844
  %909 = vst [vmem:[#allocation2 + $0x180] sm:$0xff] %v845
  %910 = vst [vmem:[#allocation2 + $0x188] sm:$0xff] %v846
  %911 = vst [vmem:[#allocation2 + $0x190] sm:$0xff] %v847
  %912 = vst [vmem:[#allocation2 + $0x198] sm:$0xff] %v848
  %913 = vst [vmem:[#allocation2 + $0x1a0] sm:$0xff] %v849
  %914 = vst [vmem:[#allocation2 + $0x1a8] sm:$0xff] %v850
  %915 = vst [vmem:[#allocation2 + $0x1b0] sm:$0xff] %v851
  %916 = vst [vmem:[#allocation2 + $0x1b8] sm:$0xff] %v852
  %917 = vst [vmem:[#allocation2 + $0x1c0] sm:$0xff] %v853
  %918 = vst [vmem:[#allocation2 + $0x1c8] sm:$0xff] %v854
  %919 = vst [vmem:[#allocation2 + $0x1d0] sm:$0xff] %v855
  %920 = vst [vmem:[#allocation2 + $0x1d8] sm:$0xff] %v856
  %921 = vst [vmem:[#allocation2 + $0x1e0] sm:$0xff] %v857
  %922 = vst [vmem:[#allocation2 + $0x1e8] sm:$0xff] %v858
  %923 = vst [vmem:[#allocation2 + $0x1f0] sm:$0xff] %v859
  %924 = vst [vmem:[#allocation2 + $0x1f8] sm:$0xff] %v860
  // Predicated region
  $region18: #{dimpnet_forward.7} parent=0 // pred_check
    %p925 = pneg %p15
  $region19: #{dimpnet_forward.7} parent=0 // pred_check_branch
    %927 = sbr.rel (%p925) target = $region21
  $region20: #{dimpnet_forward.7} parent=0 // pred_region
    %v928 = vld [vmem:[#allocation2] sm:$0xff]
    %v929 = vld [vmem:[#allocation2 + $0x8] sm:$0xff]
    %v930 = vld [vmem:[#allocation2 + $0x10] sm:$0xff]
    %v931 = vld [vmem:[#allocation2 + $0x18] sm:$0xff]
    %v932 = vld [vmem:[#allocation2 + $0x20] sm:$0xff]
    %v933 = vld [vmem:[#allocation2 + $0x28] sm:$0xff]
    %v934 = vld [vmem:[#allocation2 + $0x30] sm:$0xff]
    %v935 = vld [vmem:[#allocation2 + $0x38] sm:$0xff]
    %v936 = vld [vmem:[#allocation2 + $0x40] sm:$0xff]
    %v937 = vld [vmem:[#allocation2 + $0x48] sm:$0xff]
    %v938 = vld [vmem:[#allocation2 + $0x50] sm:$0xff]
    %v939 = vld [vmem:[#allocation2 + $0x58] sm:$0xff]
    %v940 = vld [vmem:[#allocation2 + $0x60] sm:$0xff]
    %v941 = vld [vmem:[#allocation2 + $0x68] sm:$0xff]
    %v942 = vld [vmem:[#allocation2 + $0x70] sm:$0xff]
    %v943 = vld [vmem:[#allocation2 + $0x78] sm:$0xff]
    %v944 = vld [vmem:[#allocation2 + $0x80] sm:$0xff]
    %v945 = vld [vmem:[#allocation2 + $0x88] sm:$0xff]
    %v946 = vld [vmem:[#allocation2 + $0x90] sm:$0xff]
    %v947 = vld [vmem:[#allocation2 + $0x98] sm:$0xff]
    %v948 = vld [vmem:[#allocation2 + $0xa0] sm:$0xff]
    %v949 = vld [vmem:[#allocation2 + $0xa8] sm:$0xff]
    %v950 = vld [vmem:[#allocation2 + $0xb0] sm:$0xff]
    %v951 = vld [vmem:[#allocation2 + $0xb8] sm:$0xff]
    %v952 = vld [vmem:[#allocation2 + $0xc0] sm:$0xff]
    %v953 = vld [vmem:[#allocation2 + $0xc8] sm:$0xff]
    %v954 = vld [vmem:[#allocation2 + $0xd0] sm:$0xff]
    %v955 = vld [vmem:[#allocation2 + $0xd8] sm:$0xff]
    %v956 = vld [vmem:[#allocation2 + $0xe0] sm:$0xff]
    %v957 = vld [vmem:[#allocation2 + $0xe8] sm:$0xff]
    %v958 = vld [vmem:[#allocation2 + $0xf0] sm:$0xff]
    %v959 = vld [vmem:[#allocation2 + $0xf8] sm:$0xff]
    %v960 = vld [vmem:[#allocation2 + $0x100] sm:$0xff]
    %v961 = vld [vmem:[#allocation2 + $0x108] sm:$0xff]
    %v962 = vld [vmem:[#allocation2 + $0x110] sm:$0xff]
    %v963 = vld [vmem:[#allocation2 + $0x118] sm:$0xff]
    %v964 = vld [vmem:[#allocation2 + $0x120] sm:$0xff]
    %v965 = vld [vmem:[#allocation2 + $0x128] sm:$0xff]
    %v966 = vld [vmem:[#allocation2 + $0x130] sm:$0xff]
    %v967 = vld [vmem:[#allocation2 + $0x138] sm:$0xff]
    %v968 = vld [vmem:[#allocation2 + $0x140] sm:$0xff]
    %v969 = vld [vmem:[#allocation2 + $0x148] sm:$0xff]
    %v970 = vld [vmem:[#allocation2 + $0x150] sm:$0xff]
    %v971 = vld [vmem:[#allocation2 + $0x158] sm:$0xff]
    %v972 = vld [vmem:[#allocation2 + $0x160] sm:$0xff]
    %v973 = vld [vmem:[#allocation2 + $0x168] sm:$0xff]
    %v974 = vld [vmem:[#allocation2 + $0x170] sm:$0xff]
    %v975 = vld [vmem:[#allocation2 + $0x178] sm:$0xff]
    %v976 = vld [vmem:[#allocation2 + $0x180] sm:$0xff]
    %v977 = vld [vmem:[#allocation2 + $0x188] sm:$0xff]
    %v978 = vld [vmem:[#allocation2 + $0x190] sm:$0xff]
    %v979 = vld [vmem:[#allocation2 + $0x198] sm:$0xff]
    %v980 = vld [vmem:[#allocation2 + $0x1a0] sm:$0xff]
    %v981 = vld [vmem:[#allocation2 + $0x1a8] sm:$0xff]
    %v982 = vld [vmem:[#allocation2 + $0x1b0] sm:$0xff]
    %v983 = vld [vmem:[#allocation2 + $0x1b8] sm:$0xff]
    %v984 = vld [vmem:[#allocation2 + $0x1c0] sm:$0xff]
    %v985 = vld [vmem:[#allocation2 + $0x1c8] sm:$0xff]
    %v986 = vld [vmem:[#allocation2 + $0x1d0] sm:$0xff]
    %v987 = vld [vmem:[#allocation2 + $0x1d8] sm:$0xff]
    %v988 = vld [vmem:[#allocation2 + $0x1e0] sm:$0xff]
    %v989 = vld [vmem:[#allocation2 + $0x1e8] sm:$0xff]
    %v990 = vld [vmem:[#allocation2 + $0x1f0] sm:$0xff]
    %v991 = vld [vmem:[#allocation2 + $0x1f8] sm:$0xff]
    %v992 = vld [vmem:[%s2] sm:$0x1]
    %v994 = vlaneseq
    %v995 = vshrl.u32 %v994, 7
    %v996 = vsub.s32 0, %v995
    %v997 = vrot.slane %v992, %v996
    %v999 = vadd.f32 %v928, %v997
    %v1000 = vadd.f32 %v929, %v997
    %v1001 = vadd.f32 %v930, %v997
    %v1002 = vadd.f32 %v931, %v997
    %v1003 = vadd.f32 %v932, %v997
    %v1004 = vadd.f32 %v933, %v997
    %v1005 = vadd.f32 %v934, %v997
    %v1006 = vadd.f32 %v935, %v997
    %v1007 = vadd.f32 %v936, %v997
    %v1008 = vadd.f32 %v937, %v997
    %v1009 = vadd.f32 %v938, %v997
    %v1010 = vadd.f32 %v939, %v997
    %v1011 = vadd.f32 %v940, %v997
    %v1012 = vadd.f32 %v941, %v997
    %v1013 = vadd.f32 %v942, %v997
    %v1014 = vadd.f32 %v943, %v997
    %v1015 = vadd.f32 %v944, %v997
    %v1016 = vadd.f32 %v945, %v997
    %v1017 = vadd.f32 %v946, %v997
    %v1018 = vadd.f32 %v947, %v997
    %v1019 = vadd.f32 %v948, %v997
    %v1020 = vadd.f32 %v949, %v997
    %v1021 = vadd.f32 %v950, %v997
    %v1022 = vadd.f32 %v951, %v997
    %v1023 = vadd.f32 %v952, %v997
    %v1024 = vadd.f32 %v953, %v997
    %v1025 = vadd.f32 %v954, %v997
    %v1026 = vadd.f32 %v955, %v997
    %v1027 = vadd.f32 %v956, %v997
    %v1028 = vadd.f32 %v957, %v997
    %v1029 = vadd.f32 %v958, %v997
    %v1030 = vadd.f32 %v959, %v997
    %v1031 = vadd.f32 %v960, %v997
    %v1032 = vadd.f32 %v961, %v997
    %v1033 = vadd.f32 %v962, %v997
    %v1034 = vadd.f32 %v963, %v997
    %v1035 = vadd.f32 %v964, %v997
    %v1036 = vadd.f32 %v965, %v997
    %v1037 = vadd.f32 %v966, %v997
    %v1038 = vadd.f32 %v967, %v997
    %v1039 = vadd.f32 %v968, %v997
    %v1040 = vadd.f32 %v969, %v997
    %v1041 = vadd.f32 %v970, %v997
    %v1042 = vadd.f32 %v971, %v997
    %v1043 = vadd.f32 %v972, %v997
    %v1044 = vadd.f32 %v973, %v997
    %v1045 = vadd.f32 %v974, %v997
    %v1046 = vadd.f32 %v975, %v997
    %v1047 = vadd.f32 %v976, %v997
    %v1048 = vadd.f32 %v977, %v997
    %v1049 = vadd.f32 %v978, %v997
    %v1050 = vadd.f32 %v979, %v997
    %v1051 = vadd.f32 %v980, %v997
    %v1052 = vadd.f32 %v981, %v997
    %v1053 = vadd.f32 %v982, %v997
    %v1054 = vadd.f32 %v983, %v997
    %v1055 = vadd.f32 %v984, %v997
    %v1056 = vadd.f32 %v985, %v997
    %v1057 = vadd.f32 %v986, %v997
    %v1058 = vadd.f32 %v987, %v997
    %v1059 = vadd.f32 %v988, %v997
    %v1060 = vadd.f32 %v989, %v997
    %v1061 = vadd.f32 %v990, %v997
    %v1062 = vadd.f32 %v991, %v997
    %v1063 = vmax.f32 %v999, 0.0
    %v1064 = vmax.f32 %v1000, 0.0
    %v1065 = vmax.f32 %v1001, 0.0
    %v1066 = vmax.f32 %v1002, 0.0
    %v1067 = vmax.f32 %v1003, 0.0
    %v1068 = vmax.f32 %v1004, 0.0
    %v1069 = vmax.f32 %v1005, 0.0
    %v1070 = vmax.f32 %v1006, 0.0
    %v1071 = vmax.f32 %v1007, 0.0
    %v1072 = vmax.f32 %v1008, 0.0
    %v1073 = vmax.f32 %v1009, 0.0
    %v1074 = vmax.f32 %v1010, 0.0
    %v1075 = vmax.f32 %v1011, 0.0
    %v1076 = vmax.f32 %v1012, 0.0
    %v1077 = vmax.f32 %v1013, 0.0
    %v1078 = vmax.f32 %v1014, 0.0
    %v1079 = vmax.f32 %v1015, 0.0
    %v1080 = vmax.f32 %v1016, 0.0
    %v1081 = vmax.f32 %v1017, 0.0
    %v1082 = vmax.f32 %v1018, 0.0
    %v1083 = vmax.f32 %v1019, 0.0
    %v1084 = vmax.f32 %v1020, 0.0
    %v1085 = vmax.f32 %v1021, 0.0
    %v1086 = vmax.f32 %v1022, 0.0
    %v1087 = vmax.f32 %v1023, 0.0
    %v1088 = vmax.f32 %v1024, 0.0
    %v1089 = vmax.f32 %v1025, 0.0
    %v1090 = vmax.f32 %v1026, 0.0
    %v1091 = vmax.f32 %v1027, 0.0
    %v1092 = vmax.f32 %v1028, 0.0
    %v1093 = vmax.f32 %v1029, 0.0
    %v1094 = vmax.f32 %v1030, 0.0
    %v1095 = vmax.f32 %v1031, 0.0
    %v1096 = vmax.f32 %v1032, 0.0
    %v1097 = vmax.f32 %v1033, 0.0
    %v1098 = vmax.f32 %v1034, 0.0
    %v1099 = vmax.f32 %v1035, 0.0
    %v1100 = vmax.f32 %v1036, 0.0
    %v1101 = vmax.f32 %v1037, 0.0
    %v1102 = vmax.f32 %v1038, 0.0
    %v1103 = vmax.f32 %v1039, 0.0
    %v1104 = vmax.f32 %v1040, 0.0
    %v1105 = vmax.f32 %v1041, 0.0
    %v1106 = vmax.f32 %v1042, 0.0
    %v1107 = vmax.f32 %v1043, 0.0
    %v1108 = vmax.f32 %v1044, 0.0
    %v1109 = vmax.f32 %v1045, 0.0
    %v1110 = vmax.f32 %v1046, 0.0
    %v1111 = vmax.f32 %v1047, 0.0
    %v1112 = vmax.f32 %v1048, 0.0
    %v1113 = vmax.f32 %v1049, 0.0
    %v1114 = vmax.f32 %v1050, 0.0
    %v1115 = vmax.f32 %v1051, 0.0
    %v1116 = vmax.f32 %v1052, 0.0
    %v1117 = vmax.f32 %v1053, 0.0
    %v1118 = vmax.f32 %v1054, 0.0
    %v1119 = vmax.f32 %v1055, 0.0
    %v1120 = vmax.f32 %v1056, 0.0
    %v1121 = vmax.f32 %v1057, 0.0
    %v1122 = vmax.f32 %v1058, 0.0
    %v1123 = vmax.f32 %v1059, 0.0
    %v1124 = vmax.f32 %v1060, 0.0
    %v1125 = vmax.f32 %v1061, 0.0
    %v1126 = vmax.f32 %v1062, 0.0
    %v1127 = vpack.c.bf16 %v1064, %v1063
    %v1128 = vpack.c.bf16 %v1066, %v1065
    %v1129 = vpack.c.bf16 %v1068, %v1067
    %v1130 = vpack.c.bf16 %v1070, %v1069
    %v1131 = vpack.c.bf16 %v1072, %v1071
    %v1132 = vpack.c.bf16 %v1074, %v1073
    %v1133 = vpack.c.bf16 %v1076, %v1075
    %v1134 = vpack.c.bf16 %v1078, %v1077
    %v1135 = vpack.c.bf16 %v1080, %v1079
    %v1136 = vpack.c.bf16 %v1082, %v1081
    %v1137 = vpack.c.bf16 %v1084, %v1083
    %v1138 = vpack.c.bf16 %v1086, %v1085
    %v1139 = vpack.c.bf16 %v1088, %v1087
    %v1140 = vpack.c.bf16 %v1090, %v1089
    %v1141 = vpack.c.bf16 %v1092, %v1091
    %v1142 = vpack.c.bf16 %v1094, %v1093
    %v1143 = vpack.c.bf16 %v1096, %v1095
    %v1144 = vpack.c.bf16 %v1098, %v1097
    %v1145 = vpack.c.bf16 %v1100, %v1099
    %v1146 = vpack.c.bf16 %v1102, %v1101
    %v1147 = vpack.c.bf16 %v1104, %v1103
    %v1148 = vpack.c.bf16 %v1106, %v1105
    %v1149 = vpack.c.bf16 %v1108, %v1107
    %v1150 = vpack.c.bf16 %v1110, %v1109
    %v1151 = vpack.c.bf16 %v1112, %v1111
    %v1152 = vpack.c.bf16 %v1114, %v1113
    %v1153 = vpack.c.bf16 %v1116, %v1115
    %v1154 = vpack.c.bf16 %v1118, %v1117
    %v1155 = vpack.c.bf16 %v1120, %v1119
    %v1156 = vpack.c.bf16 %v1122, %v1121
    %v1157 = vpack.c.bf16 %v1124, %v1123
    %v1158 = vpack.c.bf16 %v1126, %v1125
    %v1191 = vunpack.c.l.b16 %v1127
    %v1192 = vunpack.c.h.b16 %v1127
    %v1193 = vunpack.c.l.b16 %v1128
    %v1194 = vunpack.c.h.b16 %v1128
    %v1195 = vunpack.c.l.b16 %v1129
    %v1196 = vunpack.c.h.b16 %v1129
    %v1197 = vunpack.c.l.b16 %v1130
    %v1198 = vunpack.c.h.b16 %v1130
    %v1199 = vunpack.c.l.b16 %v1131
    %v1200 = vunpack.c.h.b16 %v1131
    %v1201 = vunpack.c.l.b16 %v1132
    %v1202 = vunpack.c.h.b16 %v1132
    %v1203 = vunpack.c.l.b16 %v1133
    %v1204 = vunpack.c.h.b16 %v1133
    %v1205 = vunpack.c.l.b16 %v1134
    %v1206 = vunpack.c.h.b16 %v1134
    %v1207 = vunpack.c.l.b16 %v1135
    %v1208 = vunpack.c.h.b16 %v1135
    %v1209 = vunpack.c.l.b16 %v1136
    %v1210 = vunpack.c.h.b16 %v1136
    %v1211 = vunpack.c.l.b16 %v1137
    %v1212 = vunpack.c.h.b16 %v1137
    %v1213 = vunpack.c.l.b16 %v1138
    %v1214 = vunpack.c.h.b16 %v1138
    %v1215 = vunpack.c.l.b16 %v1139
    %v1216 = vunpack.c.h.b16 %v1139
    %v1217 = vunpack.c.l.b16 %v1140
    %v1218 = vunpack.c.h.b16 %v1140
    %v1219 = vunpack.c.l.b16 %v1141
    %v1220 = vunpack.c.h.b16 %v1141
    %v1221 = vunpack.c.l.b16 %v1142
    %v1222 = vunpack.c.h.b16 %v1142
    %v1223 = vunpack.c.l.b16 %v1143
    %v1224 = vunpack.c.h.b16 %v1143
    %v1225 = vunpack.c.l.b16 %v1144
    %v1226 = vunpack.c.h.b16 %v1144
    %v1227 = vunpack.c.l.b16 %v1145
    %v1228 = vunpack.c.h.b16 %v1145
    %v1229 = vunpack.c.l.b16 %v1146
    %v1230 = vunpack.c.h.b16 %v1146
    %v1231 = vunpack.c.l.b16 %v1147
    %v1232 = vunpack.c.h.b16 %v1147
    %v1233 = vunpack.c.l.b16 %v1148
    %v1234 = vunpack.c.h.b16 %v1148
    %v1235 = vunpack.c.l.b16 %v1149
    %v1236 = vunpack.c.h.b16 %v1149
    %v1237 = vunpack.c.l.b16 %v1150
    %v1238 = vunpack.c.h.b16 %v1150
    %v1239 = vunpack.c.l.b16 %v1151
    %v1240 = vunpack.c.h.b16 %v1151
    %v1241 = vunpack.c.l.b16 %v1152
    %v1242 = vunpack.c.h.b16 %v1152
    %v1243 = vunpack.c.l.b16 %v1153
    %v1244 = vunpack.c.h.b16 %v1153
    %v1245 = vunpack.c.l.b16 %v1154
    %v1246 = vunpack.c.h.b16 %v1154
    %v1247 = vunpack.c.l.b16 %v1155
    %v1248 = vunpack.c.h.b16 %v1155
    %v1249 = vunpack.c.l.b16 %v1156
    %v1250 = vunpack.c.h.b16 %v1156
    %v1251 = vunpack.c.l.b16 %v1157
    %v1252 = vunpack.c.h.b16 %v1157
    %v1253 = vunpack.c.l.b16 %v1158
    %v1254 = vunpack.c.h.b16 %v1158
    %v1255 = vpack.c.b16 %v1191, %v1191
    %v1256 = vpack.c.b16 %v1192, %v1192
    %v1257 = vpack.c.b16 %v1193, %v1193
    %v1258 = vpack.c.b16 %v1194, %v1194
    %v1259 = vpack.c.b16 %v1195, %v1195
    %v1260 = vpack.c.b16 %v1196, %v1196
    %v1261 = vpack.c.b16 %v1197, %v1197
    %v1262 = vpack.c.b16 %v1198, %v1198
    %v1263 = vpack.c.b16 %v1199, %v1199
    %v1264 = vpack.c.b16 %v1200, %v1200
    %v1265 = vpack.c.b16 %v1201, %v1201
    %v1266 = vpack.c.b16 %v1202, %v1202
    %v1267 = vpack.c.b16 %v1203, %v1203
    %v1268 = vpack.c.b16 %v1204, %v1204
    %v1269 = vpack.c.b16 %v1205, %v1205
    %v1270 = vpack.c.b16 %v1206, %v1206
    %v1271 = vpack.c.b16 %v1207, %v1207
    %v1272 = vpack.c.b16 %v1208, %v1208
    %v1273 = vpack.c.b16 %v1209, %v1209
    %v1274 = vpack.c.b16 %v1210, %v1210
    %v1275 = vpack.c.b16 %v1211, %v1211
    %v1276 = vpack.c.b16 %v1212, %v1212
    %v1277 = vpack.c.b16 %v1213, %v1213
    %v1278 = vpack.c.b16 %v1214, %v1214
    %v1279 = vpack.c.b16 %v1215, %v1215
    %v1280 = vpack.c.b16 %v1216, %v1216
    %v1281 = vpack.c.b16 %v1217, %v1217
    %v1282 = vpack.c.b16 %v1218, %v1218
    %v1283 = vpack.c.b16 %v1219, %v1219
    %v1284 = vpack.c.b16 %v1220, %v1220
    %v1285 = vpack.c.b16 %v1221, %v1221
    %v1286 = vpack.c.b16 %v1222, %v1222
    %v1287 = vpack.c.b16 %v1223, %v1223
    %v1288 = vpack.c.b16 %v1224, %v1224
    %v1289 = vpack.c.b16 %v1225, %v1225
    %v1290 = vpack.c.b16 %v1226, %v1226
    %v1291 = vpack.c.b16 %v1227, %v1227
    %v1292 = vpack.c.b16 %v1228, %v1228
    %v1293 = vpack.c.b16 %v1229, %v1229
    %v1294 = vpack.c.b16 %v1230, %v1230
    %v1295 = vpack.c.b16 %v1231, %v1231
    %v1296 = vpack.c.b16 %v1232, %v1232
    %v1297 = vpack.c.b16 %v1233, %v1233
    %v1298 = vpack.c.b16 %v1234, %v1234
    %v1299 = vpack.c.b16 %v1235, %v1235
    %v1300 = vpack.c.b16 %v1236, %v1236
    %v1301 = vpack.c.b16 %v1237, %v1237
    %v1302 = vpack.c.b16 %v1238, %v1238
    %v1303 = vpack.c.b16 %v1239, %v1239
    %v1304 = vpack.c.b16 %v1240, %v1240
    %v1305 = vpack.c.b16 %v1241, %v1241
    %v1306 = vpack.c.b16 %v1242, %v1242
    %v1307 = vpack.c.b16 %v1243, %v1243
    %v1308 = vpack.c.b16 %v1244, %v1244
    %v1309 = vpack.c.b16 %v1245, %v1245
    %v1310 = vpack.c.b16 %v1246, %v1246
    %v1311 = vpack.c.b16 %v1247, %v1247
    %v1312 = vpack.c.b16 %v1248, %v1248
    %v1313 = vpack.c.b16 %v1249, %v1249
    %v1314 = vpack.c.b16 %v1250, %v1250
    %v1315 = vpack.c.b16 %v1251, %v1251
    %v1316 = vpack.c.b16 %v1252, %v1252
    %v1317 = vpack.c.b16 %v1253, %v1253
    %v1318 = vpack.c.b16 %v1254, %v1254
    %1383 = vst [vmem:[%s3] sm:$0xf] %v1255
    %1384 = vst [vmem:[%s3 + $0x4] sm:$0xf] %v1256
    %1385 = vst [vmem:[%s3 + $0x8] sm:$0xf] %v1257
    %1386 = vst [vmem:[%s3 + $0xc] sm:$0xf] %v1258
    %1387 = vst [vmem:[%s3 + $0x10] sm:$0xf] %v1259
    %1388 = vst [vmem:[%s3 + $0x14] sm:$0xf] %v1260
    %1389 = vst [vmem:[%s3 + $0x18] sm:$0xf] %v1261
    %1390 = vst [vmem:[%s3 + $0x1c] sm:$0xf] %v1262
    %1391 = vst [vmem:[%s3 + $0x20] sm:$0xf] %v1263
    %1392 = vst [vmem:[%s3 + $0x24] sm:$0xf] %v1264
    %1393 = vst [vmem:[%s3 + $0x28] sm:$0xf] %v1265
    %1394 = vst [vmem:[%s3 + $0x2c] sm:$0xf] %v1266
    %1395 = vst [vmem:[%s3 + $0x30] sm:$0xf] %v1267
    %1396 = vst [vmem:[%s3 + $0x34] sm:$0xf] %v1268
    %1397 = vst [vmem:[%s3 + $0x38] sm:$0xf] %v1269
    %1398 = vst [vmem:[%s3 + $0x3c] sm:$0xf] %v1270
    %1399 = vst [vmem:[%s3 + $0x40] sm:$0xf] %v1271
    %1400 = vst [vmem:[%s3 + $0x44] sm:$0xf] %v1272
    %1401 = vst [vmem:[%s3 + $0x48] sm:$0xf] %v1273
    %1402 = vst [vmem:[%s3 + $0x4c] sm:$0xf] %v1274
    %1403 = vst [vmem:[%s3 + $0x50] sm:$0xf] %v1275
    %1404 = vst [vmem:[%s3 + $0x54] sm:$0xf] %v1276
    %1405 = vst [vmem:[%s3 + $0x58] sm:$0xf] %v1277
    %1406 = vst [vmem:[%s3 + $0x5c] sm:$0xf] %v1278
    %1407 = vst [vmem:[%s3 + $0x60] sm:$0xf] %v1279
    %1408 = vst [vmem:[%s3 + $0x64] sm:$0xf] %v1280
    %1409 = vst [vmem:[%s3 + $0x68] sm:$0xf] %v1281
    %1410 = vst [vmem:[%s3 + $0x6c] sm:$0xf] %v1282
    %1411 = vst [vmem:[%s3 + $0x70] sm:$0xf] %v1283
    %1412 = vst [vmem:[%s3 + $0x74] sm:$0xf] %v1284
    %1413 = vst [vmem:[%s3 + $0x78] sm:$0xf] %v1285
    %1414 = vst [vmem:[%s3 + $0x7c] sm:$0xf] %v1286
    %1415 = vst [vmem:[%s3 + $0x80] sm:$0xf] %v1287
    %1416 = vst [vmem:[%s3 + $0x84] sm:$0xf] %v1288
    %1417 = vst [vmem:[%s3 + $0x88] sm:$0xf] %v1289
    %1418 = vst [vmem:[%s3 + $0x8c] sm:$0xf] %v1290
    %1419 = vst [vmem:[%s3 + $0x90] sm:$0xf] %v1291
    %1420 = vst [vmem:[%s3 + $0x94] sm:$0xf] %v1292
    %1421 = vst [vmem:[%s3 + $0x98] sm:$0xf] %v1293
    %1422 = vst [vmem:[%s3 + $0x9c] sm:$0xf] %v1294
    %1423 = vst [vmem:[%s3 + $0xa0] sm:$0xf] %v1295
    %1424 = vst [vmem:[%s3 + $0xa4] sm:$0xf] %v1296
    %1425 = vst [vmem:[%s3 + $0xa8] sm:$0xf] %v1297
    %1426 = vst [vmem:[%s3 + $0xac] sm:$0xf] %v1298
    %1427 = vst [vmem:[%s3 + $0xb0] sm:$0xf] %v1299
    %1428 = vst [vmem:[%s3 + $0xb4] sm:$0xf] %v1300
    %1429 = vst [vmem:[%s3 + $0xb8] sm:$0xf] %v1301
    %1430 = vst [vmem:[%s3 + $0xbc] sm:$0xf] %v1302
    %1431 = vst [vmem:[%s3 + $0xc0] sm:$0xf] %v1303
    %1432 = vst [vmem:[%s3 + $0xc4] sm:$0xf] %v1304
    %1433 = vst [vmem:[%s3 + $0xc8] sm:$0xf] %v1305
    %1434 = vst [vmem:[%s3 + $0xcc] sm:$0xf] %v1306
    %1435 = vst [vmem:[%s3 + $0xd0] sm:$0xf] %v1307
    %1436 = vst [vmem:[%s3 + $0xd4] sm:$0xf] %v1308
    %1437 = vst [vmem:[%s3 + $0xd8] sm:$0xf] %v1309
    %1438 = vst [vmem:[%s3 + $0xdc] sm:$0xf] %v1310
    %1439 = vst [vmem:[%s3 + $0xe0] sm:$0xf] %v1311
    %1440 = vst [vmem:[%s3 + $0xe4] sm:$0xf] %v1312
    %1441 = vst [vmem:[%s3 + $0xe8] sm:$0xf] %v1313
    %1442 = vst [vmem:[%s3 + $0xec] sm:$0xf] %v1314
    %1443 = vst [vmem:[%s3 + $0xf0] sm:$0xf] %v1315
    %1444 = vst [vmem:[%s3 + $0xf4] sm:$0xf] %v1316
    %1445 = vst [vmem:[%s3 + $0xf8] sm:$0xf] %v1317
    %1446 = vst [vmem:[%s3 + $0xfc] sm:$0xf] %v1318
  $region21: #{dimpnet_forward.7} parent=0 // pred_fallthru
    _
  // Predicated region
  $region22: #{dimpnet_forward.7} parent=0 // pred_check
    _
  $region23: #{dimpnet_forward.7} parent=0 // pred_check_branch
    %1448 = sbr.rel (0) target = $region25
  $region24: #{dimpnet_forward.7} parent=0 // pred_region
    _
  $region25: #{dimpnet_forward.7} parent=0 // pred_fallthru
    _
  // Predicated region
  $region26: #{dimpnet_forward.7} parent=0 // pred_check
    _
  $region27: #{dimpnet_forward.7} parent=0 // pred_check_branch
    %1450 = sbr.rel (0) target = $region29
  $region28: #{dimpnet_forward.7} parent=0 // pred_region
    _
  $region29: #{dimpnet_forward.7} parent=0 // pred_fallthru
    _

// kernel: dimpnet_forward.8
$region0: #{dimpnet_forward.8}
  #allocation0 [shape = 'u32[]', space=smem, size = 0x4, offset = 0x4, fixed_abs, tag = 'smem constant byte address 0x4 - core index']
  #allocation1 [shape = 'u32[144,128]{1,0:T(1,128)}', space=vmem, size = 0x12000, scoped, tag = 'internal scratch']
  #allocation2 [shape = 'f32[512,128]{1,0:T(8,128)}', space=vmem, size = 0x40000, scoped, tag = 'scratch operand']
  %s0 = inlined_call_operand.vmem [shape: bf16[512,144], index: 0, kind: input, shape index: {}]
  %s1 = inlined_call_operand.vmem [shape: bf16[144,128], index: 1, kind: input, shape index: {}]
  %s2 = inlined_call_operand.vmem [shape: f32[1,128], index: 2, kind: input, shape index: {}]
  %s3 = inlined_call_operand.vmem [shape: bf16[512,128], index: 3, kind: output, shape index: {}]
  %s4 = sld [smem:[#allocation0]]
  $region30: #{dimpnet_forward.8} parent=0
    _
  %s6 = ssub.s32 1, %s4
  %s7 = scalar_select 0, %s6, %s4
  // Predicated region
  $region2: #{dimpnet_forward.8} parent=0 // pred_check
    _
  $region3: #{dimpnet_forward.8} parent=0 // pred_check_branch
    %9 = sbr.rel (0) target = $region5
  $region4: #{dimpnet_forward.8} parent=0 // pred_region
    _
  $region5: #{dimpnet_forward.8} parent=0 // pred_fallthru
    _
  // Predicated region
  $region6: #{dimpnet_forward.8} parent=0 // pred_check
    _
  $region7: #{dimpnet_forward.8} parent=0 // pred_check_branch
    %11 = sbr.rel (0) target = $region9
  $region8: #{dimpnet_forward.8} parent=0 // pred_region
    _
  $region9: #{dimpnet_forward.8} parent=0 // pred_fallthru
    _
  // Predicated region
  $region10: #{dimpnet_forward.8} parent=0 // pred_check
    _
  $region11: #{dimpnet_forward.8} parent=0 // pred_check_branch
    %13 = sbr.rel (0) target = $region13
  $region12: #{dimpnet_forward.8} parent=0 // pred_region
    _
  $region13: #{dimpnet_forward.8} parent=0 // pred_fallthru
    _
  %p15 = scmp.eq.s32.totalorder 0, 0
  // Predicated region
  $region14: #{dimpnet_forward.8} parent=0 // pred_check
    %p16 = pneg %p15
  $region15: #{dimpnet_forward.8} parent=0 // pred_check_branch
    %18 = sbr.rel (%p16) target = $region17
  $region16: #{dimpnet_forward.8} parent=0 // pred_region
    %19 = vst [vmem:[#allocation2] sm:$0xff] 0.0
    %20 = vst [vmem:[#allocation2 + $0x8] sm:$0xff] 0.0
    %21 = vst [vmem:[#allocation2 + $0x10] sm:$0xff] 0.0
    %22 = vst [vmem:[#allocation2 + $0x18] sm:$0xff] 0.0
    %23 = vst [vmem:[#allocation2 + $0x20] sm:$0xff] 0.0
    %24 = vst [vmem:[#allocation2 + $0x28] sm:$0xff] 0.0
    %25 = vst [vmem:[#allocation2 + $0x30] sm:$0xff] 0.0
    %26 = vst [vmem:[#allocation2 + $0x38] sm:$0xff] 0.0
    %27 = vst [vmem:[#allocation2 + $0x40] sm:$0xff] 0.0
    %28 = vst [vmem:[#allocation2 + $0x48] sm:$0xff] 0.0
    %29 = vst [vmem:[#allocation2 + $0x50] sm:$0xff] 0.0
    %30 = vst [vmem:[#allocation2 + $0x58] sm:$0xff] 0.0
    %31 = vst [vmem:[#allocation2 + $0x60] sm:$0xff] 0.0
    %32 = vst [vmem:[#allocation2 + $0x68] sm:$0xff] 0.0
    %33 = vst [vmem:[#allocation2 + $0x70] sm:$0xff] 0.0
    %34 = vst [vmem:[#allocation2 + $0x78] sm:$0xff] 0.0
    %35 = vst [vmem:[#allocation2 + $0x80] sm:$0xff] 0.0
    %36 = vst [vmem:[#allocation2 + $0x88] sm:$0xff] 0.0
    %37 = vst [vmem:[#allocation2 + $0x90] sm:$0xff] 0.0
    %38 = vst [vmem:[#allocation2 + $0x98] sm:$0xff] 0.0
    %39 = vst [vmem:[#allocation2 + $0xa0] sm:$0xff] 0.0
    %40 = vst [vmem:[#allocation2 + $0xa8] sm:$0xff] 0.0
    %41 = vst [vmem:[#allocation2 + $0xb0] sm:$0xff] 0.0
    %42 = vst [vmem:[#allocation2 + $0xb8] sm:$0xff] 0.0
    %43 = vst [vmem:[#allocation2 + $0xc0] sm:$0xff] 0.0
    %44 = vst [vmem:[#allocation2 + $0xc8] sm:$0xff] 0.0
    %45 = vst [vmem:[#allocation2 + $0xd0] sm:$0xff] 0.0
    %46 = vst [vmem:[#allocation2 + $0xd8] sm:$0xff] 0.0
    %47 = vst [vmem:[#allocation2 + $0xe0] sm:$0xff] 0.0
    %48 = vst [vmem:[#allocation2 + $0xe8] sm:$0xff] 0.0
    %49 = vst [vmem:[#allocation2 + $0xf0] sm:$0xff] 0.0
    %50 = vst [vmem:[#allocation2 + $0xf8] sm:$0xff] 0.0
    %51 = vst [vmem:[#allocation2 + $0x100] sm:$0xff] 0.0
    %52 = vst [vmem:[#allocation2 + $0x108] sm:$0xff] 0.0
    %53 = vst [vmem:[#allocation2 + $0x110] sm:$0xff] 0.0
    %54 = vst [vmem:[#allocation2 + $0x118] sm:$0xff] 0.0
    %55 = vst [vmem:[#allocation2 + $0x120] sm:$0xff] 0.0
    %56 = vst [vmem:[#allocation2 + $0x128] sm:$0xff] 0.0
    %57 = vst [vmem:[#allocation2 + $0x130] sm:$0xff] 0.0
    %58 = vst [vmem:[#allocation2 + $0x138] sm:$0xff] 0.0
    %59 = vst [vmem:[#allocation2 + $0x140] sm:$0xff] 0.0
    %60 = vst [vmem:[#allocation2 + $0x148] sm:$0xff] 0.0
    %61 = vst [vmem:[#allocation2 + $0x150] sm:$0xff] 0.0
    %62 = vst [vmem:[#allocation2 + $0x158] sm:$0xff] 0.0
    %63 = vst [vmem:[#allocation2 + $0x160] sm:$0xff] 0.0
    %64 = vst [vmem:[#allocation2 + $0x168] sm:$0xff] 0.0
    %65 = vst [vmem:[#allocation2 + $0x170] sm:$0xff] 0.0
    %66 = vst [vmem:[#allocation2 + $0x178] sm:$0xff] 0.0
    %67 = vst [vmem:[#allocation2 + $0x180] sm:$0xff] 0.0
    %68 = vst [vmem:[#allocation2 + $0x188] sm:$0xff] 0.0
    %69 = vst [vmem:[#allocation2 + $0x190] sm:$0xff] 0.0
    %70 = vst [vmem:[#allocation2 + $0x198] sm:$0xff] 0.0
    %71 = vst [vmem:[#allocation2 + $0x1a0] sm:$0xff] 0.0
    %72 = vst [vmem:[#allocation2 + $0x1a8] sm:$0xff] 0.0
    %73 = vst [vmem:[#allocation2 + $0x1b0] sm:$0xff] 0.0
    %74 = vst [vmem:[#allocation2 + $0x1b8] sm:$0xff] 0.0
    %75 = vst [vmem:[#allocation2 + $0x1c0] sm:$0xff] 0.0
    %76 = vst [vmem:[#allocation2 + $0x1c8] sm:$0xff] 0.0
    %77 = vst [vmem:[#allocation2 + $0x1d0] sm:$0xff] 0.0
    %78 = vst [vmem:[#allocation2 + $0x1d8] sm:$0xff] 0.0
    %79 = vst [vmem:[#allocation2 + $0x1e0] sm:$0xff] 0.0
    %80 = vst [vmem:[#allocation2 + $0x1e8] sm:$0xff] 0.0
    %81 = vst [vmem:[#allocation2 + $0x1f0] sm:$0xff] 0.0
    %82 = vst [vmem:[#allocation2 + $0x1f8] sm:$0xff] 0.0
  $region17: #{dimpnet_forward.8} parent=0 // pred_fallthru
    _
  %v83 = vld [vmem:[#allocation2] sm:$0xff]
  %v84 = vld [vmem:[#allocation2 + $0x8] sm:$0xff]
  %v85 = vld [vmem:[#allocation2 + $0x10] sm:$0xff]
  %v86 = vld [vmem:[#allocation2 + $0x18] sm:$0xff]
  %v87 = vld [vmem:[#allocation2 + $0x20] sm:$0xff]
  %v88 = vld [vmem:[#allocation2 + $0x28] sm:$0xff]
  %v89 = vld [vmem:[#allocation2 + $0x30] sm:$0xff]
  %v90 = vld [vmem:[#allocation2 + $0x38] sm:$0xff]
  %v91 = vld [vmem:[#allocation2 + $0x40] sm:$0xff]
  %v92 = vld [vmem:[#allocation2 + $0x48] sm:$0xff]
  %v93 = vld [vmem:[#allocation2 + $0x50] sm:$0xff]
  %v94 = vld [vmem:[#allocation2 + $0x58] sm:$0xff]
  %v95 = vld [vmem:[#allocation2 + $0x60] sm:$0xff]
  %v96 = vld [vmem:[#allocation2 + $0x68] sm:$0xff]
  %v97 = vld [vmem:[#allocation2 + $0x70] sm:$0xff]
  %v98 = vld [vmem:[#allocation2 + $0x78] sm:$0xff]
  %v99 = vld [vmem:[#allocation2 + $0x80] sm:$0xff]
  %v100 = vld [vmem:[#allocation2 + $0x88] sm:$0xff]
  %v101 = vld [vmem:[#allocation2 + $0x90] sm:$0xff]
  %v102 = vld [vmem:[#allocation2 + $0x98] sm:$0xff]
  %v103 = vld [vmem:[#allocation2 + $0xa0] sm:$0xff]
  %v104 = vld [vmem:[#allocation2 + $0xa8] sm:$0xff]
  %v105 = vld [vmem:[#allocation2 + $0xb0] sm:$0xff]
  %v106 = vld [vmem:[#allocation2 + $0xb8] sm:$0xff]
  %v107 = vld [vmem:[#allocation2 + $0xc0] sm:$0xff]
  %v108 = vld [vmem:[#allocation2 + $0xc8] sm:$0xff]
  %v109 = vld [vmem:[#allocation2 + $0xd0] sm:$0xff]
  %v110 = vld [vmem:[#allocation2 + $0xd8] sm:$0xff]
  %v111 = vld [vmem:[#allocation2 + $0xe0] sm:$0xff]
  %v112 = vld [vmem:[#allocation2 + $0xe8] sm:$0xff]
  %v113 = vld [vmem:[#allocation2 + $0xf0] sm:$0xff]
  %v114 = vld [vmem:[#allocation2 + $0xf8] sm:$0xff]
  %v115 = vld [vmem:[#allocation2 + $0x100] sm:$0xff]
  %v116 = vld [vmem:[#allocation2 + $0x108] sm:$0xff]
  %v117 = vld [vmem:[#allocation2 + $0x110] sm:$0xff]
  %v118 = vld [vmem:[#allocation2 + $0x118] sm:$0xff]
  %v119 = vld [vmem:[#allocation2 + $0x120] sm:$0xff]
  %v120 = vld [vmem:[#allocation2 + $0x128] sm:$0xff]
  %v121 = vld [vmem:[#allocation2 + $0x130] sm:$0xff]
  %v122 = vld [vmem:[#allocation2 + $0x138] sm:$0xff]
  %v123 = vld [vmem:[#allocation2 + $0x140] sm:$0xff]
  %v124 = vld [vmem:[#allocation2 + $0x148] sm:$0xff]
  %v125 = vld [vmem:[#allocation2 + $0x150] sm:$0xff]
  %v126 = vld [vmem:[#allocation2 + $0x158] sm:$0xff]
  %v127 = vld [vmem:[#allocation2 + $0x160] sm:$0xff]
  %v128 = vld [vmem:[#allocation2 + $0x168] sm:$0xff]
  %v129 = vld [vmem:[#allocation2 + $0x170] sm:$0xff]
  %v130 = vld [vmem:[#allocation2 + $0x178] sm:$0xff]
  %v131 = vld [vmem:[#allocation2 + $0x180] sm:$0xff]
  %v132 = vld [vmem:[#allocation2 + $0x188] sm:$0xff]
  %v133 = vld [vmem:[#allocation2 + $0x190] sm:$0xff]
  %v134 = vld [vmem:[#allocation2 + $0x198] sm:$0xff]
  %v135 = vld [vmem:[#allocation2 + $0x1a0] sm:$0xff]
  %v136 = vld [vmem:[#allocation2 + $0x1a8] sm:$0xff]
  %v137 = vld [vmem:[#allocation2 + $0x1b0] sm:$0xff]
  %v138 = vld [vmem:[#allocation2 + $0x1b8] sm:$0xff]
  %v139 = vld [vmem:[#allocation2 + $0x1c0] sm:$0xff]
  %v140 = vld [vmem:[#allocation2 + $0x1c8] sm:$0xff]
  %v141 = vld [vmem:[#allocation2 + $0x1d0] sm:$0xff]
  %v142 = vld [vmem:[#allocation2 + $0x1d8] sm:$0xff]
  %v143 = vld [vmem:[#allocation2 + $0x1e0] sm:$0xff]
  %v144 = vld [vmem:[#allocation2 + $0x1e8] sm:$0xff]
  %v145 = vld [vmem:[#allocation2 + $0x1f0] sm:$0xff]
  %v146 = vld [vmem:[#allocation2 + $0x1f8] sm:$0xff]
  %v147 = vld [vmem:[%s0] sm:$0xff]
  %v148 = vld [vmem:[%s0 + $0x8] sm:$0xff]
  %v149 = vld [vmem:[%s0 + $0x10] sm:$0xff]
  %v150 = vld [vmem:[%s0 + $0x18] sm:$0xff]
  %v151 = vld [vmem:[%s0 + $0x20] sm:$0xff]
  %v152 = vld [vmem:[%s0 + $0x28] sm:$0xff]
  %v153 = vld [vmem:[%s0 + $0x30] sm:$0xff]
  %v154 = vld [vmem:[%s0 + $0x38] sm:$0xff]
  %v155 = vld [vmem:[%s0 + $0x40] sm:$0xff]
  %v156 = vld [vmem:[%s0 + $0x48] sm:$0xff]
  %v157 = vld [vmem:[%s0 + $0x50] sm:$0xff]
  %v158 = vld [vmem:[%s0 + $0x58] sm:$0xff]
  %v159 = vld [vmem:[%s0 + $0x60] sm:$0xff]
  %v160 = vld [vmem:[%s0 + $0x68] sm:$0xff]
  %v161 = vld [vmem:[%s0 + $0x70] sm:$0xff]
  %v162 = vld [vmem:[%s0 + $0x78] sm:$0xff]
  %v163 = vld [vmem:[%s0 + $0x80] sm:$0xff]
  %v164 = vld [vmem:[%s0 + $0x88] sm:$0xff]
  %v165 = vld [vmem:[%s0 + $0x90] sm:$0xff]
  %v166 = vld [vmem:[%s0 + $0x98] sm:$0xff]
  %v167 = vld [vmem:[%s0 + $0xa0] sm:$0xff]
  %v168 = vld [vmem:[%s0 + $0xa8] sm:$0xff]
  %v169 = vld [vmem:[%s0 + $0xb0] sm:$0xff]
  %v170 = vld [vmem:[%s0 + $0xb8] sm:$0xff]
  %v171 = vld [vmem:[%s0 + $0xc0] sm:$0xff]
  %v172 = vld [vmem:[%s0 + $0xc8] sm:$0xff]
  %v173 = vld [vmem:[%s0 + $0xd0] sm:$0xff]
  %v174 = vld [vmem:[%s0 + $0xd8] sm:$0xff]
  %v175 = vld [vmem:[%s0 + $0xe0] sm:$0xff]
  %v176 = vld [vmem:[%s0 + $0xe8] sm:$0xff]
  %v177 = vld [vmem:[%s0 + $0xf0] sm:$0xff]
  %v178 = vld [vmem:[%s0 + $0xf8] sm:$0xff]
  %v179 = vld [vmem:[%s0 + $0x100] sm:$0xff]
  %v180 = vld [vmem:[%s0 + $0x108] sm:$0xff]
  %v181 = vld [vmem:[%s0 + $0x110] sm:$0xff]
  %v182 = vld [vmem:[%s0 + $0x118] sm:$0xff]
  %v183 = vld [vmem:[%s0 + $0x120] sm:$0xff]
  %v184 = vld [vmem:[%s0 + $0x128] sm:$0xff]
  %v185 = vld [vmem:[%s0 + $0x130] sm:$0xff]
  %v186 = vld [vmem:[%s0 + $0x138] sm:$0xff]
  %v187 = vld [vmem:[%s0 + $0x140] sm:$0xff]
  %v188 = vld [vmem:[%s0 + $0x148] sm:$0xff]
  %v189 = vld [vmem:[%s0 + $0x150] sm:$0xff]
  %v190 = vld [vmem:[%s0 + $0x158] sm:$0xff]
  %v191 = vld [vmem:[%s0 + $0x160] sm:$0xff]
  %v192 = vld [vmem:[%s0 + $0x168] sm:$0xff]
  %v193 = vld [vmem:[%s0 + $0x170] sm:$0xff]
  %v194 = vld [vmem:[%s0 + $0x178] sm:$0xff]
  %v195 = vld [vmem:[%s0 + $0x180] sm:$0xff]
  %v196 = vld [vmem:[%s0 + $0x188] sm:$0xff]
  %v197 = vld [vmem:[%s0 + $0x190] sm:$0xff]
  %v198 = vld [vmem:[%s0 + $0x198] sm:$0xff]
  %v199 = vld [vmem:[%s0 + $0x1a0] sm:$0xff]
  %v200 = vld [vmem:[%s0 + $0x1a8] sm:$0xff]
  %v201 = vld [vmem:[%s0 + $0x1b0] sm:$0xff]
  %v202 = vld [vmem:[%s0 + $0x1b8] sm:$0xff]
  %v203 = vld [vmem:[%s0 + $0x1c0] sm:$0xff]
  %v204 = vld [vmem:[%s0 + $0x1c8] sm:$0xff]
  %v205 = vld [vmem:[%s0 + $0x1d0] sm:$0xff]
  %v206 = vld [vmem:[%s0 + $0x1d8] sm:$0xff]
  %v207 = vld [vmem:[%s0 + $0x1e0] sm:$0xff]
  %v208 = vld [vmem:[%s0 + $0x1e8] sm:$0xff]
  %v209 = vld [vmem:[%s0 + $0x1f0] sm:$0xff]
  %v210 = vld [vmem:[%s0 + $0x1f8] sm:$0xff]
  %v211 = vld [vmem:[%s1] sm:$0xf]
  %v212 = vld [vmem:[%s1 + $0x4] sm:$0xf]
  %v213 = vld [vmem:[%s1 + $0x8] sm:$0xf]
  %v214 = vld [vmem:[%s1 + $0xc] sm:$0xf]
  %v215 = vld [vmem:[%s1 + $0x10] sm:$0xf]
  %v216 = vld [vmem:[%s1 + $0x14] sm:$0xf]
  %v217 = vld [vmem:[%s1 + $0x18] sm:$0xf]
  %v218 = vld [vmem:[%s1 + $0x1c] sm:$0xf]
  %v219 = vld [vmem:[%s1 + $0x20] sm:$0xf]
  %v220 = vld [vmem:[%s1 + $0x24] sm:$0xf]
  %v221 = vld [vmem:[%s1 + $0x28] sm:$0xf]
  %v222 = vld [vmem:[%s1 + $0x2c] sm:$0xf]
  %v223 = vld [vmem:[%s1 + $0x30] sm:$0xf]
  %v224 = vld [vmem:[%s1 + $0x34] sm:$0xf]
  %v225 = vld [vmem:[%s1 + $0x38] sm:$0xf]
  %v226 = vld [vmem:[%s1 + $0x3c] sm:$0xf]
  %v227 = vld [vmem:[%s1 + $0x40] sm:$0xf]
  %v228 = vld [vmem:[%s1 + $0x44] sm:$0xf]
  %v293 = vunpack.c.l.b16 %v147
  %v294 = vunpack.c.h.b16 %v147
  %v295 = vunpack.c.l.b16 %v148
  %v296 = vunpack.c.h.b16 %v148
  %v297 = vunpack.c.l.b16 %v149
  %v298 = vunpack.c.h.b16 %v149
  %v299 = vunpack.c.l.b16 %v150
  %v300 = vunpack.c.h.b16 %v150
  %v301 = vunpack.c.l.b16 %v151
  %v302 = vunpack.c.h.b16 %v151
  %v303 = vunpack.c.l.b16 %v152
  %v304 = vunpack.c.h.b16 %v152
  %v305 = vunpack.c.l.b16 %v153
  %v306 = vunpack.c.h.b16 %v153
  %v307 = vunpack.c.l.b16 %v154
  %v308 = vunpack.c.h.b16 %v154
  %v309 = vunpack.c.l.b16 %v155
  %v310 = vunpack.c.h.b16 %v155
  %v311 = vunpack.c.l.b16 %v156
  %v312 = vunpack.c.h.b16 %v156
  %v313 = vunpack.c.l.b16 %v157
  %v314 = vunpack.c.h.b16 %v157
  %v315 = vunpack.c.l.b16 %v158
  %v316 = vunpack.c.h.b16 %v158
  %v317 = vunpack.c.l.b16 %v159
  %v318 = vunpack.c.h.b16 %v159
  %v319 = vunpack.c.l.b16 %v160
  %v320 = vunpack.c.h.b16 %v160
  %v321 = vunpack.c.l.b16 %v161
  %v322 = vunpack.c.h.b16 %v161
  %v323 = vunpack.c.l.b16 %v162
  %v324 = vunpack.c.h.b16 %v162
  %v325 = vunpack.c.l.b16 %v163
  %v326 = vunpack.c.h.b16 %v163
  %v327 = vunpack.c.l.b16 %v164
  %v328 = vunpack.c.h.b16 %v164
  %v329 = vunpack.c.l.b16 %v165
  %v330 = vunpack.c.h.b16 %v165
  %v331 = vunpack.c.l.b16 %v166
  %v332 = vunpack.c.h.b16 %v166
  %v333 = vunpack.c.l.b16 %v167
  %v334 = vunpack.c.h.b16 %v167
  %v335 = vunpack.c.l.b16 %v168
  %v336 = vunpack.c.h.b16 %v168
  %v337 = vunpack.c.l.b16 %v169
  %v338 = vunpack.c.h.b16 %v169
  %v339 = vunpack.c.l.b16 %v170
  %v340 = vunpack.c.h.b16 %v170
  %v341 = vunpack.c.l.b16 %v171
  %v342 = vunpack.c.h.b16 %v171
  %v343 = vunpack.c.l.b16 %v172
  %v344 = vunpack.c.h.b16 %v172
  %v345 = vunpack.c.l.b16 %v173
  %v346 = vunpack.c.h.b16 %v173
  %v347 = vunpack.c.l.b16 %v174
  %v348 = vunpack.c.h.b16 %v174
  %v349 = vunpack.c.l.b16 %v175
  %v350 = vunpack.c.h.b16 %v175
  %v351 = vunpack.c.l.b16 %v176
  %v352 = vunpack.c.h.b16 %v176
  %v353 = vunpack.c.l.b16 %v177
  %v354 = vunpack.c.h.b16 %v177
  %v355 = vunpack.c.l.b16 %v178
  %v356 = vunpack.c.h.b16 %v178
  %v357 = vunpack.c.l.b16 %v179
  %v358 = vunpack.c.h.b16 %v179
  %v359 = vunpack.c.l.b16 %v180
  %v360 = vunpack.c.h.b16 %v180
  %v361 = vunpack.c.l.b16 %v181
  %v362 = vunpack.c.h.b16 %v181
  %v363 = vunpack.c.l.b16 %v182
  %v364 = vunpack.c.h.b16 %v182
  %v365 = vunpack.c.l.b16 %v183
  %v366 = vunpack.c.h.b16 %v183
  %v367 = vunpack.c.l.b16 %v184
  %v368 = vunpack.c.h.b16 %v184
  %v369 = vunpack.c.l.b16 %v185
  %v370 = vunpack.c.h.b16 %v185
  %v371 = vunpack.c.l.b16 %v186
  %v372 = vunpack.c.h.b16 %v186
  %v373 = vunpack.c.l.b16 %v187
  %v374 = vunpack.c.h.b16 %v187
  %v375 = vunpack.c.l.b16 %v188
  %v376 = vunpack.c.h.b16 %v188
  %v377 = vunpack.c.l.b16 %v189
  %v378 = vunpack.c.h.b16 %v189
  %v379 = vunpack.c.l.b16 %v190
  %v380 = vunpack.c.h.b16 %v190
  %v381 = vunpack.c.l.b16 %v191
  %v382 = vunpack.c.h.b16 %v191
  %v383 = vunpack.c.l.b16 %v192
  %v384 = vunpack.c.h.b16 %v192
  %v385 = vunpack.c.l.b16 %v193
  %v386 = vunpack.c.h.b16 %v193
  %v387 = vunpack.c.l.b16 %v194
  %v388 = vunpack.c.h.b16 %v194
  %v389 = vunpack.c.l.b16 %v195
  %v390 = vunpack.c.h.b16 %v195
  %v391 = vunpack.c.l.b16 %v196
  %v392 = vunpack.c.h.b16 %v196
  %v393 = vunpack.c.l.b16 %v197
  %v394 = vunpack.c.h.b16 %v197
  %v395 = vunpack.c.l.b16 %v198
  %v396 = vunpack.c.h.b16 %v198
  %v397 = vunpack.c.l.b16 %v199
  %v398 = vunpack.c.h.b16 %v199
  %v399 = vunpack.c.l.b16 %v200
  %v400 = vunpack.c.h.b16 %v200
  %v401 = vunpack.c.l.b16 %v201
  %v402 = vunpack.c.h.b16 %v201
  %v403 = vunpack.c.l.b16 %v202
  %v404 = vunpack.c.h.b16 %v202
  %v405 = vunpack.c.l.b16 %v203
  %v406 = vunpack.c.h.b16 %v203
  %v407 = vunpack.c.l.b16 %v204
  %v408 = vunpack.c.h.b16 %v204
  %v409 = vunpack.c.l.b16 %v205
  %v410 = vunpack.c.h.b16 %v205
  %v411 = vunpack.c.l.b16 %v206
  %v412 = vunpack.c.h.b16 %v206
  %v413 = vunpack.c.l.b16 %v207
  %v414 = vunpack.c.h.b16 %v207
  %v415 = vunpack.c.l.b16 %v208
  %v416 = vunpack.c.h.b16 %v208
  %v417 = vunpack.c.l.b16 %v209
  %v418 = vunpack.c.h.b16 %v209
  %v419 = vunpack.c.l.b16 %v210
  %v420 = vunpack.c.h.b16 %v210
  %v421 = vpack.c.b16 %v295, %v293
  %v422 = vpack.c.b16 %v296, %v294
  %v423 = vpack.c.b16 %v299, %v297
  %v424 = vpack.c.b16 %v300, %v298
  %v425 = vpack.c.b16 %v303, %v301
  %v426 = vpack.c.b16 %v304, %v302
  %v427 = vpack.c.b16 %v307, %v305
  %v428 = vpack.c.b16 %v308, %v306
  %v429 = vpack.c.b16 %v311, %v309
  %v430 = vpack.c.b16 %v312, %v310
  %v431 = vpack.c.b16 %v315, %v313
  %v432 = vpack.c.b16 %v316, %v314
  %v433 = vpack.c.b16 %v319, %v317
  %v434 = vpack.c.b16 %v320, %v318
  %v435 = vpack.c.b16 %v323, %v321
  %v436 = vpack.c.b16 %v324, %v322
  %v437 = vpack.c.b16 %v327, %v325
  %v438 = vpack.c.b16 %v328, %v326
  %v439 = vpack.c.b16 %v331, %v329
  %v440 = vpack.c.b16 %v332, %v330
  %v441 = vpack.c.b16 %v335, %v333
  %v442 = vpack.c.b16 %v336, %v334
  %v443 = vpack.c.b16 %v339, %v337
  %v444 = vpack.c.b16 %v340, %v338
  %v445 = vpack.c.b16 %v343, %v341
  %v446 = vpack.c.b16 %v344, %v342
  %v447 = vpack.c.b16 %v347, %v345
  %v448 = vpack.c.b16 %v348, %v346
  %v449 = vpack.c.b16 %v351, %v349
  %v450 = vpack.c.b16 %v352, %v350
  %v451 = vpack.c.b16 %v355, %v353
  %v452 = vpack.c.b16 %v356, %v354
  %v453 = vpack.c.b16 %v359, %v357
  %v454 = vpack.c.b16 %v360, %v358
  %v455 = vpack.c.b16 %v363, %v361
  %v456 = vpack.c.b16 %v364, %v362
  %v457 = vpack.c.b16 %v367, %v365
  %v458 = vpack.c.b16 %v368, %v366
  %v459 = vpack.c.b16 %v371, %v369
  %v460 = vpack.c.b16 %v372, %v370
  %v461 = vpack.c.b16 %v375, %v373
  %v462 = vpack.c.b16 %v376, %v374
  %v463 = vpack.c.b16 %v379, %v377
  %v464 = vpack.c.b16 %v380, %v378
  %v465 = vpack.c.b16 %v383, %v381
  %v466 = vpack.c.b16 %v384, %v382
  %v467 = vpack.c.b16 %v387, %v385
  %v468 = vpack.c.b16 %v388, %v386
  %v469 = vpack.c.b16 %v391, %v389
  %v470 = vpack.c.b16 %v392, %v390
  %v471 = vpack.c.b16 %v395, %v393
  %v472 = vpack.c.b16 %v396, %v394
  %v473 = vpack.c.b16 %v399, %v397
  %v474 = vpack.c.b16 %v400, %v398
  %v475 = vpack.c.b16 %v403, %v401
  %v476 = vpack.c.b16 %v404, %v402
  %v477 = vpack.c.b16 %v407, %v405
  %v478 = vpack.c.b16 %v408, %v406
  %v479 = vpack.c.b16 %v411, %v409
  %v480 = vpack.c.b16 %v412, %v410
  %v481 = vpack.c.b16 %v415, %v413
  %v482 = vpack.c.b16 %v416, %v414
  %v483 = vpack.c.b16 %v419, %v417
  %v484 = vpack.c.b16 %v420, %v418
  %v535 = vunpack.c.l.b16 %v211
  %v536 = vunpack.c.l.b16 %v212
  %v537 = vunpack.c.l.b16 %v213
  %v538 = vunpack.c.l.b16 %v214
  %v539 = vunpack.c.l.b16 %v215
  %v540 = vunpack.c.l.b16 %v216
  %v541 = vunpack.c.l.b16 %v217
  %v542 = vunpack.c.l.b16 %v218
  %v543 = vunpack.c.l.b16 %v219
  %v544 = vunpack.c.l.b16 %v220
  %v545 = vunpack.c.l.b16 %v221
  %v546 = vunpack.c.l.b16 %v222
  %v547 = vunpack.c.l.b16 %v223
  %v548 = vunpack.c.l.b16 %v224
  %v549 = vunpack.c.l.b16 %v225
  %v550 = vunpack.c.l.b16 %v226
  %v551 = vunpack.c.l.b16 %v227
  %v552 = vunpack.c.l.b16 %v228
  %v553 = vpack.c.b16 %v536, %v535
  %v554 = vpack.c.b16 %v538, %v537
  %v555 = vpack.c.b16 %v540, %v539
  %v556 = vpack.c.b16 %v542, %v541
  %v557 = vpack.c.b16 %v544, %v543
  %v558 = vpack.c.b16 %v546, %v545
  %v559 = vpack.c.b16 %v548, %v547
  %v560 = vpack.c.b16 %v550, %v549
  %v561 = vpack.c.b16 %v552, %v551
  %vm571 = vcmask 130048
  %v573 = vsel %vm571, %v422, 0
  %v576 = vsel %vm571, %v424, 0
  %v579 = vsel %vm571, %v426, 0
  %v582 = vsel %vm571, %v428, 0
  %v585 = vsel %vm571, %v430, 0
  %v588 = vsel %vm571, %v432, 0
  %v591 = vsel %vm571, %v434, 0
  %v594 = vsel %vm571, %v436, 0
  %v597 = vsel %vm571, %v438, 0
  %v600 = vsel %vm571, %v440, 0
  %v603 = vsel %vm571, %v442, 0
  %v606 = vsel %vm571, %v444, 0
  %v609 = vsel %vm571, %v446, 0
  %v612 = vsel %vm571, %v448, 0
  %v615 = vsel %vm571, %v450, 0
  %v618 = vsel %vm571, %v452, 0
  %v621 = vsel %vm571, %v454, 0
  %v624 = vsel %vm571, %v456, 0
  %v627 = vsel %vm571, %v458, 0
  %v630 = vsel %vm571, %v460, 0
  %v633 = vsel %vm571, %v462, 0
  %v636 = vsel %vm571, %v464, 0
  %v639 = vsel %vm571, %v466, 0
  %v642 = vsel %vm571, %v468, 0
  %v645 = vsel %vm571, %v470, 0
  %v648 = vsel %vm571, %v472, 0
  %v651 = vsel %vm571, %v474, 0
  %v654 = vsel %vm571, %v476, 0
  %v657 = vsel %vm571, %v478, 0
  %v660 = vsel %vm571, %v480, 0
  %v663 = vsel %vm571, %v482, 0
  %v666 = vsel %vm571, %v484, 0
  %668 = vmatprep.subr.bf16.mxu0 0
  %669 = vmatpush1.bf16.msra.mxu0 %v560
  %670 = vmatprep.subr.bf16.mxu0 0
  %671 = vmatpush1.bf16.msra.mxu0 %v559
  %672 = vmatprep.subr.bf16.mxu0 0
  %673 = vmatpush1.bf16.msra.mxu0 %v558
  %674 = vmatprep.subr.bf16.mxu0 0
  %675 = vmatpush1.bf16.msra.mxu0 %v557
  %676 = vmatprep.subr.bf16.mxu0 0
  %677 = vmatpush1.bf16.msra.mxu0 %v556
  %678 = vmatprep.subr.bf16.mxu0 0
  %679 = vmatpush1.bf16.msra.mxu0 %v555
  %680 = vmatprep.subr.bf16.mxu0 0
  %681 = vmatpush1.bf16.msra.mxu0 %v554
  %682 = vmatprep.subr.bf16.mxu0 0
  %683 = vmatpush1.bf16.msra.mxu0 %v553
  %684 = vmatprep.subr.bf16.mxu0 0
  %685 = vmatpush2.bf16.msra.mxu0 0
  %686 = vmatprep.subr.bf16.mxu0 0
  %687 = vmatpush2.bf16.msra.mxu0 0
  %688 = vmatprep.subr.bf16.mxu0 0
  %689 = vmatpush2.bf16.msra.mxu0 0
  %690 = vmatprep.subr.bf16.mxu0 0
  %691 = vmatpush2.bf16.msra.mxu0 0
  %692 = vmatprep.subr.bf16.mxu0 0
  %693 = vmatpush2.bf16.msra.mxu0 0
  %694 = vmatprep.subr.bf16.mxu0 0
  %695 = vmatpush2.bf16.msra.mxu0 0
  %696 = vmatprep.subr.bf16.mxu0 0
  %697 = vmatpush2.bf16.msra.mxu0 0
  %698 = vmatprep.subr.bf16.mxu0 0
  %699 = vmatpush2.bf16.msra.mxu0 %v561
  %700 = vmatprep.mubr.bf16.mxu0 %v573
  %701 = vmatmul.mubr.bf16.gmra.mxu0 %v421
  %v702 = vpop.f32.mrf.mxu0
  %v703 = vadd.f32 0.0, %v702
  %v704 = vpop.f32.mrf.mxu0
  %v705 = vpop.f32.mrf.mxu0
  %v706 = vadd.f32 0.0, %v705
  %v707 = vpop.f32.mrf.mxu0
  %708 = vmatprep.mubr.bf16.mxu0 %v576
  %709 = vmatmul.mubr.bf16.gmra.mxu0 %v423
  %v710 = vpop.f32.mrf.mxu0
  %v711 = vadd.f32 0.0, %v710
  %v712 = vpop.f32.mrf.mxu0
  %v713 = vpop.f32.mrf.mxu0
  %v714 = vadd.f32 0.0, %v713
  %v715 = vpop.f32.mrf.mxu0
  %716 = vmatprep.mubr.bf16.mxu0 %v579
  %717 = vmatmul.mubr.bf16.gmra.mxu0 %v425
  %v718 = vpop.f32.mrf.mxu0
  %v719 = vadd.f32 0.0, %v718
  %v720 = vpop.f32.mrf.mxu0
  %v721 = vpop.f32.mrf.mxu0
  %v722 = vadd.f32 0.0, %v721
  %v723 = vpop.f32.mrf.mxu0
  %724 = vmatprep.mubr.bf16.mxu0 %v582
  %725 = vmatmul.mubr.bf16.gmra.mxu0 %v427
  %v726 = vpop.f32.mrf.mxu0
  %v727 = vadd.f32 0.0, %v726
  %v728 = vpop.f32.mrf.mxu0
  %v729 = vpop.f32.mrf.mxu0
  %v730 = vadd.f32 0.0, %v729
  %v731 = vpop.f32.mrf.mxu0
  %732 = vmatprep.mubr.bf16.mxu0 %v585
  %733 = vmatmul.mubr.bf16.gmra.mxu0 %v429
  %v734 = vpop.f32.mrf.mxu0
  %v735 = vadd.f32 0.0, %v734
  %v736 = vpop.f32.mrf.mxu0
  %v737 = vpop.f32.mrf.mxu0
  %v738 = vadd.f32 0.0, %v737
  %v739 = vpop.f32.mrf.mxu0
  %740 = vmatprep.mubr.bf16.mxu0 %v588
  %741 = vmatmul.mubr.bf16.gmra.mxu0 %v431
  %v742 = vpop.f32.mrf.mxu0
  %v743 = vadd.f32 0.0, %v742
  %v744 = vpop.f32.mrf.mxu0
  %v745 = vpop.f32.mrf.mxu0
  %v746 = vadd.f32 0.0, %v745
  %v747 = vpop.f32.mrf.mxu0
  %748 = vmatprep.mubr.bf16.mxu0 %v591
  %749 = vmatmul.mubr.bf16.gmra.mxu0 %v433
  %v750 = vpop.f32.mrf.mxu0
  %v751 = vadd.f32 0.0, %v750
  %v752 = vpop.f32.mrf.mxu0
  %v753 = vpop.f32.mrf.mxu0
  %v754 = vadd.f32 0.0, %v753
  %v755 = vpop.f32.mrf.mxu0
  %756 = vmatprep.mubr.bf16.mxu0 %v594
  %757 = vmatmul.mubr.bf16.gmra.mxu0 %v435
  %v758 = vpop.f32.mrf.mxu0
  %v759 = vadd.f32 0.0, %v758
  %v760 = vpop.f32.mrf.mxu0
  %v761 = vpop.f32.mrf.mxu0
  %v762 = vadd.f32 0.0, %v761
  %v763 = vpop.f32.mrf.mxu0
  %764 = vmatprep.mubr.bf16.mxu0 %v597
  %765 = vmatmul.mubr.bf16.gmra.mxu0 %v437
  %v766 = vpop.f32.mrf.mxu0
  %v767 = vadd.f32 0.0, %v766
  %v768 = vpop.f32.mrf.mxu0
  %v769 = vpop.f32.mrf.mxu0
  %v770 = vadd.f32 0.0, %v769
  %v771 = vpop.f32.mrf.mxu0
  %772 = vmatprep.mubr.bf16.mxu0 %v600
  %773 = vmatmul.mubr.bf16.gmra.mxu0 %v439
  %v774 = vpop.f32.mrf.mxu0
  %v775 = vadd.f32 0.0, %v774
  %v776 = vpop.f32.mrf.mxu0
  %v777 = vpop.f32.mrf.mxu0
  %v778 = vadd.f32 0.0, %v777
  %v779 = vpop.f32.mrf.mxu0
  %780 = vmatprep.mubr.bf16.mxu0 %v603
  %781 = vmatmul.mubr.bf16.gmra.mxu0 %v441
  %v782 = vpop.f32.mrf.mxu0
  %v783 = vadd.f32 0.0, %v782
  %v784 = vpop.f32.mrf.mxu0
  %v785 = vpop.f32.mrf.mxu0
  %v786 = vadd.f32 0.0, %v785
  %v787 = vpop.f32.mrf.mxu0
  %788 = vmatprep.mubr.bf16.mxu0 %v606
  %789 = vmatmul.mubr.bf16.gmra.mxu0 %v443
  %v790 = vpop.f32.mrf.mxu0
  %v791 = vadd.f32 0.0, %v790
  %v792 = vpop.f32.mrf.mxu0
  %v793 = vpop.f32.mrf.mxu0
  %v794 = vadd.f32 0.0, %v793
  %v795 = vpop.f32.mrf.mxu0
  %796 = vmatprep.mubr.bf16.mxu0 %v609
  %797 = vmatmul.mubr.bf16.gmra.mxu0 %v445
  %v798 = vpop.f32.mrf.mxu0
  %v799 = vadd.f32 0.0, %v798
  %v800 = vpop.f32.mrf.mxu0
  %v801 = vpop.f32.mrf.mxu0
  %v802 = vadd.f32 0.0, %v801
  %v803 = vpop.f32.mrf.mxu0
  %804 = vmatprep.mubr.bf16.mxu0 %v612
  %805 = vmatmul.mubr.bf16.gmra.mxu0 %v447
  %v806 = vpop.f32.mrf.mxu0
  %v807 = vadd.f32 0.0, %v806
  %v808 = vpop.f32.mrf.mxu0
  %v809 = vpop.f32.mrf.mxu0
  %v810 = vadd.f32 0.0, %v809
  %v811 = vpop.f32.mrf.mxu0
  %812 = vmatprep.mubr.bf16.mxu0 %v615
  %813 = vmatmul.mubr.bf16.gmra.mxu0 %v449
  %v814 = vpop.f32.mrf.mxu0
  %v815 = vadd.f32 0.0, %v814
  %v816 = vpop.f32.mrf.mxu0
  %v817 = vpop.f32.mrf.mxu0
  %v818 = vadd.f32 0.0, %v817
  %v819 = vpop.f32.mrf.mxu0
  %820 = vmatprep.mubr.bf16.mxu0 %v618
  %821 = vmatmul.mubr.bf16.gmra.mxu0 %v451
  %v822 = vpop.f32.mrf.mxu0
  %v823 = vadd.f32 0.0, %v822
  %v824 = vpop.f32.mrf.mxu0
  %v825 = vpop.f32.mrf.mxu0
  %v826 = vadd.f32 0.0, %v825
  %v827 = vpop.f32.mrf.mxu0
  %828 = vmatprep.mubr.bf16.mxu0 %v621
  %829 = vmatmul.mubr.bf16.gmra.mxu0 %v453
  %v830 = vpop.f32.mrf.mxu0
  %v831 = vadd.f32 0.0, %v830
  %v832 = vpop.f32.mrf.mxu0
  %v833 = vpop.f32.mrf.mxu0
  %v834 = vadd.f32 0.0, %v833
  %v835 = vpop.f32.mrf.mxu0
  %836 = vmatprep.mubr.bf16.mxu0 %v624
  %837 = vmatmul.mubr.bf16.gmra.mxu0 %v455
  %v838 = vpop.f32.mrf.mxu0
  %v839 = vadd.f32 0.0, %v838
  %v840 = vpop.f32.mrf.mxu0
  %v841 = vpop.f32.mrf.mxu0
  %v842 = vadd.f32 0.0, %v841
  %v843 = vpop.f32.mrf.mxu0
  %844 = vmatprep.mubr.bf16.mxu0 %v627
  %845 = vmatmul.mubr.bf16.gmra.mxu0 %v457
  %v846 = vpop.f32.mrf.mxu0
  %v847 = vadd.f32 0.0, %v846
  %v848 = vpop.f32.mrf.mxu0
  %v849 = vpop.f32.mrf.mxu0
  %v850 = vadd.f32 0.0, %v849
  %v851 = vpop.f32.mrf.mxu0
  %852 = vmatprep.mubr.bf16.mxu0 %v630
  %853 = vmatmul.mubr.bf16.gmra.mxu0 %v459
  %v854 = vpop.f32.mrf.mxu0
  %v855 = vadd.f32 0.0, %v854
  %v856 = vpop.f32.mrf.mxu0
  %v857 = vpop.f32.mrf.mxu0
  %v858 = vadd.f32 0.0, %v857
  %v859 = vpop.f32.mrf.mxu0
  %860 = vmatprep.mubr.bf16.mxu0 %v633
  %861 = vmatmul.mubr.bf16.gmra.mxu0 %v461
  %v862 = vpop.f32.mrf.mxu0
  %v863 = vadd.f32 0.0, %v862
  %v864 = vpop.f32.mrf.mxu0
  %v865 = vpop.f32.mrf.mxu0
  %v866 = vadd.f32 0.0, %v865
  %v867 = vpop.f32.mrf.mxu0
  %868 = vmatprep.mubr.bf16.mxu0 %v636
  %869 = vmatmul.mubr.bf16.gmra.mxu0 %v463
  %v870 = vpop.f32.mrf.mxu0
  %v871 = vadd.f32 0.0, %v870
  %v872 = vpop.f32.mrf.mxu0
  %v873 = vpop.f32.mrf.mxu0
  %v874 = vadd.f32 0.0, %v873
  %v875 = vpop.f32.mrf.mxu0
  %876 = vmatprep.mubr.bf16.mxu0 %v639
  %877 = vmatmul.mubr.bf16.gmra.mxu0 %v465
  %v878 = vpop.f32.mrf.mxu0
  %v879 = vadd.f32 0.0, %v878
  %v880 = vpop.f32.mrf.mxu0
  %v881 = vpop.f32.mrf.mxu0
  %v882 = vadd.f32 0.0, %v881
  %v883 = vpop.f32.mrf.mxu0
  %884 = vmatprep.mubr.bf16.mxu0 %v642
  %885 = vmatmul.mubr.bf16.gmra.mxu0 %v467
  %v886 = vpop.f32.mrf.mxu0
  %v887 = vadd.f32 0.0, %v886
  %v888 = vpop.f32.mrf.mxu0
  %v889 = vpop.f32.mrf.mxu0
  %v890 = vadd.f32 0.0, %v889
  %v891 = vpop.f32.mrf.mxu0
  %892 = vmatprep.mubr.bf16.mxu0 %v645
  %893 = vmatmul.mubr.bf16.gmra.mxu0 %v469
  %v894 = vpop.f32.mrf.mxu0
  %v895 = vadd.f32 0.0, %v894
  %v896 = vpop.f32.mrf.mxu0
  %v897 = vpop.f32.mrf.mxu0
  %v898 = vadd.f32 0.0, %v897
  %v899 = vpop.f32.mrf.mxu0
  %900 = vmatprep.mubr.bf16.mxu0 %v648
  %901 = vmatmul.mubr.bf16.gmra.mxu0 %v471
  %v902 = vpop.f32.mrf.mxu0
  %v903 = vadd.f32 0.0, %v902
  %v904 = vpop.f32.mrf.mxu0
  %v905 = vpop.f32.mrf.mxu0
  %v906 = vadd.f32 0.0, %v905
  %v907 = vpop.f32.mrf.mxu0
  %908 = vmatprep.mubr.bf16.mxu0 %v651
  %909 = vmatmul.mubr.bf16.gmra.mxu0 %v473
  %v910 = vpop.f32.mrf.mxu0
  %v911 = vadd.f32 0.0, %v910
  %v912 = vpop.f32.mrf.mxu0
  %v913 = vpop.f32.mrf.mxu0
  %v914 = vadd.f32 0.0, %v913
  %v915 = vpop.f32.mrf.mxu0
  %916 = vmatprep.mubr.bf16.mxu0 %v654
  %917 = vmatmul.mubr.bf16.gmra.mxu0 %v475
  %v918 = vpop.f32.mrf.mxu0
  %v919 = vadd.f32 0.0, %v918
  %v920 = vpop.f32.mrf.mxu0
  %v921 = vpop.f32.mrf.mxu0
  %v922 = vadd.f32 0.0, %v921
  %v923 = vpop.f32.mrf.mxu0
  %924 = vmatprep.mubr.bf16.mxu0 %v657
  %925 = vmatmul.mubr.bf16.gmra.mxu0 %v477
  %v926 = vpop.f32.mrf.mxu0
  %v927 = vadd.f32 0.0, %v926
  %v928 = vpop.f32.mrf.mxu0
  %v929 = vpop.f32.mrf.mxu0
  %v930 = vadd.f32 0.0, %v929
  %v931 = vpop.f32.mrf.mxu0
  %932 = vmatprep.mubr.bf16.mxu0 %v660
  %933 = vmatmul.mubr.bf16.gmra.mxu0 %v479
  %v934 = vpop.f32.mrf.mxu0
  %v935 = vadd.f32 0.0, %v934
  %v936 = vpop.f32.mrf.mxu0
  %v937 = vpop.f32.mrf.mxu0
  %v938 = vadd.f32 0.0, %v937
  %v939 = vpop.f32.mrf.mxu0
  %940 = vmatprep.mubr.bf16.mxu0 %v663
  %941 = vmatmul.mubr.bf16.gmra.mxu0 %v481
  %v942 = vpop.f32.mrf.mxu0
  %v943 = vadd.f32 0.0, %v942
  %v944 = vpop.f32.mrf.mxu0
  %v945 = vpop.f32.mrf.mxu0
  %v946 = vadd.f32 0.0, %v945
  %v947 = vpop.f32.mrf.mxu0
  %948 = vmatprep.mubr.bf16.mxu0 %v666
  %949 = vmatmul.mubr.bf16.gmra.mxu0 %v483
  %v950 = vpop.f32.mrf.mxu0
  %v951 = vadd.f32 0.0, %v950
  %v952 = vpop.f32.mrf.mxu0
  %v953 = vpop.f32.mrf.mxu0
  %v954 = vadd.f32 0.0, %v953
  %v955 = vpop.f32.mrf.mxu0
  %956 = vdwg.mxu0
  %v957 = vadd.f32 %v83, %v703
  %v958 = vadd.f32 %v84, %v706
  %v959 = vadd.f32 %v85, %v711
  %v960 = vadd.f32 %v86, %v714
  %v961 = vadd.f32 %v87, %v719
  %v962 = vadd.f32 %v88, %v722
  %v963 = vadd.f32 %v89, %v727
  %v964 = vadd.f32 %v90, %v730
  %v965 = vadd.f32 %v91, %v735
  %v966 = vadd.f32 %v92, %v738
  %v967 = vadd.f32 %v93, %v743
  %v968 = vadd.f32 %v94, %v746
  %v969 = vadd.f32 %v95, %v751
  %v970 = vadd.f32 %v96, %v754
  %v971 = vadd.f32 %v97, %v759
  %v972 = vadd.f32 %v98, %v762
  %v973 = vadd.f32 %v99, %v767
  %v974 = vadd.f32 %v100, %v770
  %v975 = vadd.f32 %v101, %v775
  %v976 = vadd.f32 %v102, %v778
  %v977 = vadd.f32 %v103, %v783
  %v978 = vadd.f32 %v104, %v786
  %v979 = vadd.f32 %v105, %v791
  %v980 = vadd.f32 %v106, %v794
  %v981 = vadd.f32 %v107, %v799
  %v982 = vadd.f32 %v108, %v802
  %v983 = vadd.f32 %v109, %v807
  %v984 = vadd.f32 %v110, %v810
  %v985 = vadd.f32 %v111, %v815
  %v986 = vadd.f32 %v112, %v818
  %v987 = vadd.f32 %v113, %v823
  %v988 = vadd.f32 %v114, %v826
  %v989 = vadd.f32 %v115, %v831
  %v990 = vadd.f32 %v116, %v834
  %v991 = vadd.f32 %v117, %v839
  %v992 = vadd.f32 %v118, %v842
  %v993 = vadd.f32 %v119, %v847
  %v994 = vadd.f32 %v120, %v850
  %v995 = vadd.f32 %v121, %v855
  %v996 = vadd.f32 %v122, %v858
  %v997 = vadd.f32 %v123, %v863
  %v998 = vadd.f32 %v124, %v866
  %v999 = vadd.f32 %v125, %v871
  %v1000 = vadd.f32 %v126, %v874
  %v1001 = vadd.f32 %v127, %v879
  %v1002 = vadd.f32 %v128, %v882
  %v1003 = vadd.f32 %v129, %v887
  %v1004 = vadd.f32 %v130, %v890
  %v1005 = vadd.f32 %v131, %v895
  %v1006 = vadd.f32 %v132, %v898
  %v1007 = vadd.f32 %v133, %v903
  %v1008 = vadd.f32 %v134, %v906
  %v1009 = vadd.f32 %v135, %v911
  %v1010 = vadd.f32 %v136, %v914
  %v1011 = vadd.f32 %v137, %v919
  %v1012 = vadd.f32 %v138, %v922
  %v1013 = vadd.f32 %v139, %v927
  %v1014 = vadd.f32 %v140, %v930
  %v1015 = vadd.f32 %v141, %v935
  %v1016 = vadd.f32 %v142, %v938
  %v1017 = vadd.f32 %v143, %v943
  %v1018 = vadd.f32 %v144, %v946
  %v1019 = vadd.f32 %v145, %v951
  %v1020 = vadd.f32 %v146, %v954
  %1021 = vst [vmem:[#allocation2] sm:$0xff] %v957
  %1022 = vst [vmem:[#allocation2 + $0x8] sm:$0xff] %v958
  %1023 = vst [vmem:[#allocation2 + $0x10] sm:$0xff] %v959
  %1024 = vst [vmem:[#allocation2 + $0x18] sm:$0xff] %v960
  %1025 = vst [vmem:[#allocation2 + $0x20] sm:$0xff] %v961
  %1026 = vst [vmem:[#allocation2 + $0x28] sm:$0xff] %v962
  %1027 = vst [vmem:[#allocation2 + $0x30] sm:$0xff] %v963
  %1028 = vst [vmem:[#allocation2 + $0x38] sm:$0xff] %v964
  %1029 = vst [vmem:[#allocation2 + $0x40] sm:$0xff] %v965
  %1030 = vst [vmem:[#allocation2 + $0x48] sm:$0xff] %v966
  %1031 = vst [vmem:[#allocation2 + $0x50] sm:$0xff] %v967
  %1032 = vst [vmem:[#allocation2 + $0x58] sm:$0xff] %v968
  %1033 = vst [vmem:[#allocation2 + $0x60] sm:$0xff] %v969
  %1034 = vst [vmem:[#allocation2 + $0x68] sm:$0xff] %v970
  %1035 = vst [vmem:[#allocation2 + $0x70] sm:$0xff] %v971
  %1036 = vst [vmem:[#allocation2 + $0x78] sm:$0xff] %v972
  %1037 = vst [vmem:[#allocation2 + $0x80] sm:$0xff] %v973
  %1038 = vst [vmem:[#allocation2 + $0x88] sm:$0xff] %v974
  %1039 = vst [vmem:[#allocation2 + $0x90] sm:$0xff] %v975
  %1040 = vst [vmem:[#allocation2 + $0x98] sm:$0xff] %v976
  %1041 = vst [vmem:[#allocation2 + $0xa0] sm:$0xff] %v977
  %1042 = vst [vmem:[#allocation2 + $0xa8] sm:$0xff] %v978
  %1043 = vst [vmem:[#allocation2 + $0xb0] sm:$0xff] %v979
  %1044 = vst [vmem:[#allocation2 + $0xb8] sm:$0xff] %v980
  %1045 = vst [vmem:[#allocation2 + $0xc0] sm:$0xff] %v981
  %1046 = vst [vmem:[#allocation2 + $0xc8] sm:$0xff] %v982
  %1047 = vst [vmem:[#allocation2 + $0xd0] sm:$0xff] %v983
  %1048 = vst [vmem:[#allocation2 + $0xd8] sm:$0xff] %v984
  %1049 = vst [vmem:[#allocation2 + $0xe0] sm:$0xff] %v985
  %1050 = vst [vmem:[#allocation2 + $0xe8] sm:$0xff] %v986
  %1051 = vst [vmem:[#allocation2 + $0xf0] sm:$0xff] %v987
  %1052 = vst [vmem:[#allocation2 + $0xf8] sm:$0xff] %v988
  %1053 = vst [vmem:[#allocation2 + $0x100] sm:$0xff] %v989
  %1054 = vst [vmem:[#allocation2 + $0x108] sm:$0xff] %v990
  %1055 = vst [vmem:[#allocation2 + $0x110] sm:$0xff] %v991
  %1056 = vst [vmem:[#allocation2 + $0x118] sm:$0xff] %v992
  %1057 = vst [vmem:[#allocation2 + $0x120] sm:$0xff] %v993
  %1058 = vst [vmem:[#allocation2 + $0x128] sm:$0xff] %v994
  %1059 = vst [vmem:[#allocation2 + $0x130] sm:$0xff] %v995
  %1060 = vst [vmem:[#allocation2 + $0x138] sm:$0xff] %v996
  %1061 = vst [vmem:[#allocation2 + $0x140] sm:$0xff] %v997
  %1062 = vst [vmem:[#allocation2 + $0x148] sm:$0xff] %v998
  %1063 = vst [vmem:[#allocation2 + $0x150] sm:$0xff] %v999
  %1064 = vst [vmem:[#allocation2 + $0x158] sm:$0xff] %v1000
  %1065 = vst [vmem:[#allocation2 + $0x160] sm:$0xff] %v1001
  %1066 = vst [vmem:[#allocation2 + $0x168] sm:$0xff] %v1002
  %1067 = vst [vmem:[#allocation2 + $0x170] sm:$0xff] %v1003
  %1068 = vst [vmem:[#allocation2 + $0x178] sm:$0xff] %v1004
  %1069 = vst [vmem:[#allocation2 + $0x180] sm:$0xff] %v1005
  %1070 = vst [vmem:[#allocation2 + $0x188] sm:$0xff] %v1006
  %1071 = vst [vmem:[#allocation2 + $0x190] sm:$0xff] %v1007
  %1072 = vst [vmem:[#allocation2 + $0x198] sm:$0xff] %v1008
  %1073 = vst [vmem:[#allocation2 + $0x1a0] sm:$0xff] %v1009
  %1074 = vst [vmem:[#allocation2 + $0x1a8] sm:$0xff] %v1010
  %1075 = vst [vmem:[#allocation2 + $0x1b0] sm:$0xff] %v1011
  %1076 = vst [vmem:[#allocation2 + $0x1b8] sm:$0xff] %v1012
  %1077 = vst [vmem:[#allocation2 + $0x1c0] sm:$0xff] %v1013
  %1078 = vst [vmem:[#allocation2 + $0x1c8] sm:$0xff] %v1014
  %1079 = vst [vmem:[#allocation2 + $0x1d0] sm:$0xff] %v1015
  %1080 = vst [vmem:[#allocation2 + $0x1d8] sm:$0xff] %v1016
  %1081 = vst [vmem:[#allocation2 + $0x1e0] sm:$0xff] %v1017
  %1082 = vst [vmem:[#allocation2 + $0x1e8] sm:$0xff] %v1018
  %1083 = vst [vmem:[#allocation2 + $0x1f0] sm:$0xff] %v1019
  %1084 = vst [vmem:[#allocation2 + $0x1f8] sm:$0xff] %v1020
  // Predicated region
  $region18: #{dimpnet_forward.8} parent=0 // pred_check
    %p1085 = pneg %p15
  $region19: #{dimpnet_forward.8} parent=0 // pred_check_branch
    %1087 = sbr.rel (%p1085) target = $region21
  $region20: #{dimpnet_forward.8} parent=0 // pred_region
    %v1088 = vld [vmem:[#allocation2] sm:$0xff]
    %v1089 = vld [vmem:[#allocation2 + $0x8] sm:$0xff]
    %v1090 = vld [vmem:[#allocation2 + $0x10] sm:$0xff]
    %v1091 = vld [vmem:[#allocation2 + $0x18] sm:$0xff]
    %v1092 = vld [vmem:[#allocation2 + $0x20] sm:$0xff]
    %v1093 = vld [vmem:[#allocation2 + $0x28] sm:$0xff]
    %v1094 = vld [vmem:[#allocation2 + $0x30] sm:$0xff]
    %v1095 = vld [vmem:[#allocation2 + $0x38] sm:$0xff]
    %v1096 = vld [vmem:[#allocation2 + $0x40] sm:$0xff]
    %v1097 = vld [vmem:[#allocation2 + $0x48] sm:$0xff]
    %v1098 = vld [vmem:[#allocation2 + $0x50] sm:$0xff]
    %v1099 = vld [vmem:[#allocation2 + $0x58] sm:$0xff]
    %v1100 = vld [vmem:[#allocation2 + $0x60] sm:$0xff]
    %v1101 = vld [vmem:[#allocation2 + $0x68] sm:$0xff]
    %v1102 = vld [vmem:[#allocation2 + $0x70] sm:$0xff]
    %v1103 = vld [vmem:[#allocation2 + $0x78] sm:$0xff]
    %v1104 = vld [vmem:[#allocation2 + $0x80] sm:$0xff]
    %v1105 = vld [vmem:[#allocation2 + $0x88] sm:$0xff]
    %v1106 = vld [vmem:[#allocation2 + $0x90] sm:$0xff]
    %v1107 = vld [vmem:[#allocation2 + $0x98] sm:$0xff]
    %v1108 = vld [vmem:[#allocation2 + $0xa0] sm:$0xff]
    %v1109 = vld [vmem:[#allocation2 + $0xa8] sm:$0xff]
    %v1110 = vld [vmem:[#allocation2 + $0xb0] sm:$0xff]
    %v1111 = vld [vmem:[#allocation2 + $0xb8] sm:$0xff]
    %v1112 = vld [vmem:[#allocation2 + $0xc0] sm:$0xff]
    %v1113 = vld [vmem:[#allocation2 + $0xc8] sm:$0xff]
    %v1114 = vld [vmem:[#allocation2 + $0xd0] sm:$0xff]
    %v1115 = vld [vmem:[#allocation2 + $0xd8] sm:$0xff]
    %v1116 = vld [vmem:[#allocation2 + $0xe0] sm:$0xff]
    %v1117 = vld [vmem:[#allocation2 + $0xe8] sm:$0xff]
    %v1118 = vld [vmem:[#allocation2 + $0xf0] sm:$0xff]
    %v1119 = vld [vmem:[#allocation2 + $0xf8] sm:$0xff]
    %v1120 = vld [vmem:[#allocation2 + $0x100] sm:$0xff]
    %v1121 = vld [vmem:[#allocation2 + $0x108] sm:$0xff]
    %v1122 = vld [vmem:[#allocation2 + $0x110] sm:$0xff]
    %v1123 = vld [vmem:[#allocation2 + $0x118] sm:$0xff]
    %v1124 = vld [vmem:[#allocation2 + $0x120] sm:$0xff]
    %v1125 = vld [vmem:[#allocation2 + $0x128] sm:$0xff]
    %v1126 = vld [vmem:[#allocation2 + $0x130] sm:$0xff]
    %v1127 = vld [vmem:[#allocation2 + $0x138] sm:$0xff]
    %v1128 = vld [vmem:[#allocation2 + $0x140] sm:$0xff]
    %v1129 = vld [vmem:[#allocation2 + $0x148] sm:$0xff]
    %v1130 = vld [vmem:[#allocation2 + $0x150] sm:$0xff]
    %v1131 = vld [vmem:[#allocation2 + $0x158] sm:$0xff]
    %v1132 = vld [vmem:[#allocation2 + $0x160] sm:$0xff]
    %v1133 = vld [vmem:[#allocation2 + $0x168] sm:$0xff]
    %v1134 = vld [vmem:[#allocation2 + $0x170] sm:$0xff]
    %v1135 = vld [vmem:[#allocation2 + $0x178] sm:$0xff]
    %v1136 = vld [vmem:[#allocation2 + $0x180] sm:$0xff]
    %v1137 = vld [vmem:[#allocation2 + $0x188] sm:$0xff]
    %v1138 = vld [vmem:[#allocation2 + $0x190] sm:$0xff]
    %v1139 = vld [vmem:[#allocation2 + $0x198] sm:$0xff]
    %v1140 = vld [vmem:[#allocation2 + $0x1a0] sm:$0xff]
    %v1141 = vld [vmem:[#allocation2 + $0x1a8] sm:$0xff]
    %v1142 = vld [vmem:[#allocation2 + $0x1b0] sm:$0xff]
    %v1143 = vld [vmem:[#allocation2 + $0x1b8] sm:$0xff]
    %v1144 = vld [vmem:[#allocation2 + $0x1c0] sm:$0xff]
    %v1145 = vld [vmem:[#allocation2 + $0x1c8] sm:$0xff]
    %v1146 = vld [vmem:[#allocation2 + $0x1d0] sm:$0xff]
    %v1147 = vld [vmem:[#allocation2 + $0x1d8] sm:$0xff]
    %v1148 = vld [vmem:[#allocation2 + $0x1e0] sm:$0xff]
    %v1149 = vld [vmem:[#allocation2 + $0x1e8] sm:$0xff]
    %v1150 = vld [vmem:[#allocation2 + $0x1f0] sm:$0xff]
    %v1151 = vld [vmem:[#allocation2 + $0x1f8] sm:$0xff]
    %v1152 = vld [vmem:[%s2] sm:$0x1]
    %v1154 = vlaneseq
    %v1155 = vshrl.u32 %v1154, 7
    %v1156 = vsub.s32 0, %v1155
    %v1157 = vrot.slane %v1152, %v1156
    %v1159 = vadd.f32 %v1088, %v1157
    %v1160 = vadd.f32 %v1089, %v1157
    %v1161 = vadd.f32 %v1090, %v1157
    %v1162 = vadd.f32 %v1091, %v1157
    %v1163 = vadd.f32 %v1092, %v1157
    %v1164 = vadd.f32 %v1093, %v1157
    %v1165 = vadd.f32 %v1094, %v1157
    %v1166 = vadd.f32 %v1095, %v1157
    %v1167 = vadd.f32 %v1096, %v1157
    %v1168 = vadd.f32 %v1097, %v1157
    %v1169 = vadd.f32 %v1098, %v1157
    %v1170 = vadd.f32 %v1099, %v1157
    %v1171 = vadd.f32 %v1100, %v1157
    %v1172 = vadd.f32 %v1101, %v1157
    %v1173 = vadd.f32 %v1102, %v1157
    %v1174 = vadd.f32 %v1103, %v1157
    %v1175 = vadd.f32 %v1104, %v1157
    %v1176 = vadd.f32 %v1105, %v1157
    %v1177 = vadd.f32 %v1106, %v1157
    %v1178 = vadd.f32 %v1107, %v1157
    %v1179 = vadd.f32 %v1108, %v1157
    %v1180 = vadd.f32 %v1109, %v1157
    %v1181 = vadd.f32 %v1110, %v1157
    %v1182 = vadd.f32 %v1111, %v1157
    %v1183 = vadd.f32 %v1112, %v1157
    %v1184 = vadd.f32 %v1113, %v1157
    %v1185 = vadd.f32 %v1114, %v1157
    %v1186 = vadd.f32 %v1115, %v1157
    %v1187 = vadd.f32 %v1116, %v1157
    %v1188 = vadd.f32 %v1117, %v1157
    %v1189 = vadd.f32 %v1118, %v1157
    %v1190 = vadd.f32 %v1119, %v1157
    %v1191 = vadd.f32 %v1120, %v1157
    %v1192 = vadd.f32 %v1121, %v1157
    %v1193 = vadd.f32 %v1122, %v1157
    %v1194 = vadd.f32 %v1123, %v1157
    %v1195 = vadd.f32 %v1124, %v1157
    %v1196 = vadd.f32 %v1125, %v1157
    %v1197 = vadd.f32 %v1126, %v1157
    %v1198 = vadd.f32 %v1127, %v1157
    %v1199 = vadd.f32 %v1128, %v1157
    %v1200 = vadd.f32 %v1129, %v1157
    %v1201 = vadd.f32 %v1130, %v1157
    %v1202 = vadd.f32 %v1131, %v1157
    %v1203 = vadd.f32 %v1132, %v1157
    %v1204 = vadd.f32 %v1133, %v1157
    %v1205 = vadd.f32 %v1134, %v1157
    %v1206 = vadd.f32 %v1135, %v1157
    %v1207 = vadd.f32 %v1136, %v1157
    %v1208 = vadd.f32 %v1137, %v1157
    %v1209 = vadd.f32 %v1138, %v1157
    %v1210 = vadd.f32 %v1139, %v1157
    %v1211 = vadd.f32 %v1140, %v1157
    %v1212 = vadd.f32 %v1141, %v1157
    %v1213 = vadd.f32 %v1142, %v1157
    %v1214 = vadd.f32 %v1143, %v1157
    %v1215 = vadd.f32 %v1144, %v1157
    %v1216 = vadd.f32 %v1145, %v1157
    %v1217 = vadd.f32 %v1146, %v1157
    %v1218 = vadd.f32 %v1147, %v1157
    %v1219 = vadd.f32 %v1148, %v1157
    %v1220 = vadd.f32 %v1149, %v1157
    %v1221 = vadd.f32 %v1150, %v1157
    %v1222 = vadd.f32 %v1151, %v1157
    %v1223 = vmax.f32 %v1159, 0.0
    %v1224 = vmax.f32 %v1160, 0.0
    %v1225 = vmax.f32 %v1161, 0.0
    %v1226 = vmax.f32 %v1162, 0.0
    %v1227 = vmax.f32 %v1163, 0.0
    %v1228 = vmax.f32 %v1164, 0.0
    %v1229 = vmax.f32 %v1165, 0.0
    %v1230 = vmax.f32 %v1166, 0.0
    %v1231 = vmax.f32 %v1167, 0.0
    %v1232 = vmax.f32 %v1168, 0.0
    %v1233 = vmax.f32 %v1169, 0.0
    %v1234 = vmax.f32 %v1170, 0.0
    %v1235 = vmax.f32 %v1171, 0.0
    %v1236 = vmax.f32 %v1172, 0.0
    %v1237 = vmax.f32 %v1173, 0.0
    %v1238 = vmax.f32 %v1174, 0.0
    %v1239 = vmax.f32 %v1175, 0.0
    %v1240 = vmax.f32 %v1176, 0.0
    %v1241 = vmax.f32 %v1177, 0.0
    %v1242 = vmax.f32 %v1178, 0.0
    %v1243 = vmax.f32 %v1179, 0.0
    %v1244 = vmax.f32 %v1180, 0.0
    %v1245 = vmax.f32 %v1181, 0.0
    %v1246 = vmax.f32 %v1182, 0.0
    %v1247 = vmax.f32 %v1183, 0.0
    %v1248 = vmax.f32 %v1184, 0.0
    %v1249 = vmax.f32 %v1185, 0.0
    %v1250 = vmax.f32 %v1186, 0.0
    %v1251 = vmax.f32 %v1187, 0.0
    %v1252 = vmax.f32 %v1188, 0.0
    %v1253 = vmax.f32 %v1189, 0.0
    %v1254 = vmax.f32 %v1190, 0.0
    %v1255 = vmax.f32 %v1191, 0.0
    %v1256 = vmax.f32 %v1192, 0.0
    %v1257 = vmax.f32 %v1193, 0.0
    %v1258 = vmax.f32 %v1194, 0.0
    %v1259 = vmax.f32 %v1195, 0.0
    %v1260 = vmax.f32 %v1196, 0.0
    %v1261 = vmax.f32 %v1197, 0.0
    %v1262 = vmax.f32 %v1198, 0.0
    %v1263 = vmax.f32 %v1199, 0.0
    %v1264 = vmax.f32 %v1200, 0.0
    %v1265 = vmax.f32 %v1201, 0.0
    %v1266 = vmax.f32 %v1202, 0.0
    %v1267 = vmax.f32 %v1203, 0.0
    %v1268 = vmax.f32 %v1204, 0.0
    %v1269 = vmax.f32 %v1205, 0.0
    %v1270 = vmax.f32 %v1206, 0.0
    %v1271 = vmax.f32 %v1207, 0.0
    %v1272 = vmax.f32 %v1208, 0.0
    %v1273 = vmax.f32 %v1209, 0.0
    %v1274 = vmax.f32 %v1210, 0.0
    %v1275 = vmax.f32 %v1211, 0.0
    %v1276 = vmax.f32 %v1212, 0.0
    %v1277 = vmax.f32 %v1213, 0.0
    %v1278 = vmax.f32 %v1214, 0.0
    %v1279 = vmax.f32 %v1215, 0.0
    %v1280 = vmax.f32 %v1216, 0.0
    %v1281 = vmax.f32 %v1217, 0.0
    %v1282 = vmax.f32 %v1218, 0.0
    %v1283 = vmax.f32 %v1219, 0.0
    %v1284 = vmax.f32 %v1220, 0.0
    %v1285 = vmax.f32 %v1221, 0.0
    %v1286 = vmax.f32 %v1222, 0.0
    %v1287 = vpack.c.bf16 %v1224, %v1223
    %v1288 = vpack.c.bf16 %v1226, %v1225
    %v1289 = vpack.c.bf16 %v1228, %v1227
    %v1290 = vpack.c.bf16 %v1230, %v1229
    %v1291 = vpack.c.bf16 %v1232, %v1231
    %v1292 = vpack.c.bf16 %v1234, %v1233
    %v1293 = vpack.c.bf16 %v1236, %v1235
    %v1294 = vpack.c.bf16 %v1238, %v1237
    %v1295 = vpack.c.bf16 %v1240, %v1239
    %v1296 = vpack.c.bf16 %v1242, %v1241
    %v1297 = vpack.c.bf16 %v1244, %v1243
    %v1298 = vpack.c.bf16 %v1246, %v1245
    %v1299 = vpack.c.bf16 %v1248, %v1247
    %v1300 = vpack.c.bf16 %v1250, %v1249
    %v1301 = vpack.c.bf16 %v1252, %v1251
    %v1302 = vpack.c.bf16 %v1254, %v1253
    %v1303 = vpack.c.bf16 %v1256, %v1255
    %v1304 = vpack.c.bf16 %v1258, %v1257
    %v1305 = vpack.c.bf16 %v1260, %v1259
    %v1306 = vpack.c.bf16 %v1262, %v1261
    %v1307 = vpack.c.bf16 %v1264, %v1263
    %v1308 = vpack.c.bf16 %v1266, %v1265
    %v1309 = vpack.c.bf16 %v1268, %v1267
    %v1310 = vpack.c.bf16 %v1270, %v1269
    %v1311 = vpack.c.bf16 %v1272, %v1271
    %v1312 = vpack.c.bf16 %v1274, %v1273
    %v1313 = vpack.c.bf16 %v1276, %v1275
    %v1314 = vpack.c.bf16 %v1278, %v1277
    %v1315 = vpack.c.bf16 %v1280, %v1279
    %v1316 = vpack.c.bf16 %v1282, %v1281
    %v1317 = vpack.c.bf16 %v1284, %v1283
    %v1318 = vpack.c.bf16 %v1286, %v1285
    %v1351 = vunpack.c.l.b16 %v1287
    %v1352 = vunpack.c.h.b16 %v1287
    %v1353 = vunpack.c.l.b16 %v1288
    %v1354 = vunpack.c.h.b16 %v1288
    %v1355 = vunpack.c.l.b16 %v1289
    %v1356 = vunpack.c.h.b16 %v1289
    %v1357 = vunpack.c.l.b16 %v1290
    %v1358 = vunpack.c.h.b16 %v1290
    %v1359 = vunpack.c.l.b16 %v1291
    %v1360 = vunpack.c.h.b16 %v1291
    %v1361 = vunpack.c.l.b16 %v1292
    %v1362 = vunpack.c.h.b16 %v1292
    %v1363 = vunpack.c.l.b16 %v1293
    %v1364 = vunpack.c.h.b16 %v1293
    %v1365 = vunpack.c.l.b16 %v1294
    %v1366 = vunpack.c.h.b16 %v1294
    %v1367 = vunpack.c.l.b16 %v1295
    %v1368 = vunpack.c.h.b16 %v1295
    %v1369 = vunpack.c.l.b16 %v1296
    %v1370 = vunpack.c.h.b16 %v1296
    %v1371 = vunpack.c.l.b16 %v1297
    %v1372 = vunpack.c.h.b16 %v1297
    %v1373 = vunpack.c.l.b16 %v1298
    %v1374 = vunpack.c.h.b16 %v1298
    %v1375 = vunpack.c.l.b16 %v1299
    %v1376 = vunpack.c.h.b16 %v1299
    %v1377 = vunpack.c.l.b16 %v1300
    %v1378 = vunpack.c.h.b16 %v1300
    %v1379 = vunpack.c.l.b16 %v1301
    %v1380 = vunpack.c.h.b16 %v1301
    %v1381 = vunpack.c.l.b16 %v1302
    %v1382 = vunpack.c.h.b16 %v1302
    %v1383 = vunpack.c.l.b16 %v1303
    %v1384 = vunpack.c.h.b16 %v1303
    %v1385 = vunpack.c.l.b16 %v1304
    %v1386 = vunpack.c.h.b16 %v1304
    %v1387 = vunpack.c.l.b16 %v1305
    %v1388 = vunpack.c.h.b16 %v1305
    %v1389 = vunpack.c.l.b16 %v1306
    %v1390 = vunpack.c.h.b16 %v1306
    %v1391 = vunpack.c.l.b16 %v1307
    %v1392 = vunpack.c.h.b16 %v1307
    %v1393 = vunpack.c.l.b16 %v1308
    %v1394 = vunpack.c.h.b16 %v1308
    %v1395 = vunpack.c.l.b16 %v1309
    %v1396 = vunpack.c.h.b16 %v1309
    %v1397 = vunpack.c.l.b16 %v1310
    %v1398 = vunpack.c.h.b16 %v1310
    %v1399 = vunpack.c.l.b16 %v1311
    %v1400 = vunpack.c.h.b16 %v1311
    %v1401 = vunpack.c.l.b16 %v1312
    %v1402 = vunpack.c.h.b16 %v1312
    %v1403 = vunpack.c.l.b16 %v1313
    %v1404 = vunpack.c.h.b16 %v1313
    %v1405 = vunpack.c.l.b16 %v1314
    %v1406 = vunpack.c.h.b16 %v1314
    %v1407 = vunpack.c.l.b16 %v1315
    %v1408 = vunpack.c.h.b16 %v1315
    %v1409 = vunpack.c.l.b16 %v1316
    %v1410 = vunpack.c.h.b16 %v1316
    %v1411 = vunpack.c.l.b16 %v1317
    %v1412 = vunpack.c.h.b16 %v1317
    %v1413 = vunpack.c.l.b16 %v1318
    %v1414 = vunpack.c.h.b16 %v1318
    %v1415 = vpack.c.b16 %v1351, %v1351
    %v1416 = vpack.c.b16 %v1352, %v1352
    %v1417 = vpack.c.b16 %v1353, %v1353
    %v1418 = vpack.c.b16 %v1354, %v1354
    %v1419 = vpack.c.b16 %v1355, %v1355
    %v1420 = vpack.c.b16 %v1356, %v1356
    %v1421 = vpack.c.b16 %v1357, %v1357
    %v1422 = vpack.c.b16 %v1358, %v1358
    %v1423 = vpack.c.b16 %v1359, %v1359
    %v1424 = vpack.c.b16 %v1360, %v1360
    %v1425 = vpack.c.b16 %v1361, %v1361
    %v1426 = vpack.c.b16 %v1362, %v1362
    %v1427 = vpack.c.b16 %v1363, %v1363
    %v1428 = vpack.c.b16 %v1364, %v1364
    %v1429 = vpack.c.b16 %v1365, %v1365
    %v1430 = vpack.c.b16 %v1366, %v1366
    %v1431 = vpack.c.b16 %v1367, %v1367
    %v1432 = vpack.c.b16 %v1368, %v1368
    %v1433 = vpack.c.b16 %v1369, %v1369
    %v1434 = vpack.c.b16 %v1370, %v1370
    %v1435 = vpack.c.b16 %v1371, %v1371
    %v1436 = vpack.c.b16 %v1372, %v1372
    %v1437 = vpack.c.b16 %v1373, %v1373
    %v1438 = vpack.c.b16 %v1374, %v1374
    %v1439 = vpack.c.b16 %v1375, %v1375
    %v1440 = vpack.c.b16 %v1376, %v1376
    %v1441 = vpack.c.b16 %v1377, %v1377
    %v1442 = vpack.c.b16 %v1378, %v1378
    %v1443 = vpack.c.b16 %v1379, %v1379
    %v1444 = vpack.c.b16 %v1380, %v1380
    %v1445 = vpack.c.b16 %v1381, %v1381
    %v1446 = vpack.c.b16 %v1382, %v1382
    %v1447 = vpack.c.b16 %v1383, %v1383
    %v1448 = vpack.c.b16 %v1384, %v1384
    %v1449 = vpack.c.b16 %v1385, %v1385
    %v1450 = vpack.c.b16 %v1386, %v1386
    %v1451 = vpack.c.b16 %v1387, %v1387
    %v1452 = vpack.c.b16 %v1388, %v1388
    %v1453 = vpack.c.b16 %v1389, %v1389
    %v1454 = vpack.c.b16 %v1390, %v1390
    %v1455 = vpack.c.b16 %v1391, %v1391
    %v1456 = vpack.c.b16 %v1392, %v1392
    %v1457 = vpack.c.b16 %v1393, %v1393
    %v1458 = vpack.c.b16 %v1394, %v1394
    %v1459 = vpack.c.b16 %v1395, %v1395
    %v1460 = vpack.c.b16 %v1396, %v1396
    %v1461 = vpack.c.b16 %v1397, %v1397
    %v1462 = vpack.c.b16 %v1398, %v1398
    %v1463 = vpack.c.b16 %v1399, %v1399
    %v1464 = vpack.c.b16 %v1400, %v1400
    %v1465 = vpack.c.b16 %v1401, %v1401
    %v1466 = vpack.c.b16 %v1402, %v1402
    %v1467 = vpack.c.b16 %v1403, %v1403
    %v1468 = vpack.c.b16 %v1404, %v1404
    %v1469 = vpack.c.b16 %v1405, %v1405
    %v1470 = vpack.c.b16 %v1406, %v1406
    %v1471 = vpack.c.b16 %v1407, %v1407
    %v1472 = vpack.c.b16 %v1408, %v1408
    %v1473 = vpack.c.b16 %v1409, %v1409
    %v1474 = vpack.c.b16 %v1410, %v1410
    %v1475 = vpack.c.b16 %v1411, %v1411
    %v1476 = vpack.c.b16 %v1412, %v1412
    %v1477 = vpack.c.b16 %v1413, %v1413
    %v1478 = vpack.c.b16 %v1414, %v1414
    %1543 = vst [vmem:[%s3] sm:$0xf] %v1415
    %1544 = vst [vmem:[%s3 + $0x4] sm:$0xf] %v1416
    %1545 = vst [vmem:[%s3 + $0x8] sm:$0xf] %v1417
    %1546 = vst [vmem:[%s3 + $0xc] sm:$0xf] %v1418
    %1547 = vst [vmem:[%s3 + $0x10] sm:$0xf] %v1419
    %1548 = vst [vmem:[%s3 + $0x14] sm:$0xf] %v1420
    %1549 = vst [vmem:[%s3 + $0x18] sm:$0xf] %v1421
    %1550 = vst [vmem:[%s3 + $0x1c] sm:$0xf] %v1422
    %1551 = vst [vmem:[%s3 + $0x20] sm:$0xf] %v1423
    %1552 = vst [vmem:[%s3 + $0x24] sm:$0xf] %v1424
    %1553 = vst [vmem:[%s3 + $0x28] sm:$0xf] %v1425
    %1554 = vst [vmem:[%s3 + $0x2c] sm:$0xf] %v1426
    %1555 = vst [vmem:[%s3 + $0x30] sm:$0xf] %v1427
    %1556 = vst [vmem:[%s3 + $0x34] sm:$0xf] %v1428
    %1557 = vst [vmem:[%s3 + $0x38] sm:$0xf] %v1429
    %1558 = vst [vmem:[%s3 + $0x3c] sm:$0xf] %v1430
    %1559 = vst [vmem:[%s3 + $0x40] sm:$0xf] %v1431
    %1560 = vst [vmem:[%s3 + $0x44] sm:$0xf] %v1432
    %1561 = vst [vmem:[%s3 + $0x48] sm:$0xf] %v1433
    %1562 = vst [vmem:[%s3 + $0x4c] sm:$0xf] %v1434
    %1563 = vst [vmem:[%s3 + $0x50] sm:$0xf] %v1435
    %1564 = vst [vmem:[%s3 + $0x54] sm:$0xf] %v1436
    %1565 = vst [vmem:[%s3 + $0x58] sm:$0xf] %v1437
    %1566 = vst [vmem:[%s3 + $0x5c] sm:$0xf] %v1438
    %1567 = vst [vmem:[%s3 + $0x60] sm:$0xf] %v1439
    %1568 = vst [vmem:[%s3 + $0x64] sm:$0xf] %v1440
    %1569 = vst [vmem:[%s3 + $0x68] sm:$0xf] %v1441
    %1570 = vst [vmem:[%s3 + $0x6c] sm:$0xf] %v1442
    %1571 = vst [vmem:[%s3 + $0x70] sm:$0xf] %v1443
    %1572 = vst [vmem:[%s3 + $0x74] sm:$0xf] %v1444
    %1573 = vst [vmem:[%s3 + $0x78] sm:$0xf] %v1445
    %1574 = vst [vmem:[%s3 + $0x7c] sm:$0xf] %v1446
    %1575 = vst [vmem:[%s3 + $0x80] sm:$0xf] %v1447
    %1576 = vst [vmem:[%s3 + $0x84] sm:$0xf] %v1448
    %1577 = vst [vmem:[%s3 + $0x88] sm:$0xf] %v1449
    %1578 = vst [vmem:[%s3 + $0x8c] sm:$0xf] %v1450
    %1579 = vst [vmem:[%s3 + $0x90] sm:$0xf] %v1451
    %1580 = vst [vmem:[%s3 + $0x94] sm:$0xf] %v1452
    %1581 = vst [vmem:[%s3 + $0x98] sm:$0xf] %v1453
    %1582 = vst [vmem:[%s3 + $0x9c] sm:$0xf] %v1454
    %1583 = vst [vmem:[%s3 + $0xa0] sm:$0xf] %v1455
    %1584 = vst [vmem:[%s3 + $0xa4] sm:$0xf] %v1456
    %1585 = vst [vmem:[%s3 + $0xa8] sm:$0xf] %v1457
    %1586 = vst [vmem:[%s3 + $0xac] sm:$0xf] %v1458
    %1587 = vst [vmem:[%s3 + $0xb0] sm:$0xf] %v1459
    %1588 = vst [vmem:[%s3 + $0xb4] sm:$0xf] %v1460
    %1589 = vst [vmem:[%s3 + $0xb8] sm:$0xf] %v1461
    %1590 = vst [vmem:[%s3 + $0xbc] sm:$0xf] %v1462
    %1591 = vst [vmem:[%s3 + $0xc0] sm:$0xf] %v1463
    %1592 = vst [vmem:[%s3 + $0xc4] sm:$0xf] %v1464
    %1593 = vst [vmem:[%s3 + $0xc8] sm:$0xf] %v1465
    %1594 = vst [vmem:[%s3 + $0xcc] sm:$0xf] %v1466
    %1595 = vst [vmem:[%s3 + $0xd0] sm:$0xf] %v1467
    %1596 = vst [vmem:[%s3 + $0xd4] sm:$0xf] %v1468
    %1597 = vst [vmem:[%s3 + $0xd8] sm:$0xf] %v1469
    %1598 = vst [vmem:[%s3 + $0xdc] sm:$0xf] %v1470
    %1599 = vst [vmem:[%s3 + $0xe0] sm:$0xf] %v1471
    %1600 = vst [vmem:[%s3 + $0xe4] sm:$0xf] %v1472
    %1601 = vst [vmem:[%s3 + $0xe8] sm:$0xf] %v1473
    %1602 = vst [vmem:[%s3 + $0xec] sm:$0xf] %v1474
    %1603 = vst [vmem:[%s3 + $0xf0] sm:$0xf] %v1475
    %1604 = vst [vmem:[%s3 + $0xf4] sm:$0xf] %v1476
    %1605 = vst [vmem:[%s3 + $0xf8] sm:$0xf] %v1477
    %1606 = vst [vmem:[%s3 + $0xfc] sm:$0xf] %v1478
  $region21: #{dimpnet_forward.8} parent=0 // pred_fallthru
    _
  // Predicated region
  $region22: #{dimpnet_forward.8} parent=0 // pred_check
    _
  $region23: #{dimpnet_forward.8} parent=0 // pred_check_branch
    %1608 = sbr.rel (0) target = $region25
  $region24: #{dimpnet_forward.8} parent=0 // pred_region
    _
  $region25: #{dimpnet_forward.8} parent=0 // pred_fallthru
    _
  // Predicated region
  $region26: #{dimpnet_forward.8} parent=0 // pred_check
    _
  $region27: #{dimpnet_forward.8} parent=0 // pred_check_branch
    %1610 = sbr.rel (0) target = $region29
  $region28: #{dimpnet_forward.8} parent=0 // pred_region
    _
  $region29: #{dimpnet_forward.8} parent=0 // pred_fallthru
    _

// kernel: dimpnet_forward.9
$region0: #{dimpnet_forward.9}
  #allocation0 [shape = 'u32[]', space=smem, size = 0x4, offset = 0x4, fixed_abs, tag = 'smem constant byte address 0x4 - core index']
  #allocation1 [shape = 'u32[144,128]{1,0:T(1,128)}', space=vmem, size = 0x12000, scoped, tag = 'internal scratch']
  %s0 = inlined_call_operand.vmem [shape: bf16[8,256,8], index: 0, kind: input, shape index: {}]
  %s1 = inlined_call_operand.vmem [shape: bf16[8,64,16], index: 1, kind: input, shape index: {}]
  %s2 = inlined_call_operand.vmem [shape: bf16[4,64,16], index: 2, kind: input, shape index: {}]
  %s3 = inlined_call_operand.vmem [shape: f32[8,8], index: 3, kind: output, shape index: {0}]
  %s4 = inlined_call_operand.vmem [shape: f32[8,16], index: 4, kind: output, shape index: {1}]
  %s5 = inlined_call_operand.vmem [shape: f32[4,16], index: 5, kind: output, shape index: {2}]
  %6 = xla_tuple %s3, %s4, %s5
  %s7 = sld [smem:[#allocation0]]
  $region38: #{dimpnet_forward.9} parent=0
    _
  %s9 = ssub.s32 1, %s7
  %s10 = scalar_select 0, %s9, %s7
  // Predicated region
  $region2: #{dimpnet_forward.9} parent=0 // pred_check
    _
  $region3: #{dimpnet_forward.9} parent=0 // pred_check_branch
    %12 = sbr.rel (0) target = $region5
  $region4: #{dimpnet_forward.9} parent=0 // pred_region
    _
  $region5: #{dimpnet_forward.9} parent=0 // pred_fallthru
    _
  // Predicated region
  $region6: #{dimpnet_forward.9} parent=0 // pred_check
    _
  $region7: #{dimpnet_forward.9} parent=0 // pred_check_branch
    %14 = sbr.rel (0) target = $region9
  $region8: #{dimpnet_forward.9} parent=0 // pred_region
    _
  $region9: #{dimpnet_forward.9} parent=0 // pred_fallthru
    _
  // Predicated region
  $region10: #{dimpnet_forward.9} parent=0 // pred_check
    _
  $region11: #{dimpnet_forward.9} parent=0 // pred_check_branch
    %16 = sbr.rel (0) target = $region13
  $region12: #{dimpnet_forward.9} parent=0 // pred_region
    _
  $region13: #{dimpnet_forward.9} parent=0 // pred_fallthru
    _
  %v17 = vld [vmem:[%s0] sm:$0xf]
  %v18 = vld [vmem:[%s0 + $0x4] sm:$0xf]
  %v19 = vld [vmem:[%s0 + $0x8] sm:$0xf]
  %v20 = vld [vmem:[%s0 + $0xc] sm:$0xf]
  %v21 = vld [vmem:[%s0 + $0x10] sm:$0xf]
  %v22 = vld [vmem:[%s0 + $0x14] sm:$0xf]
  %v23 = vld [vmem:[%s0 + $0x18] sm:$0xf]
  %v24 = vld [vmem:[%s0 + $0x1c] sm:$0xf]
  %v25 = vld [vmem:[%s0 + $0x20] sm:$0xf]
  %v26 = vld [vmem:[%s0 + $0x24] sm:$0xf]
  %v27 = vld [vmem:[%s0 + $0x28] sm:$0xf]
  %v28 = vld [vmem:[%s0 + $0x2c] sm:$0xf]
  %v29 = vld [vmem:[%s0 + $0x30] sm:$0xf]
  %v30 = vld [vmem:[%s0 + $0x34] sm:$0xf]
  %v31 = vld [vmem:[%s0 + $0x38] sm:$0xf]
  %v32 = vld [vmem:[%s0 + $0x3c] sm:$0xf]
  %v33 = vld [vmem:[%s0 + $0x40] sm:$0xf]
  %v34 = vld [vmem:[%s0 + $0x44] sm:$0xf]
  %v35 = vld [vmem:[%s0 + $0x48] sm:$0xf]
  %v36 = vld [vmem:[%s0 + $0x4c] sm:$0xf]
  %v37 = vld [vmem:[%s0 + $0x50] sm:$0xf]
  %v38 = vld [vmem:[%s0 + $0x54] sm:$0xf]
  %v39 = vld [vmem:[%s0 + $0x58] sm:$0xf]
  %v40 = vld [vmem:[%s0 + $0x5c] sm:$0xf]
  %v41 = vld [vmem:[%s0 + $0x60] sm:$0xf]
  %v42 = vld [vmem:[%s0 + $0x64] sm:$0xf]
  %v43 = vld [vmem:[%s0 + $0x68] sm:$0xf]
  %v44 = vld [vmem:[%s0 + $0x6c] sm:$0xf]
  %v45 = vld [vmem:[%s0 + $0x70] sm:$0xf]
  %v46 = vld [vmem:[%s0 + $0x74] sm:$0xf]
  %v47 = vld [vmem:[%s0 + $0x78] sm:$0xf]
  %v48 = vld [vmem:[%s0 + $0x7c] sm:$0xf]
  %v49 = vld [vmem:[%s0 + $0x80] sm:$0xf]
  %v50 = vld [vmem:[%s0 + $0x84] sm:$0xf]
  %v51 = vld [vmem:[%s0 + $0x88] sm:$0xf]
  %v52 = vld [vmem:[%s0 + $0x8c] sm:$0xf]
  %v53 = vld [vmem:[%s0 + $0x90] sm:$0xf]
  %v54 = vld [vmem:[%s0 + $0x94] sm:$0xf]
  %v55 = vld [vmem:[%s0 + $0x98] sm:$0xf]
  %v56 = vld [vmem:[%s0 + $0x9c] sm:$0xf]
  %v57 = vld [vmem:[%s0 + $0xa0] sm:$0xf]
  %v58 = vld [vmem:[%s0 + $0xa4] sm:$0xf]
  %v59 = vld [vmem:[%s0 + $0xa8] sm:$0xf]
  %v60 = vld [vmem:[%s0 + $0xac] sm:$0xf]
  %v61 = vld [vmem:[%s0 + $0xb0] sm:$0xf]
  %v62 = vld [vmem:[%s0 + $0xb4] sm:$0xf]
  %v63 = vld [vmem:[%s0 + $0xb8] sm:$0xf]
  %v64 = vld [vmem:[%s0 + $0xbc] sm:$0xf]
  %v65 = vld [vmem:[%s0 + $0xc0] sm:$0xf]
  %v66 = vld [vmem:[%s0 + $0xc4] sm:$0xf]
  %v67 = vld [vmem:[%s0 + $0xc8] sm:$0xf]
  %v68 = vld [vmem:[%s0 + $0xcc] sm:$0xf]
  %v69 = vld [vmem:[%s0 + $0xd0] sm:$0xf]
  %v70 = vld [vmem:[%s0 + $0xd4] sm:$0xf]
  %v71 = vld [vmem:[%s0 + $0xd8] sm:$0xf]
  %v72 = vld [vmem:[%s0 + $0xdc] sm:$0xf]
  %v73 = vld [vmem:[%s0 + $0xe0] sm:$0xf]
  %v74 = vld [vmem:[%s0 + $0xe4] sm:$0xf]
  %v75 = vld [vmem:[%s0 + $0xe8] sm:$0xf]
  %v76 = vld [vmem:[%s0 + $0xec] sm:$0xf]
  %v77 = vld [vmem:[%s0 + $0xf0] sm:$0xf]
  %v78 = vld [vmem:[%s0 + $0xf4] sm:$0xf]
  %v79 = vld [vmem:[%s0 + $0xf8] sm:$0xf]
  %v80 = vld [vmem:[%s0 + $0xfc] sm:$0xf]
  %v81 = vld [vmem:[%s0 + $0x100] sm:$0xf]
  %v82 = vld [vmem:[%s0 + $0x104] sm:$0xf]
  %v83 = vld [vmem:[%s0 + $0x108] sm:$0xf]
  %v84 = vld [vmem:[%s0 + $0x10c] sm:$0xf]
  %v85 = vld [vmem:[%s0 + $0x110] sm:$0xf]
  %v86 = vld [vmem:[%s0 + $0x114] sm:$0xf]
  %v87 = vld [vmem:[%s0 + $0x118] sm:$0xf]
  %v88 = vld [vmem:[%s0 + $0x11c] sm:$0xf]
  %v89 = vld [vmem:[%s0 + $0x120] sm:$0xf]
  %v90 = vld [vmem:[%s0 + $0x124] sm:$0xf]
  %v91 = vld [vmem:[%s0 + $0x128] sm:$0xf]
  %v92 = vld [vmem:[%s0 + $0x12c] sm:$0xf]
  %v93 = vld [vmem:[%s0 + $0x130] sm:$0xf]
  %v94 = vld [vmem:[%s0 + $0x134] sm:$0xf]
  %v95 = vld [vmem:[%s0 + $0x138] sm:$0xf]
  %v96 = vld [vmem:[%s0 + $0x13c] sm:$0xf]
  %v97 = vld [vmem:[%s0 + $0x140] sm:$0xf]
  %v98 = vld [vmem:[%s0 + $0x144] sm:$0xf]
  %v99 = vld [vmem:[%s0 + $0x148] sm:$0xf]
  %v100 = vld [vmem:[%s0 + $0x14c] sm:$0xf]
  %v101 = vld [vmem:[%s0 + $0x150] sm:$0xf]
  %v102 = vld [vmem:[%s0 + $0x154] sm:$0xf]
  %v103 = vld [vmem:[%s0 + $0x158] sm:$0xf]
  %v104 = vld [vmem:[%s0 + $0x15c] sm:$0xf]
  %v105 = vld [vmem:[%s0 + $0x160] sm:$0xf]
  %v106 = vld [vmem:[%s0 + $0x164] sm:$0xf]
  %v107 = vld [vmem:[%s0 + $0x168] sm:$0xf]
  %v108 = vld [vmem:[%s0 + $0x16c] sm:$0xf]
  %v109 = vld [vmem:[%s0 + $0x170] sm:$0xf]
  %v110 = vld [vmem:[%s0 + $0x174] sm:$0xf]
  %v111 = vld [vmem:[%s0 + $0x178] sm:$0xf]
  %v112 = vld [vmem:[%s0 + $0x17c] sm:$0xf]
  %v113 = vld [vmem:[%s0 + $0x180] sm:$0xf]
  %v114 = vld [vmem:[%s0 + $0x184] sm:$0xf]
  %v115 = vld [vmem:[%s0 + $0x188] sm:$0xf]
  %v116 = vld [vmem:[%s0 + $0x18c] sm:$0xf]
  %v117 = vld [vmem:[%s0 + $0x190] sm:$0xf]
  %v118 = vld [vmem:[%s0 + $0x194] sm:$0xf]
  %v119 = vld [vmem:[%s0 + $0x198] sm:$0xf]
  %v120 = vld [vmem:[%s0 + $0x19c] sm:$0xf]
  %v121 = vld [vmem:[%s0 + $0x1a0] sm:$0xf]
  %v122 = vld [vmem:[%s0 + $0x1a4] sm:$0xf]
  %v123 = vld [vmem:[%s0 + $0x1a8] sm:$0xf]
  %v124 = vld [vmem:[%s0 + $0x1ac] sm:$0xf]
  %v125 = vld [vmem:[%s0 + $0x1b0] sm:$0xf]
  %v126 = vld [vmem:[%s0 + $0x1b4] sm:$0xf]
  %v127 = vld [vmem:[%s0 + $0x1b8] sm:$0xf]
  %v128 = vld [vmem:[%s0 + $0x1bc] sm:$0xf]
  %v129 = vld [vmem:[%s0 + $0x1c0] sm:$0xf]
  %v130 = vld [vmem:[%s0 + $0x1c4] sm:$0xf]
  %v131 = vld [vmem:[%s0 + $0x1c8] sm:$0xf]
  %v132 = vld [vmem:[%s0 + $0x1cc] sm:$0xf]
  %v133 = vld [vmem:[%s0 + $0x1d0] sm:$0xf]
  %v134 = vld [vmem:[%s0 + $0x1d4] sm:$0xf]
  %v135 = vld [vmem:[%s0 + $0x1d8] sm:$0xf]
  %v136 = vld [vmem:[%s0 + $0x1dc] sm:$0xf]
  %v137 = vld [vmem:[%s0 + $0x1e0] sm:$0xf]
  %v138 = vld [vmem:[%s0 + $0x1e4] sm:$0xf]
  %v139 = vld [vmem:[%s0 + $0x1e8] sm:$0xf]
  %v140 = vld [vmem:[%s0 + $0x1ec] sm:$0xf]
  %v141 = vld [vmem:[%s0 + $0x1f0] sm:$0xf]
  %v142 = vld [vmem:[%s0 + $0x1f4] sm:$0xf]
  %v143 = vld [vmem:[%s0 + $0x1f8] sm:$0xf]
  %v144 = vld [vmem:[%s0 + $0x1fc] sm:$0xf]
  %v145 = vld [vmem:[%s0 + $0x200] sm:$0xf]
  %v146 = vld [vmem:[%s0 + $0x204] sm:$0xf]
  %v147 = vld [vmem:[%s0 + $0x208] sm:$0xf]
  %v148 = vld [vmem:[%s0 + $0x20c] sm:$0xf]
  %v149 = vld [vmem:[%s0 + $0x210] sm:$0xf]
  %v150 = vld [vmem:[%s0 + $0x214] sm:$0xf]
  %v151 = vld [vmem:[%s0 + $0x218] sm:$0xf]
  %v152 = vld [vmem:[%s0 + $0x21c] sm:$0xf]
  %v153 = vld [vmem:[%s0 + $0x220] sm:$0xf]
  %v154 = vld [vmem:[%s0 + $0x224] sm:$0xf]
  %v155 = vld [vmem:[%s0 + $0x228] sm:$0xf]
  %v156 = vld [vmem:[%s0 + $0x22c] sm:$0xf]
  %v157 = vld [vmem:[%s0 + $0x230] sm:$0xf]
  %v158 = vld [vmem:[%s0 + $0x234] sm:$0xf]
  %v159 = vld [vmem:[%s0 + $0x238] sm:$0xf]
  %v160 = vld [vmem:[%s0 + $0x23c] sm:$0xf]
  %v161 = vld [vmem:[%s0 + $0x240] sm:$0xf]
  %v162 = vld [vmem:[%s0 + $0x244] sm:$0xf]
  %v163 = vld [vmem:[%s0 + $0x248] sm:$0xf]
  %v164 = vld [vmem:[%s0 + $0x24c] sm:$0xf]
  %v165 = vld [vmem:[%s0 + $0x250] sm:$0xf]
  %v166 = vld [vmem:[%s0 + $0x254] sm:$0xf]
  %v167 = vld [vmem:[%s0 + $0x258] sm:$0xf]
  %v168 = vld [vmem:[%s0 + $0x25c] sm:$0xf]
  %v169 = vld [vmem:[%s0 + $0x260] sm:$0xf]
  %v170 = vld [vmem:[%s0 + $0x264] sm:$0xf]
  %v171 = vld [vmem:[%s0 + $0x268] sm:$0xf]
  %v172 = vld [vmem:[%s0 + $0x26c] sm:$0xf]
  %v173 = vld [vmem:[%s0 + $0x270] sm:$0xf]
  %v174 = vld [vmem:[%s0 + $0x274] sm:$0xf]
  %v175 = vld [vmem:[%s0 + $0x278] sm:$0xf]
  %v176 = vld [vmem:[%s0 + $0x27c] sm:$0xf]
  %v177 = vld [vmem:[%s0 + $0x280] sm:$0xf]
  %v178 = vld [vmem:[%s0 + $0x284] sm:$0xf]
  %v179 = vld [vmem:[%s0 + $0x288] sm:$0xf]
  %v180 = vld [vmem:[%s0 + $0x28c] sm:$0xf]
  %v181 = vld [vmem:[%s0 + $0x290] sm:$0xf]
  %v182 = vld [vmem:[%s0 + $0x294] sm:$0xf]
  %v183 = vld [vmem:[%s0 + $0x298] sm:$0xf]
  %v184 = vld [vmem:[%s0 + $0x29c] sm:$0xf]
  %v185 = vld [vmem:[%s0 + $0x2a0] sm:$0xf]
  %v186 = vld [vmem:[%s0 + $0x2a4] sm:$0xf]
  %v187 = vld [vmem:[%s0 + $0x2a8] sm:$0xf]
  %v188 = vld [vmem:[%s0 + $0x2ac] sm:$0xf]
  %v189 = vld [vmem:[%s0 + $0x2b0] sm:$0xf]
  %v190 = vld [vmem:[%s0 + $0x2b4] sm:$0xf]
  %v191 = vld [vmem:[%s0 + $0x2b8] sm:$0xf]
  %v192 = vld [vmem:[%s0 + $0x2bc] sm:$0xf]
  %v193 = vld [vmem:[%s0 + $0x2c0] sm:$0xf]
  %v194 = vld [vmem:[%s0 + $0x2c4] sm:$0xf]
  %v195 = vld [vmem:[%s0 + $0x2c8] sm:$0xf]
  %v196 = vld [vmem:[%s0 + $0x2cc] sm:$0xf]
  %v197 = vld [vmem:[%s0 + $0x2d0] sm:$0xf]
  %v198 = vld [vmem:[%s0 + $0x2d4] sm:$0xf]
  %v199 = vld [vmem:[%s0 + $0x2d8] sm:$0xf]
  %v200 = vld [vmem:[%s0 + $0x2dc] sm:$0xf]
  %v201 = vld [vmem:[%s0 + $0x2e0] sm:$0xf]
  %v202 = vld [vmem:[%s0 + $0x2e4] sm:$0xf]
  %v203 = vld [vmem:[%s0 + $0x2e8] sm:$0xf]
  %v204 = vld [vmem:[%s0 + $0x2ec] sm:$0xf]
  %v205 = vld [vmem:[%s0 + $0x2f0] sm:$0xf]
  %v206 = vld [vmem:[%s0 + $0x2f4] sm:$0xf]
  %v207 = vld [vmem:[%s0 + $0x2f8] sm:$0xf]
  %v208 = vld [vmem:[%s0 + $0x2fc] sm:$0xf]
  %v209 = vld [vmem:[%s0 + $0x300] sm:$0xf]
  %v210 = vld [vmem:[%s0 + $0x304] sm:$0xf]
  %v211 = vld [vmem:[%s0 + $0x308] sm:$0xf]
  %v212 = vld [vmem:[%s0 + $0x30c] sm:$0xf]
  %v213 = vld [vmem:[%s0 + $0x310] sm:$0xf]
  %v214 = vld [vmem:[%s0 + $0x314] sm:$0xf]
  %v215 = vld [vmem:[%s0 + $0x318] sm:$0xf]
  %v216 = vld [vmem:[%s0 + $0x31c] sm:$0xf]
  %v217 = vld [vmem:[%s0 + $0x320] sm:$0xf]
  %v218 = vld [vmem:[%s0 + $0x324] sm:$0xf]
  %v219 = vld [vmem:[%s0 + $0x328] sm:$0xf]
  %v220 = vld [vmem:[%s0 + $0x32c] sm:$0xf]
  %v221 = vld [vmem:[%s0 + $0x330] sm:$0xf]
  %v222 = vld [vmem:[%s0 + $0x334] sm:$0xf]
  %v223 = vld [vmem:[%s0 + $0x338] sm:$0xf]
  %v224 = vld [vmem:[%s0 + $0x33c] sm:$0xf]
  %v225 = vld [vmem:[%s0 + $0x340] sm:$0xf]
  %v226 = vld [vmem:[%s0 + $0x344] sm:$0xf]
  %v227 = vld [vmem:[%s0 + $0x348] sm:$0xf]
  %v228 = vld [vmem:[%s0 + $0x34c] sm:$0xf]
  %v229 = vld [vmem:[%s0 + $0x350] sm:$0xf]
  %v230 = vld [vmem:[%s0 + $0x354] sm:$0xf]
  %v231 = vld [vmem:[%s0 + $0x358] sm:$0xf]
  %v232 = vld [vmem:[%s0 + $0x35c] sm:$0xf]
  %v233 = vld [vmem:[%s0 + $0x360] sm:$0xf]
  %v234 = vld [vmem:[%s0 + $0x364] sm:$0xf]
  %v235 = vld [vmem:[%s0 + $0x368] sm:$0xf]
  %v236 = vld [vmem:[%s0 + $0x36c] sm:$0xf]
  %v237 = vld [vmem:[%s0 + $0x370] sm:$0xf]
  %v238 = vld [vmem:[%s0 + $0x374] sm:$0xf]
  %v239 = vld [vmem:[%s0 + $0x378] sm:$0xf]
  %v240 = vld [vmem:[%s0 + $0x37c] sm:$0xf]
  %v241 = vld [vmem:[%s0 + $0x380] sm:$0xf]
  %v242 = vld [vmem:[%s0 + $0x384] sm:$0xf]
  %v243 = vld [vmem:[%s0 + $0x388] sm:$0xf]
  %v244 = vld [vmem:[%s0 + $0x38c] sm:$0xf]
  %v245 = vld [vmem:[%s0 + $0x390] sm:$0xf]
  %v246 = vld [vmem:[%s0 + $0x394] sm:$0xf]
  %v247 = vld [vmem:[%s0 + $0x398] sm:$0xf]
  %v248 = vld [vmem:[%s0 + $0x39c] sm:$0xf]
  %v249 = vld [vmem:[%s0 + $0x3a0] sm:$0xf]
  %v250 = vld [vmem:[%s0 + $0x3a4] sm:$0xf]
  %v251 = vld [vmem:[%s0 + $0x3a8] sm:$0xf]
  %v252 = vld [vmem:[%s0 + $0x3ac] sm:$0xf]
  %v253 = vld [vmem:[%s0 + $0x3b0] sm:$0xf]
  %v254 = vld [vmem:[%s0 + $0x3b4] sm:$0xf]
  %v255 = vld [vmem:[%s0 + $0x3b8] sm:$0xf]
  %v256 = vld [vmem:[%s0 + $0x3bc] sm:$0xf]
  %v257 = vld [vmem:[%s0 + $0x3c0] sm:$0xf]
  %v258 = vld [vmem:[%s0 + $0x3c4] sm:$0xf]
  %v259 = vld [vmem:[%s0 + $0x3c8] sm:$0xf]
  %v260 = vld [vmem:[%s0 + $0x3cc] sm:$0xf]
  %v261 = vld [vmem:[%s0 + $0x3d0] sm:$0xf]
  %v262 = vld [vmem:[%s0 + $0x3d4] sm:$0xf]
  %v263 = vld [vmem:[%s0 + $0x3d8] sm:$0xf]
  %v264 = vld [vmem:[%s0 + $0x3dc] sm:$0xf]
  %v265 = vld [vmem:[%s0 + $0x3e0] sm:$0xf]
  %v266 = vld [vmem:[%s0 + $0x3e4] sm:$0xf]
  %v267 = vld [vmem:[%s0 + $0x3e8] sm:$0xf]
  %v268 = vld [vmem:[%s0 + $0x3ec] sm:$0xf]
  %v269 = vld [vmem:[%s0 + $0x3f0] sm:$0xf]
  %v270 = vld [vmem:[%s0 + $0x3f4] sm:$0xf]
  %v271 = vld [vmem:[%s0 + $0x3f8] sm:$0xf]
  %v272 = vld [vmem:[%s0 + $0x3fc] sm:$0xf]
  %v273 = vunpack.c.l.bf16 %v17
  %v274 = vunpack.c.l.bf16 %v18
  %v275 = vunpack.c.l.bf16 %v19
  %v276 = vunpack.c.l.bf16 %v20
  %v277 = vunpack.c.l.bf16 %v21
  %v278 = vunpack.c.l.bf16 %v22
  %v279 = vunpack.c.l.bf16 %v23
  %v280 = vunpack.c.l.bf16 %v24
  %v281 = vunpack.c.l.bf16 %v25
  %v282 = vunpack.c.l.bf16 %v26
  %v283 = vunpack.c.l.bf16 %v27
  %v284 = vunpack.c.l.bf16 %v28
  %v285 = vunpack.c.l.bf16 %v29
  %v286 = vunpack.c.l.bf16 %v30
  %v287 = vunpack.c.l.bf16 %v31
  %v288 = vunpack.c.l.bf16 %v32
  %v289 = vunpack.c.l.bf16 %v33
  %v290 = vunpack.c.l.bf16 %v34
  %v291 = vunpack.c.l.bf16 %v35
  %v292 = vunpack.c.l.bf16 %v36
  %v293 = vunpack.c.l.bf16 %v37
  %v294 = vunpack.c.l.bf16 %v38
  %v295 = vunpack.c.l.bf16 %v39
  %v296 = vunpack.c.l.bf16 %v40
  %v297 = vunpack.c.l.bf16 %v41
  %v298 = vunpack.c.l.bf16 %v42
  %v299 = vunpack.c.l.bf16 %v43
  %v300 = vunpack.c.l.bf16 %v44
  %v301 = vunpack.c.l.bf16 %v45
  %v302 = vunpack.c.l.bf16 %v46
  %v303 = vunpack.c.l.bf16 %v47
  %v304 = vunpack.c.l.bf16 %v48
  %v305 = vunpack.c.l.bf16 %v49
  %v306 = vunpack.c.l.bf16 %v50
  %v307 = vunpack.c.l.bf16 %v51
  %v308 = vunpack.c.l.bf16 %v52
  %v309 = vunpack.c.l.bf16 %v53
  %v310 = vunpack.c.l.bf16 %v54
  %v311 = vunpack.c.l.bf16 %v55
  %v312 = vunpack.c.l.bf16 %v56
  %v313 = vunpack.c.l.bf16 %v57
  %v314 = vunpack.c.l.bf16 %v58
  %v315 = vunpack.c.l.bf16 %v59
  %v316 = vunpack.c.l.bf16 %v60
  %v317 = vunpack.c.l.bf16 %v61
  %v318 = vunpack.c.l.bf16 %v62
  %v319 = vunpack.c.l.bf16 %v63
  %v320 = vunpack.c.l.bf16 %v64
  %v321 = vunpack.c.l.bf16 %v65
  %v322 = vunpack.c.l.bf16 %v66
  %v323 = vunpack.c.l.bf16 %v67
  %v324 = vunpack.c.l.bf16 %v68
  %v325 = vunpack.c.l.bf16 %v69
  %v326 = vunpack.c.l.bf16 %v70
  %v327 = vunpack.c.l.bf16 %v71
  %v328 = vunpack.c.l.bf16 %v72
  %v329 = vunpack.c.l.bf16 %v73
  %v330 = vunpack.c.l.bf16 %v74
  %v331 = vunpack.c.l.bf16 %v75
  %v332 = vunpack.c.l.bf16 %v76
  %v333 = vunpack.c.l.bf16 %v77
  %v334 = vunpack.c.l.bf16 %v78
  %v335 = vunpack.c.l.bf16 %v79
  %v336 = vunpack.c.l.bf16 %v80
  %v337 = vunpack.c.l.bf16 %v81
  %v338 = vunpack.c.l.bf16 %v82
  %v339 = vunpack.c.l.bf16 %v83
  %v340 = vunpack.c.l.bf16 %v84
  %v341 = vunpack.c.l.bf16 %v85
  %v342 = vunpack.c.l.bf16 %v86
  %v343 = vunpack.c.l.bf16 %v87
  %v344 = vunpack.c.l.bf16 %v88
  %v345 = vunpack.c.l.bf16 %v89
  %v346 = vunpack.c.l.bf16 %v90
  %v347 = vunpack.c.l.bf16 %v91
  %v348 = vunpack.c.l.bf16 %v92
  %v349 = vunpack.c.l.bf16 %v93
  %v350 = vunpack.c.l.bf16 %v94
  %v351 = vunpack.c.l.bf16 %v95
  %v352 = vunpack.c.l.bf16 %v96
  %v353 = vunpack.c.l.bf16 %v97
  %v354 = vunpack.c.l.bf16 %v98
  %v355 = vunpack.c.l.bf16 %v99
  %v356 = vunpack.c.l.bf16 %v100
  %v357 = vunpack.c.l.bf16 %v101
  %v358 = vunpack.c.l.bf16 %v102
  %v359 = vunpack.c.l.bf16 %v103
  %v360 = vunpack.c.l.bf16 %v104
  %v361 = vunpack.c.l.bf16 %v105
  %v362 = vunpack.c.l.bf16 %v106
  %v363 = vunpack.c.l.bf16 %v107
  %v364 = vunpack.c.l.bf16 %v108
  %v365 = vunpack.c.l.bf16 %v109
  %v366 = vunpack.c.l.bf16 %v110
  %v367 = vunpack.c.l.bf16 %v111
  %v368 = vunpack.c.l.bf16 %v112
  %v369 = vunpack.c.l.bf16 %v113
  %v370 = vunpack.c.l.bf16 %v114
  %v371 = vunpack.c.l.bf16 %v115
  %v372 = vunpack.c.l.bf16 %v116
  %v373 = vunpack.c.l.bf16 %v117
  %v374 = vunpack.c.l.bf16 %v118
  %v375 = vunpack.c.l.bf16 %v119
  %v376 = vunpack.c.l.bf16 %v120
  %v377 = vunpack.c.l.bf16 %v121
  %v378 = vunpack.c.l.bf16 %v122
  %v379 = vunpack.c.l.bf16 %v123
  %v380 = vunpack.c.l.bf16 %v124
  %v381 = vunpack.c.l.bf16 %v125
  %v382 = vunpack.c.l.bf16 %v126
  %v383 = vunpack.c.l.bf16 %v127
  %v384 = vunpack.c.l.bf16 %v128
  %v385 = vunpack.c.l.bf16 %v129
  %v386 = vunpack.c.l.bf16 %v130
  %v387 = vunpack.c.l.bf16 %v131
  %v388 = vunpack.c.l.bf16 %v132
  %v389 = vunpack.c.l.bf16 %v133
  %v390 = vunpack.c.l.bf16 %v134
  %v391 = vunpack.c.l.bf16 %v135
  %v392 = vunpack.c.l.bf16 %v136
  %v393 = vunpack.c.l.bf16 %v137
  %v394 = vunpack.c.l.bf16 %v138
  %v395 = vunpack.c.l.bf16 %v139
  %v396 = vunpack.c.l.bf16 %v140
  %v397 = vunpack.c.l.bf16 %v141
  %v398 = vunpack.c.l.bf16 %v142
  %v399 = vunpack.c.l.bf16 %v143
  %v400 = vunpack.c.l.bf16 %v144
  %v401 = vunpack.c.l.bf16 %v145
  %v402 = vunpack.c.l.bf16 %v146
  %v403 = vunpack.c.l.bf16 %v147
  %v404 = vunpack.c.l.bf16 %v148
  %v405 = vunpack.c.l.bf16 %v149
  %v406 = vunpack.c.l.bf16 %v150
  %v407 = vunpack.c.l.bf16 %v151
  %v408 = vunpack.c.l.bf16 %v152
  %v409 = vunpack.c.l.bf16 %v153
  %v410 = vunpack.c.l.bf16 %v154
  %v411 = vunpack.c.l.bf16 %v155
  %v412 = vunpack.c.l.bf16 %v156
  %v413 = vunpack.c.l.bf16 %v157
  %v414 = vunpack.c.l.bf16 %v158
  %v415 = vunpack.c.l.bf16 %v159
  %v416 = vunpack.c.l.bf16 %v160
  %v417 = vunpack.c.l.bf16 %v161
  %v418 = vunpack.c.l.bf16 %v162
  %v419 = vunpack.c.l.bf16 %v163
  %v420 = vunpack.c.l.bf16 %v164
  %v421 = vunpack.c.l.bf16 %v165
  %v422 = vunpack.c.l.bf16 %v166
  %v423 = vunpack.c.l.bf16 %v167
  %v424 = vunpack.c.l.bf16 %v168
  %v425 = vunpack.c.l.bf16 %v169
  %v426 = vunpack.c.l.bf16 %v170
  %v427 = vunpack.c.l.bf16 %v171
  %v428 = vunpack.c.l.bf16 %v172
  %v429 = vunpack.c.l.bf16 %v173
  %v430 = vunpack.c.l.bf16 %v174
  %v431 = vunpack.c.l.bf16 %v175
  %v432 = vunpack.c.l.bf16 %v176
  %v433 = vunpack.c.l.bf16 %v177
  %v434 = vunpack.c.l.bf16 %v178
  %v435 = vunpack.c.l.bf16 %v179
  %v436 = vunpack.c.l.bf16 %v180
  %v437 = vunpack.c.l.bf16 %v181
  %v438 = vunpack.c.l.bf16 %v182
  %v439 = vunpack.c.l.bf16 %v183
  %v440 = vunpack.c.l.bf16 %v184
  %v441 = vunpack.c.l.bf16 %v185
  %v442 = vunpack.c.l.bf16 %v186
  %v443 = vunpack.c.l.bf16 %v187
  %v444 = vunpack.c.l.bf16 %v188
  %v445 = vunpack.c.l.bf16 %v189
  %v446 = vunpack.c.l.bf16 %v190
  %v447 = vunpack.c.l.bf16 %v191
  %v448 = vunpack.c.l.bf16 %v192
  %v449 = vunpack.c.l.bf16 %v193
  %v450 = vunpack.c.l.bf16 %v194
  %v451 = vunpack.c.l.bf16 %v195
  %v452 = vunpack.c.l.bf16 %v196
  %v453 = vunpack.c.l.bf16 %v197
  %v454 = vunpack.c.l.bf16 %v198
  %v455 = vunpack.c.l.bf16 %v199
  %v456 = vunpack.c.l.bf16 %v200
  %v457 = vunpack.c.l.bf16 %v201
  %v458 = vunpack.c.l.bf16 %v202
  %v459 = vunpack.c.l.bf16 %v203
  %v460 = vunpack.c.l.bf16 %v204
  %v461 = vunpack.c.l.bf16 %v205
  %v462 = vunpack.c.l.bf16 %v206
  %v463 = vunpack.c.l.bf16 %v207
  %v464 = vunpack.c.l.bf16 %v208
  %v465 = vunpack.c.l.bf16 %v209
  %v466 = vunpack.c.l.bf16 %v210
  %v467 = vunpack.c.l.bf16 %v211
  %v468 = vunpack.c.l.bf16 %v212
  %v469 = vunpack.c.l.bf16 %v213
  %v470 = vunpack.c.l.bf16 %v214
  %v471 = vunpack.c.l.bf16 %v215
  %v472 = vunpack.c.l.bf16 %v216
  %v473 = vunpack.c.l.bf16 %v217
  %v474 = vunpack.c.l.bf16 %v218
  %v475 = vunpack.c.l.bf16 %v219
  %v476 = vunpack.c.l.bf16 %v220
  %v477 = vunpack.c.l.bf16 %v221
  %v478 = vunpack.c.l.bf16 %v222
  %v479 = vunpack.c.l.bf16 %v223
  %v480 = vunpack.c.l.bf16 %v224
  %v481 = vunpack.c.l.bf16 %v225
  %v482 = vunpack.c.l.bf16 %v226
  %v483 = vunpack.c.l.bf16 %v227
  %v484 = vunpack.c.l.bf16 %v228
  %v485 = vunpack.c.l.bf16 %v229
  %v486 = vunpack.c.l.bf16 %v230
  %v487 = vunpack.c.l.bf16 %v231
  %v488 = vunpack.c.l.bf16 %v232
  %v489 = vunpack.c.l.bf16 %v233
  %v490 = vunpack.c.l.bf16 %v234
  %v491 = vunpack.c.l.bf16 %v235
  %v492 = vunpack.c.l.bf16 %v236
  %v493 = vunpack.c.l.bf16 %v237
  %v494 = vunpack.c.l.bf16 %v238
  %v495 = vunpack.c.l.bf16 %v239
  %v496 = vunpack.c.l.bf16 %v240
  %v497 = vunpack.c.l.bf16 %v241
  %v498 = vunpack.c.l.bf16 %v242
  %v499 = vunpack.c.l.bf16 %v243
  %v500 = vunpack.c.l.bf16 %v244
  %v501 = vunpack.c.l.bf16 %v245
  %v502 = vunpack.c.l.bf16 %v246
  %v503 = vunpack.c.l.bf16 %v247
  %v504 = vunpack.c.l.bf16 %v248
  %v505 = vunpack.c.l.bf16 %v249
  %v506 = vunpack.c.l.bf16 %v250
  %v507 = vunpack.c.l.bf16 %v251
  %v508 = vunpack.c.l.bf16 %v252
  %v509 = vunpack.c.l.bf16 %v253
  %v510 = vunpack.c.l.bf16 %v254
  %v511 = vunpack.c.l.bf16 %v255
  %v512 = vunpack.c.l.bf16 %v256
  %v513 = vunpack.c.l.bf16 %v257
  %v514 = vunpack.c.l.bf16 %v258
  %v515 = vunpack.c.l.bf16 %v259
  %v516 = vunpack.c.l.bf16 %v260
  %v517 = vunpack.c.l.bf16 %v261
  %v518 = vunpack.c.l.bf16 %v262
  %v519 = vunpack.c.l.bf16 %v263
  %v520 = vunpack.c.l.bf16 %v264
  %v521 = vunpack.c.l.bf16 %v265
  %v522 = vunpack.c.l.bf16 %v266
  %v523 = vunpack.c.l.bf16 %v267
  %v524 = vunpack.c.l.bf16 %v268
  %v525 = vunpack.c.l.bf16 %v269
  %v526 = vunpack.c.l.bf16 %v270
  %v527 = vunpack.c.l.bf16 %v271
  %v528 = vunpack.c.l.bf16 %v272
  %vm529 = vcmask 64512
  %v530 = vsel %vm529, %v273, 0.0
  %v531 = vsel %vm529, %v274, 0.0
  %v532 = vadd.f32 %v530, %v531
  %v533 = vsel %vm529, %v275, 0.0
  %v534 = vadd.f32 %v532, %v533
  %v535 = vsel %vm529, %v276, 0.0
  %v536 = vadd.f32 %v534, %v535
  %v537 = vsel %vm529, %v277, 0.0
  %v538 = vadd.f32 %v536, %v537
  %v539 = vsel %vm529, %v278, 0.0
  %v540 = vadd.f32 %v538, %v539
  %v541 = vsel %vm529, %v279, 0.0
  %v542 = vadd.f32 %v540, %v541
  %v543 = vsel %vm529, %v280, 0.0
  %v544 = vadd.f32 %v542, %v543
  %v545 = vsel %vm529, %v281, 0.0
  %v546 = vadd.f32 %v544, %v545
  %v547 = vsel %vm529, %v282, 0.0
  %v548 = vadd.f32 %v546, %v547
  %v549 = vsel %vm529, %v283, 0.0
  %v550 = vadd.f32 %v548, %v549
  %v551 = vsel %vm529, %v284, 0.0
  %v552 = vadd.f32 %v550, %v551
  %v553 = vsel %vm529, %v285, 0.0
  %v554 = vadd.f32 %v552, %v553
  %v555 = vsel %vm529, %v286, 0.0
  %v556 = vadd.f32 %v554, %v555
  %v557 = vsel %vm529, %v287, 0.0
  %v558 = vadd.f32 %v556, %v557
  %v559 = vsel %vm529, %v288, 0.0
  %v560 = vadd.f32 %v558, %v559
  %v561 = vsel %vm529, %v289, 0.0
  %v562 = vadd.f32 %v560, %v561
  %v563 = vsel %vm529, %v290, 0.0
  %v564 = vadd.f32 %v562, %v563
  %v565 = vsel %vm529, %v291, 0.0
  %v566 = vadd.f32 %v564, %v565
  %v567 = vsel %vm529, %v292, 0.0
  %v568 = vadd.f32 %v566, %v567
  %v569 = vsel %vm529, %v293, 0.0
  %v570 = vadd.f32 %v568, %v569
  %v571 = vsel %vm529, %v294, 0.0
  %v572 = vadd.f32 %v570, %v571
  %v573 = vsel %vm529, %v295, 0.0
  %v574 = vadd.f32 %v572, %v573
  %v575 = vsel %vm529, %v296, 0.0
  %v576 = vadd.f32 %v574, %v575
  %v577 = vsel %vm529, %v297, 0.0
  %v578 = vadd.f32 %v576, %v577
  %v579 = vsel %vm529, %v298, 0.0
  %v580 = vadd.f32 %v578, %v579
  %v581 = vsel %vm529, %v299, 0.0
  %v582 = vadd.f32 %v580, %v581
  %v583 = vsel %vm529, %v300, 0.0
  %v584 = vadd.f32 %v582, %v583
  %v585 = vsel %vm529, %v301, 0.0
  %v586 = vadd.f32 %v584, %v585
  %v587 = vsel %vm529, %v302, 0.0
  %v588 = vadd.f32 %v586, %v587
  %v589 = vsel %vm529, %v303, 0.0
  %v590 = vadd.f32 %v588, %v589
  %v591 = vsel %vm529, %v304, 0.0
  %v592 = vadd.f32 %v590, %v591
  %v593 = vrot.slane %v592, 4
  %v594 = vadd.f32 %v592, %v593
  %v595 = vrot.slane %v594, 2
  %v596 = vadd.f32 %v594, %v595
  %v597 = vrot.slane %v596, 1
  %v598 = vadd.f32 %v596, %v597
  %v599 = vsel %vm529, %v305, 0.0
  %v600 = vsel %vm529, %v306, 0.0
  %v601 = vadd.f32 %v599, %v600
  %v602 = vsel %vm529, %v307, 0.0
  %v603 = vadd.f32 %v601, %v602
  %v604 = vsel %vm529, %v308, 0.0
  %v605 = vadd.f32 %v603, %v604
  %v606 = vsel %vm529, %v309, 0.0
  %v607 = vadd.f32 %v605, %v606
  %v608 = vsel %vm529, %v310, 0.0
  %v609 = vadd.f32 %v607, %v608
  %v610 = vsel %vm529, %v311, 0.0
  %v611 = vadd.f32 %v609, %v610
  %v612 = vsel %vm529, %v312, 0.0
  %v613 = vadd.f32 %v611, %v612
  %v614 = vsel %vm529, %v313, 0.0
  %v615 = vadd.f32 %v613, %v614
  %v616 = vsel %vm529, %v314, 0.0
  %v617 = vadd.f32 %v615, %v616
  %v618 = vsel %vm529, %v315, 0.0
  %v619 = vadd.f32 %v617, %v618
  %v620 = vsel %vm529, %v316, 0.0
  %v621 = vadd.f32 %v619, %v620
  %v622 = vsel %vm529, %v317, 0.0
  %v623 = vadd.f32 %v621, %v622
  %v624 = vsel %vm529, %v318, 0.0
  %v625 = vadd.f32 %v623, %v624
  %v626 = vsel %vm529, %v319, 0.0
  %v627 = vadd.f32 %v625, %v626
  %v628 = vsel %vm529, %v320, 0.0
  %v629 = vadd.f32 %v627, %v628
  %v630 = vsel %vm529, %v321, 0.0
  %v631 = vadd.f32 %v629, %v630
  %v632 = vsel %vm529, %v322, 0.0
  %v633 = vadd.f32 %v631, %v632
  %v634 = vsel %vm529, %v323, 0.0
  %v635 = vadd.f32 %v633, %v634
  %v636 = vsel %vm529, %v324, 0.0
  %v637 = vadd.f32 %v635, %v636
  %v638 = vsel %vm529, %v325, 0.0
  %v639 = vadd.f32 %v637, %v638
  %v640 = vsel %vm529, %v326, 0.0
  %v641 = vadd.f32 %v639, %v640
  %v642 = vsel %vm529, %v327, 0.0
  %v643 = vadd.f32 %v641, %v642
  %v644 = vsel %vm529, %v328, 0.0
  %v645 = vadd.f32 %v643, %v644
  %v646 = vsel %vm529, %v329, 0.0
  %v647 = vadd.f32 %v645, %v646
  %v648 = vsel %vm529, %v330, 0.0
  %v649 = vadd.f32 %v647, %v648
  %v650 = vsel %vm529, %v331, 0.0
  %v651 = vadd.f32 %v649, %v650
  %v652 = vsel %vm529, %v332, 0.0
  %v653 = vadd.f32 %v651, %v652
  %v654 = vsel %vm529, %v333, 0.0
  %v655 = vadd.f32 %v653, %v654
  %v656 = vsel %vm529, %v334, 0.0
  %v657 = vadd.f32 %v655, %v656
  %v658 = vsel %vm529, %v335, 0.0
  %v659 = vadd.f32 %v657, %v658
  %v660 = vsel %vm529, %v336, 0.0
  %v661 = vadd.f32 %v659, %v660
  %v662 = vrot.slane %v661, 4
  %v663 = vadd.f32 %v661, %v662
  %v664 = vrot.slane %v663, 2
  %v665 = vadd.f32 %v663, %v664
  %v666 = vrot.slane %v665, 1
  %v667 = vadd.f32 %v665, %v666
  %v668 = vsel %vm529, %v337, 0.0
  %v669 = vsel %vm529, %v338, 0.0
  %v670 = vadd.f32 %v668, %v669
  %v671 = vsel %vm529, %v339, 0.0
  %v672 = vadd.f32 %v670, %v671
  %v673 = vsel %vm529, %v340, 0.0
  %v674 = vadd.f32 %v672, %v673
  %v675 = vsel %vm529, %v341, 0.0
  %v676 = vadd.f32 %v674, %v675
  %v677 = vsel %vm529, %v342, 0.0
  %v678 = vadd.f32 %v676, %v677
  %v679 = vsel %vm529, %v343, 0.0
  %v680 = vadd.f32 %v678, %v679
  %v681 = vsel %vm529, %v344, 0.0
  %v682 = vadd.f32 %v680, %v681
  %v683 = vsel %vm529, %v345, 0.0
  %v684 = vadd.f32 %v682, %v683
  %v685 = vsel %vm529, %v346, 0.0
  %v686 = vadd.f32 %v684, %v685
  %v687 = vsel %vm529, %v347, 0.0
  %v688 = vadd.f32 %v686, %v687
  %v689 = vsel %vm529, %v348, 0.0
  %v690 = vadd.f32 %v688, %v689
  %v691 = vsel %vm529, %v349, 0.0
  %v692 = vadd.f32 %v690, %v691
  %v693 = vsel %vm529, %v350, 0.0
  %v694 = vadd.f32 %v692, %v693
  %v695 = vsel %vm529, %v351, 0.0
  %v696 = vadd.f32 %v694, %v695
  %v697 = vsel %vm529, %v352, 0.0
  %v698 = vadd.f32 %v696, %v697
  %v699 = vsel %vm529, %v353, 0.0
  %v700 = vadd.f32 %v698, %v699
  %v701 = vsel %vm529, %v354, 0.0
  %v702 = vadd.f32 %v700, %v701
  %v703 = vsel %vm529, %v355, 0.0
  %v704 = vadd.f32 %v702, %v703
  %v705 = vsel %vm529, %v356, 0.0
  %v706 = vadd.f32 %v704, %v705
  %v707 = vsel %vm529, %v357, 0.0
  %v708 = vadd.f32 %v706, %v707
  %v709 = vsel %vm529, %v358, 0.0
  %v710 = vadd.f32 %v708, %v709
  %v711 = vsel %vm529, %v359, 0.0
  %v712 = vadd.f32 %v710, %v711
  %v713 = vsel %vm529, %v360, 0.0
  %v714 = vadd.f32 %v712, %v713
  %v715 = vsel %vm529, %v361, 0.0
  %v716 = vadd.f32 %v714, %v715
  %v717 = vsel %vm529, %v362, 0.0
  %v718 = vadd.f32 %v716, %v717
  %v719 = vsel %vm529, %v363, 0.0
  %v720 = vadd.f32 %v718, %v719
  %v721 = vsel %vm529, %v364, 0.0
  %v722 = vadd.f32 %v720, %v721
  %v723 = vsel %vm529, %v365, 0.0
  %v724 = vadd.f32 %v722, %v723
  %v725 = vsel %vm529, %v366, 0.0
  %v726 = vadd.f32 %v724, %v725
  %v727 = vsel %vm529, %v367, 0.0
  %v728 = vadd.f32 %v726, %v727
  %v729 = vsel %vm529, %v368, 0.0
  %v730 = vadd.f32 %v728, %v729
  %v731 = vrot.slane %v730, 4
  %v732 = vadd.f32 %v730, %v731
  %v733 = vrot.slane %v732, 2
  %v734 = vadd.f32 %v732, %v733
  %v735 = vrot.slane %v734, 1
  %v736 = vadd.f32 %v734, %v735
  %v737 = vsel %vm529, %v369, 0.0
  %v738 = vsel %vm529, %v370, 0.0
  %v739 = vadd.f32 %v737, %v738
  %v740 = vsel %vm529, %v371, 0.0
  %v741 = vadd.f32 %v739, %v740
  %v742 = vsel %vm529, %v372, 0.0
  %v743 = vadd.f32 %v741, %v742
  %v744 = vsel %vm529, %v373, 0.0
  %v745 = vadd.f32 %v743, %v744
  %v746 = vsel %vm529, %v374, 0.0
  %v747 = vadd.f32 %v745, %v746
  %v748 = vsel %vm529, %v375, 0.0
  %v749 = vadd.f32 %v747, %v748
  %v750 = vsel %vm529, %v376, 0.0
  %v751 = vadd.f32 %v749, %v750
  %v752 = vsel %vm529, %v377, 0.0
  %v753 = vadd.f32 %v751, %v752
  %v754 = vsel %vm529, %v378, 0.0
  %v755 = vadd.f32 %v753, %v754
  %v756 = vsel %vm529, %v379, 0.0
  %v757 = vadd.f32 %v755, %v756
  %v758 = vsel %vm529, %v380, 0.0
  %v759 = vadd.f32 %v757, %v758
  %v760 = vsel %vm529, %v381, 0.0
  %v761 = vadd.f32 %v759, %v760
  %v762 = vsel %vm529, %v382, 0.0
  %v763 = vadd.f32 %v761, %v762
  %v764 = vsel %vm529, %v383, 0.0
  %v765 = vadd.f32 %v763, %v764
  %v766 = vsel %vm529, %v384, 0.0
  %v767 = vadd.f32 %v765, %v766
  %v768 = vsel %vm529, %v385, 0.0
  %v769 = vadd.f32 %v767, %v768
  %v770 = vsel %vm529, %v386, 0.0
  %v771 = vadd.f32 %v769, %v770
  %v772 = vsel %vm529, %v387, 0.0
  %v773 = vadd.f32 %v771, %v772
  %v774 = vsel %vm529, %v388, 0.0
  %v775 = vadd.f32 %v773, %v774
  %v776 = vsel %vm529, %v389, 0.0
  %v777 = vadd.f32 %v775, %v776
  %v778 = vsel %vm529, %v390, 0.0
  %v779 = vadd.f32 %v777, %v778
  %v780 = vsel %vm529, %v391, 0.0
  %v781 = vadd.f32 %v779, %v780
  %v782 = vsel %vm529, %v392, 0.0
  %v783 = vadd.f32 %v781, %v782
  %v784 = vsel %vm529, %v393, 0.0
  %v785 = vadd.f32 %v783, %v784
  %v786 = vsel %vm529, %v394, 0.0
  %v787 = vadd.f32 %v785, %v786
  %v788 = vsel %vm529, %v395, 0.0
  %v789 = vadd.f32 %v787, %v788
  %v790 = vsel %vm529, %v396, 0.0
  %v791 = vadd.f32 %v789, %v790
  %v792 = vsel %vm529, %v397, 0.0
  %v793 = vadd.f32 %v791, %v792
  %v794 = vsel %vm529, %v398, 0.0
  %v795 = vadd.f32 %v793, %v794
  %v796 = vsel %vm529, %v399, 0.0
  %v797 = vadd.f32 %v795, %v796
  %v798 = vsel %vm529, %v400, 0.0
  %v799 = vadd.f32 %v797, %v798
  %v800 = vrot.slane %v799, 4
  %v801 = vadd.f32 %v799, %v800
  %v802 = vrot.slane %v801, 2
  %v803 = vadd.f32 %v801, %v802
  %v804 = vrot.slane %v803, 1
  %v805 = vadd.f32 %v803, %v804
  %v806 = vsel %vm529, %v401, 0.0
  %v807 = vsel %vm529, %v402, 0.0
  %v808 = vadd.f32 %v806, %v807
  %v809 = vsel %vm529, %v403, 0.0
  %v810 = vadd.f32 %v808, %v809
  %v811 = vsel %vm529, %v404, 0.0
  %v812 = vadd.f32 %v810, %v811
  %v813 = vsel %vm529, %v405, 0.0
  %v814 = vadd.f32 %v812, %v813
  %v815 = vsel %vm529, %v406, 0.0
  %v816 = vadd.f32 %v814, %v815
  %v817 = vsel %vm529, %v407, 0.0
  %v818 = vadd.f32 %v816, %v817
  %v819 = vsel %vm529, %v408, 0.0
  %v820 = vadd.f32 %v818, %v819
  %v821 = vsel %vm529, %v409, 0.0
  %v822 = vadd.f32 %v820, %v821
  %v823 = vsel %vm529, %v410, 0.0
  %v824 = vadd.f32 %v822, %v823
  %v825 = vsel %vm529, %v411, 0.0
  %v826 = vadd.f32 %v824, %v825
  %v827 = vsel %vm529, %v412, 0.0
  %v828 = vadd.f32 %v826, %v827
  %v829 = vsel %vm529, %v413, 0.0
  %v830 = vadd.f32 %v828, %v829
  %v831 = vsel %vm529, %v414, 0.0
  %v832 = vadd.f32 %v830, %v831
  %v833 = vsel %vm529, %v415, 0.0
  %v834 = vadd.f32 %v832, %v833
  %v835 = vsel %vm529, %v416, 0.0
  %v836 = vadd.f32 %v834, %v835
  %v837 = vsel %vm529, %v417, 0.0
  %v838 = vadd.f32 %v836, %v837
  %v839 = vsel %vm529, %v418, 0.0
  %v840 = vadd.f32 %v838, %v839
  %v841 = vsel %vm529, %v419, 0.0
  %v842 = vadd.f32 %v840, %v841
  %v843 = vsel %vm529, %v420, 0.0
  %v844 = vadd.f32 %v842, %v843
  %v845 = vsel %vm529, %v421, 0.0
  %v846 = vadd.f32 %v844, %v845
  %v847 = vsel %vm529, %v422, 0.0
  %v848 = vadd.f32 %v846, %v847
  %v849 = vsel %vm529, %v423, 0.0
  %v850 = vadd.f32 %v848, %v849
  %v851 = vsel %vm529, %v424, 0.0
  %v852 = vadd.f32 %v850, %v851
  %v853 = vsel %vm529, %v425, 0.0
  %v854 = vadd.f32 %v852, %v853
  %v855 = vsel %vm529, %v426, 0.0
  %v856 = vadd.f32 %v854, %v855
  %v857 = vsel %vm529, %v427, 0.0
  %v858 = vadd.f32 %v856, %v857
  %v859 = vsel %vm529, %v428, 0.0
  %v860 = vadd.f32 %v858, %v859
  %v861 = vsel %vm529, %v429, 0.0
  %v862 = vadd.f32 %v860, %v861
  %v863 = vsel %vm529, %v430, 0.0
  %v864 = vadd.f32 %v862, %v863
  %v865 = vsel %vm529, %v431, 0.0
  %v866 = vadd.f32 %v864, %v865
  %v867 = vsel %vm529, %v432, 0.0
  %v868 = vadd.f32 %v866, %v867
  %v869 = vrot.slane %v868, 4
  %v870 = vadd.f32 %v868, %v869
  %v871 = vrot.slane %v870, 2
  %v872 = vadd.f32 %v870, %v871
  %v873 = vrot.slane %v872, 1
  %v874 = vadd.f32 %v872, %v873
  %v875 = vsel %vm529, %v433, 0.0
  %v876 = vsel %vm529, %v434, 0.0
  %v877 = vadd.f32 %v875, %v876
  %v878 = vsel %vm529, %v435, 0.0
  %v879 = vadd.f32 %v877, %v878
  %v880 = vsel %vm529, %v436, 0.0
  %v881 = vadd.f32 %v879, %v880
  %v882 = vsel %vm529, %v437, 0.0
  %v883 = vadd.f32 %v881, %v882
  %v884 = vsel %vm529, %v438, 0.0
  %v885 = vadd.f32 %v883, %v884
  %v886 = vsel %vm529, %v439, 0.0
  %v887 = vadd.f32 %v885, %v886
  %v888 = vsel %vm529, %v440, 0.0
  %v889 = vadd.f32 %v887, %v888
  %v890 = vsel %vm529, %v441, 0.0
  %v891 = vadd.f32 %v889, %v890
  %v892 = vsel %vm529, %v442, 0.0
  %v893 = vadd.f32 %v891, %v892
  %v894 = vsel %vm529, %v443, 0.0
  %v895 = vadd.f32 %v893, %v894
  %v896 = vsel %vm529, %v444, 0.0
  %v897 = vadd.f32 %v895, %v896
  %v898 = vsel %vm529, %v445, 0.0
  %v899 = vadd.f32 %v897, %v898
  %v900 = vsel %vm529, %v446, 0.0
  %v901 = vadd.f32 %v899, %v900
  %v902 = vsel %vm529, %v447, 0.0
  %v903 = vadd.f32 %v901, %v902
  %v904 = vsel %vm529, %v448, 0.0
  %v905 = vadd.f32 %v903, %v904
  %v906 = vsel %vm529, %v449, 0.0
  %v907 = vadd.f32 %v905, %v906
  %v908 = vsel %vm529, %v450, 0.0
  %v909 = vadd.f32 %v907, %v908
  %v910 = vsel %vm529, %v451, 0.0
  %v911 = vadd.f32 %v909, %v910
  %v912 = vsel %vm529, %v452, 0.0
  %v913 = vadd.f32 %v911, %v912
  %v914 = vsel %vm529, %v453, 0.0
  %v915 = vadd.f32 %v913, %v914
  %v916 = vsel %vm529, %v454, 0.0
  %v917 = vadd.f32 %v915, %v916
  %v918 = vsel %vm529, %v455, 0.0
  %v919 = vadd.f32 %v917, %v918
  %v920 = vsel %vm529, %v456, 0.0
  %v921 = vadd.f32 %v919, %v920
  %v922 = vsel %vm529, %v457, 0.0
  %v923 = vadd.f32 %v921, %v922
  %v924 = vsel %vm529, %v458, 0.0
  %v925 = vadd.f32 %v923, %v924
  %v926 = vsel %vm529, %v459, 0.0
  %v927 = vadd.f32 %v925, %v926
  %v928 = vsel %vm529, %v460, 0.0
  %v929 = vadd.f32 %v927, %v928
  %v930 = vsel %vm529, %v461, 0.0
  %v931 = vadd.f32 %v929, %v930
  %v932 = vsel %vm529, %v462, 0.0
  %v933 = vadd.f32 %v931, %v932
  %v934 = vsel %vm529, %v463, 0.0
  %v935 = vadd.f32 %v933, %v934
  %v936 = vsel %vm529, %v464, 0.0
  %v937 = vadd.f32 %v935, %v936
  %v938 = vrot.slane %v937, 4
  %v939 = vadd.f32 %v937, %v938
  %v940 = vrot.slane %v939, 2
  %v941 = vadd.f32 %v939, %v940
  %v942 = vrot.slane %v941, 1
  %v943 = vadd.f32 %v941, %v942
  %v944 = vsel %vm529, %v465, 0.0
  %v945 = vsel %vm529, %v466, 0.0
  %v946 = vadd.f32 %v944, %v945
  %v947 = vsel %vm529, %v467, 0.0
  %v948 = vadd.f32 %v946, %v947
  %v949 = vsel %vm529, %v468, 0.0
  %v950 = vadd.f32 %v948, %v949
  %v951 = vsel %vm529, %v469, 0.0
  %v952 = vadd.f32 %v950, %v951
  %v953 = vsel %vm529, %v470, 0.0
  %v954 = vadd.f32 %v952, %v953
  %v955 = vsel %vm529, %v471, 0.0
  %v956 = vadd.f32 %v954, %v955
  %v957 = vsel %vm529, %v472, 0.0
  %v958 = vadd.f32 %v956, %v957
  %v959 = vsel %vm529, %v473, 0.0
  %v960 = vadd.f32 %v958, %v959
  %v961 = vsel %vm529, %v474, 0.0
  %v962 = vadd.f32 %v960, %v961
  %v963 = vsel %vm529, %v475, 0.0
  %v964 = vadd.f32 %v962, %v963
  %v965 = vsel %vm529, %v476, 0.0
  %v966 = vadd.f32 %v964, %v965
  %v967 = vsel %vm529, %v477, 0.0
  %v968 = vadd.f32 %v966, %v967
  %v969 = vsel %vm529, %v478, 0.0
  %v970 = vadd.f32 %v968, %v969
  %v971 = vsel %vm529, %v479, 0.0
  %v972 = vadd.f32 %v970, %v971
  %v973 = vsel %vm529, %v480, 0.0
  %v974 = vadd.f32 %v972, %v973
  %v975 = vsel %vm529, %v481, 0.0
  %v976 = vadd.f32 %v974, %v975
  %v977 = vsel %vm529, %v482, 0.0
  %v978 = vadd.f32 %v976, %v977
  %v979 = vsel %vm529, %v483, 0.0
  %v980 = vadd.f32 %v978, %v979
  %v981 = vsel %vm529, %v484, 0.0
  %v982 = vadd.f32 %v980, %v981
  %v983 = vsel %vm529, %v485, 0.0
  %v984 = vadd.f32 %v982, %v983
  %v985 = vsel %vm529, %v486, 0.0
  %v986 = vadd.f32 %v984, %v985
  %v987 = vsel %vm529, %v487, 0.0
  %v988 = vadd.f32 %v986, %v987
  %v989 = vsel %vm529, %v488, 0.0
  %v990 = vadd.f32 %v988, %v989
  %v991 = vsel %vm529, %v489, 0.0
  %v992 = vadd.f32 %v990, %v991
  %v993 = vsel %vm529, %v490, 0.0
  %v994 = vadd.f32 %v992, %v993
  %v995 = vsel %vm529, %v491, 0.0
  %v996 = vadd.f32 %v994, %v995
  %v997 = vsel %vm529, %v492, 0.0
  %v998 = vadd.f32 %v996, %v997
  %v999 = vsel %vm529, %v493, 0.0
  %v1000 = vadd.f32 %v998, %v999
  %v1001 = vsel %vm529, %v494, 0.0
  %v1002 = vadd.f32 %v1000, %v1001
  %v1003 = vsel %vm529, %v495, 0.0
  %v1004 = vadd.f32 %v1002, %v1003
  %v1005 = vsel %vm529, %v496, 0.0
  %v1006 = vadd.f32 %v1004, %v1005
  %v1007 = vrot.slane %v1006, 4
  %v1008 = vadd.f32 %v1006, %v1007
  %v1009 = vrot.slane %v1008, 2
  %v1010 = vadd.f32 %v1008, %v1009
  %v1011 = vrot.slane %v1010, 1
  %v1012 = vadd.f32 %v1010, %v1011
  %v1013 = vsel %vm529, %v497, 0.0
  %v1014 = vsel %vm529, %v498, 0.0
  %v1015 = vadd.f32 %v1013, %v1014
  %v1016 = vsel %vm529, %v499, 0.0
  %v1017 = vadd.f32 %v1015, %v1016
  %v1018 = vsel %vm529, %v500, 0.0
  %v1019 = vadd.f32 %v1017, %v1018
  %v1020 = vsel %vm529, %v501, 0.0
  %v1021 = vadd.f32 %v1019, %v1020
  %v1022 = vsel %vm529, %v502, 0.0
  %v1023 = vadd.f32 %v1021, %v1022
  %v1024 = vsel %vm529, %v503, 0.0
  %v1025 = vadd.f32 %v1023, %v1024
  %v1026 = vsel %vm529, %v504, 0.0
  %v1027 = vadd.f32 %v1025, %v1026
  %v1028 = vsel %vm529, %v505, 0.0
  %v1029 = vadd.f32 %v1027, %v1028
  %v1030 = vsel %vm529, %v506, 0.0
  %v1031 = vadd.f32 %v1029, %v1030
  %v1032 = vsel %vm529, %v507, 0.0
  %v1033 = vadd.f32 %v1031, %v1032
  %v1034 = vsel %vm529, %v508, 0.0
  %v1035 = vadd.f32 %v1033, %v1034
  %v1036 = vsel %vm529, %v509, 0.0
  %v1037 = vadd.f32 %v1035, %v1036
  %v1038 = vsel %vm529, %v510, 0.0
  %v1039 = vadd.f32 %v1037, %v1038
  %v1040 = vsel %vm529, %v511, 0.0
  %v1041 = vadd.f32 %v1039, %v1040
  %v1042 = vsel %vm529, %v512, 0.0
  %v1043 = vadd.f32 %v1041, %v1042
  %v1044 = vsel %vm529, %v513, 0.0
  %v1045 = vadd.f32 %v1043, %v1044
  %v1046 = vsel %vm529, %v514, 0.0
  %v1047 = vadd.f32 %v1045, %v1046
  %v1048 = vsel %vm529, %v515, 0.0
  %v1049 = vadd.f32 %v1047, %v1048
  %v1050 = vsel %vm529, %v516, 0.0
  %v1051 = vadd.f32 %v1049, %v1050
  %v1052 = vsel %vm529, %v517, 0.0
  %v1053 = vadd.f32 %v1051, %v1052
  %v1054 = vsel %vm529, %v518, 0.0
  %v1055 = vadd.f32 %v1053, %v1054
  %v1056 = vsel %vm529, %v519, 0.0
  %v1057 = vadd.f32 %v1055, %v1056
  %v1058 = vsel %vm529, %v520, 0.0
  %v1059 = vadd.f32 %v1057, %v1058
  %v1060 = vsel %vm529, %v521, 0.0
  %v1061 = vadd.f32 %v1059, %v1060
  %v1062 = vsel %vm529, %v522, 0.0
  %v1063 = vadd.f32 %v1061, %v1062
  %v1064 = vsel %vm529, %v523, 0.0
  %v1065 = vadd.f32 %v1063, %v1064
  %v1066 = vsel %vm529, %v524, 0.0
  %v1067 = vadd.f32 %v1065, %v1066
  %v1068 = vsel %vm529, %v525, 0.0
  %v1069 = vadd.f32 %v1067, %v1068
  %v1070 = vsel %vm529, %v526, 0.0
  %v1071 = vadd.f32 %v1069, %v1070
  %v1072 = vsel %vm529, %v527, 0.0
  %v1073 = vadd.f32 %v1071, %v1072
  %v1074 = vsel %vm529, %v528, 0.0
  %v1075 = vadd.f32 %v1073, %v1074
  %v1076 = vrot.slane %v1075, 4
  %v1077 = vadd.f32 %v1075, %v1076
  %v1078 = vrot.slane %v1077, 2
  %v1079 = vadd.f32 %v1077, %v1078
  %v1080 = vrot.slane %v1079, 1
  %v1081 = vadd.f32 %v1079, %v1080
  %v1082 = vmul.f32 %v598, 0.00390625
  %v1083 = vmul.f32 %v667, 0.00390625
  %v1084 = vmul.f32 %v736, 0.00390625
  %v1085 = vmul.f32 %v805, 0.00390625
  %v1086 = vmul.f32 %v874, 0.00390625
  %v1087 = vmul.f32 %v943, 0.00390625
  %v1088 = vmul.f32 %v1012, 0.00390625
  %v1089 = vmul.f32 %v1081, 0.00390625
  %vm1098 = vcmask 1041409
  %v1099 = vsel %vm1098, %v1083, %v1082
  %vm1100 = vcmask 1042434
  %v1101 = vsel %vm1100, %v1084, %v1099
  %vm1102 = vcmask 1043459
  %v1103 = vsel %vm1102, %v1085, %v1101
  %vm1104 = vcmask 1044484
  %v1105 = vsel %vm1104, %v1086, %v1103
  %vm1106 = vcmask 1045509
  %v1107 = vsel %vm1106, %v1087, %v1105
  %vm1108 = vcmask 1046534
  %v1109 = vsel %vm1108, %v1088, %v1107
  %vm1110 = vcmask 1047559
  %v1111 = vsel %vm1110, %v1089, %v1109
  %1113 = vst.msk [vmem:[%s3] sm:$0xff] %vm529, %v1111
  %v1114 = vld [vmem:[%s1] sm:$0xf]
  %v1115 = vld [vmem:[%s1 + $0x4] sm:$0xf]
  %v1116 = vld [vmem:[%s1 + $0x8] sm:$0xf]
  %v1117 = vld [vmem:[%s1 + $0xc] sm:$0xf]
  %v1118 = vld [vmem:[%s1 + $0x10] sm:$0xf]
  %v1119 = vld [vmem:[%s1 + $0x14] sm:$0xf]
  %v1120 = vld [vmem:[%s1 + $0x18] sm:$0xf]
  %v1121 = vld [vmem:[%s1 + $0x1c] sm:$0xf]
  %v1122 = vld [vmem:[%s1 + $0x20] sm:$0xf]
  %v1123 = vld [vmem:[%s1 + $0x24] sm:$0xf]
  %v1124 = vld [vmem:[%s1 + $0x28] sm:$0xf]
  %v1125 = vld [vmem:[%s1 + $0x2c] sm:$0xf]
  %v1126 = vld [vmem:[%s1 + $0x30] sm:$0xf]
  %v1127 = vld [vmem:[%s1 + $0x34] sm:$0xf]
  %v1128 = vld [vmem:[%s1 + $0x38] sm:$0xf]
  %v1129 = vld [vmem:[%s1 + $0x3c] sm:$0xf]
  %v1130 = vld [vmem:[%s1 + $0x40] sm:$0xf]
  %v1131 = vld [vmem:[%s1 + $0x44] sm:$0xf]
  %v1132 = vld [vmem:[%s1 + $0x48] sm:$0xf]
  %v1133 = vld [vmem:[%s1 + $0x4c] sm:$0xf]
  %v1134 = vld [vmem:[%s1 + $0x50] sm:$0xf]
  %v1135 = vld [vmem:[%s1 + $0x54] sm:$0xf]
  %v1136 = vld [vmem:[%s1 + $0x58] sm:$0xf]
  %v1137 = vld [vmem:[%s1 + $0x5c] sm:$0xf]
  %v1138 = vld [vmem:[%s1 + $0x60] sm:$0xf]
  %v1139 = vld [vmem:[%s1 + $0x64] sm:$0xf]
  %v1140 = vld [vmem:[%s1 + $0x68] sm:$0xf]
  %v1141 = vld [vmem:[%s1 + $0x6c] sm:$0xf]
  %v1142 = vld [vmem:[%s1 + $0x70] sm:$0xf]
  %v1143 = vld [vmem:[%s1 + $0x74] sm:$0xf]
  %v1144 = vld [vmem:[%s1 + $0x78] sm:$0xf]
  %v1145 = vld [vmem:[%s1 + $0x7c] sm:$0xf]
  %v1146 = vld [vmem:[%s1 + $0x80] sm:$0xf]
  %v1147 = vld [vmem:[%s1 + $0x84] sm:$0xf]
  %v1148 = vld [vmem:[%s1 + $0x88] sm:$0xf]
  %v1149 = vld [vmem:[%s1 + $0x8c] sm:$0xf]
  %v1150 = vld [vmem:[%s1 + $0x90] sm:$0xf]
  %v1151 = vld [vmem:[%s1 + $0x94] sm:$0xf]
  %v1152 = vld [vmem:[%s1 + $0x98] sm:$0xf]
  %v1153 = vld [vmem:[%s1 + $0x9c] sm:$0xf]
  %v1154 = vld [vmem:[%s1 + $0xa0] sm:$0xf]
  %v1155 = vld [vmem:[%s1 + $0xa4] sm:$0xf]
  %v1156 = vld [vmem:[%s1 + $0xa8] sm:$0xf]
  %v1157 = vld [vmem:[%s1 + $0xac] sm:$0xf]
  %v1158 = vld [vmem:[%s1 + $0xb0] sm:$0xf]
  %v1159 = vld [vmem:[%s1 + $0xb4] sm:$0xf]
  %v1160 = vld [vmem:[%s1 + $0xb8] sm:$0xf]
  %v1161 = vld [vmem:[%s1 + $0xbc] sm:$0xf]
  %v1162 = vld [vmem:[%s1 + $0xc0] sm:$0xf]
  %v1163 = vld [vmem:[%s1 + $0xc4] sm:$0xf]
  %v1164 = vld [vmem:[%s1 + $0xc8] sm:$0xf]
  %v1165 = vld [vmem:[%s1 + $0xcc] sm:$0xf]
  %v1166 = vld [vmem:[%s1 + $0xd0] sm:$0xf]
  %v1167 = vld [vmem:[%s1 + $0xd4] sm:$0xf]
  %v1168 = vld [vmem:[%s1 + $0xd8] sm:$0xf]
  %v1169 = vld [vmem:[%s1 + $0xdc] sm:$0xf]
  %v1170 = vld [vmem:[%s1 + $0xe0] sm:$0xf]
  %v1171 = vld [vmem:[%s1 + $0xe4] sm:$0xf]
  %v1172 = vld [vmem:[%s1 + $0xe8] sm:$0xf]
  %v1173 = vld [vmem:[%s1 + $0xec] sm:$0xf]
  %v1174 = vld [vmem:[%s1 + $0xf0] sm:$0xf]
  %v1175 = vld [vmem:[%s1 + $0xf4] sm:$0xf]
  %v1176 = vld [vmem:[%s1 + $0xf8] sm:$0xf]
  %v1177 = vld [vmem:[%s1 + $0xfc] sm:$0xf]
  %v1178 = vunpack.c.l.bf16 %v1114
  %v1179 = vunpack.c.l.bf16 %v1115
  %v1180 = vunpack.c.l.bf16 %v1116
  %v1181 = vunpack.c.l.bf16 %v1117
  %v1182 = vunpack.c.l.bf16 %v1118
  %v1183 = vunpack.c.l.bf16 %v1119
  %v1184 = vunpack.c.l.bf16 %v1120
  %v1185 = vunpack.c.l.bf16 %v1121
  %v1186 = vunpack.c.l.bf16 %v1122
  %v1187 = vunpack.c.l.bf16 %v1123
  %v1188 = vunpack.c.l.bf16 %v1124
  %v1189 = vunpack.c.l.bf16 %v1125
  %v1190 = vunpack.c.l.bf16 %v1126
  %v1191 = vunpack.c.l.bf16 %v1127
  %v1192 = vunpack.c.l.bf16 %v1128
  %v1193 = vunpack.c.l.bf16 %v1129
  %v1194 = vunpack.c.l.bf16 %v1130
  %v1195 = vunpack.c.l.bf16 %v1131
  %v1196 = vunpack.c.l.bf16 %v1132
  %v1197 = vunpack.c.l.bf16 %v1133
  %v1198 = vunpack.c.l.bf16 %v1134
  %v1199 = vunpack.c.l.bf16 %v1135
  %v1200 = vunpack.c.l.bf16 %v1136
  %v1201 = vunpack.c.l.bf16 %v1137
  %v1202 = vunpack.c.l.bf16 %v1138
  %v1203 = vunpack.c.l.bf16 %v1139
  %v1204 = vunpack.c.l.bf16 %v1140
  %v1205 = vunpack.c.l.bf16 %v1141
  %v1206 = vunpack.c.l.bf16 %v1142
  %v1207 = vunpack.c.l.bf16 %v1143
  %v1208 = vunpack.c.l.bf16 %v1144
  %v1209 = vunpack.c.l.bf16 %v1145
  %v1210 = vunpack.c.l.bf16 %v1146
  %v1211 = vunpack.c.l.bf16 %v1147
  %v1212 = vunpack.c.l.bf16 %v1148
  %v1213 = vunpack.c.l.bf16 %v1149
  %v1214 = vunpack.c.l.bf16 %v1150
  %v1215 = vunpack.c.l.bf16 %v1151
  %v1216 = vunpack.c.l.bf16 %v1152
  %v1217 = vunpack.c.l.bf16 %v1153
  %v1218 = vunpack.c.l.bf16 %v1154
  %v1219 = vunpack.c.l.bf16 %v1155
  %v1220 = vunpack.c.l.bf16 %v1156
  %v1221 = vunpack.c.l.bf16 %v1157
  %v1222 = vunpack.c.l.bf16 %v1158
  %v1223 = vunpack.c.l.bf16 %v1159
  %v1224 = vunpack.c.l.bf16 %v1160
  %v1225 = vunpack.c.l.bf16 %v1161
  %v1226 = vunpack.c.l.bf16 %v1162
  %v1227 = vunpack.c.l.bf16 %v1163
  %v1228 = vunpack.c.l.bf16 %v1164
  %v1229 = vunpack.c.l.bf16 %v1165
  %v1230 = vunpack.c.l.bf16 %v1166
  %v1231 = vunpack.c.l.bf16 %v1167
  %v1232 = vunpack.c.l.bf16 %v1168
  %v1233 = vunpack.c.l.bf16 %v1169
  %v1234 = vunpack.c.l.bf16 %v1170
  %v1235 = vunpack.c.l.bf16 %v1171
  %v1236 = vunpack.c.l.bf16 %v1172
  %v1237 = vunpack.c.l.bf16 %v1173
  %v1238 = vunpack.c.l.bf16 %v1174
  %v1239 = vunpack.c.l.bf16 %v1175
  %v1240 = vunpack.c.l.bf16 %v1176
  %v1241 = vunpack.c.l.bf16 %v1177
  %vm1242 = vcmask 130048
  %v1243 = vsel %vm1242, %v1178, 0.0
  %v1244 = vsel %vm1242, %v1179, 0.0
  %v1245 = vadd.f32 %v1243, %v1244
  %v1246 = vsel %vm1242, %v1180, 0.0
  %v1247 = vadd.f32 %v1245, %v1246
  %v1248 = vsel %vm1242, %v1181, 0.0
  %v1249 = vadd.f32 %v1247, %v1248
  %v1250 = vsel %vm1242, %v1182, 0.0
  %v1251 = vadd.f32 %v1249, %v1250
  %v1252 = vsel %vm1242, %v1183, 0.0
  %v1253 = vadd.f32 %v1251, %v1252
  %v1254 = vsel %vm1242, %v1184, 0.0
  %v1255 = vadd.f32 %v1253, %v1254
  %v1256 = vsel %vm1242, %v1185, 0.0
  %v1257 = vadd.f32 %v1255, %v1256
  %v1258 = vrot.slane %v1257, 4
  %v1259 = vadd.f32 %v1257, %v1258
  %v1260 = vrot.slane %v1259, 2
  %v1261 = vadd.f32 %v1259, %v1260
  %v1262 = vrot.slane %v1261, 1
  %v1263 = vadd.f32 %v1261, %v1262
  %v1264 = vsel %vm1242, %v1186, 0.0
  %v1265 = vsel %vm1242, %v1187, 0.0
  %v1266 = vadd.f32 %v1264, %v1265
  %v1267 = vsel %vm1242, %v1188, 0.0
  %v1268 = vadd.f32 %v1266, %v1267
  %v1269 = vsel %vm1242, %v1189, 0.0
  %v1270 = vadd.f32 %v1268, %v1269
  %v1271 = vsel %vm1242, %v1190, 0.0
  %v1272 = vadd.f32 %v1270, %v1271
  %v1273 = vsel %vm1242, %v1191, 0.0
  %v1274 = vadd.f32 %v1272, %v1273
  %v1275 = vsel %vm1242, %v1192, 0.0
  %v1276 = vadd.f32 %v1274, %v1275
  %v1277 = vsel %vm1242, %v1193, 0.0
  %v1278 = vadd.f32 %v1276, %v1277
  %v1279 = vrot.slane %v1278, 4
  %v1280 = vadd.f32 %v1278, %v1279
  %v1281 = vrot.slane %v1280, 2
  %v1282 = vadd.f32 %v1280, %v1281
  %v1283 = vrot.slane %v1282, 1
  %v1284 = vadd.f32 %v1282, %v1283
  %v1285 = vsel %vm1242, %v1194, 0.0
  %v1286 = vsel %vm1242, %v1195, 0.0
  %v1287 = vadd.f32 %v1285, %v1286
  %v1288 = vsel %vm1242, %v1196, 0.0
  %v1289 = vadd.f32 %v1287, %v1288
  %v1290 = vsel %vm1242, %v1197, 0.0
  %v1291 = vadd.f32 %v1289, %v1290
  %v1292 = vsel %vm1242, %v1198, 0.0
  %v1293 = vadd.f32 %v1291, %v1292
  %v1294 = vsel %vm1242, %v1199, 0.0
  %v1295 = vadd.f32 %v1293, %v1294
  %v1296 = vsel %vm1242, %v1200, 0.0
  %v1297 = vadd.f32 %v1295, %v1296
  %v1298 = vsel %vm1242, %v1201, 0.0
  %v1299 = vadd.f32 %v1297, %v1298
  %v1300 = vrot.slane %v1299, 4
  %v1301 = vadd.f32 %v1299, %v1300
  %v1302 = vrot.slane %v1301, 2
  %v1303 = vadd.f32 %v1301, %v1302
  %v1304 = vrot.slane %v1303, 1
  %v1305 = vadd.f32 %v1303, %v1304
  %v1306 = vsel %vm1242, %v1202, 0.0
  %v1307 = vsel %vm1242, %v1203, 0.0
  %v1308 = vadd.f32 %v1306, %v1307
  %v1309 = vsel %vm1242, %v1204, 0.0
  %v1310 = vadd.f32 %v1308, %v1309
  %v1311 = vsel %vm1242, %v1205, 0.0
  %v1312 = vadd.f32 %v1310, %v1311
  %v1313 = vsel %vm1242, %v1206, 0.0
  %v1314 = vadd.f32 %v1312, %v1313
  %v1315 = vsel %vm1242, %v1207, 0.0
  %v1316 = vadd.f32 %v1314, %v1315
  %v1317 = vsel %vm1242, %v1208, 0.0
  %v1318 = vadd.f32 %v1316, %v1317
  %v1319 = vsel %vm1242, %v1209, 0.0
  %v1320 = vadd.f32 %v1318, %v1319
  %v1321 = vrot.slane %v1320, 4
  %v1322 = vadd.f32 %v1320, %v1321
  %v1323 = vrot.slane %v1322, 2
  %v1324 = vadd.f32 %v1322, %v1323
  %v1325 = vrot.slane %v1324, 1
  %v1326 = vadd.f32 %v1324, %v1325
  %v1327 = vsel %vm1242, %v1210, 0.0
  %v1328 = vsel %vm1242, %v1211, 0.0
  %v1329 = vadd.f32 %v1327, %v1328
  %v1330 = vsel %vm1242, %v1212, 0.0
  %v1331 = vadd.f32 %v1329, %v1330
  %v1332 = vsel %vm1242, %v1213, 0.0
  %v1333 = vadd.f32 %v1331, %v1332
  %v1334 = vsel %vm1242, %v1214, 0.0
  %v1335 = vadd.f32 %v1333, %v1334
  %v1336 = vsel %vm1242, %v1215, 0.0
  %v1337 = vadd.f32 %v1335, %v1336
  %v1338 = vsel %vm1242, %v1216, 0.0
  %v1339 = vadd.f32 %v1337, %v1338
  %v1340 = vsel %vm1242, %v1217, 0.0
  %v1341 = vadd.f32 %v1339, %v1340
  %v1342 = vrot.slane %v1341, 4
  %v1343 = vadd.f32 %v1341, %v1342
  %v1344 = vrot.slane %v1343, 2
  %v1345 = vadd.f32 %v1343, %v1344
  %v1346 = vrot.slane %v1345, 1
  %v1347 = vadd.f32 %v1345, %v1346
  %v1348 = vsel %vm1242, %v1218, 0.0
  %v1349 = vsel %vm1242, %v1219, 0.0
  %v1350 = vadd.f32 %v1348, %v1349
  %v1351 = vsel %vm1242, %v1220, 0.0
  %v1352 = vadd.f32 %v1350, %v1351
  %v1353 = vsel %vm1242, %v1221, 0.0
  %v1354 = vadd.f32 %v1352, %v1353
  %v1355 = vsel %vm1242, %v1222, 0.0
  %v1356 = vadd.f32 %v1354, %v1355
  %v1357 = vsel %vm1242, %v1223, 0.0
  %v1358 = vadd.f32 %v1356, %v1357
  %v1359 = vsel %vm1242, %v1224, 0.0
  %v1360 = vadd.f32 %v1358, %v1359
  %v1361 = vsel %vm1242, %v1225, 0.0
  %v1362 = vadd.f32 %v1360, %v1361
  %v1363 = vrot.slane %v1362, 4
  %v1364 = vadd.f32 %v1362, %v1363
  %v1365 = vrot.slane %v1364, 2
  %v1366 = vadd.f32 %v1364, %v1365
  %v1367 = vrot.slane %v1366, 1
  %v1368 = vadd.f32 %v1366, %v1367
  %v1369 = vsel %vm1242, %v1226, 0.0
  %v1370 = vsel %vm1242, %v1227, 0.0
  %v1371 = vadd.f32 %v1369, %v1370
  %v1372 = vsel %vm1242, %v1228, 0.0
  %v1373 = vadd.f32 %v1371, %v1372
  %v1374 = vsel %vm1242, %v1229, 0.0
  %v1375 = vadd.f32 %v1373, %v1374
  %v1376 = vsel %vm1242, %v1230, 0.0
  %v1377 = vadd.f32 %v1375, %v1376
  %v1378 = vsel %vm1242, %v1231, 0.0
  %v1379 = vadd.f32 %v1377, %v1378
  %v1380 = vsel %vm1242, %v1232, 0.0
  %v1381 = vadd.f32 %v1379, %v1380
  %v1382 = vsel %vm1242, %v1233, 0.0
  %v1383 = vadd.f32 %v1381, %v1382
  %v1384 = vrot.slane %v1383, 4
  %v1385 = vadd.f32 %v1383, %v1384
  %v1386 = vrot.slane %v1385, 2
  %v1387 = vadd.f32 %v1385, %v1386
  %v1388 = vrot.slane %v1387, 1
  %v1389 = vadd.f32 %v1387, %v1388
  %v1390 = vsel %vm1242, %v1234, 0.0
  %v1391 = vsel %vm1242, %v1235, 0.0
  %v1392 = vadd.f32 %v1390, %v1391
  %v1393 = vsel %vm1242, %v1236, 0.0
  %v1394 = vadd.f32 %v1392, %v1393
  %v1395 = vsel %vm1242, %v1237, 0.0
  %v1396 = vadd.f32 %v1394, %v1395
  %v1397 = vsel %vm1242, %v1238, 0.0
  %v1398 = vadd.f32 %v1396, %v1397
  %v1399 = vsel %vm1242, %v1239, 0.0
  %v1400 = vadd.f32 %v1398, %v1399
  %v1401 = vsel %vm1242, %v1240, 0.0
  %v1402 = vadd.f32 %v1400, %v1401
  %v1403 = vsel %vm1242, %v1241, 0.0
  %v1404 = vadd.f32 %v1402, %v1403
  %v1405 = vrot.slane %v1404, 4
  %v1406 = vadd.f32 %v1404, %v1405
  %v1407 = vrot.slane %v1406, 2
  %v1408 = vadd.f32 %v1406, %v1407
  %v1409 = vrot.slane %v1408, 1
  %v1410 = vadd.f32 %v1408, %v1409
  %v1411 = vmul.f32 %v1263, 0.015625
  %v1412 = vmul.f32 %v1284, 0.015625
  %v1413 = vmul.f32 %v1305, 0.015625
  %v1414 = vmul.f32 %v1326, 0.015625
  %v1415 = vmul.f32 %v1347, 0.015625
  %v1416 = vmul.f32 %v1368, 0.015625
  %v1417 = vmul.f32 %v1389, 0.015625
  %v1418 = vmul.f32 %v1410, 0.015625
  %v1427 = vsel %vm1098, %v1412, %v1411
  %v1428 = vsel %vm1100, %v1413, %v1427
  %v1429 = vsel %vm1102, %v1414, %v1428
  %v1430 = vsel %vm1104, %v1415, %v1429
  %v1431 = vsel %vm1106, %v1416, %v1430
  %v1432 = vsel %vm1108, %v1417, %v1431
  %v1433 = vsel %vm1110, %v1418, %v1432
  %1435 = vst.msk [vmem:[%s4] sm:$0xff] %vm1242, %v1433
  %v1436 = vld [vmem:[%s2] sm:$0xf]
  %v1437 = vld [vmem:[%s2 + $0x4] sm:$0xf]
  %v1438 = vld [vmem:[%s2 + $0x8] sm:$0xf]
  %v1439 = vld [vmem:[%s2 + $0xc] sm:$0xf]
  %v1440 = vld [vmem:[%s2 + $0x10] sm:$0xf]
  %v1441 = vld [vmem:[%s2 + $0x14] sm:$0xf]
  %v1442 = vld [vmem:[%s2 + $0x18] sm:$0xf]
  %v1443 = vld [vmem:[%s2 + $0x1c] sm:$0xf]
  %v1444 = vld [vmem:[%s2 + $0x20] sm:$0xf]
  %v1445 = vld [vmem:[%s2 + $0x24] sm:$0xf]
  %v1446 = vld [vmem:[%s2 + $0x28] sm:$0xf]
  %v1447 = vld [vmem:[%s2 + $0x2c] sm:$0xf]
  %v1448 = vld [vmem:[%s2 + $0x30] sm:$0xf]
  %v1449 = vld [vmem:[%s2 + $0x34] sm:$0xf]
  %v1450 = vld [vmem:[%s2 + $0x38] sm:$0xf]
  %v1451 = vld [vmem:[%s2 + $0x3c] sm:$0xf]
  %v1452 = vld [vmem:[%s2 + $0x40] sm:$0xf]
  %v1453 = vld [vmem:[%s2 + $0x44] sm:$0xf]
  %v1454 = vld [vmem:[%s2 + $0x48] sm:$0xf]
  %v1455 = vld [vmem:[%s2 + $0x4c] sm:$0xf]
  %v1456 = vld [vmem:[%s2 + $0x50] sm:$0xf]
  %v1457 = vld [vmem:[%s2 + $0x54] sm:$0xf]
  %v1458 = vld [vmem:[%s2 + $0x58] sm:$0xf]
  %v1459 = vld [vmem:[%s2 + $0x5c] sm:$0xf]
  %v1460 = vld [vmem:[%s2 + $0x60] sm:$0xf]
  %v1461 = vld [vmem:[%s2 + $0x64] sm:$0xf]
  %v1462 = vld [vmem:[%s2 + $0x68] sm:$0xf]
  %v1463 = vld [vmem:[%s2 + $0x6c] sm:$0xf]
  %v1464 = vld [vmem:[%s2 + $0x70] sm:$0xf]
  %v1465 = vld [vmem:[%s2 + $0x74] sm:$0xf]
  %v1466 = vld [vmem:[%s2 + $0x78] sm:$0xf]
  %v1467 = vld [vmem:[%s2 + $0x7c] sm:$0xf]
  %v1468 = vunpack.c.l.bf16 %v1436
  %v1469 = vunpack.c.l.bf16 %v1437
  %v1470 = vunpack.c.l.bf16 %v1438
  %v1471 = vunpack.c.l.bf16 %v1439
  %v1472 = vunpack.c.l.bf16 %v1440
  %v1473 = vunpack.c.l.bf16 %v1441
  %v1474 = vunpack.c.l.bf16 %v1442
  %v1475 = vunpack.c.l.bf16 %v1443
  %v1476 = vunpack.c.l.bf16 %v1444
  %v1477 = vunpack.c.l.bf16 %v1445
  %v1478 = vunpack.c.l.bf16 %v1446
  %v1479 = vunpack.c.l.bf16 %v1447
  %v1480 = vunpack.c.l.bf16 %v1448
  %v1481 = vunpack.c.l.bf16 %v1449
  %v1482 = vunpack.c.l.bf16 %v1450
  %v1483 = vunpack.c.l.bf16 %v1451
  %v1484 = vunpack.c.l.bf16 %v1452
  %v1485 = vunpack.c.l.bf16 %v1453
  %v1486 = vunpack.c.l.bf16 %v1454
  %v1487 = vunpack.c.l.bf16 %v1455
  %v1488 = vunpack.c.l.bf16 %v1456
  %v1489 = vunpack.c.l.bf16 %v1457
  %v1490 = vunpack.c.l.bf16 %v1458
  %v1491 = vunpack.c.l.bf16 %v1459
  %v1492 = vunpack.c.l.bf16 %v1460
  %v1493 = vunpack.c.l.bf16 %v1461
  %v1494 = vunpack.c.l.bf16 %v1462
  %v1495 = vunpack.c.l.bf16 %v1463
  %v1496 = vunpack.c.l.bf16 %v1464
  %v1497 = vunpack.c.l.bf16 %v1465
  %v1498 = vunpack.c.l.bf16 %v1466
  %v1499 = vunpack.c.l.bf16 %v1467
  %v1500 = vsel %vm1242, %v1468, 0.0
  %v1501 = vsel %vm1242, %v1469, 0.0
  %v1502 = vadd.f32 %v1500, %v1501
  %v1503 = vsel %vm1242, %v1470, 0.0
  %v1504 = vadd.f32 %v1502, %v1503
  %v1505 = vsel %vm1242, %v1471, 0.0
  %v1506 = vadd.f32 %v1504, %v1505
  %v1507 = vsel %vm1242, %v1472, 0.0
  %v1508 = vadd.f32 %v1506, %v1507
  %v1509 = vsel %vm1242, %v1473, 0.0
  %v1510 = vadd.f32 %v1508, %v1509
  %v1511 = vsel %vm1242, %v1474, 0.0
  %v1512 = vadd.f32 %v1510, %v1511
  %v1513 = vsel %vm1242, %v1475, 0.0
  %v1514 = vadd.f32 %v1512, %v1513
  %v1515 = vrot.slane %v1514, 4
  %v1516 = vadd.f32 %v1514, %v1515
  %v1517 = vrot.slane %v1516, 2
  %v1518 = vadd.f32 %v1516, %v1517
  %v1519 = vrot.slane %v1518, 1
  %v1520 = vadd.f32 %v1518, %v1519
  %v1521 = vsel %vm1242, %v1476, 0.0
  %v1522 = vsel %vm1242, %v1477, 0.0
  %v1523 = vadd.f32 %v1521, %v1522
  %v1524 = vsel %vm1242, %v1478, 0.0
  %v1525 = vadd.f32 %v1523, %v1524
  %v1526 = vsel %vm1242, %v1479, 0.0
  %v1527 = vadd.f32 %v1525, %v1526
  %v1528 = vsel %vm1242, %v1480, 0.0
  %v1529 = vadd.f32 %v1527, %v1528
  %v1530 = vsel %vm1242, %v1481, 0.0
  %v1531 = vadd.f32 %v1529, %v1530
  %v1532 = vsel %vm1242, %v1482, 0.0
  %v1533 = vadd.f32 %v1531, %v1532
  %v1534 = vsel %vm1242, %v1483, 0.0
  %v1535 = vadd.f32 %v1533, %v1534
  %v1536 = vrot.slane %v1535, 4
  %v1537 = vadd.f32 %v1535, %v1536
  %v1538 = vrot.slane %v1537, 2
  %v1539 = vadd.f32 %v1537, %v1538
  %v1540 = vrot.slane %v1539, 1
  %v1541 = vadd.f32 %v1539, %v1540
  %v1542 = vsel %vm1242, %v1484, 0.0
  %v1543 = vsel %vm1242, %v1485, 0.0
  %v1544 = vadd.f32 %v1542, %v1543
  %v1545 = vsel %vm1242, %v1486, 0.0
  %v1546 = vadd.f32 %v1544, %v1545
  %v1547 = vsel %vm1242, %v1487, 0.0
  %v1548 = vadd.f32 %v1546, %v1547
  %v1549 = vsel %vm1242, %v1488, 0.0
  %v1550 = vadd.f32 %v1548, %v1549
  %v1551 = vsel %vm1242, %v1489, 0.0
  %v1552 = vadd.f32 %v1550, %v1551
  %v1553 = vsel %vm1242, %v1490, 0.0
  %v1554 = vadd.f32 %v1552, %v1553
  %v1555 = vsel %vm1242, %v1491, 0.0
  %v1556 = vadd.f32 %v1554, %v1555
  %v1557 = vrot.slane %v1556, 4
  %v1558 = vadd.f32 %v1556, %v1557
  %v1559 = vrot.slane %v1558, 2
  %v1560 = vadd.f32 %v1558, %v1559
  %v1561 = vrot.slane %v1560, 1
  %v1562 = vadd.f32 %v1560, %v1561
  %v1563 = vsel %vm1242, %v1492, 0.0
  %v1564 = vsel %vm1242, %v1493, 0.0
  %v1565 = vadd.f32 %v1563, %v1564
  %v1566 = vsel %vm1242, %v1494, 0.0
  %v1567 = vadd.f32 %v1565, %v1566
  %v1568 = vsel %vm1242, %v1495, 0.0
  %v1569 = vadd.f32 %v1567, %v1568
  %v1570 = vsel %vm1242, %v1496, 0.0
  %v1571 = vadd.f32 %v1569, %v1570
  %v1572 = vsel %vm1242, %v1497, 0.0
  %v1573 = vadd.f32 %v1571, %v1572
  %v1574 = vsel %vm1242, %v1498, 0.0
  %v1575 = vadd.f32 %v1573, %v1574
  %v1576 = vsel %vm1242, %v1499, 0.0
  %v1577 = vadd.f32 %v1575, %v1576
  %v1578 = vrot.slane %v1577, 4
  %v1579 = vadd.f32 %v1577, %v1578
  %v1580 = vrot.slane %v1579, 2
  %v1581 = vadd.f32 %v1579, %v1580
  %v1582 = vrot.slane %v1581, 1
  %v1583 = vadd.f32 %v1581, %v1582
  %v1584 = vmul.f32 %v1520, 0.015625
  %v1585 = vmul.f32 %v1541, 0.015625
  %v1586 = vmul.f32 %v1562, 0.015625
  %v1587 = vmul.f32 %v1583, 0.015625
  %v1592 = vsel %vm1098, %v1585, %v1584
  %v1593 = vsel %vm1100, %v1586, %v1592
  %v1594 = vsel %vm1102, %v1587, %v1593
  %vm1596 = vcmask 125952
  %1597 = vst.msk [vmem:[%s5] sm:$0xf] %vm1596, %v1594
  // Predicated region
  $region14: #{dimpnet_forward.9} parent=0 // pred_check
    _
  $region15: #{dimpnet_forward.9} parent=0 // pred_check_branch
    %1599 = sbr.rel (0) target = $region17
  $region16: #{dimpnet_forward.9} parent=0 // pred_region
    _
  $region17: #{dimpnet_forward.9} parent=0 // pred_fallthru
    _
  // Predicated region
  $region18: #{dimpnet_forward.9} parent=0 // pred_check
    _
  $region19: #{dimpnet_forward.9} parent=0 // pred_check_branch
    %1601 = sbr.rel (0) target = $region21
  $region20: #{dimpnet_forward.9} parent=0 // pred_region
    _
  $region21: #{dimpnet_forward.9} parent=0 // pred_fallthru
    _
  // Predicated region
  $region22: #{dimpnet_forward.9} parent=0 // pred_check
    _
  $region23: #{dimpnet_forward.9} parent=0 // pred_check_branch
    %1603 = sbr.rel (0) target = $region25
  $region24: #{dimpnet_forward.9} parent=0 // pred_region
    _
  $region25: #{dimpnet_forward.9} parent=0 // pred_fallthru
    _
  // Predicated region
  $region26: #{dimpnet_forward.9} parent=0 // pred_check
    _
  $region27: #{dimpnet_forward.9} parent=0 // pred_check_branch
    %1605 = sbr.rel (0) target = $region29
  $region28: #{dimpnet_forward.9} parent=0 // pred_region
    _
  $region29: #{dimpnet_forward.9} parent=0 // pred_fallthru
    _
  // Predicated region
  $region30: #{dimpnet_forward.9} parent=0 // pred_check
    _
  $region31: #{dimpnet_forward.9} parent=0 // pred_check_branch
    %1607 = sbr.rel (0) target = $region33
  $region32: #{dimpnet_forward.9} parent=0 // pred_region
    _
  $region33: #{dimpnet_forward.9} parent=0 // pred_fallthru
    _
  // Predicated region
  $region34: #{dimpnet_forward.9} parent=0 // pred_check
    _
  $region35: #{dimpnet_forward.9} parent=0 // pred_check_branch
    %1609 = sbr.rel (0) target = $region37
  $region36: #{dimpnet_forward.9} parent=0 // pred_region
    _
  $region37: #{dimpnet_forward.9} parent=0 // pred_fallthru
    _

// kernel: dimpnet_forward.10
$region0: #{dimpnet_forward.10}
  #allocation0 [shape = 'u32[]', space=smem, size = 0x4, offset = 0x4, fixed_abs, tag = 'smem constant byte address 0x4 - core index']
  #allocation1 [shape = 'u32[144,128]{1,0:T(1,128)}', space=vmem, size = 0x12000, scoped, tag = 'internal scratch']
  #allocation2 [shape = 'f32[8,128]{1,0:T(8,128)}', space=vmem, size = 0x1000, scoped, tag = 'scratch operand']
  %s0 = inlined_call_operand.vmem [shape: f32[8,72], index: 0, kind: input, shape index: {}]
  %s1 = inlined_call_operand.vmem [shape: bf16[72,128], index: 1, kind: input, shape index: {}]
  %s2 = inlined_call_operand.vmem [shape: f32[1,128], index: 2, kind: input, shape index: {}]
  %s3 = inlined_call_operand.vmem [shape: f32[8,128], index: 3, kind: output, shape index: {}]
  %s4 = sld [smem:[#allocation0]]
  $region30: #{dimpnet_forward.10} parent=0
    _
  %s6 = ssub.s32 1, %s4
  %s7 = scalar_select 0, %s6, %s4
  // Predicated region
  $region2: #{dimpnet_forward.10} parent=0 // pred_check
    _
  $region3: #{dimpnet_forward.10} parent=0 // pred_check_branch
    %9 = sbr.rel (0) target = $region5
  $region4: #{dimpnet_forward.10} parent=0 // pred_region
    _
  $region5: #{dimpnet_forward.10} parent=0 // pred_fallthru
    _
  // Predicated region
  $region6: #{dimpnet_forward.10} parent=0 // pred_check
    _
  $region7: #{dimpnet_forward.10} parent=0 // pred_check_branch
    %11 = sbr.rel (0) target = $region9
  $region8: #{dimpnet_forward.10} parent=0 // pred_region
    _
  $region9: #{dimpnet_forward.10} parent=0 // pred_fallthru
    _
  // Predicated region
  $region10: #{dimpnet_forward.10} parent=0 // pred_check
    _
  $region11: #{dimpnet_forward.10} parent=0 // pred_check_branch
    %13 = sbr.rel (0) target = $region13
  $region12: #{dimpnet_forward.10} parent=0 // pred_region
    _
  $region13: #{dimpnet_forward.10} parent=0 // pred_fallthru
    _
  %p15 = scmp.eq.s32.totalorder 0, 0
  // Predicated region
  $region14: #{dimpnet_forward.10} parent=0 // pred_check
    %p16 = pneg %p15
  $region15: #{dimpnet_forward.10} parent=0 // pred_check_branch
    %18 = sbr.rel (%p16) target = $region17
  $region16: #{dimpnet_forward.10} parent=0 // pred_region
    %19 = vst [vmem:[#allocation2] sm:$0xff] 0.0
  $region17: #{dimpnet_forward.10} parent=0 // pred_fallthru
    _
  %v20 = vld [vmem:[#allocation2] sm:$0xff]
  %v21 = vld [vmem:[%s0] sm:$0xff]
  %v22 = vpack.c.bf16 %v21, %v21
  %v23 = vld [vmem:[%s1] sm:$0xf]
  %v24 = vld [vmem:[%s1 + $0x4] sm:$0xf]
  %v25 = vld [vmem:[%s1 + $0x8] sm:$0xf]
  %v26 = vld [vmem:[%s1 + $0xc] sm:$0xf]
  %v27 = vld [vmem:[%s1 + $0x10] sm:$0xf]
  %v28 = vld [vmem:[%s1 + $0x14] sm:$0xf]
  %v29 = vld [vmem:[%s1 + $0x18] sm:$0xf]
  %v30 = vld [vmem:[%s1 + $0x1c] sm:$0xf]
  %v31 = vld [vmem:[%s1 + $0x20] sm:$0xf]
  %v41 = vunpack.c.l.b16 %v23
  %v42 = vunpack.c.l.b16 %v24
  %v43 = vunpack.c.l.b16 %v25
  %v44 = vunpack.c.l.b16 %v26
  %v45 = vunpack.c.l.b16 %v27
  %v46 = vunpack.c.l.b16 %v28
  %v47 = vunpack.c.l.b16 %v29
  %v48 = vunpack.c.l.b16 %v30
  %v49 = vunpack.c.l.b16 %v31
  %v50 = vpack.c.b16 %v42, %v41
  %v51 = vpack.c.b16 %v44, %v43
  %v52 = vpack.c.b16 %v46, %v45
  %v53 = vpack.c.b16 %v48, %v47
  %v54 = vpack.c.b16 %v49, %v49
  %vm59 = vcmask 588800
  %v61 = vsel %vm59, %v22, 0
  %vm63 = vcmask 1043456
  %v65 = vsel %vm63, %v54, 0
  %67 = vmatprep.subr.bf16.mxu0 0
  %68 = vmatpush1.bf16.msra.mxu0 0
  %69 = vmatprep.subr.bf16.mxu0 0
  %70 = vmatpush1.bf16.msra.mxu0 0
  %71 = vmatprep.subr.bf16.mxu0 0
  %72 = vmatpush1.bf16.msra.mxu0 0
  %73 = vmatprep.subr.bf16.mxu0 0
  %74 = vmatpush1.bf16.msra.mxu0 %v65
  %75 = vmatprep.subr.bf16.mxu0 0
  %76 = vmatpush1.bf16.msra.mxu0 %v53
  %77 = vmatprep.subr.bf16.mxu0 0
  %78 = vmatpush1.bf16.msra.mxu0 %v52
  %79 = vmatprep.subr.bf16.mxu0 0
  %80 = vmatpush1.bf16.msra.mxu0 %v51
  %81 = vmatprep.subr.bf16.mxu0 0
  %82 = vmatpush1.bf16.msra.mxu0 %v50
  %83 = vmatprep.subr.bf16.mxu0 0
  %84 = vmatpush2.bf16.msra.mxu0 0
  %85 = vmatprep.subr.bf16.mxu0 0
  %86 = vmatpush2.bf16.msra.mxu0 0
  %87 = vmatprep.subr.bf16.mxu0 0
  %88 = vmatpush2.bf16.msra.mxu0 0
  %89 = vmatprep.subr.bf16.mxu0 0
  %90 = vmatpush2.bf16.msra.mxu0 0
  %91 = vmatprep.subr.bf16.mxu0 0
  %92 = vmatpush2.bf16.msra.mxu0 0
  %93 = vmatprep.subr.bf16.mxu0 0
  %94 = vmatpush2.bf16.msra.mxu0 0
  %95 = vmatprep.subr.bf16.mxu0 0
  %96 = vmatpush2.bf16.msra.mxu0 0
  %97 = vmatprep.subr.bf16.mxu0 0
  %98 = vmatpush2.bf16.msra.mxu0 0
  %99 = vmatprep.mubr.bf16.mxu0 0
  %100 = vmatmul.mubr.bf16.gmra.mxu0 %v61
  %v101 = vpop.f32.mrf.mxu0
  %v102 = vadd.f32 0.0, %v101
  %v103 = vpop.f32.mrf.mxu0
  %v104 = vpop.f32.mrf.mxu0
  %v105 = vpop.f32.mrf.mxu0
  %106 = vdwg.mxu0
  %v107 = vadd.f32 %v20, %v102
  %108 = vst [vmem:[#allocation2] sm:$0xff] %v107
  // Predicated region
  $region18: #{dimpnet_forward.10} parent=0 // pred_check
    %p109 = pneg %p15
  $region19: #{dimpnet_forward.10} parent=0 // pred_check_branch
    %111 = sbr.rel (%p109) target = $region21
  $region20: #{dimpnet_forward.10} parent=0 // pred_region
    %v112 = vld [vmem:[#allocation2] sm:$0xff]
    %v113 = vld [vmem:[%s2] sm:$0x1]
    %v115 = vlaneseq
    %v116 = vshrl.u32 %v115, 7
    %v117 = vsub.s32 0, %v116
    %v118 = vrot.slane %v113, %v117
    %v120 = vadd.f32 %v112, %v118
    %v121 = vmax.f32 %v120, 0.0
    %122 = vst [vmem:[%s3] sm:$0xff] %v121
  $region21: #{dimpnet_forward.10} parent=0 // pred_fallthru
    _
  // Predicated region
  $region22: #{dimpnet_forward.10} parent=0 // pred_check
    _
  $region23: #{dimpnet_forward.10} parent=0 // pred_check_branch
    %124 = sbr.rel (0) target = $region25
  $region24: #{dimpnet_forward.10} parent=0 // pred_region
    _
  $region25: #{dimpnet_forward.10} parent=0 // pred_fallthru
    _
  // Predicated region
  $region26: #{dimpnet_forward.10} parent=0 // pred_check
    _
  $region27: #{dimpnet_forward.10} parent=0 // pred_check_branch
    %126 = sbr.rel (0) target = $region29
  $region28: #{dimpnet_forward.10} parent=0 // pred_region
    _
  $region29: #{dimpnet_forward.10} parent=0 // pred_fallthru
    _

// kernel: squeeze.3
$region0: #{squeeze.3}
  %s0 = inlined_call_operand.vmem [shape: f32[32], index: 0, kind: input, shape index: {}]
  %s1 = inlined_call_operand.vmem [shape: f32[2,2,8], index: 1, kind: output, shape index: {}]
  $region1: #{squeeze.3} parent=0
    #allocation0 [shape = 'u8[8192]{0}', space=vmem, size = 0x2000, scoped, tag = 'scoped mem for output reshape']
    #allocation1 [shape = 'u8[4096]{0}', space=vmem, size = 0x1000, scoped, tag = 'scoped mem for input reshape']
    %s3 = sshll.u32 1, 1
    %s4 = ssub.s32 %s3, 1
    %v5 = vld [vmem:[%s0] sm:%s4]
    %6 = vst [vmem:[#allocation1] sm:%s4] %v5
    %v7 = vld [vmem:[#allocation1] sm:$0x1]
    %vm8 = vcmask 64512
    %9 = vst.msk [vmem:[#allocation0] sm:$0x1] %vm8, %v7
    %v10 = vld [vmem:[#allocation1] sm:$0x1]
    %11 = vrot.lane.b32.xlu0 %v10, 120
    %v12 = vpop.permute.xlu0 %11
    %vm13 = vcmask 64512
    %s14 = scalar_lea.vmem [#allocation0], 1
    %15 = vst.msk [vmem:[%s14] sm:$0x1] %vm13, %v12
    %v16 = vld [vmem:[#allocation1] sm:$0x1]
    %17 = vrot.lane.b32.xlu0 %v16, 112
    %v18 = vpop.permute.xlu0 %17
    %vm19 = vcmask 64512
    %s20 = scalar_lea.vmem [#allocation0], 8
    %21 = vst.msk [vmem:[%s20] sm:$0x1] %vm19, %v18
    %v22 = vld [vmem:[#allocation1] sm:$0x1]
    %23 = vrot.lane.b32.xlu0 %v22, 104
    %v24 = vpop.permute.xlu0 %23
    %vm25 = vcmask 64512
    %s26 = scalar_lea.vmem [#allocation0], 9
    %27 = vst.msk [vmem:[%s26] sm:$0x1] %vm25, %v24
    %s29 = sshll.u32 1, 2
    %s30 = ssub.s32 %s29, 1
    %v32 = vld [vmem:[#allocation0] sm:%s30]
    %s33 = sshll.u32 1, 2
    %s34 = ssub.s32 %s33, 1
    %35 = vst [vmem:[%s1] sm:%s34] %v32
    %s36 = scalar_lea.vmem [#allocation0], 8
    %v37 = vld [vmem:[%s36] sm:%s30]
    %s38 = sshll.u32 1, 2
    %s39 = ssub.s32 %s38, 1
    %s40 = scalar_lea.vmem %s1, 2
    %41 = vst [vmem:[%s40] sm:%s39] %v37

// kernel: dimpnet_forward.11
$region0: #{dimpnet_forward.11}
  #allocation0 [shape = 'u32[]', space=smem, size = 0x4, offset = 0x4, fixed_abs, tag = 'smem constant byte address 0x4 - core index']
  #allocation1 [shape = 'u32[144,128]{1,0:T(1,128)}', space=vmem, size = 0x12000, scoped, tag = 'internal scratch']
  #allocation2 [shape = 'f32[40,256]{1,0:T(8,128)}', space=vmem, size = 0xa000, scoped, tag = 'scratch operand']
  %s0 = inlined_call_operand.vmem [shape: f32[40,68], index: 0, kind: input, shape index: {}]
  %s1 = inlined_call_operand.vmem [shape: bf16[68,256], index: 1, kind: input, shape index: {}]
  %s2 = inlined_call_operand.vmem [shape: f32[1,256], index: 2, kind: input, shape index: {}]
  %s3 = inlined_call_operand.vmem [shape: f32[40,256], index: 3, kind: output, shape index: {}]
  %s4 = sld [smem:[#allocation0]]
  $region30: #{dimpnet_forward.11} parent=0
    _
  %s6 = ssub.s32 1, %s4
  %s7 = scalar_select 0, %s6, %s4
  // Predicated region
  $region2: #{dimpnet_forward.11} parent=0 // pred_check
    _
  $region3: #{dimpnet_forward.11} parent=0 // pred_check_branch
    %9 = sbr.rel (0) target = $region5
  $region4: #{dimpnet_forward.11} parent=0 // pred_region
    _
  $region5: #{dimpnet_forward.11} parent=0 // pred_fallthru
    _
  // Predicated region
  $region6: #{dimpnet_forward.11} parent=0 // pred_check
    _
  $region7: #{dimpnet_forward.11} parent=0 // pred_check_branch
    %11 = sbr.rel (0) target = $region9
  $region8: #{dimpnet_forward.11} parent=0 // pred_region
    _
  $region9: #{dimpnet_forward.11} parent=0 // pred_fallthru
    _
  // Predicated region
  $region10: #{dimpnet_forward.11} parent=0 // pred_check
    _
  $region11: #{dimpnet_forward.11} parent=0 // pred_check_branch
    %13 = sbr.rel (0) target = $region13
  $region12: #{dimpnet_forward.11} parent=0 // pred_region
    _
  $region13: #{dimpnet_forward.11} parent=0 // pred_fallthru
    _
  %p15 = scmp.eq.s32.totalorder 0, 0
  // Predicated region
  $region14: #{dimpnet_forward.11} parent=0 // pred_check
    %p16 = pneg %p15
  $region15: #{dimpnet_forward.11} parent=0 // pred_check_branch
    %18 = sbr.rel (%p16) target = $region17
  $region16: #{dimpnet_forward.11} parent=0 // pred_region
    %19 = vst [vmem:[#allocation2] sm:$0xff] 0.0
    %20 = vst [vmem:[#allocation2 + $0x8] sm:$0xff] 0.0
    %21 = vst [vmem:[#allocation2 + $0x10] sm:$0xff] 0.0
    %22 = vst [vmem:[#allocation2 + $0x18] sm:$0xff] 0.0
    %23 = vst [vmem:[#allocation2 + $0x20] sm:$0xff] 0.0
    %24 = vst [vmem:[#allocation2 + $0x28] sm:$0xff] 0.0
    %25 = vst [vmem:[#allocation2 + $0x30] sm:$0xff] 0.0
    %26 = vst [vmem:[#allocation2 + $0x38] sm:$0xff] 0.0
    %27 = vst [vmem:[#allocation2 + $0x40] sm:$0xff] 0.0
    %28 = vst [vmem:[#allocation2 + $0x48] sm:$0xff] 0.0
  $region17: #{dimpnet_forward.11} parent=0 // pred_fallthru
    _
  %v29 = vld [vmem:[#allocation2] sm:$0xff]
  %v30 = vld [vmem:[#allocation2 + $0x8] sm:$0xff]
  %v31 = vld [vmem:[#allocation2 + $0x10] sm:$0xff]
  %v32 = vld [vmem:[#allocation2 + $0x18] sm:$0xff]
  %v33 = vld [vmem:[#allocation2 + $0x20] sm:$0xff]
  %v34 = vld [vmem:[#allocation2 + $0x28] sm:$0xff]
  %v35 = vld [vmem:[#allocation2 + $0x30] sm:$0xff]
  %v36 = vld [vmem:[#allocation2 + $0x38] sm:$0xff]
  %v37 = vld [vmem:[#allocation2 + $0x40] sm:$0xff]
  %v38 = vld [vmem:[#allocation2 + $0x48] sm:$0xff]
  %v39 = vld [vmem:[%s0] sm:$0xff]
  %v40 = vld [vmem:[%s0 + $0x8] sm:$0xff]
  %v41 = vld [vmem:[%s0 + $0x10] sm:$0xff]
  %v42 = vld [vmem:[%s0 + $0x18] sm:$0xff]
  %v43 = vld [vmem:[%s0 + $0x20] sm:$0xff]
  %v44 = vpack.c.bf16 %v40, %v39
  %v45 = vpack.c.bf16 %v42, %v41
  %v46 = vpack.c.bf16 %v43, %v43
  %v47 = vld [vmem:[%s1] sm:$0xff]
  %v48 = vld [vmem:[%s1 + $0x8] sm:$0xff]
  %v49 = vld [vmem:[%s1 + $0x10] sm:$0xff]
  %v50 = vld [vmem:[%s1 + $0x18] sm:$0xff]
  %v51 = vld [vmem:[%s1 + $0x20] sm:$0xff]
  %v52 = vld [vmem:[%s1 + $0x28] sm:$0xff]
  %v53 = vld [vmem:[%s1 + $0x30] sm:$0xff]
  %v54 = vld [vmem:[%s1 + $0x38] sm:$0xff]
  %v55 = vld [vmem:[%s1 + $0x40] sm:$0x33]
  %v65 = vunpack.c.l.b16 %v47
  %v66 = vunpack.c.h.b16 %v47
  %v67 = vunpack.c.l.b16 %v48
  %v68 = vunpack.c.h.b16 %v48
  %v69 = vunpack.c.l.b16 %v49
  %v70 = vunpack.c.h.b16 %v49
  %v71 = vunpack.c.l.b16 %v50
  %v72 = vunpack.c.h.b16 %v50
  %v73 = vunpack.c.l.b16 %v51
  %v74 = vunpack.c.h.b16 %v51
  %v75 = vunpack.c.l.b16 %v52
  %v76 = vunpack.c.h.b16 %v52
  %v77 = vunpack.c.l.b16 %v53
  %v78 = vunpack.c.h.b16 %v53
  %v79 = vunpack.c.l.b16 %v54
  %v80 = vunpack.c.h.b16 %v54
  %v81 = vunpack.c.l.b16 %v55
  %v82 = vunpack.c.h.b16 %v55
  %v83 = vpack.c.b16 %v67, %v65
  %v84 = vpack.c.b16 %v68, %v66
  %v85 = vpack.c.b16 %v71, %v69
  %v86 = vpack.c.b16 %v72, %v70
  %v87 = vpack.c.b16 %v75, %v73
  %v88 = vpack.c.b16 %v76, %v74
  %v89 = vpack.c.b16 %v79, %v77
  %v90 = vpack.c.b16 %v80, %v78
  %v91 = vpack.c.b16 %v81, %v81
  %v92 = vpack.c.b16 %v82, %v82
  %vm101 = vcmask 556032
  %v103 = vsel %vm101, %v44, 0
  %v106 = vsel %vm101, %v45, 0
  %v109 = vsel %vm101, %v46, 0
  %vm111 = vcmask 1041408
  %v113 = vsel %vm111, %v91, 0
  %v116 = vsel %vm111, %v92, 0
  %118 = vmatprep.subr.bf16.mxu0 0
  %119 = vmatpush1.bf16.msra.mxu0 0
  %120 = vmatprep.subr.bf16.mxu0 0
  %121 = vmatpush1.bf16.msra.mxu0 0
  %122 = vmatprep.subr.bf16.mxu0 0
  %123 = vmatpush1.bf16.msra.mxu0 0
  %124 = vmatprep.subr.bf16.mxu0 %v116
  %125 = vmatpush1.bf16.msra.mxu0 %v113
  %126 = vmatprep.subr.bf16.mxu0 %v90
  %127 = vmatpush1.bf16.msra.mxu0 %v89
  %128 = vmatprep.subr.bf16.mxu0 %v88
  %129 = vmatpush1.bf16.msra.mxu0 %v87
  %130 = vmatprep.subr.bf16.mxu0 %v86
  %131 = vmatpush1.bf16.msra.mxu0 %v85
  %132 = vmatprep.subr.bf16.mxu0 %v84
  %133 = vmatpush1.bf16.msra.mxu0 %v83
  %134 = vmatprep.subr.bf16.mxu0 0
  %135 = vmatpush2.bf16.msra.mxu0 0
  %136 = vmatprep.subr.bf16.mxu0 0
  %137 = vmatpush2.bf16.msra.mxu0 0
  %138 = vmatprep.subr.bf16.mxu0 0
  %139 = vmatpush2.bf16.msra.mxu0 0
  %140 = vmatprep.subr.bf16.mxu0 0
  %141 = vmatpush2.bf16.msra.mxu0 0
  %142 = vmatprep.subr.bf16.mxu0 0
  %143 = vmatpush2.bf16.msra.mxu0 0
  %144 = vmatprep.subr.bf16.mxu0 0
  %145 = vmatpush2.bf16.msra.mxu0 0
  %146 = vmatprep.subr.bf16.mxu0 0
  %147 = vmatpush2.bf16.msra.mxu0 0
  %148 = vmatprep.subr.bf16.mxu0 0
  %149 = vmatpush2.bf16.msra.mxu0 0
  %150 = vmatprep.mubr.bf16.mxu0 0
  %151 = vmatmul.mubr.bf16.gmra.mxu0 %v103
  %v152 = vpop.f32.mrf.mxu0
  %v153 = vadd.f32 0.0, %v152
  %v154 = vpop.f32.mrf.mxu0
  %v155 = vadd.f32 0.0, %v154
  %v156 = vpop.f32.mrf.mxu0
  %v157 = vadd.f32 0.0, %v156
  %v158 = vpop.f32.mrf.mxu0
  %v159 = vadd.f32 0.0, %v158
  %160 = vmatprep.mubr.bf16.mxu0 0
  %161 = vmatmul.mubr.bf16.gmra.mxu0 %v106
  %v162 = vpop.f32.mrf.mxu0
  %v163 = vadd.f32 0.0, %v162
  %v164 = vpop.f32.mrf.mxu0
  %v165 = vadd.f32 0.0, %v164
  %v166 = vpop.f32.mrf.mxu0
  %v167 = vadd.f32 0.0, %v166
  %v168 = vpop.f32.mrf.mxu0
  %v169 = vadd.f32 0.0, %v168
  %170 = vmatprep.mubr.bf16.mxu0 0
  %171 = vmatmul.mubr.bf16.gmra.mxu0 %v109
  %v172 = vpop.f32.mrf.mxu0
  %v173 = vadd.f32 0.0, %v172
  %v174 = vpop.f32.mrf.mxu0
  %v175 = vadd.f32 0.0, %v174
  %v176 = vpop.f32.mrf.mxu0
  %v177 = vpop.f32.mrf.mxu0
  %178 = vdwg.mxu0
  %v179 = vadd.f32 %v29, %v153
  %v180 = vadd.f32 %v30, %v155
  %v181 = vadd.f32 %v31, %v157
  %v182 = vadd.f32 %v32, %v159
  %v183 = vadd.f32 %v33, %v163
  %v184 = vadd.f32 %v34, %v165
  %v185 = vadd.f32 %v35, %v167
  %v186 = vadd.f32 %v36, %v169
  %v187 = vadd.f32 %v37, %v173
  %v188 = vadd.f32 %v38, %v175
  %189 = vst [vmem:[#allocation2] sm:$0xff] %v179
  %190 = vst [vmem:[#allocation2 + $0x8] sm:$0xff] %v180
  %191 = vst [vmem:[#allocation2 + $0x10] sm:$0xff] %v181
  %192 = vst [vmem:[#allocation2 + $0x18] sm:$0xff] %v182
  %193 = vst [vmem:[#allocation2 + $0x20] sm:$0xff] %v183
  %194 = vst [vmem:[#allocation2 + $0x28] sm:$0xff] %v184
  %195 = vst [vmem:[#allocation2 + $0x30] sm:$0xff] %v185
  %196 = vst [vmem:[#allocation2 + $0x38] sm:$0xff] %v186
  %197 = vst [vmem:[#allocation2 + $0x40] sm:$0xff] %v187
  %198 = vst [vmem:[#allocation2 + $0x48] sm:$0xff] %v188
  // Predicated region
  $region18: #{dimpnet_forward.11} parent=0 // pred_check
    %p199 = pneg %p15
  $region19: #{dimpnet_forward.11} parent=0 // pred_check_branch
    %201 = sbr.rel (%p199) target = $region21
  $region20: #{dimpnet_forward.11} parent=0 // pred_region
    %v202 = vld [vmem:[#allocation2] sm:$0xff]
    %v203 = vld [vmem:[#allocation2 + $0x8] sm:$0xff]
    %v204 = vld [vmem:[#allocation2 + $0x10] sm:$0xff]
    %v205 = vld [vmem:[#allocation2 + $0x18] sm:$0xff]
    %v206 = vld [vmem:[#allocation2 + $0x20] sm:$0xff]
    %v207 = vld [vmem:[#allocation2 + $0x28] sm:$0xff]
    %v208 = vld [vmem:[#allocation2 + $0x30] sm:$0xff]
    %v209 = vld [vmem:[#allocation2 + $0x38] sm:$0xff]
    %v210 = vld [vmem:[#allocation2 + $0x40] sm:$0xff]
    %v211 = vld [vmem:[#allocation2 + $0x48] sm:$0xff]
    %v212 = vld [vmem:[%s2] sm:$0x3]
    %v214 = vlaneseq
    %v215 = vshrl.u32 %v214, 7
    %v216 = vsub.s32 0, %v215
    %v217 = vrot.slane %v212, %v216
    %v218 = vlaneseq
    %v219 = vshrl.u32 %v218, 7
    %v220 = vsub.s32 1, %v219
    %v221 = vrot.slane %v212, %v220
    %v224 = vadd.f32 %v202, %v217
    %v225 = vadd.f32 %v203, %v221
    %v226 = vadd.f32 %v204, %v217
    %v227 = vadd.f32 %v205, %v221
    %v228 = vadd.f32 %v206, %v217
    %v229 = vadd.f32 %v207, %v221
    %v230 = vadd.f32 %v208, %v217
    %v231 = vadd.f32 %v209, %v221
    %v232 = vadd.f32 %v210, %v217
    %v233 = vadd.f32 %v211, %v221
    %234 = vst [vmem:[%s3] sm:$0xff] %v224
    %235 = vst [vmem:[%s3 + $0x8] sm:$0xff] %v225
    %236 = vst [vmem:[%s3 + $0x10] sm:$0xff] %v226
    %237 = vst [vmem:[%s3 + $0x18] sm:$0xff] %v227
    %238 = vst [vmem:[%s3 + $0x20] sm:$0xff] %v228
    %239 = vst [vmem:[%s3 + $0x28] sm:$0xff] %v229
    %240 = vst [vmem:[%s3 + $0x30] sm:$0xff] %v230
    %241 = vst [vmem:[%s3 + $0x38] sm:$0xff] %v231
    %242 = vst [vmem:[%s3 + $0x40] sm:$0xff] %v232
    %243 = vst [vmem:[%s3 + $0x48] sm:$0xff] %v233
  $region21: #{dimpnet_forward.11} parent=0 // pred_fallthru
    _
  // Predicated region
  $region22: #{dimpnet_forward.11} parent=0 // pred_check
    _
  $region23: #{dimpnet_forward.11} parent=0 // pred_check_branch
    %245 = sbr.rel (0) target = $region25
  $region24: #{dimpnet_forward.11} parent=0 // pred_region
    _
  $region25: #{dimpnet_forward.11} parent=0 // pred_fallthru
    _
  // Predicated region
  $region26: #{dimpnet_forward.11} parent=0 // pred_check
    _
  $region27: #{dimpnet_forward.11} parent=0 // pred_check_branch
    %247 = sbr.rel (0) target = $region29
  $region28: #{dimpnet_forward.11} parent=0 // pred_region
    _
  $region29: #{dimpnet_forward.11} parent=0 // pred_fallthru
    _

</llo_original>
